<compile_context>
chip_gen: v7x
topology: tpu7x:2x2x1
jax: 0.10.0
libtpu: 0.0.40
codegen_flags: <defaults>
</compile_context>

<pallas_src>
import math
import numpy as np
import jax
import jax.numpy as jnp
from jax.experimental import pallas as pl
from jax.experimental.pallas import tpu as pltpu

# ------------------------- small synthetic ViT-MAE config -------------------
BATCH = 2
CHANNELS = 3
IMAGE_SIZE = (32, 32)
PATCH = 8
HIDDEN = 32
NUM_HEADS = 4
HEAD_DIM = HIDDEN // NUM_HEADS
MLP = 4 * HIDDEN
NUM_LAYERS = 4
NUM_USED_LAYERS = NUM_LAYERS - 1      # hidden_states[num_layers-1] == after L-1 blocks
LN_EPS = 1e-12                        # HF ViTConfig.layer_norm_eps default
FEAT_H = IMAGE_SIZE[0] // PATCH
FEAT_W = IMAGE_SIZE[1] // PATCH
NUM_PATCHES = FEAT_H * FEAT_W         # 16
SEQ = NUM_PATCHES + 1                 # 17 (+cls token)
SEQ_PAD = 24                          # pad to a multiple of 8 (f32 sublanes)
ROWS = BATCH * SEQ_PAD                # 48 flattened token rows
NEG = -1e30


# ------------------------- fixed 2D sin-cos position embeddings -------------
def _get_1d_sincos(embed_dim, pos):
    omega = np.arange(embed_dim // 2, dtype=np.float64)
    omega /= embed_dim / 2.0
    omega = 1.0 / 10000 ** omega
    out = np.einsum("m,d->md", pos.reshape(-1), omega)
    return np.concatenate([np.sin(out), np.cos(out)], axis=1)


def get_2d_sincos_pos_embed(embed_dim, grid_size, add_cls_token=False):
    gh, gw = grid_size
    grid_h = np.arange(gh, dtype=np.float64)
    grid_w = np.arange(gw, dtype=np.float64)
    grid = np.stack(np.meshgrid(grid_w, grid_h), axis=0).reshape([2, 1, gh, gw])
    emb_h = _get_1d_sincos(embed_dim // 2, grid[0])
    emb_w = _get_1d_sincos(embed_dim // 2, grid[1])
    pos = np.concatenate([emb_h, emb_w], axis=1)
    if add_cls_token:
        pos = np.concatenate([np.zeros([1, embed_dim]), pos], axis=0)
    return pos.astype(np.float32)


# ------------------------- fused Pallas kernel -------------------------------
def _layer_norm(x, g, b):
    mean = jnp.mean(x, axis=-1, keepdims=True)
    var = jnp.mean(jnp.square(x - mean), axis=-1, keepdims=True)
    return (x - mean) * jax.lax.rsqrt(var + LN_EPS) * g + b


def _gelu(x):
    # TODO(synk): HF ViT uses exact (erf) GELU; tanh approximation used here.
    return 0.5 * x * (1.0 + jnp.tanh(0.7978845608028654 * (x + 0.044715 * x * x * x)))


def mae_fused_kernel(
    patches_ref, pw_ref, pb_ref, pos_ref, cls_ref, mask_ref,
    ln1g_ref, ln1b_ref, wqkv_ref, bqkv_ref, wo_ref, bo_ref,
    ln2g_ref, ln2b_ref, w1_ref, b1_ref, w2_ref, b2_ref,
    out_ref,
    buf_ref,            # VMEM scratch (ROWS, HIDDEN): token assembly + per-head ctx
):
    # ---- patch embedding (Conv2d folded to a matmul) + position embedding ----
    tok = (
        jnp.dot(patches_ref[...], pw_ref[...], preferred_element_type=jnp.float32)
        + pb_ref[...]
        + pos_ref[...]
    )                                                          # (B*N, D)

    # ---- assemble padded sequence; per batch block: rows [0,N)=patches,
    #      row N = cls token (position-embedded), rows [N+1, SEQ_PAD) = zero pad.
    buf_ref[...] = jnp.zeros_like(buf_ref)
    for b in range(BATCH):
        base = b * SEQ_PAD
        buf_ref[base:base + NUM_PATCHES, :] = tok[b * NUM_PATCHES:(b + 1) * NUM_PATCHES, :]
        buf_ref[base + NUM_PATCHES:base + NUM_PATCHES + 1, :] = cls_ref[...]
    x = buf_ref[...]                                           # (ROWS, D)

    mask = mask_ref[...]                                       # (ROWS, ROWS)
    scale = 1.0 / math.sqrt(HEAD_DIM)

    for l in range(NUM_USED_LAYERS):                           # static unroll
        # --- self attention (pre-LN); both batch elements share one matmul
        #     per head thanks to the block-diagonal additive mask.
        h = _layer_norm(x, ln1g_ref[l], ln1b_ref[l])
        qkv = jnp.dot(h, wqkv_ref[l], preferred_element_type=jnp.float32) + bqkv_ref[l]
        q = qkv[:, :HIDDEN] * scale                            # fold 1/sqrt(dh) into Q
        k = qkv[:, HIDDEN:2 * HIDDEN]
        v = qkv[:, 2 * HIDDEN:]
        for hd in range(NUM_HEADS):
            sl = slice(hd * HEAD_DIM, (hd + 1) * HEAD_DIM)
            s = jax.lax.dot_general(
                q[:, sl], k[:, sl], (((1,), (1,)), ((), ())),
                preferred_element_type=jnp.float32,
            ) + mask                                           # (ROWS, ROWS)
            s = s - jnp.max(s, axis=-1, keepdims=True)
            p = jnp.exp(s)
            p = p * pl.reciprocal(jnp.sum(p, axis=-1, keepdims=True), approx=True)
            # write head context straight into the shared scratch (no lane concat)
            buf_ref[:, sl] = jnp.dot(p, v[:, sl], preferred_element_type=jnp.float32)
        ctx = buf_ref[...]
        x = x + jnp.dot(ctx, wo_ref[l], preferred_element_type=jnp.float32) + bo_ref[l]

        # --- MLP (pre-LN) ---
        h2 = _layer_norm(x, ln2g_ref[l], ln2b_ref[l])
        m = _gelu(jnp.dot(h2, w1_ref[l], preferred_element_type=jnp.float32) + b1_ref[l])
        x = x + jnp.dot(m, w2_ref[l], preferred_element_type=jnp.float32) + b2_ref[l]

    # ---- emit patch-token features (cls + pad rows dropped) ----
    for b in range(BATCH):
        out_ref[b * NUM_PATCHES:(b + 1) * NUM_PATCHES, :] = (
            x[b * SEQ_PAD:b * SEQ_PAD + NUM_PATCHES, :]
        )


# ------------------------- deterministic parameter init ---------------------
def init_params(key):
    cnt = [0]

    def nrm(shape):
        cnt[0] += 1
        return jax.random.normal(jax.random.fold_in(key, cnt[0]), shape, jnp.float32) * 0.02

    params = {
        # Conv2d(C, D, kernel=stride=PATCH) folded into a matmul weight.
        "patch_w": nrm((CHANNELS * PATCH * PATCH, HIDDEN)),
        "patch_b": nrm((1, HIDDEN)),
        "cls_token": nrm((1, 1, HIDDEN)),
        "pos_embed": jnp.asarray(
            get_2d_sincos_pos_embed(HIDDEN, (FEAT_H, FEAT_W), add_cls_token=True)
        ),                                                     # (1+N, D)
        "layers": [],
    }
    for _ in range(NUM_LAYERS):
        layer = (
            jnp.ones((1, HIDDEN), jnp.float32), nrm((1, HIDDEN)),   # ln1 gamma/beta
            nrm((HIDDEN, HIDDEN)), nrm((1, HIDDEN)),                # wq, bq
            nrm((HIDDEN, HIDDEN)), nrm((1, HIDDEN)),                # wk, bk
            nrm((HIDDEN, HIDDEN)), nrm((1, HIDDEN)),                # wv, bv
            nrm((HIDDEN, HIDDEN)), nrm((1, HIDDEN)),                # wo, bo
            jnp.ones((1, HIDDEN), jnp.float32), nrm((1, HIDDEN)),   # ln2 gamma/beta
            nrm((HIDDEN, MLP)), nrm((1, MLP)),                      # mlp fc1
            nrm((MLP, HIDDEN)), nrm((1, HIDDEN)),                   # mlp fc2
        )
        params["layers"].append(layer)
    return params


# ------------------------- MAE forward ('dense' output, layer=-1) -----------
def mae_forward(images, params):
    B, C, H, W = images.shape
    assert (B, C, H, W) == (BATCH, CHANNELS, IMAGE_SIZE[0], IMAGE_SIZE[1])
    fh, fw = H // PATCH, W // PATCH
    n = fh * fw

    # Patch extraction glue: NCHW -> (B*N, C*P*P) in Conv2d weight-flattening order.
    patches = images.reshape(B, C, fh, PATCH, fw, PATCH)
    patches = patches.transpose(0, 2, 4, 1, 3, 5).reshape(B * n, C * PATCH * PATCH)

    pos = params["pos_embed"]                        # (1+N, D)
    pos_tiled = jnp.tile(pos[1:], (B, 1))            # (B*N, D), per-batch patch pos
    cls_pos = params["cls_token"].reshape(1, HIDDEN) + pos[:1]

    # Additive attention mask: key must be in the same padded batch block and a
    # valid (non-pad) position.  0 where allowed, -1e30 where masked.
    idx = np.arange(ROWS)
    same_batch = (idx[:, None] // SEQ_PAD) == (idx[None, :] // SEQ_PAD)
    valid_key = (idx[None, :] % SEQ_PAD) < SEQ
    mask = jnp.asarray(np.where(same_batch & valid_key, 0.0, NEG).astype(np.float32))

    # Stack only the encoder blocks whose output the MAE wrapper consumes.
    used = params["layers"][:NUM_USED_LAYERS]
    stk = lambda i: jnp.stack([lyr[i] for lyr in used], axis=0)
    ln1g, ln1b = stk(0), stk(1)
    wqkv = jnp.stack([jnp.concatenate([lyr[2], lyr[4], lyr[6]], axis=1) for lyr in used], 0)
    bqkv = jnp.stack([jnp.concatenate([lyr[3], lyr[5], lyr[7]], axis=1) for lyr in used], 0)
    wo, bo = stk(8), stk(9)
    ln2g, ln2b = stk(10), stk(11)
    w1, b1, w2, b2 = stk(12), stk(13), stk(14), stk(15)

    out = pl.pallas_call(
        mae_fused_kernel,
        out_shape=jax.ShapeDtypeStruct((B * n, HIDDEN), jnp.float32),
        scratch_shapes=[pltpu.VMEM((ROWS, HIDDEN), jnp.float32)],
    )(patches, params["patch_w"], params["patch_b"], pos_tiled, cls_pos, mask,
      ln1g, ln1b, wqkv, bqkv, wo, bo, ln2g, ln2b, w1, b1, w2, b2)

    # tokens_to_output('dense'): (B, N, D) -> (B, D, fh, fw)
    return out.reshape(B, fh, fw, HIDDEN).transpose(0, 3, 1, 2)


mae_forward_jit = jax.jit(mae_forward)


# ------------------------- main ----------------------------------------------
if __name__ == "__main__":
    key = jax.random.PRNGKey(0)
    k_img, k_par = jax.random.split(key)
    images = jax.random.normal(
        k_img, (BATCH, CHANNELS, IMAGE_SIZE[0], IMAGE_SIZE[1]), jnp.float32
    )
    params = init_params(k_par)

    out = jax.block_until_ready(mae_forward_jit(images, params))

    assert out.shape == (BATCH, HIDDEN, FEAT_H, FEAT_W), out.shape
    assert bool(jnp.all(jnp.isfinite(out)))
    print("KERNEL_OK")
</pallas_src>

<mosaic_0001>
module attributes {stable_mosaic.version = 11 : i64} {
  func.func @mae_fused_kernel(%arg0: memref<32x192xf32, #tpu.memory_space<vmem>>, %arg1: memref<192x32xf32, #tpu.memory_space<vmem>>, %arg2: memref<1x32xf32, #tpu.memory_space<vmem>>, %arg3: memref<32x32xf32, #tpu.memory_space<vmem>>, %arg4: memref<1x32xf32, #tpu.memory_space<vmem>>, %arg5: memref<48x48xf32, #tpu.memory_space<vmem>>, %arg6: memref<3x1x32xf32, #tpu.memory_space<vmem>>, %arg7: memref<3x1x32xf32, #tpu.memory_space<vmem>>, %arg8: memref<3x32x96xf32, #tpu.memory_space<vmem>>, %arg9: memref<3x1x96xf32, #tpu.memory_space<vmem>>, %arg10: memref<3x32x32xf32, #tpu.memory_space<vmem>>, %arg11: memref<3x1x32xf32, #tpu.memory_space<vmem>>, %arg12: memref<3x1x32xf32, #tpu.memory_space<vmem>>, %arg13: memref<3x1x32xf32, #tpu.memory_space<vmem>>, %arg14: memref<3x32x128xf32, #tpu.memory_space<vmem>>, %arg15: memref<3x1x128xf32, #tpu.memory_space<vmem>>, %arg16: memref<3x128x32xf32, #tpu.memory_space<vmem>>, %arg17: memref<3x1x32xf32, #tpu.memory_space<vmem>>, %arg18: memref<32x32xf32, #tpu.memory_space<vmem>>, %arg19: memref<48x32xf32, #tpu.memory_space<vmem>>) attributes {dimension_semantics = [], scalar_prefetch = 0 : i64, scratch_operands = 1 : i64, tpu.core_type = #tpu.core_type<tc>} {
    %c0 = arith.constant 0 : index
    %c0_0 = arith.constant 0 : index
    %0 = vector.load %arg0[%c0, %c0_0] : memref<32x192xf32, #tpu.memory_space<vmem>>, vector<32x192xf32>
    %c0_1 = arith.constant 0 : index
    %c0_2 = arith.constant 0 : index
    %1 = vector.load %arg1[%c0_1, %c0_2] : memref<192x32xf32, #tpu.memory_space<vmem>>, vector<192x32xf32>
    %cst = arith.constant dense<0.000000e+00> : vector<32x32xf32>
    %2 = tpu.matmul %0, %1, %cst {dimension_numbers = #tpu.dot_dimension_numbers<[1], [0], [0], [1], [0, 0, 1, 1], [], []>} : vector<32x192xf32>, vector<192x32xf32>, vector<32x32xf32> -> vector<32x32xf32>
    %c0_3 = arith.constant 0 : index
    %c0_4 = arith.constant 0 : index
    %3 = vector.load %arg2[%c0_3, %c0_4] : memref<1x32xf32, #tpu.memory_space<vmem>>, vector<1x32xf32>
    %4 = vector.broadcast %3 : vector<1x32xf32> to vector<32x32xf32>
    %5 = arith.addf %2, %4 : vector<32x32xf32>
    %c0_5 = arith.constant 0 : index
    %c0_6 = arith.constant 0 : index
    %6 = vector.load %arg3[%c0_5, %c0_6] : memref<32x32xf32, #tpu.memory_space<vmem>>, vector<32x32xf32>
    %7 = arith.addf %5, %6 : vector<32x32xf32>
    %cst_7 = arith.constant 0.000000e+00 : f32
    %8 = vector.broadcast %cst_7 : f32 to vector<48x32xf32>
    %c0_8 = arith.constant 0 : index
    %c0_9 = arith.constant 0 : index
    %9 = vector.load %arg19[%c0_8, %c0_9] : memref<48x32xf32, #tpu.memory_space<vmem>>, vector<48x32xf32>
    tpu.vector_store %arg19[%c0_8, %c0_9], %8 {strides = array<i32>} : memref<48x32xf32, #tpu.memory_space<vmem>>, vector<48x32xf32>,
    %10 = vector.extract_strided_slice %7 {offsets = [0, 0], sizes = [16, 32], strides = [1, 1]} : vector<32x32xf32> to vector<16x32xf32>
    %c0_10 = arith.constant 0 : index
    %c0_11 = arith.constant 0 : index
    %11 = vector.load %arg19[%c0_10, %c0_11] : memref<48x32xf32, #tpu.memory_space<vmem>>, vector<16x32xf32>
    tpu.vector_store %arg19[%c0_10, %c0_11], %10 {strides = array<i32>} : memref<48x32xf32, #tpu.memory_space<vmem>>, vector<16x32xf32>,
    %c0_12 = arith.constant 0 : index
    %c0_13 = arith.constant 0 : index
    %12 = vector.load %arg4[%c0_12, %c0_13] : memref<1x32xf32, #tpu.memory_space<vmem>>, vector<1x32xf32>
    %c16 = arith.constant 16 : index
    %c0_14 = arith.constant 0 : index
    %13 = vector.load %arg19[%c16, %c0_14] : memref<48x32xf32, #tpu.memory_space<vmem>>, vector<1x32xf32>
    tpu.vector_store %arg19[%c16, %c0_14], %12 {strides = array<i32>} : memref<48x32xf32, #tpu.memory_space<vmem>>, vector<1x32xf32>,
    %14 = vector.extract_strided_slice %7 {offsets = [16, 0], sizes = [16, 32], strides = [1, 1]} : vector<32x32xf32> to vector<16x32xf32>
    %c24 = arith.constant 24 : index
    %c0_15 = arith.constant 0 : index
    %15 = vector.load %arg19[%c24, %c0_15] : memref<48x32xf32, #tpu.memory_space<vmem>>, vector<16x32xf32>
    tpu.vector_store %arg19[%c24, %c0_15], %14 {strides = array<i32>} : memref<48x32xf32, #tpu.memory_space<vmem>>, vector<16x32xf32>,
    %c0_16 = arith.constant 0 : index
    %c0_17 = arith.constant 0 : index
    %16 = vector.load %arg4[%c0_16, %c0_17] : memref<1x32xf32, #tpu.memory_space<vmem>>, vector<1x32xf32>
    %c40 = arith.constant 40 : index
    %c0_18 = arith.constant 0 : index
    %17 = vector.load %arg19[%c40, %c0_18] : memref<48x32xf32, #tpu.memory_space<vmem>>, vector<1x32xf32>
    tpu.vector_store %arg19[%c40, %c0_18], %16 {strides = array<i32>} : memref<48x32xf32, #tpu.memory_space<vmem>>, vector<1x32xf32>,
    %c0_19 = arith.constant 0 : index
    %c0_20 = arith.constant 0 : index
    %18 = vector.load %arg19[%c0_19, %c0_20] : memref<48x32xf32, #tpu.memory_space<vmem>>, vector<48x32xf32>
    %c0_21 = arith.constant 0 : index
    %c0_22 = arith.constant 0 : index
    %19 = vector.load %arg5[%c0_21, %c0_22] : memref<48x48xf32, #tpu.memory_space<vmem>>, vector<48x48xf32>
    %c0_23 = arith.constant 0 : index
    %c0_24 = arith.constant 0 : index
    %c0_25 = arith.constant 0 : index
    %20 = vector.load %arg6[%c0_23, %c0_24, %c0_25] : memref<3x1x32xf32, #tpu.memory_space<vmem>>, vector<1x1x32xf32>
    %21 = vector.shape_cast %20 : vector<1x1x32xf32> to vector<1x32xf32>
    %c0_26 = arith.constant 0 : index
    %c0_27 = arith.constant 0 : index
    %c0_28 = arith.constant 0 : index
    %22 = vector.load %arg7[%c0_26, %c0_27, %c0_28] : memref<3x1x32xf32, #tpu.memory_space<vmem>>, vector<1x1x32xf32>
    %23 = vector.shape_cast %22 : vector<1x1x32xf32> to vector<1x32xf32>
    %cst_29 = arith.constant dense<0.000000e+00> : vector<48xf32>
    %24 = vector.multi_reduction <add>, %18, %cst_29 [1] : vector<48x32xf32> to vector<48xf32>
    %25 = vector.shape_cast %24 : vector<48xf32> to vector<48x1xf32>
    %cst_30 = arith.constant 3.200000e+01 : f32
    %26 = vector.broadcast %cst_30 : f32 to vector<48x1xf32>
    %27 = arith.divf %25, %26 : vector<48x1xf32>
    %28 = vector.broadcast %27 : vector<48x1xf32> to vector<48x32xf32>
    %29 = arith.subf %18, %28 : vector<48x32xf32>
    %30 = arith.mulf %29, %29 : vector<48x32xf32>
    %cst_31 = arith.constant dense<0.000000e+00> : vector<48xf32>
    %31 = vector.multi_reduction <add>, %30, %cst_31 [1] : vector<48x32xf32> to vector<48xf32>
    %32 = vector.shape_cast %31 : vector<48xf32> to vector<48x1xf32>
    %cst_32 = arith.constant 3.200000e+01 : f32
    %33 = vector.broadcast %cst_32 : f32 to vector<48x1xf32>
    %34 = arith.divf %32, %33 : vector<48x1xf32>
    %35 = vector.broadcast %27 : vector<48x1xf32> to vector<48x32xf32>
    %36 = arith.subf %18, %35 : vector<48x32xf32>
    %cst_33 = arith.constant 9.99999996E-13 : f32
    %37 = vector.broadcast %cst_33 : f32 to vector<48x1xf32>
    %38 = arith.addf %34, %37 : vector<48x1xf32>
    %39 = math.rsqrt %38 : vector<48x1xf32>
    %40 = vector.broadcast %39 : vector<48x1xf32> to vector<48x32xf32>
    %41 = arith.mulf %36, %40 : vector<48x32xf32>
    %42 = vector.broadcast %21 : vector<1x32xf32> to vector<48x32xf32>
    %43 = arith.mulf %41, %42 : vector<48x32xf32>
    %44 = vector.broadcast %23 : vector<1x32xf32> to vector<48x32xf32>
    %45 = arith.addf %43, %44 : vector<48x32xf32>
    %c0_34 = arith.constant 0 : index
    %c0_35 = arith.constant 0 : index
    %c0_36 = arith.constant 0 : index
    %46 = vector.load %arg8[%c0_34, %c0_35, %c0_36] : memref<3x32x96xf32, #tpu.memory_space<vmem>>, vector<1x32x96xf32>
    %47 = vector.shape_cast %46 : vector<1x32x96xf32> to vector<32x96xf32>
    %cst_37 = arith.constant dense<0.000000e+00> : vector<48x96xf32>
    %48 = tpu.matmul %45, %47, %cst_37 {dimension_numbers = #tpu.dot_dimension_numbers<[1], [0], [0], [1], [0, 0, 1, 1], [], []>} : vector<48x32xf32>, vector<32x96xf32>, vector<48x96xf32> -> vector<48x96xf32>
    %c0_38 = arith.constant 0 : index
    %c0_39 = arith.constant 0 : index
    %c0_40 = arith.constant 0 : index
    %49 = vector.load %arg9[%c0_38, %c0_39, %c0_40] : memref<3x1x96xf32, #tpu.memory_space<vmem>>, vector<1x1x96xf32>
    %50 = vector.shape_cast %49 : vector<1x1x96xf32> to vector<1x96xf32>
    %51 = vector.broadcast %50 : vector<1x96xf32> to vector<48x96xf32>
    %52 = arith.addf %48, %51 : vector<48x96xf32>
    %53 = vector.extract_strided_slice %52 {offsets = [0, 0], sizes = [48, 32], strides = [1, 1]} : vector<48x96xf32> to vector<48x32xf32>
    %cst_41 = arith.constant 0.353553385 : f32
    %54 = vector.broadcast %cst_41 : f32 to vector<48x32xf32>
    %55 = arith.mulf %53, %54 : vector<48x32xf32>
    %56 = vector.extract_strided_slice %52 {offsets = [0, 32], sizes = [48, 32], strides = [1, 1]} : vector<48x96xf32> to vector<48x32xf32>
    %57 = vector.extract_strided_slice %52 {offsets = [0, 64], sizes = [48, 32], strides = [1, 1]} : vector<48x96xf32> to vector<48x32xf32>
    %58 = vector.extract_strided_slice %55 {offsets = [0, 0], sizes = [48, 8], strides = [1, 1]} : vector<48x32xf32> to vector<48x8xf32>
    %59 = vector.extract_strided_slice %56 {offsets = [0, 0], sizes = [48, 8], strides = [1, 1]} : vector<48x32xf32> to vector<48x8xf32>
    %cst_42 = arith.constant dense<0.000000e+00> : vector<48x48xf32>
    %60 = tpu.matmul %58, %59, %cst_42 {dimension_numbers = #tpu.dot_dimension_numbers<[1], [1], [0], [0], [0, 0, 1, 0], [], []>} : vector<48x8xf32>, vector<48x8xf32>, vector<48x48xf32> -> vector<48x48xf32>
    %61 = arith.addf %60, %19 : vector<48x48xf32>
    %cst_43 = arith.constant dense<0xFF800000> : vector<48xf32>
    %62 = vector.multi_reduction <maximumf>, %61, %cst_43 [1] : vector<48x48xf32> to vector<48xf32>
    %63 = vector.shape_cast %62 : vector<48xf32> to vector<48x1xf32>
    %64 = vector.broadcast %63 : vector<48x1xf32> to vector<48x48xf32>
    %65 = arith.subf %61, %64 : vector<48x48xf32>
    %66 = math.exp %65 : vector<48x48xf32>
    %cst_44 = arith.constant dense<0.000000e+00> : vector<48xf32>
    %67 = vector.multi_reduction <add>, %66, %cst_44 [1] : vector<48x48xf32> to vector<48xf32>
    %68 = vector.shape_cast %67 : vector<48xf32> to vector<48x1xf32>
    %69 = tpu.reciprocal %68 {approx = true} : vector<48x1xf32> -> vector<48x1xf32>
    %70 = vector.broadcast %69 : vector<48x1xf32> to vector<48x48xf32>
    %71 = arith.mulf %66, %70 : vector<48x48xf32>
    %72 = vector.extract_strided_slice %57 {offsets = [0, 0], sizes = [48, 8], strides = [1, 1]} : vector<48x32xf32> to vector<48x8xf32>
    %cst_45 = arith.constant dense<0.000000e+00> : vector<48x8xf32>
    %73 = tpu.matmul %71, %72, %cst_45 {dimension_numbers = #tpu.dot_dimension_numbers<[1], [0], [0], [1], [0, 0, 1, 1], [], []>} : vector<48x48xf32>, vector<48x8xf32>, vector<48x8xf32> -> vector<48x8xf32>
    %c0_46 = arith.constant 0 : index
    %c0_47 = arith.constant 0 : index
    %74 = vector.load %arg19[%c0_46, %c0_47] : memref<48x32xf32, #tpu.memory_space<vmem>>, vector<48x8xf32>
    tpu.vector_store %arg19[%c0_46, %c0_47], %73 {strides = array<i32>} : memref<48x32xf32, #tpu.memory_space<vmem>>, vector<48x8xf32>,
    %75 = vector.extract_strided_slice %55 {offsets = [0, 8], sizes = [48, 8], strides = [1, 1]} : vector<48x32xf32> to vector<48x8xf32>
    %76 = vector.extract_strided_slice %56 {offsets = [0, 8], sizes = [48, 8], strides = [1, 1]} : vector<48x32xf32> to vector<48x8xf32>
    %cst_48 = arith.constant dense<0.000000e+00> : vector<48x48xf32>
    %77 = tpu.matmul %75, %76, %cst_48 {dimension_numbers = #tpu.dot_dimension_numbers<[1], [1], [0], [0], [0, 0, 1, 0], [], []>} : vector<48x8xf32>, vector<48x8xf32>, vector<48x48xf32> -> vector<48x48xf32>
    %78 = arith.addf %77, %19 : vector<48x48xf32>
    %cst_49 = arith.constant dense<0xFF800000> : vector<48xf32>
    %79 = vector.multi_reduction <maximumf>, %78, %cst_49 [1] : vector<48x48xf32> to vector<48xf32>
    %80 = vector.shape_cast %79 : vector<48xf32> to vector<48x1xf32>
    %81 = vector.broadcast %80 : vector<48x1xf32> to vector<48x48xf32>
    %82 = arith.subf %78, %81 : vector<48x48xf32>
    %83 = math.exp %82 : vector<48x48xf32>
    %cst_50 = arith.constant dense<0.000000e+00> : vector<48xf32>
    %84 = vector.multi_reduction <add>, %83, %cst_50 [1] : vector<48x48xf32> to vector<48xf32>
    %85 = vector.shape_cast %84 : vector<48xf32> to vector<48x1xf32>
    %86 = tpu.reciprocal %85 {approx = true} : vector<48x1xf32> -> vector<48x1xf32>
    %87 = vector.broadcast %86 : vector<48x1xf32> to vector<48x48xf32>
    %88 = arith.mulf %83, %87 : vector<48x48xf32>
    %89 = vector.extract_strided_slice %57 {offsets = [0, 8], sizes = [48, 8], strides = [1, 1]} : vector<48x32xf32> to vector<48x8xf32>
    %cst_51 = arith.constant dense<0.000000e+00> : vector<48x8xf32>
    %90 = tpu.matmul %88, %89, %cst_51 {dimension_numbers = #tpu.dot_dimension_numbers<[1], [0], [0], [1], [0, 0, 1, 1], [], []>} : vector<48x48xf32>, vector<48x8xf32>, vector<48x8xf32> -> vector<48x8xf32>
    %c0_52 = arith.constant 0 : index
    %c8 = arith.constant 8 : index
    %91 = vector.load %arg19[%c0_52, %c8] : memref<48x32xf32, #tpu.memory_space<vmem>>, vector<48x8xf32>
    tpu.vector_store %arg19[%c0_52, %c8], %90 {strides = array<i32>} : memref<48x32xf32, #tpu.memory_space<vmem>>, vector<48x8xf32>,
    %92 = vector.extract_strided_slice %55 {offsets = [0, 16], sizes = [48, 8], strides = [1, 1]} : vector<48x32xf32> to vector<48x8xf32>
    %93 = vector.extract_strided_slice %56 {offsets = [0, 16], sizes = [48, 8], strides = [1, 1]} : vector<48x32xf32> to vector<48x8xf32>
    %cst_53 = arith.constant dense<0.000000e+00> : vector<48x48xf32>
    %94 = tpu.matmul %92, %93, %cst_53 {dimension_numbers = #tpu.dot_dimension_numbers<[1], [1], [0], [0], [0, 0, 1, 0], [], []>} : vector<48x8xf32>, vector<48x8xf32>, vector<48x48xf32> -> vector<48x48xf32>
    %95 = arith.addf %94, %19 : vector<48x48xf32>
    %cst_54 = arith.constant dense<0xFF800000> : vector<48xf32>
    %96 = vector.multi_reduction <maximumf>, %95, %cst_54 [1] : vector<48x48xf32> to vector<48xf32>
    %97 = vector.shape_cast %96 : vector<48xf32> to vector<48x1xf32>
    %98 = vector.broadcast %97 : vector<48x1xf32> to vector<48x48xf32>
    %99 = arith.subf %95, %98 : vector<48x48xf32>
    %100 = math.exp %99 : vector<48x48xf32>
    %cst_55 = arith.constant dense<0.000000e+00> : vector<48xf32>
    %101 = vector.multi_reduction <add>, %100, %cst_55 [1] : vector<48x48xf32> to vector<48xf32>
    %102 = vector.shape_cast %101 : vector<48xf32> to vector<48x1xf32>
    %103 = tpu.reciprocal %102 {approx = true} : vector<48x1xf32> -> vector<48x1xf32>
    %104 = vector.broadcast %103 : vector<48x1xf32> to vector<48x48xf32>
    %105 = arith.mulf %100, %104 : vector<48x48xf32>
    %106 = vector.extract_strided_slice %57 {offsets = [0, 16], sizes = [48, 8], strides = [1, 1]} : vector<48x32xf32> to vector<48x8xf32>
    %cst_56 = arith.constant dense<0.000000e+00> : vector<48x8xf32>
    %107 = tpu.matmul %105, %106, %cst_56 {dimension_numbers = #tpu.dot_dimension_numbers<[1], [0], [0], [1], [0, 0, 1, 1], [], []>} : vector<48x48xf32>, vector<48x8xf32>, vector<48x8xf32> -> vector<48x8xf32>
    %c0_57 = arith.constant 0 : index
    %c16_58 = arith.constant 16 : index
    %108 = vector.load %arg19[%c0_57, %c16_58] : memref<48x32xf32, #tpu.memory_space<vmem>>, vector<48x8xf32>
    tpu.vector_store %arg19[%c0_57, %c16_58], %107 {strides = array<i32>} : memref<48x32xf32, #tpu.memory_space<vmem>>, vector<48x8xf32>,
    %109 = vector.extract_strided_slice %55 {offsets = [0, 24], sizes = [48, 8], strides = [1, 1]} : vector<48x32xf32> to vector<48x8xf32>
    %110 = vector.extract_strided_slice %56 {offsets = [0, 24], sizes = [48, 8], strides = [1, 1]} : vector<48x32xf32> to vector<48x8xf32>
    %cst_59 = arith.constant dense<0.000000e+00> : vector<48x48xf32>
    %111 = tpu.matmul %109, %110, %cst_59 {dimension_numbers = #tpu.dot_dimension_numbers<[1], [1], [0], [0], [0, 0, 1, 0], [], []>} : vector<48x8xf32>, vector<48x8xf32>, vector<48x48xf32> -> vector<48x48xf32>
    %112 = arith.addf %111, %19 : vector<48x48xf32>
    %cst_60 = arith.constant dense<0xFF800000> : vector<48xf32>
    %113 = vector.multi_reduction <maximumf>, %112, %cst_60 [1] : vector<48x48xf32> to vector<48xf32>
    %114 = vector.shape_cast %113 : vector<48xf32> to vector<48x1xf32>
    %115 = vector.broadcast %114 : vector<48x1xf32> to vector<48x48xf32>
    %116 = arith.subf %112, %115 : vector<48x48xf32>
    %117 = math.exp %116 : vector<48x48xf32>
    %cst_61 = arith.constant dense<0.000000e+00> : vector<48xf32>
    %118 = vector.multi_reduction <add>, %117, %cst_61 [1] : vector<48x48xf32> to vector<48xf32>
    %119 = vector.shape_cast %118 : vector<48xf32> to vector<48x1xf32>
    %120 = tpu.reciprocal %119 {approx = true} : vector<48x1xf32> -> vector<48x1xf32>
    %121 = vector.broadcast %120 : vector<48x1xf32> to vector<48x48xf32>
    %122 = arith.mulf %117, %121 : vector<48x48xf32>
    %123 = vector.extract_strided_slice %57 {offsets = [0, 24], sizes = [48, 8], strides = [1, 1]} : vector<48x32xf32> to vector<48x8xf32>
    %cst_62 = arith.constant dense<0.000000e+00> : vector<48x8xf32>
    %124 = tpu.matmul %122, %123, %cst_62 {dimension_numbers = #tpu.dot_dimension_numbers<[1], [0], [0], [1], [0, 0, 1, 1], [], []>} : vector<48x48xf32>, vector<48x8xf32>, vector<48x8xf32> -> vector<48x8xf32>
    %c0_63 = arith.constant 0 : index
    %c24_64 = arith.constant 24 : index
    %125 = vector.load %arg19[%c0_63, %c24_64] : memref<48x32xf32, #tpu.memory_space<vmem>>, vector<48x8xf32>
    tpu.vector_store %arg19[%c0_63, %c24_64], %124 {strides = array<i32>} : memref<48x32xf32, #tpu.memory_space<vmem>>, vector<48x8xf32>,
    %c0_65 = arith.constant 0 : index
    %c0_66 = arith.constant 0 : index
    %126 = vector.load %arg19[%c0_65, %c0_66] : memref<48x32xf32, #tpu.memory_space<vmem>>, vector<48x32xf32>
    %c0_67 = arith.constant 0 : index
    %c0_68 = arith.constant 0 : index
    %c0_69 = arith.constant 0 : index
    %127 = vector.load %arg10[%c0_67, %c0_68, %c0_69] : memref<3x32x32xf32, #tpu.memory_space<vmem>>, vector<1x32x32xf32>
    %128 = vector.shape_cast %127 : vector<1x32x32xf32> to vector<32x32xf32>
    %cst_70 = arith.constant dense<0.000000e+00> : vector<48x32xf32>
    %129 = tpu.matmul %126, %128, %cst_70 {dimension_numbers = #tpu.dot_dimension_numbers<[1], [0], [0], [1], [0, 0, 1, 1], [], []>} : vector<48x32xf32>, vector<32x32xf32>, vector<48x32xf32> -> vector<48x32xf32>
    %130 = arith.addf %18, %129 : vector<48x32xf32>
    %c0_71 = arith.constant 0 : index
    %c0_72 = arith.constant 0 : index
    %c0_73 = arith.constant 0 : index
    %131 = vector.load %arg11[%c0_71, %c0_72, %c0_73] : memref<3x1x32xf32, #tpu.memory_space<vmem>>, vector<1x1x32xf32>
    %132 = vector.shape_cast %131 : vector<1x1x32xf32> to vector<1x32xf32>
    %133 = vector.broadcast %132 : vector<1x32xf32> to vector<48x32xf32>
    %134 = arith.addf %130, %133 : vector<48x32xf32>
    %c0_74 = arith.constant 0 : index
    %c0_75 = arith.constant 0 : index
    %c0_76 = arith.constant 0 : index
    %135 = vector.load %arg12[%c0_74, %c0_75, %c0_76] : memref<3x1x32xf32, #tpu.memory_space<vmem>>, vector<1x1x32xf32>
    %136 = vector.shape_cast %135 : vector<1x1x32xf32> to vector<1x32xf32>
    %c0_77 = arith.constant 0 : index
    %c0_78 = arith.constant 0 : index
    %c0_79 = arith.constant 0 : index
    %137 = vector.load %arg13[%c0_77, %c0_78, %c0_79] : memref<3x1x32xf32, #tpu.memory_space<vmem>>, vector<1x1x32xf32>
    %138 = vector.shape_cast %137 : vector<1x1x32xf32> to vector<1x32xf32>
    %cst_80 = arith.constant dense<0.000000e+00> : vector<48xf32>
    %139 = vector.multi_reduction <add>, %134, %cst_80 [1] : vector<48x32xf32> to vector<48xf32>
    %140 = vector.shape_cast %139 : vector<48xf32> to vector<48x1xf32>
    %cst_81 = arith.constant 3.200000e+01 : f32
    %141 = vector.broadcast %cst_81 : f32 to vector<48x1xf32>
    %142 = arith.divf %140, %141 : vector<48x1xf32>
    %143 = vector.broadcast %142 : vector<48x1xf32> to vector<48x32xf32>
    %144 = arith.subf %134, %143 : vector<48x32xf32>
    %145 = arith.mulf %144, %144 : vector<48x32xf32>
    %cst_82 = arith.constant dense<0.000000e+00> : vector<48xf32>
    %146 = vector.multi_reduction <add>, %145, %cst_82 [1] : vector<48x32xf32> to vector<48xf32>
    %147 = vector.shape_cast %146 : vector<48xf32> to vector<48x1xf32>
    %cst_83 = arith.constant 3.200000e+01 : f32
    %148 = vector.broadcast %cst_83 : f32 to vector<48x1xf32>
    %149 = arith.divf %147, %148 : vector<48x1xf32>
    %150 = vector.broadcast %142 : vector<48x1xf32> to vector<48x32xf32>
    %151 = arith.subf %134, %150 : vector<48x32xf32>
    %cst_84 = arith.constant 9.99999996E-13 : f32
    %152 = vector.broadcast %cst_84 : f32 to vector<48x1xf32>
    %153 = arith.addf %149, %152 : vector<48x1xf32>
    %154 = math.rsqrt %153 : vector<48x1xf32>
    %155 = vector.broadcast %154 : vector<48x1xf32> to vector<48x32xf32>
    %156 = arith.mulf %151, %155 : vector<48x32xf32>
    %157 = vector.broadcast %136 : vector<1x32xf32> to vector<48x32xf32>
    %158 = arith.mulf %156, %157 : vector<48x32xf32>
    %159 = vector.broadcast %138 : vector<1x32xf32> to vector<48x32xf32>
    %160 = arith.addf %158, %159 : vector<48x32xf32>
    %c0_85 = arith.constant 0 : index
    %c0_86 = arith.constant 0 : index
    %c0_87 = arith.constant 0 : index
    %161 = vector.load %arg14[%c0_85, %c0_86, %c0_87] : memref<3x32x128xf32, #tpu.memory_space<vmem>>, vector<1x32x128xf32>
    %162 = vector.shape_cast %161 : vector<1x32x128xf32> to vector<32x128xf32>
    %cst_88 = arith.constant dense<0.000000e+00> : vector<48x128xf32>
    %163 = tpu.matmul %160, %162, %cst_88 {dimension_numbers = #tpu.dot_dimension_numbers<[1], [0], [0], [1], [0, 0, 1, 1], [], []>} : vector<48x32xf32>, vector<32x128xf32>, vector<48x128xf32> -> vector<48x128xf32>
    %c0_89 = arith.constant 0 : index
    %c0_90 = arith.constant 0 : index
    %c0_91 = arith.constant 0 : index
    %164 = vector.load %arg15[%c0_89, %c0_90, %c0_91] : memref<3x1x128xf32, #tpu.memory_space<vmem>>, vector<1x1x128xf32>
    %165 = vector.shape_cast %164 : vector<1x1x128xf32> to vector<1x128xf32>
    %166 = vector.broadcast %165 : vector<1x128xf32> to vector<48x128xf32>
    %167 = arith.addf %163, %166 : vector<48x128xf32>
    %cst_92 = arith.constant 5.000000e-01 : f32
    %168 = vector.broadcast %cst_92 : f32 to vector<48x128xf32>
    %169 = arith.mulf %168, %167 : vector<48x128xf32>
    %cst_93 = arith.constant 4.471500e-02 : f32
    %170 = vector.broadcast %cst_93 : f32 to vector<48x128xf32>
    %171 = arith.mulf %170, %167 : vector<48x128xf32>
    %172 = arith.mulf %171, %167 : vector<48x128xf32>
    %173 = arith.mulf %172, %167 : vector<48x128xf32>
    %174 = arith.addf %167, %173 : vector<48x128xf32>
    %cst_94 = arith.constant 0.797884583 : f32
    %175 = vector.broadcast %cst_94 : f32 to vector<48x128xf32>
    %176 = arith.mulf %175, %174 : vector<48x128xf32>
    %177 = math.tanh %176 : vector<48x128xf32>
    %cst_95 = arith.constant 1.000000e+00 : f32
    %178 = vector.broadcast %cst_95 : f32 to vector<48x128xf32>
    %179 = arith.addf %178, %177 : vector<48x128xf32>
    %180 = arith.mulf %169, %179 : vector<48x128xf32>
    %c0_96 = arith.constant 0 : index
    %c0_97 = arith.constant 0 : index
    %c0_98 = arith.constant 0 : index
    %181 = vector.load %arg16[%c0_96, %c0_97, %c0_98] : memref<3x128x32xf32, #tpu.memory_space<vmem>>, vector<1x128x32xf32>
    %182 = vector.shape_cast %181 : vector<1x128x32xf32> to vector<128x32xf32>
    %cst_99 = arith.constant dense<0.000000e+00> : vector<48x32xf32>
    %183 = tpu.matmul %180, %182, %cst_99 {dimension_numbers = #tpu.dot_dimension_numbers<[1], [0], [0], [1], [0, 0, 1, 1], [], []>} : vector<48x128xf32>, vector<128x32xf32>, vector<48x32xf32> -> vector<48x32xf32>
    %184 = arith.addf %134, %183 : vector<48x32xf32>
    %c0_100 = arith.constant 0 : index
    %c0_101 = arith.constant 0 : index
    %c0_102 = arith.constant 0 : index
    %185 = vector.load %arg17[%c0_100, %c0_101, %c0_102] : memref<3x1x32xf32, #tpu.memory_space<vmem>>, vector<1x1x32xf32>
    %186 = vector.shape_cast %185 : vector<1x1x32xf32> to vector<1x32xf32>
    %187 = vector.broadcast %186 : vector<1x32xf32> to vector<48x32xf32>
    %188 = arith.addf %184, %187 : vector<48x32xf32>
    %c1 = arith.constant 1 : index
    %c0_103 = arith.constant 0 : index
    %c0_104 = arith.constant 0 : index
    %189 = vector.load %arg6[%c1, %c0_103, %c0_104] : memref<3x1x32xf32, #tpu.memory_space<vmem>>, vector<1x1x32xf32>
    %190 = vector.shape_cast %189 : vector<1x1x32xf32> to vector<1x32xf32>
    %c1_105 = arith.constant 1 : index
    %c0_106 = arith.constant 0 : index
    %c0_107 = arith.constant 0 : index
    %191 = vector.load %arg7[%c1_105, %c0_106, %c0_107] : memref<3x1x32xf32, #tpu.memory_space<vmem>>, vector<1x1x32xf32>
    %192 = vector.shape_cast %191 : vector<1x1x32xf32> to vector<1x32xf32>
    %cst_108 = arith.constant dense<0.000000e+00> : vector<48xf32>
    %193 = vector.multi_reduction <add>, %188, %cst_108 [1] : vector<48x32xf32> to vector<48xf32>
    %194 = vector.shape_cast %193 : vector<48xf32> to vector<48x1xf32>
    %cst_109 = arith.constant 3.200000e+01 : f32
    %195 = vector.broadcast %cst_109 : f32 to vector<48x1xf32>
    %196 = arith.divf %194, %195 : vector<48x1xf32>
    %197 = vector.broadcast %196 : vector<48x1xf32> to vector<48x32xf32>
    %198 = arith.subf %188, %197 : vector<48x32xf32>
    %199 = arith.mulf %198, %198 : vector<48x32xf32>
    %cst_110 = arith.constant dense<0.000000e+00> : vector<48xf32>
    %200 = vector.multi_reduction <add>, %199, %cst_110 [1] : vector<48x32xf32> to vector<48xf32>
    %201 = vector.shape_cast %200 : vector<48xf32> to vector<48x1xf32>
    %cst_111 = arith.constant 3.200000e+01 : f32
    %202 = vector.broadcast %cst_111 : f32 to vector<48x1xf32>
    %203 = arith.divf %201, %202 : vector<48x1xf32>
    %204 = vector.broadcast %196 : vector<48x1xf32> to vector<48x32xf32>
    %205 = arith.subf %188, %204 : vector<48x32xf32>
    %cst_112 = arith.constant 9.99999996E-13 : f32
    %206 = vector.broadcast %cst_112 : f32 to vector<48x1xf32>
    %207 = arith.addf %203, %206 : vector<48x1xf32>
    %208 = math.rsqrt %207 : vector<48x1xf32>
    %209 = vector.broadcast %208 : vector<48x1xf32> to vector<48x32xf32>
    %210 = arith.mulf %205, %209 : vector<48x32xf32>
    %211 = vector.broadcast %190 : vector<1x32xf32> to vector<48x32xf32>
    %212 = arith.mulf %210, %211 : vector<48x32xf32>
    %213 = vector.broadcast %192 : vector<1x32xf32> to vector<48x32xf32>
    %214 = arith.addf %212, %213 : vector<48x32xf32>
    %c1_113 = arith.constant 1 : index
    %c0_114 = arith.constant 0 : index
    %c0_115 = arith.constant 0 : index
    %215 = vector.load %arg8[%c1_113, %c0_114, %c0_115] : memref<3x32x96xf32, #tpu.memory_space<vmem>>, vector<1x32x96xf32>
    %216 = vector.shape_cast %215 : vector<1x32x96xf32> to vector<32x96xf32>
    %cst_116 = arith.constant dense<0.000000e+00> : vector<48x96xf32>
    %217 = tpu.matmul %214, %216, %cst_116 {dimension_numbers = #tpu.dot_dimension_numbers<[1], [0], [0], [1], [0, 0, 1, 1], [], []>} : vector<48x32xf32>, vector<32x96xf32>, vector<48x96xf32> -> vector<48x96xf32>
    %c1_117 = arith.constant 1 : index
    %c0_118 = arith.constant 0 : index
    %c0_119 = arith.constant 0 : index
    %218 = vector.load %arg9[%c1_117, %c0_118, %c0_119] : memref<3x1x96xf32, #tpu.memory_space<vmem>>, vector<1x1x96xf32>
    %219 = vector.shape_cast %218 : vector<1x1x96xf32> to vector<1x96xf32>
    %220 = vector.broadcast %219 : vector<1x96xf32> to vector<48x96xf32>
    %221 = arith.addf %217, %220 : vector<48x96xf32>
    %222 = vector.extract_strided_slice %221 {offsets = [0, 0], sizes = [48, 32], strides = [1, 1]} : vector<48x96xf32> to vector<48x32xf32>
    %cst_120 = arith.constant 0.353553385 : f32
    %223 = vector.broadcast %cst_120 : f32 to vector<48x32xf32>
    %224 = arith.mulf %222, %223 : vector<48x32xf32>
    %225 = vector.extract_strided_slice %221 {offsets = [0, 32], sizes = [48, 32], strides = [1, 1]} : vector<48x96xf32> to vector<48x32xf32>
    %226 = vector.extract_strided_slice %221 {offsets = [0, 64], sizes = [48, 32], strides = [1, 1]} : vector<48x96xf32> to vector<48x32xf32>
    %227 = vector.extract_strided_slice %224 {offsets = [0, 0], sizes = [48, 8], strides = [1, 1]} : vector<48x32xf32> to vector<48x8xf32>
    %228 = vector.extract_strided_slice %225 {offsets = [0, 0], sizes = [48, 8], strides = [1, 1]} : vector<48x32xf32> to vector<48x8xf32>
    %cst_121 = arith.constant dense<0.000000e+00> : vector<48x48xf32>
    %229 = tpu.matmul %227, %228, %cst_121 {dimension_numbers = #tpu.dot_dimension_numbers<[1], [1], [0], [0], [0, 0, 1, 0], [], []>} : vector<48x8xf32>, vector<48x8xf32>, vector<48x48xf32> -> vector<48x48xf32>
    %230 = arith.addf %229, %19 : vector<48x48xf32>
    %cst_122 = arith.constant dense<0xFF800000> : vector<48xf32>
    %231 = vector.multi_reduction <maximumf>, %230, %cst_122 [1] : vector<48x48xf32> to vector<48xf32>
    %232 = vector.shape_cast %231 : vector<48xf32> to vector<48x1xf32>
    %233 = vector.broadcast %232 : vector<48x1xf32> to vector<48x48xf32>
    %234 = arith.subf %230, %233 : vector<48x48xf32>
    %235 = math.exp %234 : vector<48x48xf32>
    %cst_123 = arith.constant dense<0.000000e+00> : vector<48xf32>
    %236 = vector.multi_reduction <add>, %235, %cst_123 [1] : vector<48x48xf32> to vector<48xf32>
    %237 = vector.shape_cast %236 : vector<48xf32> to vector<48x1xf32>
    %238 = tpu.reciprocal %237 {approx = true} : vector<48x1xf32> -> vector<48x1xf32>
    %239 = vector.broadcast %238 : vector<48x1xf32> to vector<48x48xf32>
    %240 = arith.mulf %235, %239 : vector<48x48xf32>
    %241 = vector.extract_strided_slice %226 {offsets = [0, 0], sizes = [48, 8], strides = [1, 1]} : vector<48x32xf32> to vector<48x8xf32>
    %cst_124 = arith.constant dense<0.000000e+00> : vector<48x8xf32>
    %242 = tpu.matmul %240, %241, %cst_124 {dimension_numbers = #tpu.dot_dimension_numbers<[1], [0], [0], [1], [0, 0, 1, 1], [], []>} : vector<48x48xf32>, vector<48x8xf32>, vector<48x8xf32> -> vector<48x8xf32>
    %c0_125 = arith.constant 0 : index
    %c0_126 = arith.constant 0 : index
    %243 = vector.load %arg19[%c0_125, %c0_126] : memref<48x32xf32, #tpu.memory_space<vmem>>, vector<48x8xf32>
    tpu.vector_store %arg19[%c0_125, %c0_126], %242 {strides = array<i32>} : memref<48x32xf32, #tpu.memory_space<vmem>>, vector<48x8xf32>,
    %244 = vector.extract_strided_slice %224 {offsets = [0, 8], sizes = [48, 8], strides = [1, 1]} : vector<48x32xf32> to vector<48x8xf32>
    %245 = vector.extract_strided_slice %225 {offsets = [0, 8], sizes = [48, 8], strides = [1, 1]} : vector<48x32xf32> to vector<48x8xf32>
    %cst_127 = arith.constant dense<0.000000e+00> : vector<48x48xf32>
    %246 = tpu.matmul %244, %245, %cst_127 {dimension_numbers = #tpu.dot_dimension_numbers<[1], [1], [0], [0], [0, 0, 1, 0], [], []>} : vector<48x8xf32>, vector<48x8xf32>, vector<48x48xf32> -> vector<48x48xf32>
    %247 = arith.addf %246, %19 : vector<48x48xf32>
    %cst_128 = arith.constant dense<0xFF800000> : vector<48xf32>
    %248 = vector.multi_reduction <maximumf>, %247, %cst_128 [1] : vector<48x48xf32> to vector<48xf32>
    %249 = vector.shape_cast %248 : vector<48xf32> to vector<48x1xf32>
    %250 = vector.broadcast %249 : vector<48x1xf32> to vector<48x48xf32>
    %251 = arith.subf %247, %250 : vector<48x48xf32>
    %252 = math.exp %251 : vector<48x48xf32>
    %cst_129 = arith.constant dense<0.000000e+00> : vector<48xf32>
    %253 = vector.multi_reduction <add>, %252, %cst_129 [1] : vector<48x48xf32> to vector<48xf32>
    %254 = vector.shape_cast %253 : vector<48xf32> to vector<48x1xf32>
    %255 = tpu.reciprocal %254 {approx = true} : vector<48x1xf32> -> vector<48x1xf32>
    %256 = vector.broadcast %255 : vector<48x1xf32> to vector<48x48xf32>
    %257 = arith.mulf %252, %256 : vector<48x48xf32>
    %258 = vector.extract_strided_slice %226 {offsets = [0, 8], sizes = [48, 8], strides = [1, 1]} : vector<48x32xf32> to vector<48x8xf32>
    %cst_130 = arith.constant dense<0.000000e+00> : vector<48x8xf32>
    %259 = tpu.matmul %257, %258, %cst_130 {dimension_numbers = #tpu.dot_dimension_numbers<[1], [0], [0], [1], [0, 0, 1, 1], [], []>} : vector<48x48xf32>, vector<48x8xf32>, vector<48x8xf32> -> vector<48x8xf32>
    %c0_131 = arith.constant 0 : index
    %c8_132 = arith.constant 8 : index
    %260 = vector.load %arg19[%c0_131, %c8_132] : memref<48x32xf32, #tpu.memory_space<vmem>>, vector<48x8xf32>
    tpu.vector_store %arg19[%c0_131, %c8_132], %259 {strides = array<i32>} : memref<48x32xf32, #tpu.memory_space<vmem>>, vector<48x8xf32>,
    %261 = vector.extract_strided_slice %224 {offsets = [0, 16], sizes = [48, 8], strides = [1, 1]} : vector<48x32xf32> to vector<48x8xf32>
    %262 = vector.extract_strided_slice %225 {offsets = [0, 16], sizes = [48, 8], strides = [1, 1]} : vector<48x32xf32> to vector<48x8xf32>
    %cst_133 = arith.constant dense<0.000000e+00> : vector<48x48xf32>
    %263 = tpu.matmul %261, %262, %cst_133 {dimension_numbers = #tpu.dot_dimension_numbers<[1], [1], [0], [0], [0, 0, 1, 0], [], []>} : vector<48x8xf32>, vector<48x8xf32>, vector<48x48xf32> -> vector<48x48xf32>
    %264 = arith.addf %263, %19 : vector<48x48xf32>
    %cst_134 = arith.constant dense<0xFF800000> : vector<48xf32>
    %265 = vector.multi_reduction <maximumf>, %264, %cst_134 [1] : vector<48x48xf32> to vector<48xf32>
    %266 = vector.shape_cast %265 : vector<48xf32> to vector<48x1xf32>
    %267 = vector.broadcast %266 : vector<48x1xf32> to vector<48x48xf32>
    %268 = arith.subf %264, %267 : vector<48x48xf32>
    %269 = math.exp %268 : vector<48x48xf32>
    %cst_135 = arith.constant dense<0.000000e+00> : vector<48xf32>
    %270 = vector.multi_reduction <add>, %269, %cst_135 [1] : vector<48x48xf32> to vector<48xf32>
    %271 = vector.shape_cast %270 : vector<48xf32> to vector<48x1xf32>
    %272 = tpu.reciprocal %271 {approx = true} : vector<48x1xf32> -> vector<48x1xf32>
    %273 = vector.broadcast %272 : vector<48x1xf32> to vector<48x48xf32>
    %274 = arith.mulf %269, %273 : vector<48x48xf32>
    %275 = vector.extract_strided_slice %226 {offsets = [0, 16], sizes = [48, 8], strides = [1, 1]} : vector<48x32xf32> to vector<48x8xf32>
    %cst_136 = arith.constant dense<0.000000e+00> : vector<48x8xf32>
    %276 = tpu.matmul %274, %275, %cst_136 {dimension_numbers = #tpu.dot_dimension_numbers<[1], [0], [0], [1], [0, 0, 1, 1], [], []>} : vector<48x48xf32>, vector<48x8xf32>, vector<48x8xf32> -> vector<48x8xf32>
    %c0_137 = arith.constant 0 : index
    %c16_138 = arith.constant 16 : index
    %277 = vector.load %arg19[%c0_137, %c16_138] : memref<48x32xf32, #tpu.memory_space<vmem>>, vector<48x8xf32>
    tpu.vector_store %arg19[%c0_137, %c16_138], %276 {strides = array<i32>} : memref<48x32xf32, #tpu.memory_space<vmem>>, vector<48x8xf32>,
    %278 = vector.extract_strided_slice %224 {offsets = [0, 24], sizes = [48, 8], strides = [1, 1]} : vector<48x32xf32> to vector<48x8xf32>
    %279 = vector.extract_strided_slice %225 {offsets = [0, 24], sizes = [48, 8], strides = [1, 1]} : vector<48x32xf32> to vector<48x8xf32>
    %cst_139 = arith.constant dense<0.000000e+00> : vector<48x48xf32>
    %280 = tpu.matmul %278, %279, %cst_139 {dimension_numbers = #tpu.dot_dimension_numbers<[1], [1], [0], [0], [0, 0, 1, 0], [], []>} : vector<48x8xf32>, vector<48x8xf32>, vector<48x48xf32> -> vector<48x48xf32>
    %281 = arith.addf %280, %19 : vector<48x48xf32>
    %cst_140 = arith.constant dense<0xFF800000> : vector<48xf32>
    %282 = vector.multi_reduction <maximumf>, %281, %cst_140 [1] : vector<48x48xf32> to vector<48xf32>
    %283 = vector.shape_cast %282 : vector<48xf32> to vector<48x1xf32>
    %284 = vector.broadcast %283 : vector<48x1xf32> to vector<48x48xf32>
    %285 = arith.subf %281, %284 : vector<48x48xf32>
    %286 = math.exp %285 : vector<48x48xf32>
    %cst_141 = arith.constant dense<0.000000e+00> : vector<48xf32>
    %287 = vector.multi_reduction <add>, %286, %cst_141 [1] : vector<48x48xf32> to vector<48xf32>
    %288 = vector.shape_cast %287 : vector<48xf32> to vector<48x1xf32>
    %289 = tpu.reciprocal %288 {approx = true} : vector<48x1xf32> -> vector<48x1xf32>
    %290 = vector.broadcast %289 : vector<48x1xf32> to vector<48x48xf32>
    %291 = arith.mulf %286, %290 : vector<48x48xf32>
    %292 = vector.extract_strided_slice %226 {offsets = [0, 24], sizes = [48, 8], strides = [1, 1]} : vector<48x32xf32> to vector<48x8xf32>
    %cst_142 = arith.constant dense<0.000000e+00> : vector<48x8xf32>
    %293 = tpu.matmul %291, %292, %cst_142 {dimension_numbers = #tpu.dot_dimension_numbers<[1], [0], [0], [1], [0, 0, 1, 1], [], []>} : vector<48x48xf32>, vector<48x8xf32>, vector<48x8xf32> -> vector<48x8xf32>
    %c0_143 = arith.constant 0 : index
    %c24_144 = arith.constant 24 : index
    %294 = vector.load %arg19[%c0_143, %c24_144] : memref<48x32xf32, #tpu.memory_space<vmem>>, vector<48x8xf32>
    tpu.vector_store %arg19[%c0_143, %c24_144], %293 {strides = array<i32>} : memref<48x32xf32, #tpu.memory_space<vmem>>, vector<48x8xf32>,
    %c0_145 = arith.constant 0 : index
    %c0_146 = arith.constant 0 : index
    %295 = vector.load %arg19[%c0_145, %c0_146] : memref<48x32xf32, #tpu.memory_space<vmem>>, vector<48x32xf32>
    %c1_147 = arith.constant 1 : index
    %c0_148 = arith.constant 0 : index
    %c0_149 = arith.constant 0 : index
    %296 = vector.load %arg10[%c1_147, %c0_148, %c0_149] : memref<3x32x32xf32, #tpu.memory_space<vmem>>, vector<1x32x32xf32>
    %297 = vector.shape_cast %296 : vector<1x32x32xf32> to vector<32x32xf32>
    %cst_150 = arith.constant dense<0.000000e+00> : vector<48x32xf32>
    %298 = tpu.matmul %295, %297, %cst_150 {dimension_numbers = #tpu.dot_dimension_numbers<[1], [0], [0], [1], [0, 0, 1, 1], [], []>} : vector<48x32xf32>, vector<32x32xf32>, vector<48x32xf32> -> vector<48x32xf32>
    %299 = arith.addf %188, %298 : vector<48x32xf32>
    %c1_151 = arith.constant 1 : index
    %c0_152 = arith.constant 0 : index
    %c0_153 = arith.constant 0 : index
    %300 = vector.load %arg11[%c1_151, %c0_152, %c0_153] : memref<3x1x32xf32, #tpu.memory_space<vmem>>, vector<1x1x32xf32>
    %301 = vector.shape_cast %300 : vector<1x1x32xf32> to vector<1x32xf32>
    %302 = vector.broadcast %301 : vector<1x32xf32> to vector<48x32xf32>
    %303 = arith.addf %299, %302 : vector<48x32xf32>
    %c1_154 = arith.constant 1 : index
    %c0_155 = arith.constant 0 : index
    %c0_156 = arith.constant 0 : index
    %304 = vector.load %arg12[%c1_154, %c0_155, %c0_156] : memref<3x1x32xf32, #tpu.memory_space<vmem>>, vector<1x1x32xf32>
    %305 = vector.shape_cast %304 : vector<1x1x32xf32> to vector<1x32xf32>
    %c1_157 = arith.constant 1 : index
    %c0_158 = arith.constant 0 : index
    %c0_159 = arith.constant 0 : index
    %306 = vector.load %arg13[%c1_157, %c0_158, %c0_159] : memref<3x1x32xf32, #tpu.memory_space<vmem>>, vector<1x1x32xf32>
    %307 = vector.shape_cast %306 : vector<1x1x32xf32> to vector<1x32xf32>
    %cst_160 = arith.constant dense<0.000000e+00> : vector<48xf32>
    %308 = vector.multi_reduction <add>, %303, %cst_160 [1] : vector<48x32xf32> to vector<48xf32>
    %309 = vector.shape_cast %308 : vector<48xf32> to vector<48x1xf32>
    %cst_161 = arith.constant 3.200000e+01 : f32
    %310 = vector.broadcast %cst_161 : f32 to vector<48x1xf32>
    %311 = arith.divf %309, %310 : vector<48x1xf32>
    %312 = vector.broadcast %311 : vector<48x1xf32> to vector<48x32xf32>
    %313 = arith.subf %303, %312 : vector<48x32xf32>
    %314 = arith.mulf %313, %313 : vector<48x32xf32>
    %cst_162 = arith.constant dense<0.000000e+00> : vector<48xf32>
    %315 = vector.multi_reduction <add>, %314, %cst_162 [1] : vector<48x32xf32> to vector<48xf32>
    %316 = vector.shape_cast %315 : vector<48xf32> to vector<48x1xf32>
    %cst_163 = arith.constant 3.200000e+01 : f32
    %317 = vector.broadcast %cst_163 : f32 to vector<48x1xf32>
    %318 = arith.divf %316, %317 : vector<48x1xf32>
    %319 = vector.broadcast %311 : vector<48x1xf32> to vector<48x32xf32>
    %320 = arith.subf %303, %319 : vector<48x32xf32>
    %cst_164 = arith.constant 9.99999996E-13 : f32
    %321 = vector.broadcast %cst_164 : f32 to vector<48x1xf32>
    %322 = arith.addf %318, %321 : vector<48x1xf32>
    %323 = math.rsqrt %322 : vector<48x1xf32>
    %324 = vector.broadcast %323 : vector<48x1xf32> to vector<48x32xf32>
    %325 = arith.mulf %320, %324 : vector<48x32xf32>
    %326 = vector.broadcast %305 : vector<1x32xf32> to vector<48x32xf32>
    %327 = arith.mulf %325, %326 : vector<48x32xf32>
    %328 = vector.broadcast %307 : vector<1x32xf32> to vector<48x32xf32>
    %329 = arith.addf %327, %328 : vector<48x32xf32>
    %c1_165 = arith.constant 1 : index
    %c0_166 = arith.constant 0 : index
    %c0_167 = arith.constant 0 : index
    %330 = vector.load %arg14[%c1_165, %c0_166, %c0_167] : memref<3x32x128xf32, #tpu.memory_space<vmem>>, vector<1x32x128xf32>
    %331 = vector.shape_cast %330 : vector<1x32x128xf32> to vector<32x128xf32>
    %cst_168 = arith.constant dense<0.000000e+00> : vector<48x128xf32>
    %332 = tpu.matmul %329, %331, %cst_168 {dimension_numbers = #tpu.dot_dimension_numbers<[1], [0], [0], [1], [0, 0, 1, 1], [], []>} : vector<48x32xf32>, vector<32x128xf32>, vector<48x128xf32> -> vector<48x128xf32>
    %c1_169 = arith.constant 1 : index
    %c0_170 = arith.constant 0 : index
    %c0_171 = arith.constant 0 : index
    %333 = vector.load %arg15[%c1_169, %c0_170, %c0_171] : memref<3x1x128xf32, #tpu.memory_space<vmem>>, vector<1x1x128xf32>
    %334 = vector.shape_cast %333 : vector<1x1x128xf32> to vector<1x128xf32>
    %335 = vector.broadcast %334 : vector<1x128xf32> to vector<48x128xf32>
    %336 = arith.addf %332, %335 : vector<48x128xf32>
    %cst_172 = arith.constant 5.000000e-01 : f32
    %337 = vector.broadcast %cst_172 : f32 to vector<48x128xf32>
    %338 = arith.mulf %337, %336 : vector<48x128xf32>
    %cst_173 = arith.constant 4.471500e-02 : f32
    %339 = vector.broadcast %cst_173 : f32 to vector<48x128xf32>
    %340 = arith.mulf %339, %336 : vector<48x128xf32>
    %341 = arith.mulf %340, %336 : vector<48x128xf32>
    %342 = arith.mulf %341, %336 : vector<48x128xf32>
    %343 = arith.addf %336, %342 : vector<48x128xf32>
    %cst_174 = arith.constant 0.797884583 : f32
    %344 = vector.broadcast %cst_174 : f32 to vector<48x128xf32>
    %345 = arith.mulf %344, %343 : vector<48x128xf32>
    %346 = math.tanh %345 : vector<48x128xf32>
    %cst_175 = arith.constant 1.000000e+00 : f32
    %347 = vector.broadcast %cst_175 : f32 to vector<48x128xf32>
    %348 = arith.addf %347, %346 : vector<48x128xf32>
    %349 = arith.mulf %338, %348 : vector<48x128xf32>
    %c1_176 = arith.constant 1 : index
    %c0_177 = arith.constant 0 : index
    %c0_178 = arith.constant 0 : index
    %350 = vector.load %arg16[%c1_176, %c0_177, %c0_178] : memref<3x128x32xf32, #tpu.memory_space<vmem>>, vector<1x128x32xf32>
    %351 = vector.shape_cast %350 : vector<1x128x32xf32> to vector<128x32xf32>
    %cst_179 = arith.constant dense<0.000000e+00> : vector<48x32xf32>
    %352 = tpu.matmul %349, %351, %cst_179 {dimension_numbers = #tpu.dot_dimension_numbers<[1], [0], [0], [1], [0, 0, 1, 1], [], []>} : vector<48x128xf32>, vector<128x32xf32>, vector<48x32xf32> -> vector<48x32xf32>
    %353 = arith.addf %303, %352 : vector<48x32xf32>
    %c1_180 = arith.constant 1 : index
    %c0_181 = arith.constant 0 : index
    %c0_182 = arith.constant 0 : index
    %354 = vector.load %arg17[%c1_180, %c0_181, %c0_182] : memref<3x1x32xf32, #tpu.memory_space<vmem>>, vector<1x1x32xf32>
    %355 = vector.shape_cast %354 : vector<1x1x32xf32> to vector<1x32xf32>
    %356 = vector.broadcast %355 : vector<1x32xf32> to vector<48x32xf32>
    %357 = arith.addf %353, %356 : vector<48x32xf32>
    %c2 = arith.constant 2 : index
    %c0_183 = arith.constant 0 : index
    %c0_184 = arith.constant 0 : index
    %358 = vector.load %arg6[%c2, %c0_183, %c0_184] : memref<3x1x32xf32, #tpu.memory_space<vmem>>, vector<1x1x32xf32>
    %359 = vector.shape_cast %358 : vector<1x1x32xf32> to vector<1x32xf32>
    %c2_185 = arith.constant 2 : index
    %c0_186 = arith.constant 0 : index
    %c0_187 = arith.constant 0 : index
    %360 = vector.load %arg7[%c2_185, %c0_186, %c0_187] : memref<3x1x32xf32, #tpu.memory_space<vmem>>, vector<1x1x32xf32>
    %361 = vector.shape_cast %360 : vector<1x1x32xf32> to vector<1x32xf32>
    %cst_188 = arith.constant dense<0.000000e+00> : vector<48xf32>
    %362 = vector.multi_reduction <add>, %357, %cst_188 [1] : vector<48x32xf32> to vector<48xf32>
    %363 = vector.shape_cast %362 : vector<48xf32> to vector<48x1xf32>
    %cst_189 = arith.constant 3.200000e+01 : f32
    %364 = vector.broadcast %cst_189 : f32 to vector<48x1xf32>
    %365 = arith.divf %363, %364 : vector<48x1xf32>
    %366 = vector.broadcast %365 : vector<48x1xf32> to vector<48x32xf32>
    %367 = arith.subf %357, %366 : vector<48x32xf32>
    %368 = arith.mulf %367, %367 : vector<48x32xf32>
    %cst_190 = arith.constant dense<0.000000e+00> : vector<48xf32>
    %369 = vector.multi_reduction <add>, %368, %cst_190 [1] : vector<48x32xf32> to vector<48xf32>
    %370 = vector.shape_cast %369 : vector<48xf32> to vector<48x1xf32>
    %cst_191 = arith.constant 3.200000e+01 : f32
    %371 = vector.broadcast %cst_191 : f32 to vector<48x1xf32>
    %372 = arith.divf %370, %371 : vector<48x1xf32>
    %373 = vector.broadcast %365 : vector<48x1xf32> to vector<48x32xf32>
    %374 = arith.subf %357, %373 : vector<48x32xf32>
    %cst_192 = arith.constant 9.99999996E-13 : f32
    %375 = vector.broadcast %cst_192 : f32 to vector<48x1xf32>
    %376 = arith.addf %372, %375 : vector<48x1xf32>
    %377 = math.rsqrt %376 : vector<48x1xf32>
    %378 = vector.broadcast %377 : vector<48x1xf32> to vector<48x32xf32>
    %379 = arith.mulf %374, %378 : vector<48x32xf32>
    %380 = vector.broadcast %359 : vector<1x32xf32> to vector<48x32xf32>
    %381 = arith.mulf %379, %380 : vector<48x32xf32>
    %382 = vector.broadcast %361 : vector<1x32xf32> to vector<48x32xf32>
    %383 = arith.addf %381, %382 : vector<48x32xf32>
    %c2_193 = arith.constant 2 : index
    %c0_194 = arith.constant 0 : index
    %c0_195 = arith.constant 0 : index
    %384 = vector.load %arg8[%c2_193, %c0_194, %c0_195] : memref<3x32x96xf32, #tpu.memory_space<vmem>>, vector<1x32x96xf32>
    %385 = vector.shape_cast %384 : vector<1x32x96xf32> to vector<32x96xf32>
    %cst_196 = arith.constant dense<0.000000e+00> : vector<48x96xf32>
    %386 = tpu.matmul %383, %385, %cst_196 {dimension_numbers = #tpu.dot_dimension_numbers<[1], [0], [0], [1], [0, 0, 1, 1], [], []>} : vector<48x32xf32>, vector<32x96xf32>, vector<48x96xf32> -> vector<48x96xf32>
    %c2_197 = arith.constant 2 : index
    %c0_198 = arith.constant 0 : index
    %c0_199 = arith.constant 0 : index
    %387 = vector.load %arg9[%c2_197, %c0_198, %c0_199] : memref<3x1x96xf32, #tpu.memory_space<vmem>>, vector<1x1x96xf32>
    %388 = vector.shape_cast %387 : vector<1x1x96xf32> to vector<1x96xf32>
    %389 = vector.broadcast %388 : vector<1x96xf32> to vector<48x96xf32>
    %390 = arith.addf %386, %389 : vector<48x96xf32>
    %391 = vector.extract_strided_slice %390 {offsets = [0, 0], sizes = [48, 32], strides = [1, 1]} : vector<48x96xf32> to vector<48x32xf32>
    %cst_200 = arith.constant 0.353553385 : f32
    %392 = vector.broadcast %cst_200 : f32 to vector<48x32xf32>
    %393 = arith.mulf %391, %392 : vector<48x32xf32>
    %394 = vector.extract_strided_slice %390 {offsets = [0, 32], sizes = [48, 32], strides = [1, 1]} : vector<48x96xf32> to vector<48x32xf32>
    %395 = vector.extract_strided_slice %390 {offsets = [0, 64], sizes = [48, 32], strides = [1, 1]} : vector<48x96xf32> to vector<48x32xf32>
    %396 = vector.extract_strided_slice %393 {offsets = [0, 0], sizes = [48, 8], strides = [1, 1]} : vector<48x32xf32> to vector<48x8xf32>
    %397 = vector.extract_strided_slice %394 {offsets = [0, 0], sizes = [48, 8], strides = [1, 1]} : vector<48x32xf32> to vector<48x8xf32>
    %cst_201 = arith.constant dense<0.000000e+00> : vector<48x48xf32>
    %398 = tpu.matmul %396, %397, %cst_201 {dimension_numbers = #tpu.dot_dimension_numbers<[1], [1], [0], [0], [0, 0, 1, 0], [], []>} : vector<48x8xf32>, vector<48x8xf32>, vector<48x48xf32> -> vector<48x48xf32>
    %399 = arith.addf %398, %19 : vector<48x48xf32>
    %cst_202 = arith.constant dense<0xFF800000> : vector<48xf32>
    %400 = vector.multi_reduction <maximumf>, %399, %cst_202 [1] : vector<48x48xf32> to vector<48xf32>
    %401 = vector.shape_cast %400 : vector<48xf32> to vector<48x1xf32>
    %402 = vector.broadcast %401 : vector<48x1xf32> to vector<48x48xf32>
    %403 = arith.subf %399, %402 : vector<48x48xf32>
    %404 = math.exp %403 : vector<48x48xf32>
    %cst_203 = arith.constant dense<0.000000e+00> : vector<48xf32>
    %405 = vector.multi_reduction <add>, %404, %cst_203 [1] : vector<48x48xf32> to vector<48xf32>
    %406 = vector.shape_cast %405 : vector<48xf32> to vector<48x1xf32>
    %407 = tpu.reciprocal %406 {approx = true} : vector<48x1xf32> -> vector<48x1xf32>
    %408 = vector.broadcast %407 : vector<48x1xf32> to vector<48x48xf32>
    %409 = arith.mulf %404, %408 : vector<48x48xf32>
    %410 = vector.extract_strided_slice %395 {offsets = [0, 0], sizes = [48, 8], strides = [1, 1]} : vector<48x32xf32> to vector<48x8xf32>
    %cst_204 = arith.constant dense<0.000000e+00> : vector<48x8xf32>
    %411 = tpu.matmul %409, %410, %cst_204 {dimension_numbers = #tpu.dot_dimension_numbers<[1], [0], [0], [1], [0, 0, 1, 1], [], []>} : vector<48x48xf32>, vector<48x8xf32>, vector<48x8xf32> -> vector<48x8xf32>
    %c0_205 = arith.constant 0 : index
    %c0_206 = arith.constant 0 : index
    %412 = vector.load %arg19[%c0_205, %c0_206] : memref<48x32xf32, #tpu.memory_space<vmem>>, vector<48x8xf32>
    tpu.vector_store %arg19[%c0_205, %c0_206], %411 {strides = array<i32>} : memref<48x32xf32, #tpu.memory_space<vmem>>, vector<48x8xf32>,
    %413 = vector.extract_strided_slice %393 {offsets = [0, 8], sizes = [48, 8], strides = [1, 1]} : vector<48x32xf32> to vector<48x8xf32>
    %414 = vector.extract_strided_slice %394 {offsets = [0, 8], sizes = [48, 8], strides = [1, 1]} : vector<48x32xf32> to vector<48x8xf32>
    %cst_207 = arith.constant dense<0.000000e+00> : vector<48x48xf32>
    %415 = tpu.matmul %413, %414, %cst_207 {dimension_numbers = #tpu.dot_dimension_numbers<[1], [1], [0], [0], [0, 0, 1, 0], [], []>} : vector<48x8xf32>, vector<48x8xf32>, vector<48x48xf32> -> vector<48x48xf32>
    %416 = arith.addf %415, %19 : vector<48x48xf32>
    %cst_208 = arith.constant dense<0xFF800000> : vector<48xf32>
    %417 = vector.multi_reduction <maximumf>, %416, %cst_208 [1] : vector<48x48xf32> to vector<48xf32>
    %418 = vector.shape_cast %417 : vector<48xf32> to vector<48x1xf32>
    %419 = vector.broadcast %418 : vector<48x1xf32> to vector<48x48xf32>
    %420 = arith.subf %416, %419 : vector<48x48xf32>
    %421 = math.exp %420 : vector<48x48xf32>
    %cst_209 = arith.constant dense<0.000000e+00> : vector<48xf32>
    %422 = vector.multi_reduction <add>, %421, %cst_209 [1] : vector<48x48xf32> to vector<48xf32>
    %423 = vector.shape_cast %422 : vector<48xf32> to vector<48x1xf32>
    %424 = tpu.reciprocal %423 {approx = true} : vector<48x1xf32> -> vector<48x1xf32>
    %425 = vector.broadcast %424 : vector<48x1xf32> to vector<48x48xf32>
    %426 = arith.mulf %421, %425 : vector<48x48xf32>
    %427 = vector.extract_strided_slice %395 {offsets = [0, 8], sizes = [48, 8], strides = [1, 1]} : vector<48x32xf32> to vector<48x8xf32>
    %cst_210 = arith.constant dense<0.000000e+00> : vector<48x8xf32>
    %428 = tpu.matmul %426, %427, %cst_210 {dimension_numbers = #tpu.dot_dimension_numbers<[1], [0], [0], [1], [0, 0, 1, 1], [], []>} : vector<48x48xf32>, vector<48x8xf32>, vector<48x8xf32> -> vector<48x8xf32>
    %c0_211 = arith.constant 0 : index
    %c8_212 = arith.constant 8 : index
    %429 = vector.load %arg19[%c0_211, %c8_212] : memref<48x32xf32, #tpu.memory_space<vmem>>, vector<48x8xf32>
    tpu.vector_store %arg19[%c0_211, %c8_212], %428 {strides = array<i32>} : memref<48x32xf32, #tpu.memory_space<vmem>>, vector<48x8xf32>,
    %430 = vector.extract_strided_slice %393 {offsets = [0, 16], sizes = [48, 8], strides = [1, 1]} : vector<48x32xf32> to vector<48x8xf32>
    %431 = vector.extract_strided_slice %394 {offsets = [0, 16], sizes = [48, 8], strides = [1, 1]} : vector<48x32xf32> to vector<48x8xf32>
    %cst_213 = arith.constant dense<0.000000e+00> : vector<48x48xf32>
    %432 = tpu.matmul %430, %431, %cst_213 {dimension_numbers = #tpu.dot_dimension_numbers<[1], [1], [0], [0], [0, 0, 1, 0], [], []>} : vector<48x8xf32>, vector<48x8xf32>, vector<48x48xf32> -> vector<48x48xf32>
    %433 = arith.addf %432, %19 : vector<48x48xf32>
    %cst_214 = arith.constant dense<0xFF800000> : vector<48xf32>
    %434 = vector.multi_reduction <maximumf>, %433, %cst_214 [1] : vector<48x48xf32> to vector<48xf32>
    %435 = vector.shape_cast %434 : vector<48xf32> to vector<48x1xf32>
    %436 = vector.broadcast %435 : vector<48x1xf32> to vector<48x48xf32>
    %437 = arith.subf %433, %436 : vector<48x48xf32>
    %438 = math.exp %437 : vector<48x48xf32>
    %cst_215 = arith.constant dense<0.000000e+00> : vector<48xf32>
    %439 = vector.multi_reduction <add>, %438, %cst_215 [1] : vector<48x48xf32> to vector<48xf32>
    %440 = vector.shape_cast %439 : vector<48xf32> to vector<48x1xf32>
    %441 = tpu.reciprocal %440 {approx = true} : vector<48x1xf32> -> vector<48x1xf32>
    %442 = vector.broadcast %441 : vector<48x1xf32> to vector<48x48xf32>
    %443 = arith.mulf %438, %442 : vector<48x48xf32>
    %444 = vector.extract_strided_slice %395 {offsets = [0, 16], sizes = [48, 8], strides = [1, 1]} : vector<48x32xf32> to vector<48x8xf32>
    %cst_216 = arith.constant dense<0.000000e+00> : vector<48x8xf32>
    %445 = tpu.matmul %443, %444, %cst_216 {dimension_numbers = #tpu.dot_dimension_numbers<[1], [0], [0], [1], [0, 0, 1, 1], [], []>} : vector<48x48xf32>, vector<48x8xf32>, vector<48x8xf32> -> vector<48x8xf32>
    %c0_217 = arith.constant 0 : index
    %c16_218 = arith.constant 16 : index
    %446 = vector.load %arg19[%c0_217, %c16_218] : memref<48x32xf32, #tpu.memory_space<vmem>>, vector<48x8xf32>
    tpu.vector_store %arg19[%c0_217, %c16_218], %445 {strides = array<i32>} : memref<48x32xf32, #tpu.memory_space<vmem>>, vector<48x8xf32>,
    %447 = vector.extract_strided_slice %393 {offsets = [0, 24], sizes = [48, 8], strides = [1, 1]} : vector<48x32xf32> to vector<48x8xf32>
    %448 = vector.extract_strided_slice %394 {offsets = [0, 24], sizes = [48, 8], strides = [1, 1]} : vector<48x32xf32> to vector<48x8xf32>
    %cst_219 = arith.constant dense<0.000000e+00> : vector<48x48xf32>
    %449 = tpu.matmul %447, %448, %cst_219 {dimension_numbers = #tpu.dot_dimension_numbers<[1], [1], [0], [0], [0, 0, 1, 0], [], []>} : vector<48x8xf32>, vector<48x8xf32>, vector<48x48xf32> -> vector<48x48xf32>
    %450 = arith.addf %449, %19 : vector<48x48xf32>
    %cst_220 = arith.constant dense<0xFF800000> : vector<48xf32>
    %451 = vector.multi_reduction <maximumf>, %450, %cst_220 [1] : vector<48x48xf32> to vector<48xf32>
    %452 = vector.shape_cast %451 : vector<48xf32> to vector<48x1xf32>
    %453 = vector.broadcast %452 : vector<48x1xf32> to vector<48x48xf32>
    %454 = arith.subf %450, %453 : vector<48x48xf32>
    %455 = math.exp %454 : vector<48x48xf32>
    %cst_221 = arith.constant dense<0.000000e+00> : vector<48xf32>
    %456 = vector.multi_reduction <add>, %455, %cst_221 [1] : vector<48x48xf32> to vector<48xf32>
    %457 = vector.shape_cast %456 : vector<48xf32> to vector<48x1xf32>
    %458 = tpu.reciprocal %457 {approx = true} : vector<48x1xf32> -> vector<48x1xf32>
    %459 = vector.broadcast %458 : vector<48x1xf32> to vector<48x48xf32>
    %460 = arith.mulf %455, %459 : vector<48x48xf32>
    %461 = vector.extract_strided_slice %395 {offsets = [0, 24], sizes = [48, 8], strides = [1, 1]} : vector<48x32xf32> to vector<48x8xf32>
    %cst_222 = arith.constant dense<0.000000e+00> : vector<48x8xf32>
    %462 = tpu.matmul %460, %461, %cst_222 {dimension_numbers = #tpu.dot_dimension_numbers<[1], [0], [0], [1], [0, 0, 1, 1], [], []>} : vector<48x48xf32>, vector<48x8xf32>, vector<48x8xf32> -> vector<48x8xf32>
    %c0_223 = arith.constant 0 : index
    %c24_224 = arith.constant 24 : index
    %463 = vector.load %arg19[%c0_223, %c24_224] : memref<48x32xf32, #tpu.memory_space<vmem>>, vector<48x8xf32>
    tpu.vector_store %arg19[%c0_223, %c24_224], %462 {strides = array<i32>} : memref<48x32xf32, #tpu.memory_space<vmem>>, vector<48x8xf32>,
    %c0_225 = arith.constant 0 : index
    %c0_226 = arith.constant 0 : index
    %464 = vector.load %arg19[%c0_225, %c0_226] : memref<48x32xf32, #tpu.memory_space<vmem>>, vector<48x32xf32>
    %c2_227 = arith.constant 2 : index
    %c0_228 = arith.constant 0 : index
    %c0_229 = arith.constant 0 : index
    %465 = vector.load %arg10[%c2_227, %c0_228, %c0_229] : memref<3x32x32xf32, #tpu.memory_space<vmem>>, vector<1x32x32xf32>
    %466 = vector.shape_cast %465 : vector<1x32x32xf32> to vector<32x32xf32>
    %cst_230 = arith.constant dense<0.000000e+00> : vector<48x32xf32>
    %467 = tpu.matmul %464, %466, %cst_230 {dimension_numbers = #tpu.dot_dimension_numbers<[1], [0], [0], [1], [0, 0, 1, 1], [], []>} : vector<48x32xf32>, vector<32x32xf32>, vector<48x32xf32> -> vector<48x32xf32>
    %468 = arith.addf %357, %467 : vector<48x32xf32>
    %c2_231 = arith.constant 2 : index
    %c0_232 = arith.constant 0 : index
    %c0_233 = arith.constant 0 : index
    %469 = vector.load %arg11[%c2_231, %c0_232, %c0_233] : memref<3x1x32xf32, #tpu.memory_space<vmem>>, vector<1x1x32xf32>
    %470 = vector.shape_cast %469 : vector<1x1x32xf32> to vector<1x32xf32>
    %471 = vector.broadcast %470 : vector<1x32xf32> to vector<48x32xf32>
    %472 = arith.addf %468, %471 : vector<48x32xf32>
    %c2_234 = arith.constant 2 : index
    %c0_235 = arith.constant 0 : index
    %c0_236 = arith.constant 0 : index
    %473 = vector.load %arg12[%c2_234, %c0_235, %c0_236] : memref<3x1x32xf32, #tpu.memory_space<vmem>>, vector<1x1x32xf32>
    %474 = vector.shape_cast %473 : vector<1x1x32xf32> to vector<1x32xf32>
    %c2_237 = arith.constant 2 : index
    %c0_238 = arith.constant 0 : index
    %c0_239 = arith.constant 0 : index
    %475 = vector.load %arg13[%c2_237, %c0_238, %c0_239] : memref<3x1x32xf32, #tpu.memory_space<vmem>>, vector<1x1x32xf32>
    %476 = vector.shape_cast %475 : vector<1x1x32xf32> to vector<1x32xf32>
    %cst_240 = arith.constant dense<0.000000e+00> : vector<48xf32>
    %477 = vector.multi_reduction <add>, %472, %cst_240 [1] : vector<48x32xf32> to vector<48xf32>
    %478 = vector.shape_cast %477 : vector<48xf32> to vector<48x1xf32>
    %cst_241 = arith.constant 3.200000e+01 : f32
    %479 = vector.broadcast %cst_241 : f32 to vector<48x1xf32>
    %480 = arith.divf %478, %479 : vector<48x1xf32>
    %481 = vector.broadcast %480 : vector<48x1xf32> to vector<48x32xf32>
    %482 = arith.subf %472, %481 : vector<48x32xf32>
    %483 = arith.mulf %482, %482 : vector<48x32xf32>
    %cst_242 = arith.constant dense<0.000000e+00> : vector<48xf32>
    %484 = vector.multi_reduction <add>, %483, %cst_242 [1] : vector<48x32xf32> to vector<48xf32>
    %485 = vector.shape_cast %484 : vector<48xf32> to vector<48x1xf32>
    %cst_243 = arith.constant 3.200000e+01 : f32
    %486 = vector.broadcast %cst_243 : f32 to vector<48x1xf32>
    %487 = arith.divf %485, %486 : vector<48x1xf32>
    %488 = vector.broadcast %480 : vector<48x1xf32> to vector<48x32xf32>
    %489 = arith.subf %472, %488 : vector<48x32xf32>
    %cst_244 = arith.constant 9.99999996E-13 : f32
    %490 = vector.broadcast %cst_244 : f32 to vector<48x1xf32>
    %491 = arith.addf %487, %490 : vector<48x1xf32>
    %492 = math.rsqrt %491 : vector<48x1xf32>
    %493 = vector.broadcast %492 : vector<48x1xf32> to vector<48x32xf32>
    %494 = arith.mulf %489, %493 : vector<48x32xf32>
    %495 = vector.broadcast %474 : vector<1x32xf32> to vector<48x32xf32>
    %496 = arith.mulf %494, %495 : vector<48x32xf32>
    %497 = vector.broadcast %476 : vector<1x32xf32> to vector<48x32xf32>
    %498 = arith.addf %496, %497 : vector<48x32xf32>
    %c2_245 = arith.constant 2 : index
    %c0_246 = arith.constant 0 : index
    %c0_247 = arith.constant 0 : index
    %499 = vector.load %arg14[%c2_245, %c0_246, %c0_247] : memref<3x32x128xf32, #tpu.memory_space<vmem>>, vector<1x32x128xf32>
    %500 = vector.shape_cast %499 : vector<1x32x128xf32> to vector<32x128xf32>
    %cst_248 = arith.constant dense<0.000000e+00> : vector<48x128xf32>
    %501 = tpu.matmul %498, %500, %cst_248 {dimension_numbers = #tpu.dot_dimension_numbers<[1], [0], [0], [1], [0, 0, 1, 1], [], []>} : vector<48x32xf32>, vector<32x128xf32>, vector<48x128xf32> -> vector<48x128xf32>
    %c2_249 = arith.constant 2 : index
    %c0_250 = arith.constant 0 : index
    %c0_251 = arith.constant 0 : index
    %502 = vector.load %arg15[%c2_249, %c0_250, %c0_251] : memref<3x1x128xf32, #tpu.memory_space<vmem>>, vector<1x1x128xf32>
    %503 = vector.shape_cast %502 : vector<1x1x128xf32> to vector<1x128xf32>
    %504 = vector.broadcast %503 : vector<1x128xf32> to vector<48x128xf32>
    %505 = arith.addf %501, %504 : vector<48x128xf32>
    %cst_252 = arith.constant 5.000000e-01 : f32
    %506 = vector.broadcast %cst_252 : f32 to vector<48x128xf32>
    %507 = arith.mulf %506, %505 : vector<48x128xf32>
    %cst_253 = arith.constant 4.471500e-02 : f32
    %508 = vector.broadcast %cst_253 : f32 to vector<48x128xf32>
    %509 = arith.mulf %508, %505 : vector<48x128xf32>
    %510 = arith.mulf %509, %505 : vector<48x128xf32>
    %511 = arith.mulf %510, %505 : vector<48x128xf32>
    %512 = arith.addf %505, %511 : vector<48x128xf32>
    %cst_254 = arith.constant 0.797884583 : f32
    %513 = vector.broadcast %cst_254 : f32 to vector<48x128xf32>
    %514 = arith.mulf %513, %512 : vector<48x128xf32>
    %515 = math.tanh %514 : vector<48x128xf32>
    %cst_255 = arith.constant 1.000000e+00 : f32
    %516 = vector.broadcast %cst_255 : f32 to vector<48x128xf32>
    %517 = arith.addf %516, %515 : vector<48x128xf32>
    %518 = arith.mulf %507, %517 : vector<48x128xf32>
    %c2_256 = arith.constant 2 : index
    %c0_257 = arith.constant 0 : index
    %c0_258 = arith.constant 0 : index
    %519 = vector.load %arg16[%c2_256, %c0_257, %c0_258] : memref<3x128x32xf32, #tpu.memory_space<vmem>>, vector<1x128x32xf32>
    %520 = vector.shape_cast %519 : vector<1x128x32xf32> to vector<128x32xf32>
    %cst_259 = arith.constant dense<0.000000e+00> : vector<48x32xf32>
    %521 = tpu.matmul %518, %520, %cst_259 {dimension_numbers = #tpu.dot_dimension_numbers<[1], [0], [0], [1], [0, 0, 1, 1], [], []>} : vector<48x128xf32>, vector<128x32xf32>, vector<48x32xf32> -> vector<48x32xf32>
    %522 = arith.addf %472, %521 : vector<48x32xf32>
    %c2_260 = arith.constant 2 : index
    %c0_261 = arith.constant 0 : index
    %c0_262 = arith.constant 0 : index
    %523 = vector.load %arg17[%c2_260, %c0_261, %c0_262] : memref<3x1x32xf32, #tpu.memory_space<vmem>>, vector<1x1x32xf32>
    %524 = vector.shape_cast %523 : vector<1x1x32xf32> to vector<1x32xf32>
    %525 = vector.broadcast %524 : vector<1x32xf32> to vector<48x32xf32>
    %526 = arith.addf %522, %525 : vector<48x32xf32>
    %527 = vector.extract_strided_slice %526 {offsets = [0, 0], sizes = [16, 32], strides = [1, 1]} : vector<48x32xf32> to vector<16x32xf32>
    %c0_263 = arith.constant 0 : index
    %c0_264 = arith.constant 0 : index
    %528 = vector.load %arg18[%c0_263, %c0_264] : memref<32x32xf32, #tpu.memory_space<vmem>>, vector<16x32xf32>
    tpu.vector_store %arg18[%c0_263, %c0_264], %527 {strides = array<i32>} : memref<32x32xf32, #tpu.memory_space<vmem>>, vector<16x32xf32>,
    %529 = vector.extract_strided_slice %526 {offsets = [24, 0], sizes = [16, 32], strides = [1, 1]} : vector<48x32xf32> to vector<16x32xf32>
    %c16_265 = arith.constant 16 : index
    %c0_266 = arith.constant 0 : index
    %530 = vector.load %arg18[%c16_265, %c0_266] : memref<32x32xf32, #tpu.memory_space<vmem>>, vector<16x32xf32>
    tpu.vector_store %arg18[%c16_265, %c0_266], %529 {strides = array<i32>} : memref<32x32xf32, #tpu.memory_space<vmem>>, vector<16x32xf32>,
    return
  }
}

</mosaic_0001>

<llo_original>
// kernel: mae_forward.1
$region0: #{mae_forward.1}
  #allocation0 [shape = 'u32[]', space=smem, size = 0x4, offset = 0x4, fixed_abs, tag = 'smem constant byte address 0x4 - core index']
  #allocation1 [shape = 'u32[144,128]{1,0:T(1,128)}', space=vmem, size = 0x12000, scoped, tag = 'internal scratch']
  #allocation2 [shape = 'f32[48,32]{1,0:T(8,128)}', space=vmem, size = 0x6000, scoped, tag = 'scratch operand']
  %s0 = inlined_call_operand.vmem [shape: f32[32,192], index: 0, kind: input, shape index: {}]
  %s1 = inlined_call_operand.vmem [shape: f32[192,32], index: 1, kind: input, shape index: {}]
  %s2 = inlined_call_operand.vmem [shape: f32[1,32], index: 2, kind: input, shape index: {}]
  %s3 = inlined_call_operand.vmem [shape: f32[32,32], index: 3, kind: input, shape index: {}]
  %s4 = inlined_call_operand.vmem [shape: f32[1,32], index: 4, kind: input, shape index: {}]
  %s5 = inlined_call_operand.vmem [shape: f32[48,48], index: 5, kind: input, shape index: {}]
  %s6 = inlined_call_operand.vmem [shape: f32[3,1,32], index: 6, kind: input, shape index: {}]
  %s7 = inlined_call_operand.vmem [shape: f32[3,1,32], index: 7, kind: input, shape index: {}]
  %s8 = inlined_call_operand.vmem [shape: f32[3,32,96], index: 8, kind: input, shape index: {}]
  %s9 = inlined_call_operand.vmem [shape: f32[3,1,96], index: 9, kind: input, shape index: {}]
  %s10 = inlined_call_operand.vmem [shape: f32[3,32,32], index: 10, kind: input, shape index: {}]
  %s11 = inlined_call_operand.vmem [shape: f32[3,1,32], index: 11, kind: input, shape index: {}]
  %s12 = inlined_call_operand.vmem [shape: f32[3,1,32], index: 12, kind: input, shape index: {}]
  %s13 = inlined_call_operand.vmem [shape: f32[3,1,32], index: 13, kind: input, shape index: {}]
  %s14 = inlined_call_operand.vmem [shape: f32[3,32,128], index: 14, kind: input, shape index: {}]
  %s15 = inlined_call_operand.vmem [shape: f32[3,1,128], index: 15, kind: input, shape index: {}]
  %s16 = inlined_call_operand.vmem [shape: f32[3,128,32], index: 16, kind: input, shape index: {}]
  %s17 = inlined_call_operand.vmem [shape: f32[3,1,32], index: 17, kind: input, shape index: {}]
  %s18 = inlined_call_operand.hbm [shape: f32[32,32], index: 18, kind: output, shape index: {}]
  %s19 = sld [smem:[#allocation0]]
  $region82: #{mae_forward.1} parent=0
    _
  %s21 = ssub.s32 1, %s19
  %s22 = scalar_select 0, %s21, %s19
  $region1: #{mae_forward.1} parent=0
    #allocation3 [shape = 'u8[16384]{0}', space=vmem, size = 0x4000, scoped, tag = 'output window, operand 0, single buffered']
    #allocation4 [shape = 's32[1]{0}', space=sflag, size = 0x4, scoped, tag = 'scoped memory for mae_forward.1']
    %23 = vsyncpa [#allocation4], 0
    // Predicated region
    $region2: #{mae_forward.1} parent=1 // pred_check
      _
    $region3: #{mae_forward.1} parent=1 // pred_check_branch
      %25 = sbr.rel (0) target = $region5
    $region4: #{mae_forward.1} parent=1 // pred_region
      _
    $region5: #{mae_forward.1} parent=1 // pred_fallthru
      _
    // Predicated region
    $region6: #{mae_forward.1} parent=1 // pred_check
      _
    $region7: #{mae_forward.1} parent=1 // pred_check_branch
      %27 = sbr.rel (0) target = $region9
    $region8: #{mae_forward.1} parent=1 // pred_region
      _
    $region9: #{mae_forward.1} parent=1 // pred_fallthru
      _
    // Predicated region
    $region10: #{mae_forward.1} parent=1 // pred_check
      _
    $region11: #{mae_forward.1} parent=1 // pred_check_branch
      %29 = sbr.rel (0) target = $region13
    $region12: #{mae_forward.1} parent=1 // pred_region
      _
    $region13: #{mae_forward.1} parent=1 // pred_fallthru
      _
    // Predicated region
    $region14: #{mae_forward.1} parent=1 // pred_check
      _
    $region15: #{mae_forward.1} parent=1 // pred_check_branch
      %31 = sbr.rel (0) target = $region17
    $region16: #{mae_forward.1} parent=1 // pred_region
      _
    $region17: #{mae_forward.1} parent=1 // pred_fallthru
      _
    // Predicated region
    $region18: #{mae_forward.1} parent=1 // pred_check
      _
    $region19: #{mae_forward.1} parent=1 // pred_check_branch
      %33 = sbr.rel (0) target = $region21
    $region20: #{mae_forward.1} parent=1 // pred_region
      _
    $region21: #{mae_forward.1} parent=1 // pred_fallthru
      _
    // Predicated region
    $region22: #{mae_forward.1} parent=1 // pred_check
      _
    $region23: #{mae_forward.1} parent=1 // pred_check_branch
      %35 = sbr.rel (0) target = $region25
    $region24: #{mae_forward.1} parent=1 // pred_region
      _
    $region25: #{mae_forward.1} parent=1 // pred_fallthru
      _
    // Predicated region
    $region26: #{mae_forward.1} parent=1 // pred_check
      _
    $region27: #{mae_forward.1} parent=1 // pred_check_branch
      %37 = sbr.rel (0) target = $region29
    $region28: #{mae_forward.1} parent=1 // pred_region
      _
    $region29: #{mae_forward.1} parent=1 // pred_fallthru
      _
    // Predicated region
    $region30: #{mae_forward.1} parent=1 // pred_check
      _
    $region31: #{mae_forward.1} parent=1 // pred_check_branch
      %39 = sbr.rel (0) target = $region33
    $region32: #{mae_forward.1} parent=1 // pred_region
      _
    $region33: #{mae_forward.1} parent=1 // pred_fallthru
      _
    // Predicated region
    $region34: #{mae_forward.1} parent=1 // pred_check
      _
    $region35: #{mae_forward.1} parent=1 // pred_check_branch
      %41 = sbr.rel (0) target = $region37
    $region36: #{mae_forward.1} parent=1 // pred_region
      _
    $region37: #{mae_forward.1} parent=1 // pred_fallthru
      _
    // Predicated region
    $region38: #{mae_forward.1} parent=1 // pred_check
      _
    $region39: #{mae_forward.1} parent=1 // pred_check_branch
      %43 = sbr.rel (0) target = $region41
    $region40: #{mae_forward.1} parent=1 // pred_region
      _
    $region41: #{mae_forward.1} parent=1 // pred_fallthru
      _
    // Predicated region
    $region42: #{mae_forward.1} parent=1 // pred_check
      _
    $region43: #{mae_forward.1} parent=1 // pred_check_branch
      %45 = sbr.rel (0) target = $region45
    $region44: #{mae_forward.1} parent=1 // pred_region
      _
    $region45: #{mae_forward.1} parent=1 // pred_fallthru
      _
    // Predicated region
    $region46: #{mae_forward.1} parent=1 // pred_check
      _
    $region47: #{mae_forward.1} parent=1 // pred_check_branch
      %47 = sbr.rel (0) target = $region49
    $region48: #{mae_forward.1} parent=1 // pred_region
      _
    $region49: #{mae_forward.1} parent=1 // pred_fallthru
      _
    // Predicated region
    $region50: #{mae_forward.1} parent=1 // pred_check
      _
    $region51: #{mae_forward.1} parent=1 // pred_check_branch
      %49 = sbr.rel (0) target = $region53
    $region52: #{mae_forward.1} parent=1 // pred_region
      _
    $region53: #{mae_forward.1} parent=1 // pred_fallthru
      _
    // Predicated region
    $region54: #{mae_forward.1} parent=1 // pred_check
      _
    $region55: #{mae_forward.1} parent=1 // pred_check_branch
      %51 = sbr.rel (0) target = $region57
    $region56: #{mae_forward.1} parent=1 // pred_region
      _
    $region57: #{mae_forward.1} parent=1 // pred_fallthru
      _
    // Predicated region
    $region58: #{mae_forward.1} parent=1 // pred_check
      _
    $region59: #{mae_forward.1} parent=1 // pred_check_branch
      %53 = sbr.rel (0) target = $region61
    $region60: #{mae_forward.1} parent=1 // pred_region
      _
    $region61: #{mae_forward.1} parent=1 // pred_fallthru
      _
    // Predicated region
    $region62: #{mae_forward.1} parent=1 // pred_check
      _
    $region63: #{mae_forward.1} parent=1 // pred_check_branch
      %55 = sbr.rel (0) target = $region65
    $region64: #{mae_forward.1} parent=1 // pred_region
      _
    $region65: #{mae_forward.1} parent=1 // pred_fallthru
      _
    // Predicated region
    $region66: #{mae_forward.1} parent=1 // pred_check
      _
    $region67: #{mae_forward.1} parent=1 // pred_check_branch
      %57 = sbr.rel (0) target = $region69
    $region68: #{mae_forward.1} parent=1 // pred_region
      _
    $region69: #{mae_forward.1} parent=1 // pred_fallthru
      _
    // Predicated region
    $region70: #{mae_forward.1} parent=1 // pred_check
      _
    $region71: #{mae_forward.1} parent=1 // pred_check_branch
      %59 = sbr.rel (0) target = $region73
    $region72: #{mae_forward.1} parent=1 // pred_region
      _
    $region73: #{mae_forward.1} parent=1 // pred_fallthru
      _
    %v60 = vld [vmem:[%s0] sm:$0xff]
    %v61 = vld [vmem:[%s0 + $0x8] sm:$0xff]
    %v62 = vld [vmem:[%s0 + $0x10] sm:$0xff]
    %v63 = vld [vmem:[%s0 + $0x18] sm:$0xff]
    %v64 = vld [vmem:[%s0 + $0x20] sm:$0xff]
    %v65 = vld [vmem:[%s0 + $0x28] sm:$0xff]
    %v66 = vld [vmem:[%s0 + $0x30] sm:$0xff]
    %v67 = vld [vmem:[%s0 + $0x38] sm:$0xff]
    %v68 = vld [vmem:[%s1] sm:$0xff]
    %v69 = vld [vmem:[%s1 + $0x8] sm:$0xff]
    %v70 = vld [vmem:[%s1 + $0x10] sm:$0xff]
    %v71 = vld [vmem:[%s1 + $0x18] sm:$0xff]
    %v72 = vld [vmem:[%s1 + $0x20] sm:$0xff]
    %v73 = vld [vmem:[%s1 + $0x28] sm:$0xff]
    %v74 = vld [vmem:[%s1 + $0x30] sm:$0xff]
    %v75 = vld [vmem:[%s1 + $0x38] sm:$0xff]
    %v76 = vld [vmem:[%s1 + $0x40] sm:$0xff]
    %v77 = vld [vmem:[%s1 + $0x48] sm:$0xff]
    %v78 = vld [vmem:[%s1 + $0x50] sm:$0xff]
    %v79 = vld [vmem:[%s1 + $0x58] sm:$0xff]
    %v80 = vld [vmem:[%s1 + $0x60] sm:$0xff]
    %v81 = vld [vmem:[%s1 + $0x68] sm:$0xff]
    %v82 = vld [vmem:[%s1 + $0x70] sm:$0xff]
    %v83 = vld [vmem:[%s1 + $0x78] sm:$0xff]
    %v84 = vld [vmem:[%s1 + $0x80] sm:$0xff]
    %v85 = vld [vmem:[%s1 + $0x88] sm:$0xff]
    %v86 = vld [vmem:[%s1 + $0x90] sm:$0xff]
    %v87 = vld [vmem:[%s1 + $0x98] sm:$0xff]
    %v88 = vld [vmem:[%s1 + $0xa0] sm:$0xff]
    %v89 = vld [vmem:[%s1 + $0xa8] sm:$0xff]
    %v90 = vld [vmem:[%s1 + $0xb0] sm:$0xff]
    %v91 = vld [vmem:[%s1 + $0xb8] sm:$0xff]
    %v92 = vld [vmem:[%s2] sm:$0x1]
    %v94 = vlaneseq
    %v95 = vshrl.u32 %v94, 7
    %v96 = vsub.s32 0, %v95
    %v97 = vrot.slane %v92, %v96
    %vm99 = vcmask 523264
    %v101 = vsel %vm99, %v61, 0
    %v104 = vsel %vm99, %v63, 0
    %v107 = vsel %vm99, %v65, 0
    %v110 = vsel %vm99, %v67, 0
    %112 = vmatprep.subr.mxu0 0.0
    %113 = vmatpush1.msra.mxu0 %v68
    %114 = vmatprep.subr.mxu0 0.0
    %115 = vmatpush1.msra.mxu0 %v69
    %116 = vmatprep.subr.mxu0 0.0
    %117 = vmatpush1.msra.mxu0 %v70
    %118 = vmatprep.subr.mxu0 0.0
    %119 = vmatpush1.msra.mxu0 %v71
    %120 = vmatprep.subr.mxu0 0.0
    %121 = vmatpush1.msra.mxu0 %v72
    %122 = vmatprep.subr.mxu0 0.0
    %123 = vmatpush1.msra.mxu0 %v73
    %124 = vmatprep.subr.mxu0 0.0
    %125 = vmatpush1.msra.mxu0 %v74
    %126 = vmatprep.subr.mxu0 0.0
    %127 = vmatpush1.msra.mxu0 %v75
    %128 = vmatprep.subr.mxu0 0.0
    %129 = vmatpush1.msra.mxu0 %v76
    %130 = vmatprep.subr.mxu0 0.0
    %131 = vmatpush1.msra.mxu0 %v77
    %132 = vmatprep.subr.mxu0 0.0
    %133 = vmatpush1.msra.mxu0 %v78
    %134 = vmatprep.subr.mxu0 0.0
    %135 = vmatpush1.msra.mxu0 %v79
    %136 = vmatprep.subr.mxu0 0.0
    %137 = vmatpush1.msra.mxu0 %v80
    %138 = vmatprep.subr.mxu0 0.0
    %139 = vmatpush1.msra.mxu0 %v81
    %140 = vmatprep.subr.mxu0 0.0
    %141 = vmatpush1.msra.mxu0 %v82
    %142 = vmatprep.subr.mxu0 0.0
    %143 = vmatpush1.msra.mxu0 %v83
    %144 = vmatprep.subr.mxu0 0.0
    %145 = vmatpush1.msra.mxu0 %v84
    %146 = vmatprep.subr.mxu0 0.0
    %147 = vmatpush1.msra.mxu0 %v85
    %148 = vmatprep.subr.mxu0 0.0
    %149 = vmatpush1.msra.mxu0 %v86
    %150 = vmatprep.subr.mxu0 0.0
    %151 = vmatpush1.msra.mxu0 %v87
    %152 = vmatprep.subr.mxu0 0.0
    %153 = vmatpush1.msra.mxu0 %v88
    %154 = vmatprep.subr.mxu0 0.0
    %155 = vmatpush1.msra.mxu0 %v89
    %156 = vmatprep.subr.mxu0 0.0
    %157 = vmatpush1.msra.mxu0 %v90
    %158 = vmatprep.subr.mxu0 0.0
    %159 = vmatpush1.msra.mxu0 %v91
    %160 = vmatprep.subr.mxu0 0.0
    %161 = vmatpush1.msra.mxu0 0.0
    %162 = vmatprep.subr.mxu0 0.0
    %163 = vmatpush1.msra.mxu0 0.0
    %164 = vmatprep.subr.mxu0 0.0
    %165 = vmatpush1.msra.mxu0 0.0
    %166 = vmatprep.subr.mxu0 0.0
    %167 = vmatpush1.msra.mxu0 0.0
    %168 = vmatprep.subr.mxu0 0.0
    %169 = vmatpush1.msra.mxu0 0.0
    %170 = vmatprep.subr.mxu0 0.0
    %171 = vmatpush1.msra.mxu0 0.0
    %172 = vmatprep.subr.mxu0 0.0
    %173 = vmatpush1.msra.mxu0 0.0
    %174 = vmatprep.subr.mxu0 0.0
    %175 = vmatpush1.msra.mxu0 0.0
    %176 = vmatprep.mubr.f32.mxu0 %v101
    %177 = vmatmul.mubr.f32.gmra.mrb[0].mxu0 %v60
    %v178 = vpop.f32.mrb[0].mxu0
    %v179 = vadd.f32 %v97, %v178
    %v180 = vpop.f32.mrb[0].mxu0
    %181 = vmatprep.mubr.f32.mxu0 %v104
    %182 = vmatmul.mubr.f32.gmra.mrb[0].mxu0 %v62
    %v183 = vpop.f32.mrb[0].mxu0
    %v184 = vadd.f32 %v97, %v183
    %v185 = vpop.f32.mrb[0].mxu0
    %186 = vmatprep.mubr.f32.mxu0 %v107
    %187 = vmatmul.mubr.f32.gmra.mrb[0].mxu0 %v64
    %v188 = vpop.f32.mrb[0].mxu0
    %v189 = vadd.f32 %v97, %v188
    %v190 = vpop.f32.mrb[0].mxu0
    %191 = vmatprep.mubr.f32.mxu0 %v110
    %192 = vmatmul.mubr.f32.gmra.mrb[0].mxu0 %v66
    %v193 = vpop.f32.mrb[0].mxu0
    %v194 = vadd.f32 %v97, %v193
    %v195 = vpop.f32.mrb[0].mxu0
    %196 = vdwg.mxu0
    %v197 = vld [vmem:[%s3] sm:$0xff]
    %v198 = vld [vmem:[%s3 + $0x8] sm:$0xff]
    %v199 = vld [vmem:[%s3 + $0x10] sm:$0xff]
    %v200 = vld [vmem:[%s3 + $0x18] sm:$0xff]
    %v201 = vadd.f32 %v179, %v197
    %v202 = vadd.f32 %v184, %v198
    %v203 = vadd.f32 %v189, %v199
    %v204 = vadd.f32 %v194, %v200
    %vm205 = vcmask 261120
    %206 = vst.msk [vmem:[#allocation2] sm:$0xff] %vm205, 0.0
    %207 = vst.msk [vmem:[#allocation2 + $0x8] sm:$0xff] %vm205, 0.0
    %208 = vst.msk [vmem:[#allocation2 + $0x10] sm:$0xff] %vm205, 0.0
    %209 = vst.msk [vmem:[#allocation2 + $0x18] sm:$0xff] %vm205, 0.0
    %210 = vst.msk [vmem:[#allocation2 + $0x20] sm:$0xff] %vm205, 0.0
    %211 = vst.msk [vmem:[#allocation2 + $0x28] sm:$0xff] %vm205, 0.0
    %212 = vst.msk [vmem:[#allocation2] sm:$0xff] %vm205, %v201
    %213 = vst.msk [vmem:[#allocation2 + $0x8] sm:$0xff] %vm205, %v202
    %v214 = vld [vmem:[%s4] sm:$0x1]
    %vm215 = vcmask 253952
    %216 = vst.msk [vmem:[#allocation2 + $0x10] sm:$0x1] %vm215, %v214
    %217 = vst.msk [vmem:[#allocation2 + $0x18] sm:$0xff] %vm205, %v203
    %218 = vst.msk [vmem:[#allocation2 + $0x20] sm:$0xff] %vm205, %v204
    %v219 = vld [vmem:[%s4] sm:$0x1]
    %220 = vst.msk [vmem:[#allocation2 + $0x28] sm:$0x1] %vm215, %v219
    %v221 = vld [vmem:[#allocation2] sm:$0xff]
    %v222 = vld [vmem:[#allocation2 + $0x8] sm:$0xff]
    %v223 = vld [vmem:[#allocation2 + $0x10] sm:$0xff]
    %v224 = vld [vmem:[#allocation2 + $0x18] sm:$0xff]
    %v225 = vld [vmem:[#allocation2 + $0x20] sm:$0xff]
    %v226 = vld [vmem:[#allocation2 + $0x28] sm:$0xff]
    %v227 = vld [vmem:[%s5] sm:$0xff]
    %v228 = vld [vmem:[%s5 + $0x8] sm:$0xff]
    %v229 = vld [vmem:[%s5 + $0x10] sm:$0xff]
    %v230 = vld [vmem:[%s5 + $0x18] sm:$0xff]
    %v231 = vld [vmem:[%s5 + $0x20] sm:$0xff]
    %v232 = vld [vmem:[%s5 + $0x28] sm:$0xff]
    %v233 = vld [vmem:[%s6] sm:$0x1]
    %v234 = vld [vmem:[%s7] sm:$0x1]
    %v235 = vsel %vm205, %v221, 0.0
    %236 = vadd.xlane.f32.xlu0 %v235
    %v237 = vpop.xlane.xlu0 %236
    %v238 = vsel %vm205, %v222, 0.0
    %239 = vadd.xlane.f32.xlu0 %v238
    %v240 = vpop.xlane.xlu0 %239
    %v241 = vsel %vm205, %v223, 0.0
    %242 = vadd.xlane.f32.xlu0 %v241
    %v243 = vpop.xlane.xlu0 %242
    %v244 = vsel %vm205, %v224, 0.0
    %245 = vadd.xlane.f32.xlu0 %v244
    %v246 = vpop.xlane.xlu0 %245
    %v247 = vsel %vm205, %v225, 0.0
    %248 = vadd.xlane.f32.xlu0 %v247
    %v249 = vpop.xlane.xlu0 %248
    %v250 = vsel %vm205, %v226, 0.0
    %251 = vadd.xlane.f32.xlu0 %v250
    %v252 = vpop.xlane.xlu0 %251
    %v253 = vrcp.pop 32.0
    %v254 = vmul.f32 %v237, %v253
    %v255 = vmul.f32 %v240, %v253
    %v256 = vmul.f32 %v243, %v253
    %v257 = vmul.f32 %v246, %v253
    %v258 = vmul.f32 %v249, %v253
    %v259 = vmul.f32 %v252, %v253
    %v260 = vsub.f32 %v221, %v254
    %v261 = vsub.f32 %v222, %v255
    %v262 = vsub.f32 %v223, %v256
    %v263 = vsub.f32 %v224, %v257
    %v264 = vsub.f32 %v225, %v258
    %v265 = vsub.f32 %v226, %v259
    %v266 = vmul.f32 %v260, %v260
    %v267 = vmul.f32 %v261, %v261
    %v268 = vmul.f32 %v262, %v262
    %v269 = vmul.f32 %v263, %v263
    %v270 = vmul.f32 %v264, %v264
    %v271 = vmul.f32 %v265, %v265
    %v272 = vsel %vm205, %v266, 0.0
    %273 = vadd.xlane.f32.xlu0 %v272
    %v274 = vpop.xlane.xlu0 %273
    %v275 = vsel %vm205, %v267, 0.0
    %276 = vadd.xlane.f32.xlu0 %v275
    %v277 = vpop.xlane.xlu0 %276
    %v278 = vsel %vm205, %v268, 0.0
    %279 = vadd.xlane.f32.xlu0 %v278
    %v280 = vpop.xlane.xlu0 %279
    %v281 = vsel %vm205, %v269, 0.0
    %282 = vadd.xlane.f32.xlu0 %v281
    %v283 = vpop.xlane.xlu0 %282
    %v284 = vsel %vm205, %v270, 0.0
    %285 = vadd.xlane.f32.xlu0 %v284
    %v286 = vpop.xlane.xlu0 %285
    %v287 = vsel %vm205, %v271, 0.0
    %288 = vadd.xlane.f32.xlu0 %v287
    %v289 = vpop.xlane.xlu0 %288
    %v290 = vmul.f32 %v274, %v253
    %v291 = vmul.f32 %v277, %v253
    %v292 = vmul.f32 %v280, %v253
    %v293 = vmul.f32 %v283, %v253
    %v294 = vmul.f32 %v286, %v253
    %v295 = vmul.f32 %v289, %v253
    %v296 = vadd.f32 %v290, 1e-12
    %v297 = vadd.f32 %v291, 1e-12
    %v298 = vadd.f32 %v292, 1e-12
    %v299 = vadd.f32 %v293, 1e-12
    %v300 = vadd.f32 %v294, 1e-12
    %v301 = vadd.f32 %v295, 1e-12
    %v302 = vrsqrt.pop %v296
    %v303 = vrsqrt.pop %v297
    %v304 = vrsqrt.pop %v298
    %v305 = vrsqrt.pop %v299
    %v306 = vrsqrt.pop %v300
    %v307 = vrsqrt.pop %v301
    %v308 = vmul.f32 %v260, %v302
    %v309 = vmul.f32 %v261, %v303
    %v310 = vmul.f32 %v262, %v304
    %v311 = vmul.f32 %v263, %v305
    %v312 = vmul.f32 %v264, %v306
    %v313 = vmul.f32 %v265, %v307
    %v315 = vlaneseq
    %v316 = vshrl.u32 %v315, 7
    %v317 = vsub.s32 0, %v316
    %v318 = vrot.slane %v233, %v317
    %v320 = vmul.f32 %v308, %v318
    %v321 = vmul.f32 %v309, %v318
    %v322 = vmul.f32 %v310, %v318
    %v323 = vmul.f32 %v311, %v318
    %v324 = vmul.f32 %v312, %v318
    %v325 = vmul.f32 %v313, %v318
    %v327 = vlaneseq
    %v328 = vshrl.u32 %v327, 7
    %v329 = vsub.s32 0, %v328
    %v330 = vrot.slane %v234, %v329
    %v332 = vadd.f32 %v320, %v330
    %v333 = vadd.f32 %v321, %v330
    %v334 = vadd.f32 %v322, %v330
    %v335 = vadd.f32 %v323, %v330
    %v336 = vadd.f32 %v324, %v330
    %v337 = vadd.f32 %v325, %v330
    %v338 = vld [vmem:[%s8] sm:$0xff]
    %v339 = vld [vmem:[%s8 + $0x8] sm:$0xff]
    %v340 = vld [vmem:[%s8 + $0x10] sm:$0xff]
    %v341 = vld [vmem:[%s8 + $0x18] sm:$0xff]
    %v342 = vld [vmem:[%s9] sm:$0x1]
    %v344 = vlaneseq
    %v345 = vshrl.u32 %v344, 7
    %v346 = vsub.s32 0, %v345
    %v347 = vrot.slane %v342, %v346
    %v350 = vsel %vm205, %v332, 0
    %v353 = vsel %vm205, %v333, 0
    %v356 = vsel %vm205, %v334, 0
    %v359 = vsel %vm205, %v335, 0
    %v362 = vsel %vm205, %v336, 0
    %v365 = vsel %vm205, %v337, 0
    %367 = vmatprep.subr.mxu0 0.0
    %368 = vmatpush1.msra.mxu0 %v338
    %369 = vmatprep.subr.mxu0 0.0
    %370 = vmatpush1.msra.mxu0 %v339
    %371 = vmatprep.subr.mxu0 0.0
    %372 = vmatpush1.msra.mxu0 %v340
    %373 = vmatprep.subr.mxu0 0.0
    %374 = vmatpush1.msra.mxu0 %v341
    %375 = vmatprep.subr.mxu0 0.0
    %376 = vmatpush1.msra.mxu0 0.0
    %377 = vmatprep.subr.mxu0 0.0
    %378 = vmatpush1.msra.mxu0 0.0
    %379 = vmatprep.subr.mxu0 0.0
    %380 = vmatpush1.msra.mxu0 0.0
    %381 = vmatprep.subr.mxu0 0.0
    %382 = vmatpush1.msra.mxu0 0.0
    %383 = vmatprep.subr.mxu0 0.0
    %384 = vmatpush1.msra.mxu0 0.0
    %385 = vmatprep.subr.mxu0 0.0
    %386 = vmatpush1.msra.mxu0 0.0
    %387 = vmatprep.subr.mxu0 0.0
    %388 = vmatpush1.msra.mxu0 0.0
    %389 = vmatprep.subr.mxu0 0.0
    %390 = vmatpush1.msra.mxu0 0.0
    %391 = vmatprep.subr.mxu0 0.0
    %392 = vmatpush1.msra.mxu0 0.0
    %393 = vmatprep.subr.mxu0 0.0
    %394 = vmatpush1.msra.mxu0 0.0
    %395 = vmatprep.subr.mxu0 0.0
    %396 = vmatpush1.msra.mxu0 0.0
    %397 = vmatprep.subr.mxu0 0.0
    %398 = vmatpush1.msra.mxu0 0.0
    %399 = vmatprep.subr.mxu0 0.0
    %400 = vmatpush1.msra.mxu0 0.0
    %401 = vmatprep.subr.mxu0 0.0
    %402 = vmatpush1.msra.mxu0 0.0
    %403 = vmatprep.subr.mxu0 0.0
    %404 = vmatpush1.msra.mxu0 0.0
    %405 = vmatprep.subr.mxu0 0.0
    %406 = vmatpush1.msra.mxu0 0.0
    %407 = vmatprep.subr.mxu0 0.0
    %408 = vmatpush1.msra.mxu0 0.0
    %409 = vmatprep.subr.mxu0 0.0
    %410 = vmatpush1.msra.mxu0 0.0
    %411 = vmatprep.subr.mxu0 0.0
    %412 = vmatpush1.msra.mxu0 0.0
    %413 = vmatprep.subr.mxu0 0.0
    %414 = vmatpush1.msra.mxu0 0.0
    %415 = vmatprep.subr.mxu0 0.0
    %416 = vmatpush1.msra.mxu0 0.0
    %417 = vmatprep.subr.mxu0 0.0
    %418 = vmatpush1.msra.mxu0 0.0
    %419 = vmatprep.subr.mxu0 0.0
    %420 = vmatpush1.msra.mxu0 0.0
    %421 = vmatprep.subr.mxu0 0.0
    %422 = vmatpush1.msra.mxu0 0.0
    %423 = vmatprep.subr.mxu0 0.0
    %424 = vmatpush1.msra.mxu0 0.0
    %425 = vmatprep.subr.mxu0 0.0
    %426 = vmatpush1.msra.mxu0 0.0
    %427 = vmatprep.subr.mxu0 0.0
    %428 = vmatpush1.msra.mxu0 0.0
    %429 = vmatprep.subr.mxu0 0.0
    %430 = vmatpush1.msra.mxu0 0.0
    %431 = vmatprep.mubr.f32.mxu0 0.0
    %432 = vmatmul.mubr.f32.gmra.mrb[0].mxu0 %v350
    %v433 = vpop.f32.mrb[0].mxu0
    %v434 = vadd.f32 %v347, %v433
    %v435 = vpop.f32.mrb[0].mxu0
    %436 = vmatprep.mubr.f32.mxu0 0.0
    %437 = vmatmul.mubr.f32.gmra.mrb[0].mxu0 %v353
    %v438 = vpop.f32.mrb[0].mxu0
    %v439 = vadd.f32 %v347, %v438
    %v440 = vpop.f32.mrb[0].mxu0
    %441 = vmatprep.mubr.f32.mxu0 0.0
    %442 = vmatmul.mubr.f32.gmra.mrb[0].mxu0 %v356
    %v443 = vpop.f32.mrb[0].mxu0
    %v444 = vadd.f32 %v347, %v443
    %v445 = vpop.f32.mrb[0].mxu0
    %446 = vmatprep.mubr.f32.mxu0 0.0
    %447 = vmatmul.mubr.f32.gmra.mrb[0].mxu0 %v359
    %v448 = vpop.f32.mrb[0].mxu0
    %v449 = vadd.f32 %v347, %v448
    %v450 = vpop.f32.mrb[0].mxu0
    %451 = vmatprep.mubr.f32.mxu0 0.0
    %452 = vmatmul.mubr.f32.gmra.mrb[0].mxu0 %v362
    %v453 = vpop.f32.mrb[0].mxu0
    %v454 = vadd.f32 %v347, %v453
    %v455 = vpop.f32.mrb[0].mxu0
    %456 = vmatprep.mubr.f32.mxu0 0.0
    %457 = vmatmul.mubr.f32.gmra.mrb[0].mxu0 %v365
    %v458 = vpop.f32.mrb[0].mxu0
    %v459 = vadd.f32 %v347, %v458
    %v460 = vpop.f32.mrb[0].mxu0
    %461 = vdwg.mxu0
    %v462 = vmul.f32 %v434, 0.35355338
    %v463 = vmul.f32 %v439, 0.35355338
    %v464 = vmul.f32 %v444, 0.35355338
    %v465 = vmul.f32 %v449, 0.35355338
    %v466 = vmul.f32 %v454, 0.35355338
    %v467 = vmul.f32 %v459, 0.35355338
    %474 = vrot.lane.b32.xlu0 %v434, 96
    %v475 = vpop.permute.xlu0 %474
    %476 = vrot.lane.b32.xlu0 %v439, 96
    %v477 = vpop.permute.xlu0 %476
    %478 = vrot.lane.b32.xlu0 %v444, 96
    %v479 = vpop.permute.xlu0 %478
    %480 = vrot.lane.b32.xlu0 %v449, 96
    %v481 = vpop.permute.xlu0 %480
    %482 = vrot.lane.b32.xlu0 %v454, 96
    %v483 = vpop.permute.xlu0 %482
    %484 = vrot.lane.b32.xlu0 %v459, 96
    %v485 = vpop.permute.xlu0 %484
    %vm486 = vcmask 64512
    %v488 = vsel %vm486, %v462, 0
    %v491 = vsel %vm486, %v463, 0
    %v494 = vsel %vm486, %v464, 0
    %v497 = vsel %vm486, %v465, 0
    %v500 = vsel %vm486, %v466, 0
    %v503 = vsel %vm486, %v467, 0
    %v505 = vsel %vm486, %v475, 0
    %v507 = vsel %vm486, %v477, 0
    %v509 = vsel %vm486, %v479, 0
    %v511 = vsel %vm486, %v481, 0
    %v513 = vsel %vm486, %v483, 0
    %v515 = vsel %vm486, %v485, 0
    %517 = vmatprep.subr.mxu0 0.0
    %518 = vmatpush1.xpose.msra.mxu0 %v505
    %519 = vmatprep.subr.mxu0 0.0
    %520 = vmatpush1.xpose.msra.mxu0 %v507
    %521 = vmatprep.subr.mxu0 0.0
    %522 = vmatpush1.xpose.msra.mxu0 %v509
    %523 = vmatprep.subr.mxu0 0.0
    %524 = vmatpush1.xpose.msra.mxu0 %v511
    %525 = vmatprep.subr.mxu0 0.0
    %526 = vmatpush1.xpose.msra.mxu0 %v513
    %527 = vmatprep.subr.mxu0 0.0
    %528 = vmatpush1.xpose.msra.mxu0 %v515
    %529 = vmatprep.subr.mxu0 0.0
    %530 = vmatpush1.xpose.msra.mxu0 0.0
    %531 = vmatprep.subr.mxu0 0.0
    %532 = vmatpush1.xpose.msra.mxu0 0.0
    %533 = vmatprep.subr.mxu0 0.0
    %534 = vmatpush1.xpose.msra.mxu0 0.0
    %535 = vmatprep.subr.mxu0 0.0
    %536 = vmatpush1.xpose.msra.mxu0 0.0
    %537 = vmatprep.subr.mxu0 0.0
    %538 = vmatpush1.xpose.msra.mxu0 0.0
    %539 = vmatprep.subr.mxu0 0.0
    %540 = vmatpush1.xpose.msra.mxu0 0.0
    %541 = vmatprep.subr.mxu0 0.0
    %542 = vmatpush1.xpose.msra.mxu0 0.0
    %543 = vmatprep.subr.mxu0 0.0
    %544 = vmatpush1.xpose.msra.mxu0 0.0
    %545 = vmatprep.subr.mxu0 0.0
    %546 = vmatpush1.xpose.msra.mxu0 0.0
    %547 = vmatprep.subr.mxu0 0.0
    %548 = vmatpush1.xpose.msra.mxu0 0.0
    %549 = vmatprep.subr.mxu0 0.0
    %550 = vmatpush1.xpose.msra.mxu0 0.0
    %551 = vmatprep.subr.mxu0 0.0
    %552 = vmatpush1.xpose.msra.mxu0 0.0
    %553 = vmatprep.subr.mxu0 0.0
    %554 = vmatpush1.xpose.msra.mxu0 0.0
    %555 = vmatprep.subr.mxu0 0.0
    %556 = vmatpush1.xpose.msra.mxu0 0.0
    %557 = vmatprep.subr.mxu0 0.0
    %558 = vmatpush1.xpose.msra.mxu0 0.0
    %559 = vmatprep.subr.mxu0 0.0
    %560 = vmatpush1.xpose.msra.mxu0 0.0
    %561 = vmatprep.subr.mxu0 0.0
    %562 = vmatpush1.xpose.msra.mxu0 0.0
    %563 = vmatprep.subr.mxu0 0.0
    %564 = vmatpush1.xpose.msra.mxu0 0.0
    %565 = vmatprep.subr.mxu0 0.0
    %566 = vmatpush1.xpose.msra.mxu0 0.0
    %567 = vmatprep.subr.mxu0 0.0
    %568 = vmatpush1.xpose.msra.mxu0 0.0
    %569 = vmatprep.subr.mxu0 0.0
    %570 = vmatpush1.xpose.msra.mxu0 0.0
    %571 = vmatprep.subr.mxu0 0.0
    %572 = vmatpush1.xpose.msra.mxu0 0.0
    %573 = vmatprep.subr.mxu0 0.0
    %574 = vmatpush1.xpose.msra.mxu0 0.0
    %575 = vmatprep.subr.mxu0 0.0
    %576 = vmatpush1.xpose.msra.mxu0 0.0
    %577 = vmatprep.subr.mxu0 0.0
    %578 = vmatpush1.xpose.msra.mxu0 0.0
    %579 = vmatprep.subr.mxu0 0.0
    %580 = vmatpush1.xpose.msra.mxu0 0.0
    %581 = vmatprep.mubr.f32.mxu0 0.0
    %582 = vmatmul.mubr.f32.gmra.mrb[0].mxu0 %v488
    %v583 = vpop.f32.mrb[0].mxu0
    %v584 = vadd.f32 %v227, %v583
    %v585 = vpop.f32.mrb[0].mxu0
    %586 = vmatprep.mubr.f32.mxu0 0.0
    %587 = vmatmul.mubr.f32.gmra.mrb[0].mxu0 %v491
    %v588 = vpop.f32.mrb[0].mxu0
    %v589 = vadd.f32 %v228, %v588
    %v590 = vpop.f32.mrb[0].mxu0
    %591 = vmatprep.mubr.f32.mxu0 0.0
    %592 = vmatmul.mubr.f32.gmra.mrb[0].mxu0 %v494
    %v593 = vpop.f32.mrb[0].mxu0
    %v594 = vadd.f32 %v229, %v593
    %v595 = vpop.f32.mrb[0].mxu0
    %596 = vmatprep.mubr.f32.mxu0 0.0
    %597 = vmatmul.mubr.f32.gmra.mrb[0].mxu0 %v497
    %v598 = vpop.f32.mrb[0].mxu0
    %v599 = vadd.f32 %v230, %v598
    %v600 = vpop.f32.mrb[0].mxu0
    %601 = vmatprep.mubr.f32.mxu0 0.0
    %602 = vmatmul.mubr.f32.gmra.mrb[0].mxu0 %v500
    %v603 = vpop.f32.mrb[0].mxu0
    %v604 = vadd.f32 %v231, %v603
    %v605 = vpop.f32.mrb[0].mxu0
    %606 = vmatprep.mubr.f32.mxu0 0.0
    %607 = vmatmul.mubr.f32.gmra.mrb[0].mxu0 %v503
    %v608 = vpop.f32.mrb[0].mxu0
    %v609 = vadd.f32 %v232, %v608
    %v610 = vpop.f32.mrb[0].mxu0
    %611 = vdwg.mxu0
    %vm612 = vcmask 392192
    %v613 = vsel %vm612, %v584, -inf
    %614 = vmax.xlane.f32.xlu0 %v613
    %v615 = vpop.xlane.xlu0 %614
    %v616 = vsel %vm612, %v589, -inf
    %617 = vmax.xlane.f32.xlu0 %v616
    %v618 = vpop.xlane.xlu0 %617
    %v619 = vsel %vm612, %v594, -inf
    %620 = vmax.xlane.f32.xlu0 %v619
    %v621 = vpop.xlane.xlu0 %620
    %v622 = vsel %vm612, %v599, -inf
    %623 = vmax.xlane.f32.xlu0 %v622
    %v624 = vpop.xlane.xlu0 %623
    %v625 = vsel %vm612, %v604, -inf
    %626 = vmax.xlane.f32.xlu0 %v625
    %v627 = vpop.xlane.xlu0 %626
    %v628 = vsel %vm612, %v609, -inf
    %629 = vmax.xlane.f32.xlu0 %v628
    %v630 = vpop.xlane.xlu0 %629
    %v631 = vsub.f32 %v584, %v615
    %v632 = vsub.f32 %v589, %v618
    %v633 = vsub.f32 %v594, %v621
    %v634 = vsub.f32 %v599, %v624
    %v635 = vsub.f32 %v604, %v627
    %v636 = vsub.f32 %v609, %v630
    %v637 = vmul.f32 %v631, 1.442695
    %v638 = vpow.pop %v637
    %v639 = vmul.f32 %v632, 1.442695
    %v640 = vpow.pop %v639
    %v641 = vmul.f32 %v633, 1.442695
    %v642 = vpow.pop %v641
    %v643 = vmul.f32 %v634, 1.442695
    %v644 = vpow.pop %v643
    %v645 = vmul.f32 %v635, 1.442695
    %v646 = vpow.pop %v645
    %v647 = vmul.f32 %v636, 1.442695
    %v648 = vpow.pop %v647
    %v649 = vsel %vm612, %v638, 0.0
    %650 = vadd.xlane.f32.xlu0 %v649
    %v651 = vpop.xlane.xlu0 %650
    %v652 = vsel %vm612, %v640, 0.0
    %653 = vadd.xlane.f32.xlu0 %v652
    %v654 = vpop.xlane.xlu0 %653
    %v655 = vsel %vm612, %v642, 0.0
    %656 = vadd.xlane.f32.xlu0 %v655
    %v657 = vpop.xlane.xlu0 %656
    %v658 = vsel %vm612, %v644, 0.0
    %659 = vadd.xlane.f32.xlu0 %v658
    %v660 = vpop.xlane.xlu0 %659
    %v661 = vsel %vm612, %v646, 0.0
    %662 = vadd.xlane.f32.xlu0 %v661
    %v663 = vpop.xlane.xlu0 %662
    %v664 = vsel %vm612, %v648, 0.0
    %665 = vadd.xlane.f32.xlu0 %v664
    %v666 = vpop.xlane.xlu0 %665
    %v667 = vrcp.pop %v651
    %v668 = vrcp.pop %v654
    %v669 = vrcp.pop %v657
    %v670 = vrcp.pop %v660
    %v671 = vrcp.pop %v663
    %v672 = vrcp.pop %v666
    %v673 = vmul.f32 %v638, %v667
    %v674 = vmul.f32 %v640, %v668
    %v675 = vmul.f32 %v642, %v669
    %v676 = vmul.f32 %v644, %v670
    %v677 = vmul.f32 %v646, %v671
    %v678 = vmul.f32 %v648, %v672
    %679 = vrot.lane.b32.xlu0 %v434, 64
    %v680 = vpop.permute.xlu0 %679
    %681 = vrot.lane.b32.xlu0 %v439, 64
    %v682 = vpop.permute.xlu0 %681
    %683 = vrot.lane.b32.xlu0 %v444, 64
    %v684 = vpop.permute.xlu0 %683
    %685 = vrot.lane.b32.xlu0 %v449, 64
    %v686 = vpop.permute.xlu0 %685
    %687 = vrot.lane.b32.xlu0 %v454, 64
    %v688 = vpop.permute.xlu0 %687
    %689 = vrot.lane.b32.xlu0 %v459, 64
    %v690 = vpop.permute.xlu0 %689
    %v698 = vsel %vm612, %v673, 0
    %v701 = vsel %vm612, %v674, 0
    %v704 = vsel %vm612, %v675, 0
    %v707 = vsel %vm612, %v676, 0
    %v710 = vsel %vm612, %v677, 0
    %v713 = vsel %vm612, %v678, 0
    %715 = vmatprep.subr.mxu0 0.0
    %716 = vmatpush1.msra.mxu0 %v680
    %717 = vmatprep.subr.mxu0 0.0
    %718 = vmatpush1.msra.mxu0 %v682
    %719 = vmatprep.subr.mxu0 0.0
    %720 = vmatpush1.msra.mxu0 %v684
    %721 = vmatprep.subr.mxu0 0.0
    %722 = vmatpush1.msra.mxu0 %v686
    %723 = vmatprep.subr.mxu0 0.0
    %724 = vmatpush1.msra.mxu0 %v688
    %725 = vmatprep.subr.mxu0 0.0
    %726 = vmatpush1.msra.mxu0 %v690
    %727 = vmatprep.subr.mxu0 0.0
    %728 = vmatpush1.msra.mxu0 0.0
    %729 = vmatprep.subr.mxu0 0.0
    %730 = vmatpush1.msra.mxu0 0.0
    %731 = vmatprep.subr.mxu0 0.0
    %732 = vmatpush1.msra.mxu0 0.0
    %733 = vmatprep.subr.mxu0 0.0
    %734 = vmatpush1.msra.mxu0 0.0
    %735 = vmatprep.subr.mxu0 0.0
    %736 = vmatpush1.msra.mxu0 0.0
    %737 = vmatprep.subr.mxu0 0.0
    %738 = vmatpush1.msra.mxu0 0.0
    %739 = vmatprep.subr.mxu0 0.0
    %740 = vmatpush1.msra.mxu0 0.0
    %741 = vmatprep.subr.mxu0 0.0
    %742 = vmatpush1.msra.mxu0 0.0
    %743 = vmatprep.subr.mxu0 0.0
    %744 = vmatpush1.msra.mxu0 0.0
    %745 = vmatprep.subr.mxu0 0.0
    %746 = vmatpush1.msra.mxu0 0.0
    %747 = vmatprep.subr.mxu0 0.0
    %748 = vmatpush1.msra.mxu0 0.0
    %749 = vmatprep.subr.mxu0 0.0
    %750 = vmatpush1.msra.mxu0 0.0
    %751 = vmatprep.subr.mxu0 0.0
    %752 = vmatpush1.msra.mxu0 0.0
    %753 = vmatprep.subr.mxu0 0.0
    %754 = vmatpush1.msra.mxu0 0.0
    %755 = vmatprep.subr.mxu0 0.0
    %756 = vmatpush1.msra.mxu0 0.0
    %757 = vmatprep.subr.mxu0 0.0
    %758 = vmatpush1.msra.mxu0 0.0
    %759 = vmatprep.subr.mxu0 0.0
    %760 = vmatpush1.msra.mxu0 0.0
    %761 = vmatprep.subr.mxu0 0.0
    %762 = vmatpush1.msra.mxu0 0.0
    %763 = vmatprep.subr.mxu0 0.0
    %764 = vmatpush1.msra.mxu0 0.0
    %765 = vmatprep.subr.mxu0 0.0
    %766 = vmatpush1.msra.mxu0 0.0
    %767 = vmatprep.subr.mxu0 0.0
    %768 = vmatpush1.msra.mxu0 0.0
    %769 = vmatprep.subr.mxu0 0.0
    %770 = vmatpush1.msra.mxu0 0.0
    %771 = vmatprep.subr.mxu0 0.0
    %772 = vmatpush1.msra.mxu0 0.0
    %773 = vmatprep.subr.mxu0 0.0
    %774 = vmatpush1.msra.mxu0 0.0
    %775 = vmatprep.subr.mxu0 0.0
    %776 = vmatpush1.msra.mxu0 0.0
    %777 = vmatprep.subr.mxu0 0.0
    %778 = vmatpush1.msra.mxu0 0.0
    %779 = vmatprep.mubr.f32.mxu0 0.0
    %780 = vmatmul.mubr.f32.gmra.mrb[0].mxu0 %v698
    %v781 = vpop.f32.mrb[0].mxu0
    %v782 = vadd.f32 0.0, %v781
    %v783 = vpop.f32.mrb[0].mxu0
    %784 = vmatprep.mubr.f32.mxu0 0.0
    %785 = vmatmul.mubr.f32.gmra.mrb[0].mxu0 %v701
    %v786 = vpop.f32.mrb[0].mxu0
    %v787 = vadd.f32 0.0, %v786
    %v788 = vpop.f32.mrb[0].mxu0
    %789 = vmatprep.mubr.f32.mxu0 0.0
    %790 = vmatmul.mubr.f32.gmra.mrb[0].mxu0 %v704
    %v791 = vpop.f32.mrb[0].mxu0
    %v792 = vadd.f32 0.0, %v791
    %v793 = vpop.f32.mrb[0].mxu0
    %794 = vmatprep.mubr.f32.mxu0 0.0
    %795 = vmatmul.mubr.f32.gmra.mrb[0].mxu0 %v707
    %v796 = vpop.f32.mrb[0].mxu0
    %v797 = vadd.f32 0.0, %v796
    %v798 = vpop.f32.mrb[0].mxu0
    %799 = vmatprep.mubr.f32.mxu0 0.0
    %800 = vmatmul.mubr.f32.gmra.mrb[0].mxu0 %v710
    %v801 = vpop.f32.mrb[0].mxu0
    %v802 = vadd.f32 0.0, %v801
    %v803 = vpop.f32.mrb[0].mxu0
    %804 = vmatprep.mubr.f32.mxu0 0.0
    %805 = vmatmul.mubr.f32.gmra.mrb[0].mxu0 %v713
    %v806 = vpop.f32.mrb[0].mxu0
    %v807 = vadd.f32 0.0, %v806
    %v808 = vpop.f32.mrb[0].mxu0
    %809 = vdwg.mxu0
    %810 = vst.msk [vmem:[#allocation2] sm:$0xff] %vm486, %v782
    %811 = vst.msk [vmem:[#allocation2 + $0x8] sm:$0xff] %vm486, %v787
    %812 = vst.msk [vmem:[#allocation2 + $0x10] sm:$0xff] %vm486, %v792
    %813 = vst.msk [vmem:[#allocation2 + $0x18] sm:$0xff] %vm486, %v797
    %814 = vst.msk [vmem:[#allocation2 + $0x20] sm:$0xff] %vm486, %v802
    %815 = vst.msk [vmem:[#allocation2 + $0x28] sm:$0xff] %vm486, %v807
    %816 = vrot.lane.b32.xlu0 %v462, 120
    %v817 = vpop.permute.xlu0 %816
    %818 = vrot.lane.b32.xlu0 %v463, 120
    %v819 = vpop.permute.xlu0 %818
    %820 = vrot.lane.b32.xlu0 %v464, 120
    %v821 = vpop.permute.xlu0 %820
    %822 = vrot.lane.b32.xlu0 %v465, 120
    %v823 = vpop.permute.xlu0 %822
    %824 = vrot.lane.b32.xlu0 %v466, 120
    %v825 = vpop.permute.xlu0 %824
    %826 = vrot.lane.b32.xlu0 %v467, 120
    %v827 = vpop.permute.xlu0 %826
    %828 = vrot.lane.b32.xlu0 %v434, 88
    %v829 = vpop.permute.xlu0 %828
    %830 = vrot.lane.b32.xlu0 %v439, 88
    %v831 = vpop.permute.xlu0 %830
    %832 = vrot.lane.b32.xlu0 %v444, 88
    %v833 = vpop.permute.xlu0 %832
    %834 = vrot.lane.b32.xlu0 %v449, 88
    %v835 = vpop.permute.xlu0 %834
    %836 = vrot.lane.b32.xlu0 %v454, 88
    %v837 = vpop.permute.xlu0 %836
    %838 = vrot.lane.b32.xlu0 %v459, 88
    %v839 = vpop.permute.xlu0 %838
    %v840 = vsel %vm486, %v817, 0
    %v842 = vsel %vm486, %v819, 0
    %v844 = vsel %vm486, %v821, 0
    %v846 = vsel %vm486, %v823, 0
    %v848 = vsel %vm486, %v825, 0
    %v850 = vsel %vm486, %v827, 0
    %v852 = vsel %vm486, %v829, 0
    %v854 = vsel %vm486, %v831, 0
    %v856 = vsel %vm486, %v833, 0
    %v858 = vsel %vm486, %v835, 0
    %v860 = vsel %vm486, %v837, 0
    %v862 = vsel %vm486, %v839, 0
    %864 = vmatprep.subr.mxu0 0.0
    %865 = vmatpush1.xpose.msra.mxu0 %v852
    %866 = vmatprep.subr.mxu0 0.0
    %867 = vmatpush1.xpose.msra.mxu0 %v854
    %868 = vmatprep.subr.mxu0 0.0
    %869 = vmatpush1.xpose.msra.mxu0 %v856
    %870 = vmatprep.subr.mxu0 0.0
    %871 = vmatpush1.xpose.msra.mxu0 %v858
    %872 = vmatprep.subr.mxu0 0.0
    %873 = vmatpush1.xpose.msra.mxu0 %v860
    %874 = vmatprep.subr.mxu0 0.0
    %875 = vmatpush1.xpose.msra.mxu0 %v862
    %876 = vmatprep.subr.mxu0 0.0
    %877 = vmatpush1.xpose.msra.mxu0 0.0
    %878 = vmatprep.subr.mxu0 0.0
    %879 = vmatpush1.xpose.msra.mxu0 0.0
    %880 = vmatprep.subr.mxu0 0.0
    %881 = vmatpush1.xpose.msra.mxu0 0.0
    %882 = vmatprep.subr.mxu0 0.0
    %883 = vmatpush1.xpose.msra.mxu0 0.0
    %884 = vmatprep.subr.mxu0 0.0
    %885 = vmatpush1.xpose.msra.mxu0 0.0
    %886 = vmatprep.subr.mxu0 0.0
    %887 = vmatpush1.xpose.msra.mxu0 0.0
    %888 = vmatprep.subr.mxu0 0.0
    %889 = vmatpush1.xpose.msra.mxu0 0.0
    %890 = vmatprep.subr.mxu0 0.0
    %891 = vmatpush1.xpose.msra.mxu0 0.0
    %892 = vmatprep.subr.mxu0 0.0
    %893 = vmatpush1.xpose.msra.mxu0 0.0
    %894 = vmatprep.subr.mxu0 0.0
    %895 = vmatpush1.xpose.msra.mxu0 0.0
    %896 = vmatprep.subr.mxu0 0.0
    %897 = vmatpush1.xpose.msra.mxu0 0.0
    %898 = vmatprep.subr.mxu0 0.0
    %899 = vmatpush1.xpose.msra.mxu0 0.0
    %900 = vmatprep.subr.mxu0 0.0
    %901 = vmatpush1.xpose.msra.mxu0 0.0
    %902 = vmatprep.subr.mxu0 0.0
    %903 = vmatpush1.xpose.msra.mxu0 0.0
    %904 = vmatprep.subr.mxu0 0.0
    %905 = vmatpush1.xpose.msra.mxu0 0.0
    %906 = vmatprep.subr.mxu0 0.0
    %907 = vmatpush1.xpose.msra.mxu0 0.0
    %908 = vmatprep.subr.mxu0 0.0
    %909 = vmatpush1.xpose.msra.mxu0 0.0
    %910 = vmatprep.subr.mxu0 0.0
    %911 = vmatpush1.xpose.msra.mxu0 0.0
    %912 = vmatprep.subr.mxu0 0.0
    %913 = vmatpush1.xpose.msra.mxu0 0.0
    %914 = vmatprep.subr.mxu0 0.0
    %915 = vmatpush1.xpose.msra.mxu0 0.0
    %916 = vmatprep.subr.mxu0 0.0
    %917 = vmatpush1.xpose.msra.mxu0 0.0
    %918 = vmatprep.subr.mxu0 0.0
    %919 = vmatpush1.xpose.msra.mxu0 0.0
    %920 = vmatprep.subr.mxu0 0.0
    %921 = vmatpush1.xpose.msra.mxu0 0.0
    %922 = vmatprep.subr.mxu0 0.0
    %923 = vmatpush1.xpose.msra.mxu0 0.0
    %924 = vmatprep.subr.mxu0 0.0
    %925 = vmatpush1.xpose.msra.mxu0 0.0
    %926 = vmatprep.subr.mxu0 0.0
    %927 = vmatpush1.xpose.msra.mxu0 0.0
    %928 = vmatprep.mubr.f32.mxu0 0.0
    %929 = vmatmul.mubr.f32.gmra.mrb[0].mxu0 %v840
    %v930 = vpop.f32.mrb[0].mxu0
    %v931 = vadd.f32 %v227, %v930
    %v932 = vpop.f32.mrb[0].mxu0
    %933 = vmatprep.mubr.f32.mxu0 0.0
    %934 = vmatmul.mubr.f32.gmra.mrb[0].mxu0 %v842
    %v935 = vpop.f32.mrb[0].mxu0
    %v936 = vadd.f32 %v228, %v935
    %v937 = vpop.f32.mrb[0].mxu0
    %938 = vmatprep.mubr.f32.mxu0 0.0
    %939 = vmatmul.mubr.f32.gmra.mrb[0].mxu0 %v844
    %v940 = vpop.f32.mrb[0].mxu0
    %v941 = vadd.f32 %v229, %v940
    %v942 = vpop.f32.mrb[0].mxu0
    %943 = vmatprep.mubr.f32.mxu0 0.0
    %944 = vmatmul.mubr.f32.gmra.mrb[0].mxu0 %v846
    %v945 = vpop.f32.mrb[0].mxu0
    %v946 = vadd.f32 %v230, %v945
    %v947 = vpop.f32.mrb[0].mxu0
    %948 = vmatprep.mubr.f32.mxu0 0.0
    %949 = vmatmul.mubr.f32.gmra.mrb[0].mxu0 %v848
    %v950 = vpop.f32.mrb[0].mxu0
    %v951 = vadd.f32 %v231, %v950
    %v952 = vpop.f32.mrb[0].mxu0
    %953 = vmatprep.mubr.f32.mxu0 0.0
    %954 = vmatmul.mubr.f32.gmra.mrb[0].mxu0 %v850
    %v955 = vpop.f32.mrb[0].mxu0
    %v956 = vadd.f32 %v232, %v955
    %v957 = vpop.f32.mrb[0].mxu0
    %958 = vdwg.mxu0
    %v959 = vsel %vm612, %v931, -inf
    %960 = vmax.xlane.f32.xlu0 %v959
    %v961 = vpop.xlane.xlu0 %960
    %v962 = vsel %vm612, %v936, -inf
    %963 = vmax.xlane.f32.xlu0 %v962
    %v964 = vpop.xlane.xlu0 %963
    %v965 = vsel %vm612, %v941, -inf
    %966 = vmax.xlane.f32.xlu0 %v965
    %v967 = vpop.xlane.xlu0 %966
    %v968 = vsel %vm612, %v946, -inf
    %969 = vmax.xlane.f32.xlu0 %v968
    %v970 = vpop.xlane.xlu0 %969
    %v971 = vsel %vm612, %v951, -inf
    %972 = vmax.xlane.f32.xlu0 %v971
    %v973 = vpop.xlane.xlu0 %972
    %v974 = vsel %vm612, %v956, -inf
    %975 = vmax.xlane.f32.xlu0 %v974
    %v976 = vpop.xlane.xlu0 %975
    %v977 = vsub.f32 %v931, %v961
    %v978 = vsub.f32 %v936, %v964
    %v979 = vsub.f32 %v941, %v967
    %v980 = vsub.f32 %v946, %v970
    %v981 = vsub.f32 %v951, %v973
    %v982 = vsub.f32 %v956, %v976
    %v983 = vmul.f32 %v977, 1.442695
    %v984 = vpow.pop %v983
    %v985 = vmul.f32 %v978, 1.442695
    %v986 = vpow.pop %v985
    %v987 = vmul.f32 %v979, 1.442695
    %v988 = vpow.pop %v987
    %v989 = vmul.f32 %v980, 1.442695
    %v990 = vpow.pop %v989
    %v991 = vmul.f32 %v981, 1.442695
    %v992 = vpow.pop %v991
    %v993 = vmul.f32 %v982, 1.442695
    %v994 = vpow.pop %v993
    %v995 = vsel %vm612, %v984, 0.0
    %996 = vadd.xlane.f32.xlu0 %v995
    %v997 = vpop.xlane.xlu0 %996
    %v998 = vsel %vm612, %v986, 0.0
    %999 = vadd.xlane.f32.xlu0 %v998
    %v1000 = vpop.xlane.xlu0 %999
    %v1001 = vsel %vm612, %v988, 0.0
    %1002 = vadd.xlane.f32.xlu0 %v1001
    %v1003 = vpop.xlane.xlu0 %1002
    %v1004 = vsel %vm612, %v990, 0.0
    %1005 = vadd.xlane.f32.xlu0 %v1004
    %v1006 = vpop.xlane.xlu0 %1005
    %v1007 = vsel %vm612, %v992, 0.0
    %1008 = vadd.xlane.f32.xlu0 %v1007
    %v1009 = vpop.xlane.xlu0 %1008
    %v1010 = vsel %vm612, %v994, 0.0
    %1011 = vadd.xlane.f32.xlu0 %v1010
    %v1012 = vpop.xlane.xlu0 %1011
    %v1013 = vrcp.pop %v997
    %v1014 = vrcp.pop %v1000
    %v1015 = vrcp.pop %v1003
    %v1016 = vrcp.pop %v1006
    %v1017 = vrcp.pop %v1009
    %v1018 = vrcp.pop %v1012
    %v1019 = vmul.f32 %v984, %v1013
    %v1020 = vmul.f32 %v986, %v1014
    %v1021 = vmul.f32 %v988, %v1015
    %v1022 = vmul.f32 %v990, %v1016
    %v1023 = vmul.f32 %v992, %v1017
    %v1024 = vmul.f32 %v994, %v1018
    %1025 = vrot.lane.b32.xlu0 %v434, 56
    %v1026 = vpop.permute.xlu0 %1025
    %1027 = vrot.lane.b32.xlu0 %v439, 56
    %v1028 = vpop.permute.xlu0 %1027
    %1029 = vrot.lane.b32.xlu0 %v444, 56
    %v1030 = vpop.permute.xlu0 %1029
    %1031 = vrot.lane.b32.xlu0 %v449, 56
    %v1032 = vpop.permute.xlu0 %1031
    %1033 = vrot.lane.b32.xlu0 %v454, 56
    %v1034 = vpop.permute.xlu0 %1033
    %1035 = vrot.lane.b32.xlu0 %v459, 56
    %v1036 = vpop.permute.xlu0 %1035
    %v1044 = vsel %vm612, %v1019, 0
    %v1047 = vsel %vm612, %v1020, 0
    %v1050 = vsel %vm612, %v1021, 0
    %v1053 = vsel %vm612, %v1022, 0
    %v1056 = vsel %vm612, %v1023, 0
    %v1059 = vsel %vm612, %v1024, 0
    %1061 = vmatprep.subr.mxu0 0.0
    %1062 = vmatpush1.msra.mxu0 %v1026
    %1063 = vmatprep.subr.mxu0 0.0
    %1064 = vmatpush1.msra.mxu0 %v1028
    %1065 = vmatprep.subr.mxu0 0.0
    %1066 = vmatpush1.msra.mxu0 %v1030
    %1067 = vmatprep.subr.mxu0 0.0
    %1068 = vmatpush1.msra.mxu0 %v1032
    %1069 = vmatprep.subr.mxu0 0.0
    %1070 = vmatpush1.msra.mxu0 %v1034
    %1071 = vmatprep.subr.mxu0 0.0
    %1072 = vmatpush1.msra.mxu0 %v1036
    %1073 = vmatprep.subr.mxu0 0.0
    %1074 = vmatpush1.msra.mxu0 0.0
    %1075 = vmatprep.subr.mxu0 0.0
    %1076 = vmatpush1.msra.mxu0 0.0
    %1077 = vmatprep.subr.mxu0 0.0
    %1078 = vmatpush1.msra.mxu0 0.0
    %1079 = vmatprep.subr.mxu0 0.0
    %1080 = vmatpush1.msra.mxu0 0.0
    %1081 = vmatprep.subr.mxu0 0.0
    %1082 = vmatpush1.msra.mxu0 0.0
    %1083 = vmatprep.subr.mxu0 0.0
    %1084 = vmatpush1.msra.mxu0 0.0
    %1085 = vmatprep.subr.mxu0 0.0
    %1086 = vmatpush1.msra.mxu0 0.0
    %1087 = vmatprep.subr.mxu0 0.0
    %1088 = vmatpush1.msra.mxu0 0.0
    %1089 = vmatprep.subr.mxu0 0.0
    %1090 = vmatpush1.msra.mxu0 0.0
    %1091 = vmatprep.subr.mxu0 0.0
    %1092 = vmatpush1.msra.mxu0 0.0
    %1093 = vmatprep.subr.mxu0 0.0
    %1094 = vmatpush1.msra.mxu0 0.0
    %1095 = vmatprep.subr.mxu0 0.0
    %1096 = vmatpush1.msra.mxu0 0.0
    %1097 = vmatprep.subr.mxu0 0.0
    %1098 = vmatpush1.msra.mxu0 0.0
    %1099 = vmatprep.subr.mxu0 0.0
    %1100 = vmatpush1.msra.mxu0 0.0
    %1101 = vmatprep.subr.mxu0 0.0
    %1102 = vmatpush1.msra.mxu0 0.0
    %1103 = vmatprep.subr.mxu0 0.0
    %1104 = vmatpush1.msra.mxu0 0.0
    %1105 = vmatprep.subr.mxu0 0.0
    %1106 = vmatpush1.msra.mxu0 0.0
    %1107 = vmatprep.subr.mxu0 0.0
    %1108 = vmatpush1.msra.mxu0 0.0
    %1109 = vmatprep.subr.mxu0 0.0
    %1110 = vmatpush1.msra.mxu0 0.0
    %1111 = vmatprep.subr.mxu0 0.0
    %1112 = vmatpush1.msra.mxu0 0.0
    %1113 = vmatprep.subr.mxu0 0.0
    %1114 = vmatpush1.msra.mxu0 0.0
    %1115 = vmatprep.subr.mxu0 0.0
    %1116 = vmatpush1.msra.mxu0 0.0
    %1117 = vmatprep.subr.mxu0 0.0
    %1118 = vmatpush1.msra.mxu0 0.0
    %1119 = vmatprep.subr.mxu0 0.0
    %1120 = vmatpush1.msra.mxu0 0.0
    %1121 = vmatprep.subr.mxu0 0.0
    %1122 = vmatpush1.msra.mxu0 0.0
    %1123 = vmatprep.subr.mxu0 0.0
    %1124 = vmatpush1.msra.mxu0 0.0
    %1125 = vmatprep.mubr.f32.mxu0 0.0
    %1126 = vmatmul.mubr.f32.gmra.mrb[0].mxu0 %v1044
    %v1127 = vpop.f32.mrb[0].mxu0
    %v1128 = vadd.f32 0.0, %v1127
    %v1129 = vpop.f32.mrb[0].mxu0
    %1130 = vmatprep.mubr.f32.mxu0 0.0
    %1131 = vmatmul.mubr.f32.gmra.mrb[0].mxu0 %v1047
    %v1132 = vpop.f32.mrb[0].mxu0
    %v1133 = vadd.f32 0.0, %v1132
    %v1134 = vpop.f32.mrb[0].mxu0
    %1135 = vmatprep.mubr.f32.mxu0 0.0
    %1136 = vmatmul.mubr.f32.gmra.mrb[0].mxu0 %v1050
    %v1137 = vpop.f32.mrb[0].mxu0
    %v1138 = vadd.f32 0.0, %v1137
    %v1139 = vpop.f32.mrb[0].mxu0
    %1140 = vmatprep.mubr.f32.mxu0 0.0
    %1141 = vmatmul.mubr.f32.gmra.mrb[0].mxu0 %v1053
    %v1142 = vpop.f32.mrb[0].mxu0
    %v1143 = vadd.f32 0.0, %v1142
    %v1144 = vpop.f32.mrb[0].mxu0
    %1145 = vmatprep.mubr.f32.mxu0 0.0
    %1146 = vmatmul.mubr.f32.gmra.mrb[0].mxu0 %v1056
    %v1147 = vpop.f32.mrb[0].mxu0
    %v1148 = vadd.f32 0.0, %v1147
    %v1149 = vpop.f32.mrb[0].mxu0
    %1150 = vmatprep.mubr.f32.mxu0 0.0
    %1151 = vmatmul.mubr.f32.gmra.mrb[0].mxu0 %v1059
    %v1152 = vpop.f32.mrb[0].mxu0
    %v1153 = vadd.f32 0.0, %v1152
    %v1154 = vpop.f32.mrb[0].mxu0
    %1155 = vdwg.mxu0
    %1162 = vrot.lane.b32.xlu0 %v1128, 8
    %v1163 = vpop.permute.xlu0 %1162
    %1164 = vrot.lane.b32.xlu0 %v1133, 8
    %v1165 = vpop.permute.xlu0 %1164
    %1166 = vrot.lane.b32.xlu0 %v1138, 8
    %v1167 = vpop.permute.xlu0 %1166
    %1168 = vrot.lane.b32.xlu0 %v1143, 8
    %v1169 = vpop.permute.xlu0 %1168
    %1170 = vrot.lane.b32.xlu0 %v1148, 8
    %v1171 = vpop.permute.xlu0 %1170
    %1172 = vrot.lane.b32.xlu0 %v1153, 8
    %v1173 = vpop.permute.xlu0 %1172
    %vm1180 = vcmask 130112
    %1181 = vst.msk [vmem:[#allocation2] sm:$0xff] %vm1180, %v1163
    %1182 = vst.msk [vmem:[#allocation2 + $0x8] sm:$0xff] %vm1180, %v1165
    %1183 = vst.msk [vmem:[#allocation2 + $0x10] sm:$0xff] %vm1180, %v1167
    %1184 = vst.msk [vmem:[#allocation2 + $0x18] sm:$0xff] %vm1180, %v1169
    %1185 = vst.msk [vmem:[#allocation2 + $0x20] sm:$0xff] %vm1180, %v1171
    %1186 = vst.msk [vmem:[#allocation2 + $0x28] sm:$0xff] %vm1180, %v1173
    %1187 = vrot.lane.b32.xlu0 %v462, 112
    %v1188 = vpop.permute.xlu0 %1187
    %1189 = vrot.lane.b32.xlu0 %v463, 112
    %v1190 = vpop.permute.xlu0 %1189
    %1191 = vrot.lane.b32.xlu0 %v464, 112
    %v1192 = vpop.permute.xlu0 %1191
    %1193 = vrot.lane.b32.xlu0 %v465, 112
    %v1194 = vpop.permute.xlu0 %1193
    %1195 = vrot.lane.b32.xlu0 %v466, 112
    %v1196 = vpop.permute.xlu0 %1195
    %1197 = vrot.lane.b32.xlu0 %v467, 112
    %v1198 = vpop.permute.xlu0 %1197
    %1199 = vrot.lane.b32.xlu0 %v434, 80
    %v1200 = vpop.permute.xlu0 %1199
    %1201 = vrot.lane.b32.xlu0 %v439, 80
    %v1202 = vpop.permute.xlu0 %1201
    %1203 = vrot.lane.b32.xlu0 %v444, 80
    %v1204 = vpop.permute.xlu0 %1203
    %1205 = vrot.lane.b32.xlu0 %v449, 80
    %v1206 = vpop.permute.xlu0 %1205
    %1207 = vrot.lane.b32.xlu0 %v454, 80
    %v1208 = vpop.permute.xlu0 %1207
    %1209 = vrot.lane.b32.xlu0 %v459, 80
    %v1210 = vpop.permute.xlu0 %1209
    %v1211 = vsel %vm486, %v1188, 0
    %v1213 = vsel %vm486, %v1190, 0
    %v1215 = vsel %vm486, %v1192, 0
    %v1217 = vsel %vm486, %v1194, 0
    %v1219 = vsel %vm486, %v1196, 0
    %v1221 = vsel %vm486, %v1198, 0
    %v1223 = vsel %vm486, %v1200, 0
    %v1225 = vsel %vm486, %v1202, 0
    %v1227 = vsel %vm486, %v1204, 0
    %v1229 = vsel %vm486, %v1206, 0
    %v1231 = vsel %vm486, %v1208, 0
    %v1233 = vsel %vm486, %v1210, 0
    %1235 = vmatprep.subr.mxu0 0.0
    %1236 = vmatpush1.xpose.msra.mxu0 %v1223
    %1237 = vmatprep.subr.mxu0 0.0
    %1238 = vmatpush1.xpose.msra.mxu0 %v1225
    %1239 = vmatprep.subr.mxu0 0.0
    %1240 = vmatpush1.xpose.msra.mxu0 %v1227
    %1241 = vmatprep.subr.mxu0 0.0
    %1242 = vmatpush1.xpose.msra.mxu0 %v1229
    %1243 = vmatprep.subr.mxu0 0.0
    %1244 = vmatpush1.xpose.msra.mxu0 %v1231
    %1245 = vmatprep.subr.mxu0 0.0
    %1246 = vmatpush1.xpose.msra.mxu0 %v1233
    %1247 = vmatprep.subr.mxu0 0.0
    %1248 = vmatpush1.xpose.msra.mxu0 0.0
    %1249 = vmatprep.subr.mxu0 0.0
    %1250 = vmatpush1.xpose.msra.mxu0 0.0
    %1251 = vmatprep.subr.mxu0 0.0
    %1252 = vmatpush1.xpose.msra.mxu0 0.0
    %1253 = vmatprep.subr.mxu0 0.0
    %1254 = vmatpush1.xpose.msra.mxu0 0.0
    %1255 = vmatprep.subr.mxu0 0.0
    %1256 = vmatpush1.xpose.msra.mxu0 0.0
    %1257 = vmatprep.subr.mxu0 0.0
    %1258 = vmatpush1.xpose.msra.mxu0 0.0
    %1259 = vmatprep.subr.mxu0 0.0
    %1260 = vmatpush1.xpose.msra.mxu0 0.0
    %1261 = vmatprep.subr.mxu0 0.0
    %1262 = vmatpush1.xpose.msra.mxu0 0.0
    %1263 = vmatprep.subr.mxu0 0.0
    %1264 = vmatpush1.xpose.msra.mxu0 0.0
    %1265 = vmatprep.subr.mxu0 0.0
    %1266 = vmatpush1.xpose.msra.mxu0 0.0
    %1267 = vmatprep.subr.mxu0 0.0
    %1268 = vmatpush1.xpose.msra.mxu0 0.0
    %1269 = vmatprep.subr.mxu0 0.0
    %1270 = vmatpush1.xpose.msra.mxu0 0.0
    %1271 = vmatprep.subr.mxu0 0.0
    %1272 = vmatpush1.xpose.msra.mxu0 0.0
    %1273 = vmatprep.subr.mxu0 0.0
    %1274 = vmatpush1.xpose.msra.mxu0 0.0
    %1275 = vmatprep.subr.mxu0 0.0
    %1276 = vmatpush1.xpose.msra.mxu0 0.0
    %1277 = vmatprep.subr.mxu0 0.0
    %1278 = vmatpush1.xpose.msra.mxu0 0.0
    %1279 = vmatprep.subr.mxu0 0.0
    %1280 = vmatpush1.xpose.msra.mxu0 0.0
    %1281 = vmatprep.subr.mxu0 0.0
    %1282 = vmatpush1.xpose.msra.mxu0 0.0
    %1283 = vmatprep.subr.mxu0 0.0
    %1284 = vmatpush1.xpose.msra.mxu0 0.0
    %1285 = vmatprep.subr.mxu0 0.0
    %1286 = vmatpush1.xpose.msra.mxu0 0.0
    %1287 = vmatprep.subr.mxu0 0.0
    %1288 = vmatpush1.xpose.msra.mxu0 0.0
    %1289 = vmatprep.subr.mxu0 0.0
    %1290 = vmatpush1.xpose.msra.mxu0 0.0
    %1291 = vmatprep.subr.mxu0 0.0
    %1292 = vmatpush1.xpose.msra.mxu0 0.0
    %1293 = vmatprep.subr.mxu0 0.0
    %1294 = vmatpush1.xpose.msra.mxu0 0.0
    %1295 = vmatprep.subr.mxu0 0.0
    %1296 = vmatpush1.xpose.msra.mxu0 0.0
    %1297 = vmatprep.subr.mxu0 0.0
    %1298 = vmatpush1.xpose.msra.mxu0 0.0
    %1299 = vmatprep.mubr.f32.mxu0 0.0
    %1300 = vmatmul.mubr.f32.gmra.mrb[0].mxu0 %v1211
    %v1301 = vpop.f32.mrb[0].mxu0
    %v1302 = vadd.f32 %v227, %v1301
    %v1303 = vpop.f32.mrb[0].mxu0
    %1304 = vmatprep.mubr.f32.mxu0 0.0
    %1305 = vmatmul.mubr.f32.gmra.mrb[0].mxu0 %v1213
    %v1306 = vpop.f32.mrb[0].mxu0
    %v1307 = vadd.f32 %v228, %v1306
    %v1308 = vpop.f32.mrb[0].mxu0
    %1309 = vmatprep.mubr.f32.mxu0 0.0
    %1310 = vmatmul.mubr.f32.gmra.mrb[0].mxu0 %v1215
    %v1311 = vpop.f32.mrb[0].mxu0
    %v1312 = vadd.f32 %v229, %v1311
    %v1313 = vpop.f32.mrb[0].mxu0
    %1314 = vmatprep.mubr.f32.mxu0 0.0
    %1315 = vmatmul.mubr.f32.gmra.mrb[0].mxu0 %v1217
    %v1316 = vpop.f32.mrb[0].mxu0
    %v1317 = vadd.f32 %v230, %v1316
    %v1318 = vpop.f32.mrb[0].mxu0
    %1319 = vmatprep.mubr.f32.mxu0 0.0
    %1320 = vmatmul.mubr.f32.gmra.mrb[0].mxu0 %v1219
    %v1321 = vpop.f32.mrb[0].mxu0
    %v1322 = vadd.f32 %v231, %v1321
    %v1323 = vpop.f32.mrb[0].mxu0
    %1324 = vmatprep.mubr.f32.mxu0 0.0
    %1325 = vmatmul.mubr.f32.gmra.mrb[0].mxu0 %v1221
    %v1326 = vpop.f32.mrb[0].mxu0
    %v1327 = vadd.f32 %v232, %v1326
    %v1328 = vpop.f32.mrb[0].mxu0
    %1329 = vdwg.mxu0
    %v1330 = vsel %vm612, %v1302, -inf
    %1331 = vmax.xlane.f32.xlu0 %v1330
    %v1332 = vpop.xlane.xlu0 %1331
    %v1333 = vsel %vm612, %v1307, -inf
    %1334 = vmax.xlane.f32.xlu0 %v1333
    %v1335 = vpop.xlane.xlu0 %1334
    %v1336 = vsel %vm612, %v1312, -inf
    %1337 = vmax.xlane.f32.xlu0 %v1336
    %v1338 = vpop.xlane.xlu0 %1337
    %v1339 = vsel %vm612, %v1317, -inf
    %1340 = vmax.xlane.f32.xlu0 %v1339
    %v1341 = vpop.xlane.xlu0 %1340
    %v1342 = vsel %vm612, %v1322, -inf
    %1343 = vmax.xlane.f32.xlu0 %v1342
    %v1344 = vpop.xlane.xlu0 %1343
    %v1345 = vsel %vm612, %v1327, -inf
    %1346 = vmax.xlane.f32.xlu0 %v1345
    %v1347 = vpop.xlane.xlu0 %1346
    %v1348 = vsub.f32 %v1302, %v1332
    %v1349 = vsub.f32 %v1307, %v1335
    %v1350 = vsub.f32 %v1312, %v1338
    %v1351 = vsub.f32 %v1317, %v1341
    %v1352 = vsub.f32 %v1322, %v1344
    %v1353 = vsub.f32 %v1327, %v1347
    %v1354 = vmul.f32 %v1348, 1.442695
    %v1355 = vpow.pop %v1354
    %v1356 = vmul.f32 %v1349, 1.442695
    %v1357 = vpow.pop %v1356
    %v1358 = vmul.f32 %v1350, 1.442695
    %v1359 = vpow.pop %v1358
    %v1360 = vmul.f32 %v1351, 1.442695
    %v1361 = vpow.pop %v1360
    %v1362 = vmul.f32 %v1352, 1.442695
    %v1363 = vpow.pop %v1362
    %v1364 = vmul.f32 %v1353, 1.442695
    %v1365 = vpow.pop %v1364
    %v1366 = vsel %vm612, %v1355, 0.0
    %1367 = vadd.xlane.f32.xlu0 %v1366
    %v1368 = vpop.xlane.xlu0 %1367
    %v1369 = vsel %vm612, %v1357, 0.0
    %1370 = vadd.xlane.f32.xlu0 %v1369
    %v1371 = vpop.xlane.xlu0 %1370
    %v1372 = vsel %vm612, %v1359, 0.0
    %1373 = vadd.xlane.f32.xlu0 %v1372
    %v1374 = vpop.xlane.xlu0 %1373
    %v1375 = vsel %vm612, %v1361, 0.0
    %1376 = vadd.xlane.f32.xlu0 %v1375
    %v1377 = vpop.xlane.xlu0 %1376
    %v1378 = vsel %vm612, %v1363, 0.0
    %1379 = vadd.xlane.f32.xlu0 %v1378
    %v1380 = vpop.xlane.xlu0 %1379
    %v1381 = vsel %vm612, %v1365, 0.0
    %1382 = vadd.xlane.f32.xlu0 %v1381
    %v1383 = vpop.xlane.xlu0 %1382
    %v1384 = vrcp.pop %v1368
    %v1385 = vrcp.pop %v1371
    %v1386 = vrcp.pop %v1374
    %v1387 = vrcp.pop %v1377
    %v1388 = vrcp.pop %v1380
    %v1389 = vrcp.pop %v1383
    %v1390 = vmul.f32 %v1355, %v1384
    %v1391 = vmul.f32 %v1357, %v1385
    %v1392 = vmul.f32 %v1359, %v1386
    %v1393 = vmul.f32 %v1361, %v1387
    %v1394 = vmul.f32 %v1363, %v1388
    %v1395 = vmul.f32 %v1365, %v1389
    %1396 = vrot.lane.b32.xlu0 %v434, 48
    %v1397 = vpop.permute.xlu0 %1396
    %1398 = vrot.lane.b32.xlu0 %v439, 48
    %v1399 = vpop.permute.xlu0 %1398
    %1400 = vrot.lane.b32.xlu0 %v444, 48
    %v1401 = vpop.permute.xlu0 %1400
    %1402 = vrot.lane.b32.xlu0 %v449, 48
    %v1403 = vpop.permute.xlu0 %1402
    %1404 = vrot.lane.b32.xlu0 %v454, 48
    %v1405 = vpop.permute.xlu0 %1404
    %1406 = vrot.lane.b32.xlu0 %v459, 48
    %v1407 = vpop.permute.xlu0 %1406
    %v1415 = vsel %vm612, %v1390, 0
    %v1418 = vsel %vm612, %v1391, 0
    %v1421 = vsel %vm612, %v1392, 0
    %v1424 = vsel %vm612, %v1393, 0
    %v1427 = vsel %vm612, %v1394, 0
    %v1430 = vsel %vm612, %v1395, 0
    %1432 = vmatprep.subr.mxu0 0.0
    %1433 = vmatpush1.msra.mxu0 %v1397
    %1434 = vmatprep.subr.mxu0 0.0
    %1435 = vmatpush1.msra.mxu0 %v1399
    %1436 = vmatprep.subr.mxu0 0.0
    %1437 = vmatpush1.msra.mxu0 %v1401
    %1438 = vmatprep.subr.mxu0 0.0
    %1439 = vmatpush1.msra.mxu0 %v1403
    %1440 = vmatprep.subr.mxu0 0.0
    %1441 = vmatpush1.msra.mxu0 %v1405
    %1442 = vmatprep.subr.mxu0 0.0
    %1443 = vmatpush1.msra.mxu0 %v1407
    %1444 = vmatprep.subr.mxu0 0.0
    %1445 = vmatpush1.msra.mxu0 0.0
    %1446 = vmatprep.subr.mxu0 0.0
    %1447 = vmatpush1.msra.mxu0 0.0
    %1448 = vmatprep.subr.mxu0 0.0
    %1449 = vmatpush1.msra.mxu0 0.0
    %1450 = vmatprep.subr.mxu0 0.0
    %1451 = vmatpush1.msra.mxu0 0.0
    %1452 = vmatprep.subr.mxu0 0.0
    %1453 = vmatpush1.msra.mxu0 0.0
    %1454 = vmatprep.subr.mxu0 0.0
    %1455 = vmatpush1.msra.mxu0 0.0
    %1456 = vmatprep.subr.mxu0 0.0
    %1457 = vmatpush1.msra.mxu0 0.0
    %1458 = vmatprep.subr.mxu0 0.0
    %1459 = vmatpush1.msra.mxu0 0.0
    %1460 = vmatprep.subr.mxu0 0.0
    %1461 = vmatpush1.msra.mxu0 0.0
    %1462 = vmatprep.subr.mxu0 0.0
    %1463 = vmatpush1.msra.mxu0 0.0
    %1464 = vmatprep.subr.mxu0 0.0
    %1465 = vmatpush1.msra.mxu0 0.0
    %1466 = vmatprep.subr.mxu0 0.0
    %1467 = vmatpush1.msra.mxu0 0.0
    %1468 = vmatprep.subr.mxu0 0.0
    %1469 = vmatpush1.msra.mxu0 0.0
    %1470 = vmatprep.subr.mxu0 0.0
    %1471 = vmatpush1.msra.mxu0 0.0
    %1472 = vmatprep.subr.mxu0 0.0
    %1473 = vmatpush1.msra.mxu0 0.0
    %1474 = vmatprep.subr.mxu0 0.0
    %1475 = vmatpush1.msra.mxu0 0.0
    %1476 = vmatprep.subr.mxu0 0.0
    %1477 = vmatpush1.msra.mxu0 0.0
    %1478 = vmatprep.subr.mxu0 0.0
    %1479 = vmatpush1.msra.mxu0 0.0
    %1480 = vmatprep.subr.mxu0 0.0
    %1481 = vmatpush1.msra.mxu0 0.0
    %1482 = vmatprep.subr.mxu0 0.0
    %1483 = vmatpush1.msra.mxu0 0.0
    %1484 = vmatprep.subr.mxu0 0.0
    %1485 = vmatpush1.msra.mxu0 0.0
    %1486 = vmatprep.subr.mxu0 0.0
    %1487 = vmatpush1.msra.mxu0 0.0
    %1488 = vmatprep.subr.mxu0 0.0
    %1489 = vmatpush1.msra.mxu0 0.0
    %1490 = vmatprep.subr.mxu0 0.0
    %1491 = vmatpush1.msra.mxu0 0.0
    %1492 = vmatprep.subr.mxu0 0.0
    %1493 = vmatpush1.msra.mxu0 0.0
    %1494 = vmatprep.subr.mxu0 0.0
    %1495 = vmatpush1.msra.mxu0 0.0
    %1496 = vmatprep.mubr.f32.mxu0 0.0
    %1497 = vmatmul.mubr.f32.gmra.mrb[0].mxu0 %v1415
    %v1498 = vpop.f32.mrb[0].mxu0
    %v1499 = vadd.f32 0.0, %v1498
    %v1500 = vpop.f32.mrb[0].mxu0
    %1501 = vmatprep.mubr.f32.mxu0 0.0
    %1502 = vmatmul.mubr.f32.gmra.mrb[0].mxu0 %v1418
    %v1503 = vpop.f32.mrb[0].mxu0
    %v1504 = vadd.f32 0.0, %v1503
    %v1505 = vpop.f32.mrb[0].mxu0
    %1506 = vmatprep.mubr.f32.mxu0 0.0
    %1507 = vmatmul.mubr.f32.gmra.mrb[0].mxu0 %v1421
    %v1508 = vpop.f32.mrb[0].mxu0
    %v1509 = vadd.f32 0.0, %v1508
    %v1510 = vpop.f32.mrb[0].mxu0
    %1511 = vmatprep.mubr.f32.mxu0 0.0
    %1512 = vmatmul.mubr.f32.gmra.mrb[0].mxu0 %v1424
    %v1513 = vpop.f32.mrb[0].mxu0
    %v1514 = vadd.f32 0.0, %v1513
    %v1515 = vpop.f32.mrb[0].mxu0
    %1516 = vmatprep.mubr.f32.mxu0 0.0
    %1517 = vmatmul.mubr.f32.gmra.mrb[0].mxu0 %v1427
    %v1518 = vpop.f32.mrb[0].mxu0
    %v1519 = vadd.f32 0.0, %v1518
    %v1520 = vpop.f32.mrb[0].mxu0
    %1521 = vmatprep.mubr.f32.mxu0 0.0
    %1522 = vmatmul.mubr.f32.gmra.mrb[0].mxu0 %v1430
    %v1523 = vpop.f32.mrb[0].mxu0
    %v1524 = vadd.f32 0.0, %v1523
    %v1525 = vpop.f32.mrb[0].mxu0
    %1526 = vdwg.mxu0
    %1533 = vrot.lane.b32.xlu0 %v1499, 16
    %v1534 = vpop.permute.xlu0 %1533
    %1535 = vrot.lane.b32.xlu0 %v1504, 16
    %v1536 = vpop.permute.xlu0 %1535
    %1537 = vrot.lane.b32.xlu0 %v1509, 16
    %v1538 = vpop.permute.xlu0 %1537
    %1539 = vrot.lane.b32.xlu0 %v1514, 16
    %v1540 = vpop.permute.xlu0 %1539
    %1541 = vrot.lane.b32.xlu0 %v1519, 16
    %v1542 = vpop.permute.xlu0 %1541
    %1543 = vrot.lane.b32.xlu0 %v1524, 16
    %v1544 = vpop.permute.xlu0 %1543
    %vm1551 = vcmask 195712
    %1552 = vst.msk [vmem:[#allocation2] sm:$0xff] %vm1551, %v1534
    %1553 = vst.msk [vmem:[#allocation2 + $0x8] sm:$0xff] %vm1551, %v1536
    %1554 = vst.msk [vmem:[#allocation2 + $0x10] sm:$0xff] %vm1551, %v1538
    %1555 = vst.msk [vmem:[#allocation2 + $0x18] sm:$0xff] %vm1551, %v1540
    %1556 = vst.msk [vmem:[#allocation2 + $0x20] sm:$0xff] %vm1551, %v1542
    %1557 = vst.msk [vmem:[#allocation2 + $0x28] sm:$0xff] %vm1551, %v1544
    %1558 = vrot.lane.b32.xlu0 %v462, 104
    %v1559 = vpop.permute.xlu0 %1558
    %1560 = vrot.lane.b32.xlu0 %v463, 104
    %v1561 = vpop.permute.xlu0 %1560
    %1562 = vrot.lane.b32.xlu0 %v464, 104
    %v1563 = vpop.permute.xlu0 %1562
    %1564 = vrot.lane.b32.xlu0 %v465, 104
    %v1565 = vpop.permute.xlu0 %1564
    %1566 = vrot.lane.b32.xlu0 %v466, 104
    %v1567 = vpop.permute.xlu0 %1566
    %1568 = vrot.lane.b32.xlu0 %v467, 104
    %v1569 = vpop.permute.xlu0 %1568
    %1570 = vrot.lane.b32.xlu0 %v434, 72
    %v1571 = vpop.permute.xlu0 %1570
    %1572 = vrot.lane.b32.xlu0 %v439, 72
    %v1573 = vpop.permute.xlu0 %1572
    %1574 = vrot.lane.b32.xlu0 %v444, 72
    %v1575 = vpop.permute.xlu0 %1574
    %1576 = vrot.lane.b32.xlu0 %v449, 72
    %v1577 = vpop.permute.xlu0 %1576
    %1578 = vrot.lane.b32.xlu0 %v454, 72
    %v1579 = vpop.permute.xlu0 %1578
    %1580 = vrot.lane.b32.xlu0 %v459, 72
    %v1581 = vpop.permute.xlu0 %1580
    %v1582 = vsel %vm486, %v1559, 0
    %v1584 = vsel %vm486, %v1561, 0
    %v1586 = vsel %vm486, %v1563, 0
    %v1588 = vsel %vm486, %v1565, 0
    %v1590 = vsel %vm486, %v1567, 0
    %v1592 = vsel %vm486, %v1569, 0
    %v1594 = vsel %vm486, %v1571, 0
    %v1596 = vsel %vm486, %v1573, 0
    %v1598 = vsel %vm486, %v1575, 0
    %v1600 = vsel %vm486, %v1577, 0
    %v1602 = vsel %vm486, %v1579, 0
    %v1604 = vsel %vm486, %v1581, 0
    %1606 = vmatprep.subr.mxu0 0.0
    %1607 = vmatpush1.xpose.msra.mxu0 %v1594
    %1608 = vmatprep.subr.mxu0 0.0
    %1609 = vmatpush1.xpose.msra.mxu0 %v1596
    %1610 = vmatprep.subr.mxu0 0.0
    %1611 = vmatpush1.xpose.msra.mxu0 %v1598
    %1612 = vmatprep.subr.mxu0 0.0
    %1613 = vmatpush1.xpose.msra.mxu0 %v1600
    %1614 = vmatprep.subr.mxu0 0.0
    %1615 = vmatpush1.xpose.msra.mxu0 %v1602
    %1616 = vmatprep.subr.mxu0 0.0
    %1617 = vmatpush1.xpose.msra.mxu0 %v1604
    %1618 = vmatprep.subr.mxu0 0.0
    %1619 = vmatpush1.xpose.msra.mxu0 0.0
    %1620 = vmatprep.subr.mxu0 0.0
    %1621 = vmatpush1.xpose.msra.mxu0 0.0
    %1622 = vmatprep.subr.mxu0 0.0
    %1623 = vmatpush1.xpose.msra.mxu0 0.0
    %1624 = vmatprep.subr.mxu0 0.0
    %1625 = vmatpush1.xpose.msra.mxu0 0.0
    %1626 = vmatprep.subr.mxu0 0.0
    %1627 = vmatpush1.xpose.msra.mxu0 0.0
    %1628 = vmatprep.subr.mxu0 0.0
    %1629 = vmatpush1.xpose.msra.mxu0 0.0
    %1630 = vmatprep.subr.mxu0 0.0
    %1631 = vmatpush1.xpose.msra.mxu0 0.0
    %1632 = vmatprep.subr.mxu0 0.0
    %1633 = vmatpush1.xpose.msra.mxu0 0.0
    %1634 = vmatprep.subr.mxu0 0.0
    %1635 = vmatpush1.xpose.msra.mxu0 0.0
    %1636 = vmatprep.subr.mxu0 0.0
    %1637 = vmatpush1.xpose.msra.mxu0 0.0
    %1638 = vmatprep.subr.mxu0 0.0
    %1639 = vmatpush1.xpose.msra.mxu0 0.0
    %1640 = vmatprep.subr.mxu0 0.0
    %1641 = vmatpush1.xpose.msra.mxu0 0.0
    %1642 = vmatprep.subr.mxu0 0.0
    %1643 = vmatpush1.xpose.msra.mxu0 0.0
    %1644 = vmatprep.subr.mxu0 0.0
    %1645 = vmatpush1.xpose.msra.mxu0 0.0
    %1646 = vmatprep.subr.mxu0 0.0
    %1647 = vmatpush1.xpose.msra.mxu0 0.0
    %1648 = vmatprep.subr.mxu0 0.0
    %1649 = vmatpush1.xpose.msra.mxu0 0.0
    %1650 = vmatprep.subr.mxu0 0.0
    %1651 = vmatpush1.xpose.msra.mxu0 0.0
    %1652 = vmatprep.subr.mxu0 0.0
    %1653 = vmatpush1.xpose.msra.mxu0 0.0
    %1654 = vmatprep.subr.mxu0 0.0
    %1655 = vmatpush1.xpose.msra.mxu0 0.0
    %1656 = vmatprep.subr.mxu0 0.0
    %1657 = vmatpush1.xpose.msra.mxu0 0.0
    %1658 = vmatprep.subr.mxu0 0.0
    %1659 = vmatpush1.xpose.msra.mxu0 0.0
    %1660 = vmatprep.subr.mxu0 0.0
    %1661 = vmatpush1.xpose.msra.mxu0 0.0
    %1662 = vmatprep.subr.mxu0 0.0
    %1663 = vmatpush1.xpose.msra.mxu0 0.0
    %1664 = vmatprep.subr.mxu0 0.0
    %1665 = vmatpush1.xpose.msra.mxu0 0.0
    %1666 = vmatprep.subr.mxu0 0.0
    %1667 = vmatpush1.xpose.msra.mxu0 0.0
    %1668 = vmatprep.subr.mxu0 0.0
    %1669 = vmatpush1.xpose.msra.mxu0 0.0
    %1670 = vmatprep.mubr.f32.mxu0 0.0
    %1671 = vmatmul.mubr.f32.gmra.mrb[0].mxu0 %v1582
    %v1672 = vpop.f32.mrb[0].mxu0
    %v1673 = vadd.f32 %v227, %v1672
    %v1674 = vpop.f32.mrb[0].mxu0
    %1675 = vmatprep.mubr.f32.mxu0 0.0
    %1676 = vmatmul.mubr.f32.gmra.mrb[0].mxu0 %v1584
    %v1677 = vpop.f32.mrb[0].mxu0
    %v1678 = vadd.f32 %v228, %v1677
    %v1679 = vpop.f32.mrb[0].mxu0
    %1680 = vmatprep.mubr.f32.mxu0 0.0
    %1681 = vmatmul.mubr.f32.gmra.mrb[0].mxu0 %v1586
    %v1682 = vpop.f32.mrb[0].mxu0
    %v1683 = vadd.f32 %v229, %v1682
    %v1684 = vpop.f32.mrb[0].mxu0
    %1685 = vmatprep.mubr.f32.mxu0 0.0
    %1686 = vmatmul.mubr.f32.gmra.mrb[0].mxu0 %v1588
    %v1687 = vpop.f32.mrb[0].mxu0
    %v1688 = vadd.f32 %v230, %v1687
    %v1689 = vpop.f32.mrb[0].mxu0
    %1690 = vmatprep.mubr.f32.mxu0 0.0
    %1691 = vmatmul.mubr.f32.gmra.mrb[0].mxu0 %v1590
    %v1692 = vpop.f32.mrb[0].mxu0
    %v1693 = vadd.f32 %v231, %v1692
    %v1694 = vpop.f32.mrb[0].mxu0
    %1695 = vmatprep.mubr.f32.mxu0 0.0
    %1696 = vmatmul.mubr.f32.gmra.mrb[0].mxu0 %v1592
    %v1697 = vpop.f32.mrb[0].mxu0
    %v1698 = vadd.f32 %v232, %v1697
    %v1699 = vpop.f32.mrb[0].mxu0
    %1700 = vdwg.mxu0
    %v1701 = vsel %vm612, %v1673, -inf
    %1702 = vmax.xlane.f32.xlu0 %v1701
    %v1703 = vpop.xlane.xlu0 %1702
    %v1704 = vsel %vm612, %v1678, -inf
    %1705 = vmax.xlane.f32.xlu0 %v1704
    %v1706 = vpop.xlane.xlu0 %1705
    %v1707 = vsel %vm612, %v1683, -inf
    %1708 = vmax.xlane.f32.xlu0 %v1707
    %v1709 = vpop.xlane.xlu0 %1708
    %v1710 = vsel %vm612, %v1688, -inf
    %1711 = vmax.xlane.f32.xlu0 %v1710
    %v1712 = vpop.xlane.xlu0 %1711
    %v1713 = vsel %vm612, %v1693, -inf
    %1714 = vmax.xlane.f32.xlu0 %v1713
    %v1715 = vpop.xlane.xlu0 %1714
    %v1716 = vsel %vm612, %v1698, -inf
    %1717 = vmax.xlane.f32.xlu0 %v1716
    %v1718 = vpop.xlane.xlu0 %1717
    %v1719 = vsub.f32 %v1673, %v1703
    %v1720 = vsub.f32 %v1678, %v1706
    %v1721 = vsub.f32 %v1683, %v1709
    %v1722 = vsub.f32 %v1688, %v1712
    %v1723 = vsub.f32 %v1693, %v1715
    %v1724 = vsub.f32 %v1698, %v1718
    %v1725 = vmul.f32 %v1719, 1.442695
    %v1726 = vpow.pop %v1725
    %v1727 = vmul.f32 %v1720, 1.442695
    %v1728 = vpow.pop %v1727
    %v1729 = vmul.f32 %v1721, 1.442695
    %v1730 = vpow.pop %v1729
    %v1731 = vmul.f32 %v1722, 1.442695
    %v1732 = vpow.pop %v1731
    %v1733 = vmul.f32 %v1723, 1.442695
    %v1734 = vpow.pop %v1733
    %v1735 = vmul.f32 %v1724, 1.442695
    %v1736 = vpow.pop %v1735
    %v1737 = vsel %vm612, %v1726, 0.0
    %1738 = vadd.xlane.f32.xlu0 %v1737
    %v1739 = vpop.xlane.xlu0 %1738
    %v1740 = vsel %vm612, %v1728, 0.0
    %1741 = vadd.xlane.f32.xlu0 %v1740
    %v1742 = vpop.xlane.xlu0 %1741
    %v1743 = vsel %vm612, %v1730, 0.0
    %1744 = vadd.xlane.f32.xlu0 %v1743
    %v1745 = vpop.xlane.xlu0 %1744
    %v1746 = vsel %vm612, %v1732, 0.0
    %1747 = vadd.xlane.f32.xlu0 %v1746
    %v1748 = vpop.xlane.xlu0 %1747
    %v1749 = vsel %vm612, %v1734, 0.0
    %1750 = vadd.xlane.f32.xlu0 %v1749
    %v1751 = vpop.xlane.xlu0 %1750
    %v1752 = vsel %vm612, %v1736, 0.0
    %1753 = vadd.xlane.f32.xlu0 %v1752
    %v1754 = vpop.xlane.xlu0 %1753
    %v1755 = vrcp.pop %v1739
    %v1756 = vrcp.pop %v1742
    %v1757 = vrcp.pop %v1745
    %v1758 = vrcp.pop %v1748
    %v1759 = vrcp.pop %v1751
    %v1760 = vrcp.pop %v1754
    %v1761 = vmul.f32 %v1726, %v1755
    %v1762 = vmul.f32 %v1728, %v1756
    %v1763 = vmul.f32 %v1730, %v1757
    %v1764 = vmul.f32 %v1732, %v1758
    %v1765 = vmul.f32 %v1734, %v1759
    %v1766 = vmul.f32 %v1736, %v1760
    %1767 = vrot.lane.b32.xlu0 %v434, 40
    %v1768 = vpop.permute.xlu0 %1767
    %1769 = vrot.lane.b32.xlu0 %v439, 40
    %v1770 = vpop.permute.xlu0 %1769
    %1771 = vrot.lane.b32.xlu0 %v444, 40
    %v1772 = vpop.permute.xlu0 %1771
    %1773 = vrot.lane.b32.xlu0 %v449, 40
    %v1774 = vpop.permute.xlu0 %1773
    %1775 = vrot.lane.b32.xlu0 %v454, 40
    %v1776 = vpop.permute.xlu0 %1775
    %1777 = vrot.lane.b32.xlu0 %v459, 40
    %v1778 = vpop.permute.xlu0 %1777
    %v1786 = vsel %vm612, %v1761, 0
    %v1789 = vsel %vm612, %v1762, 0
    %v1792 = vsel %vm612, %v1763, 0
    %v1795 = vsel %vm612, %v1764, 0
    %v1798 = vsel %vm612, %v1765, 0
    %v1801 = vsel %vm612, %v1766, 0
    %1803 = vmatprep.subr.mxu0 0.0
    %1804 = vmatpush1.msra.mxu0 %v1768
    %1805 = vmatprep.subr.mxu0 0.0
    %1806 = vmatpush1.msra.mxu0 %v1770
    %1807 = vmatprep.subr.mxu0 0.0
    %1808 = vmatpush1.msra.mxu0 %v1772
    %1809 = vmatprep.subr.mxu0 0.0
    %1810 = vmatpush1.msra.mxu0 %v1774
    %1811 = vmatprep.subr.mxu0 0.0
    %1812 = vmatpush1.msra.mxu0 %v1776
    %1813 = vmatprep.subr.mxu0 0.0
    %1814 = vmatpush1.msra.mxu0 %v1778
    %1815 = vmatprep.subr.mxu0 0.0
    %1816 = vmatpush1.msra.mxu0 0.0
    %1817 = vmatprep.subr.mxu0 0.0
    %1818 = vmatpush1.msra.mxu0 0.0
    %1819 = vmatprep.subr.mxu0 0.0
    %1820 = vmatpush1.msra.mxu0 0.0
    %1821 = vmatprep.subr.mxu0 0.0
    %1822 = vmatpush1.msra.mxu0 0.0
    %1823 = vmatprep.subr.mxu0 0.0
    %1824 = vmatpush1.msra.mxu0 0.0
    %1825 = vmatprep.subr.mxu0 0.0
    %1826 = vmatpush1.msra.mxu0 0.0
    %1827 = vmatprep.subr.mxu0 0.0
    %1828 = vmatpush1.msra.mxu0 0.0
    %1829 = vmatprep.subr.mxu0 0.0
    %1830 = vmatpush1.msra.mxu0 0.0
    %1831 = vmatprep.subr.mxu0 0.0
    %1832 = vmatpush1.msra.mxu0 0.0
    %1833 = vmatprep.subr.mxu0 0.0
    %1834 = vmatpush1.msra.mxu0 0.0
    %1835 = vmatprep.subr.mxu0 0.0
    %1836 = vmatpush1.msra.mxu0 0.0
    %1837 = vmatprep.subr.mxu0 0.0
    %1838 = vmatpush1.msra.mxu0 0.0
    %1839 = vmatprep.subr.mxu0 0.0
    %1840 = vmatpush1.msra.mxu0 0.0
    %1841 = vmatprep.subr.mxu0 0.0
    %1842 = vmatpush1.msra.mxu0 0.0
    %1843 = vmatprep.subr.mxu0 0.0
    %1844 = vmatpush1.msra.mxu0 0.0
    %1845 = vmatprep.subr.mxu0 0.0
    %1846 = vmatpush1.msra.mxu0 0.0
    %1847 = vmatprep.subr.mxu0 0.0
    %1848 = vmatpush1.msra.mxu0 0.0
    %1849 = vmatprep.subr.mxu0 0.0
    %1850 = vmatpush1.msra.mxu0 0.0
    %1851 = vmatprep.subr.mxu0 0.0
    %1852 = vmatpush1.msra.mxu0 0.0
    %1853 = vmatprep.subr.mxu0 0.0
    %1854 = vmatpush1.msra.mxu0 0.0
    %1855 = vmatprep.subr.mxu0 0.0
    %1856 = vmatpush1.msra.mxu0 0.0
    %1857 = vmatprep.subr.mxu0 0.0
    %1858 = vmatpush1.msra.mxu0 0.0
    %1859 = vmatprep.subr.mxu0 0.0
    %1860 = vmatpush1.msra.mxu0 0.0
    %1861 = vmatprep.subr.mxu0 0.0
    %1862 = vmatpush1.msra.mxu0 0.0
    %1863 = vmatprep.subr.mxu0 0.0
    %1864 = vmatpush1.msra.mxu0 0.0
    %1865 = vmatprep.subr.mxu0 0.0
    %1866 = vmatpush1.msra.mxu0 0.0
    %1867 = vmatprep.mubr.f32.mxu0 0.0
    %1868 = vmatmul.mubr.f32.gmra.mrb[0].mxu0 %v1786
    %v1869 = vpop.f32.mrb[0].mxu0
    %v1870 = vadd.f32 0.0, %v1869
    %v1871 = vpop.f32.mrb[0].mxu0
    %1872 = vmatprep.mubr.f32.mxu0 0.0
    %1873 = vmatmul.mubr.f32.gmra.mrb[0].mxu0 %v1789
    %v1874 = vpop.f32.mrb[0].mxu0
    %v1875 = vadd.f32 0.0, %v1874
    %v1876 = vpop.f32.mrb[0].mxu0
    %1877 = vmatprep.mubr.f32.mxu0 0.0
    %1878 = vmatmul.mubr.f32.gmra.mrb[0].mxu0 %v1792
    %v1879 = vpop.f32.mrb[0].mxu0
    %v1880 = vadd.f32 0.0, %v1879
    %v1881 = vpop.f32.mrb[0].mxu0
    %1882 = vmatprep.mubr.f32.mxu0 0.0
    %1883 = vmatmul.mubr.f32.gmra.mrb[0].mxu0 %v1795
    %v1884 = vpop.f32.mrb[0].mxu0
    %v1885 = vadd.f32 0.0, %v1884
    %v1886 = vpop.f32.mrb[0].mxu0
    %1887 = vmatprep.mubr.f32.mxu0 0.0
    %1888 = vmatmul.mubr.f32.gmra.mrb[0].mxu0 %v1798
    %v1889 = vpop.f32.mrb[0].mxu0
    %v1890 = vadd.f32 0.0, %v1889
    %v1891 = vpop.f32.mrb[0].mxu0
    %1892 = vmatprep.mubr.f32.mxu0 0.0
    %1893 = vmatmul.mubr.f32.gmra.mrb[0].mxu0 %v1801
    %v1894 = vpop.f32.mrb[0].mxu0
    %v1895 = vadd.f32 0.0, %v1894
    %v1896 = vpop.f32.mrb[0].mxu0
    %1897 = vdwg.mxu0
    %1904 = vrot.lane.b32.xlu0 %v1870, 24
    %v1905 = vpop.permute.xlu0 %1904
    %1906 = vrot.lane.b32.xlu0 %v1875, 24
    %v1907 = vpop.permute.xlu0 %1906
    %1908 = vrot.lane.b32.xlu0 %v1880, 24
    %v1909 = vpop.permute.xlu0 %1908
    %1910 = vrot.lane.b32.xlu0 %v1885, 24
    %v1911 = vpop.permute.xlu0 %1910
    %1912 = vrot.lane.b32.xlu0 %v1890, 24
    %v1913 = vpop.permute.xlu0 %1912
    %1914 = vrot.lane.b32.xlu0 %v1895, 24
    %v1915 = vpop.permute.xlu0 %1914
    %vm1922 = vcmask 261312
    %1923 = vst.msk [vmem:[#allocation2] sm:$0xff] %vm1922, %v1905
    %1924 = vst.msk [vmem:[#allocation2 + $0x8] sm:$0xff] %vm1922, %v1907
    %1925 = vst.msk [vmem:[#allocation2 + $0x10] sm:$0xff] %vm1922, %v1909
    %1926 = vst.msk [vmem:[#allocation2 + $0x18] sm:$0xff] %vm1922, %v1911
    %1927 = vst.msk [vmem:[#allocation2 + $0x20] sm:$0xff] %vm1922, %v1913
    %1928 = vst.msk [vmem:[#allocation2 + $0x28] sm:$0xff] %vm1922, %v1915
    %v1929 = vld [vmem:[#allocation2] sm:$0xff]
    %v1930 = vld [vmem:[#allocation2 + $0x8] sm:$0xff]
    %v1931 = vld [vmem:[#allocation2 + $0x10] sm:$0xff]
    %v1932 = vld [vmem:[#allocation2 + $0x18] sm:$0xff]
    %v1933 = vld [vmem:[#allocation2 + $0x20] sm:$0xff]
    %v1934 = vld [vmem:[#allocation2 + $0x28] sm:$0xff]
    %v1935 = vld [vmem:[%s10] sm:$0xff]
    %v1936 = vld [vmem:[%s10 + $0x8] sm:$0xff]
    %v1937 = vld [vmem:[%s10 + $0x10] sm:$0xff]
    %v1938 = vld [vmem:[%s10 + $0x18] sm:$0xff]
    %v1940 = vsel %vm205, %v1929, 0
    %v1943 = vsel %vm205, %v1930, 0
    %v1946 = vsel %vm205, %v1931, 0
    %v1949 = vsel %vm205, %v1932, 0
    %v1952 = vsel %vm205, %v1933, 0
    %v1955 = vsel %vm205, %v1934, 0
    %1957 = vmatprep.subr.mxu0 0.0
    %1958 = vmatpush1.msra.mxu0 %v1935
    %1959 = vmatprep.subr.mxu0 0.0
    %1960 = vmatpush1.msra.mxu0 %v1936
    %1961 = vmatprep.subr.mxu0 0.0
    %1962 = vmatpush1.msra.mxu0 %v1937
    %1963 = vmatprep.subr.mxu0 0.0
    %1964 = vmatpush1.msra.mxu0 %v1938
    %1965 = vmatprep.subr.mxu0 0.0
    %1966 = vmatpush1.msra.mxu0 0.0
    %1967 = vmatprep.subr.mxu0 0.0
    %1968 = vmatpush1.msra.mxu0 0.0
    %1969 = vmatprep.subr.mxu0 0.0
    %1970 = vmatpush1.msra.mxu0 0.0
    %1971 = vmatprep.subr.mxu0 0.0
    %1972 = vmatpush1.msra.mxu0 0.0
    %1973 = vmatprep.subr.mxu0 0.0
    %1974 = vmatpush1.msra.mxu0 0.0
    %1975 = vmatprep.subr.mxu0 0.0
    %1976 = vmatpush1.msra.mxu0 0.0
    %1977 = vmatprep.subr.mxu0 0.0
    %1978 = vmatpush1.msra.mxu0 0.0
    %1979 = vmatprep.subr.mxu0 0.0
    %1980 = vmatpush1.msra.mxu0 0.0
    %1981 = vmatprep.subr.mxu0 0.0
    %1982 = vmatpush1.msra.mxu0 0.0
    %1983 = vmatprep.subr.mxu0 0.0
    %1984 = vmatpush1.msra.mxu0 0.0
    %1985 = vmatprep.subr.mxu0 0.0
    %1986 = vmatpush1.msra.mxu0 0.0
    %1987 = vmatprep.subr.mxu0 0.0
    %1988 = vmatpush1.msra.mxu0 0.0
    %1989 = vmatprep.subr.mxu0 0.0
    %1990 = vmatpush1.msra.mxu0 0.0
    %1991 = vmatprep.subr.mxu0 0.0
    %1992 = vmatpush1.msra.mxu0 0.0
    %1993 = vmatprep.subr.mxu0 0.0
    %1994 = vmatpush1.msra.mxu0 0.0
    %1995 = vmatprep.subr.mxu0 0.0
    %1996 = vmatpush1.msra.mxu0 0.0
    %1997 = vmatprep.subr.mxu0 0.0
    %1998 = vmatpush1.msra.mxu0 0.0
    %1999 = vmatprep.subr.mxu0 0.0
    %2000 = vmatpush1.msra.mxu0 0.0
    %2001 = vmatprep.subr.mxu0 0.0
    %2002 = vmatpush1.msra.mxu0 0.0
    %2003 = vmatprep.subr.mxu0 0.0
    %2004 = vmatpush1.msra.mxu0 0.0
    %2005 = vmatprep.subr.mxu0 0.0
    %2006 = vmatpush1.msra.mxu0 0.0
    %2007 = vmatprep.subr.mxu0 0.0
    %2008 = vmatpush1.msra.mxu0 0.0
    %2009 = vmatprep.subr.mxu0 0.0
    %2010 = vmatpush1.msra.mxu0 0.0
    %2011 = vmatprep.subr.mxu0 0.0
    %2012 = vmatpush1.msra.mxu0 0.0
    %2013 = vmatprep.subr.mxu0 0.0
    %2014 = vmatpush1.msra.mxu0 0.0
    %2015 = vmatprep.subr.mxu0 0.0
    %2016 = vmatpush1.msra.mxu0 0.0
    %2017 = vmatprep.subr.mxu0 0.0
    %2018 = vmatpush1.msra.mxu0 0.0
    %2019 = vmatprep.subr.mxu0 0.0
    %2020 = vmatpush1.msra.mxu0 0.0
    %2021 = vmatprep.mubr.f32.mxu0 0.0
    %2022 = vmatmul.mubr.f32.gmra.mrb[0].mxu0 %v1940
    %v2023 = vpop.f32.mrb[0].mxu0
    %v2024 = vadd.f32 0.0, %v2023
    %v2025 = vpop.f32.mrb[0].mxu0
    %2026 = vmatprep.mubr.f32.mxu0 0.0
    %2027 = vmatmul.mubr.f32.gmra.mrb[0].mxu0 %v1943
    %v2028 = vpop.f32.mrb[0].mxu0
    %v2029 = vadd.f32 0.0, %v2028
    %v2030 = vpop.f32.mrb[0].mxu0
    %2031 = vmatprep.mubr.f32.mxu0 0.0
    %2032 = vmatmul.mubr.f32.gmra.mrb[0].mxu0 %v1946
    %v2033 = vpop.f32.mrb[0].mxu0
    %v2034 = vadd.f32 0.0, %v2033
    %v2035 = vpop.f32.mrb[0].mxu0
    %2036 = vmatprep.mubr.f32.mxu0 0.0
    %2037 = vmatmul.mubr.f32.gmra.mrb[0].mxu0 %v1949
    %v2038 = vpop.f32.mrb[0].mxu0
    %v2039 = vadd.f32 0.0, %v2038
    %v2040 = vpop.f32.mrb[0].mxu0
    %2041 = vmatprep.mubr.f32.mxu0 0.0
    %2042 = vmatmul.mubr.f32.gmra.mrb[0].mxu0 %v1952
    %v2043 = vpop.f32.mrb[0].mxu0
    %v2044 = vadd.f32 0.0, %v2043
    %v2045 = vpop.f32.mrb[0].mxu0
    %2046 = vmatprep.mubr.f32.mxu0 0.0
    %2047 = vmatmul.mubr.f32.gmra.mrb[0].mxu0 %v1955
    %v2048 = vpop.f32.mrb[0].mxu0
    %v2049 = vadd.f32 0.0, %v2048
    %v2050 = vpop.f32.mrb[0].mxu0
    %2051 = vdwg.mxu0
    %v2052 = vadd.f32 %v221, %v2024
    %v2053 = vadd.f32 %v222, %v2029
    %v2054 = vadd.f32 %v223, %v2034
    %v2055 = vadd.f32 %v224, %v2039
    %v2056 = vadd.f32 %v225, %v2044
    %v2057 = vadd.f32 %v226, %v2049
    %v2058 = vld [vmem:[%s11] sm:$0x1]
    %v2060 = vlaneseq
    %v2061 = vshrl.u32 %v2060, 7
    %v2062 = vsub.s32 0, %v2061
    %v2063 = vrot.slane %v2058, %v2062
    %v2065 = vadd.f32 %v2052, %v2063
    %v2066 = vadd.f32 %v2053, %v2063
    %v2067 = vadd.f32 %v2054, %v2063
    %v2068 = vadd.f32 %v2055, %v2063
    %v2069 = vadd.f32 %v2056, %v2063
    %v2070 = vadd.f32 %v2057, %v2063
    %v2071 = vld [vmem:[%s12] sm:$0x1]
    %v2072 = vld [vmem:[%s13] sm:$0x1]
    %v2073 = vsel %vm205, %v2065, 0.0
    %2074 = vadd.xlane.f32.xlu0 %v2073
    %v2075 = vpop.xlane.xlu0 %2074
    %v2076 = vsel %vm205, %v2066, 0.0
    %2077 = vadd.xlane.f32.xlu0 %v2076
    %v2078 = vpop.xlane.xlu0 %2077
    %v2079 = vsel %vm205, %v2067, 0.0
    %2080 = vadd.xlane.f32.xlu0 %v2079
    %v2081 = vpop.xlane.xlu0 %2080
    %v2082 = vsel %vm205, %v2068, 0.0
    %2083 = vadd.xlane.f32.xlu0 %v2082
    %v2084 = vpop.xlane.xlu0 %2083
    %v2085 = vsel %vm205, %v2069, 0.0
    %2086 = vadd.xlane.f32.xlu0 %v2085
    %v2087 = vpop.xlane.xlu0 %2086
    %v2088 = vsel %vm205, %v2070, 0.0
    %2089 = vadd.xlane.f32.xlu0 %v2088
    %v2090 = vpop.xlane.xlu0 %2089
    %v2091 = vmul.f32 %v2075, %v253
    %v2092 = vmul.f32 %v2078, %v253
    %v2093 = vmul.f32 %v2081, %v253
    %v2094 = vmul.f32 %v2084, %v253
    %v2095 = vmul.f32 %v2087, %v253
    %v2096 = vmul.f32 %v2090, %v253
    %v2097 = vsub.f32 %v2065, %v2091
    %v2098 = vsub.f32 %v2066, %v2092
    %v2099 = vsub.f32 %v2067, %v2093
    %v2100 = vsub.f32 %v2068, %v2094
    %v2101 = vsub.f32 %v2069, %v2095
    %v2102 = vsub.f32 %v2070, %v2096
    %v2103 = vmul.f32 %v2097, %v2097
    %v2104 = vmul.f32 %v2098, %v2098
    %v2105 = vmul.f32 %v2099, %v2099
    %v2106 = vmul.f32 %v2100, %v2100
    %v2107 = vmul.f32 %v2101, %v2101
    %v2108 = vmul.f32 %v2102, %v2102
    %v2109 = vsel %vm205, %v2103, 0.0
    %2110 = vadd.xlane.f32.xlu0 %v2109
    %v2111 = vpop.xlane.xlu0 %2110
    %v2112 = vsel %vm205, %v2104, 0.0
    %2113 = vadd.xlane.f32.xlu0 %v2112
    %v2114 = vpop.xlane.xlu0 %2113
    %v2115 = vsel %vm205, %v2105, 0.0
    %2116 = vadd.xlane.f32.xlu0 %v2115
    %v2117 = vpop.xlane.xlu0 %2116
    %v2118 = vsel %vm205, %v2106, 0.0
    %2119 = vadd.xlane.f32.xlu0 %v2118
    %v2120 = vpop.xlane.xlu0 %2119
    %v2121 = vsel %vm205, %v2107, 0.0
    %2122 = vadd.xlane.f32.xlu0 %v2121
    %v2123 = vpop.xlane.xlu0 %2122
    %v2124 = vsel %vm205, %v2108, 0.0
    %2125 = vadd.xlane.f32.xlu0 %v2124
    %v2126 = vpop.xlane.xlu0 %2125
    %v2127 = vmul.f32 %v2111, %v253
    %v2128 = vmul.f32 %v2114, %v253
    %v2129 = vmul.f32 %v2117, %v253
    %v2130 = vmul.f32 %v2120, %v253
    %v2131 = vmul.f32 %v2123, %v253
    %v2132 = vmul.f32 %v2126, %v253
    %v2133 = vadd.f32 %v2127, 1e-12
    %v2134 = vadd.f32 %v2128, 1e-12
    %v2135 = vadd.f32 %v2129, 1e-12
    %v2136 = vadd.f32 %v2130, 1e-12
    %v2137 = vadd.f32 %v2131, 1e-12
    %v2138 = vadd.f32 %v2132, 1e-12
    %v2139 = vrsqrt.pop %v2133
    %v2140 = vrsqrt.pop %v2134
    %v2141 = vrsqrt.pop %v2135
    %v2142 = vrsqrt.pop %v2136
    %v2143 = vrsqrt.pop %v2137
    %v2144 = vrsqrt.pop %v2138
    %v2145 = vmul.f32 %v2097, %v2139
    %v2146 = vmul.f32 %v2098, %v2140
    %v2147 = vmul.f32 %v2099, %v2141
    %v2148 = vmul.f32 %v2100, %v2142
    %v2149 = vmul.f32 %v2101, %v2143
    %v2150 = vmul.f32 %v2102, %v2144
    %v2152 = vlaneseq
    %v2153 = vshrl.u32 %v2152, 7
    %v2154 = vsub.s32 0, %v2153
    %v2155 = vrot.slane %v2071, %v2154
    %v2157 = vmul.f32 %v2145, %v2155
    %v2158 = vmul.f32 %v2146, %v2155
    %v2159 = vmul.f32 %v2147, %v2155
    %v2160 = vmul.f32 %v2148, %v2155
    %v2161 = vmul.f32 %v2149, %v2155
    %v2162 = vmul.f32 %v2150, %v2155
    %v2164 = vlaneseq
    %v2165 = vshrl.u32 %v2164, 7
    %v2166 = vsub.s32 0, %v2165
    %v2167 = vrot.slane %v2072, %v2166
    %v2169 = vadd.f32 %v2157, %v2167
    %v2170 = vadd.f32 %v2158, %v2167
    %v2171 = vadd.f32 %v2159, %v2167
    %v2172 = vadd.f32 %v2160, %v2167
    %v2173 = vadd.f32 %v2161, %v2167
    %v2174 = vadd.f32 %v2162, %v2167
    %v2175 = vld [vmem:[%s14] sm:$0xff]
    %v2176 = vld [vmem:[%s14 + $0x8] sm:$0xff]
    %v2177 = vld [vmem:[%s14 + $0x10] sm:$0xff]
    %v2178 = vld [vmem:[%s14 + $0x18] sm:$0xff]
    %v2179 = vld [vmem:[%s15] sm:$0x1]
    %v2181 = vlaneseq
    %v2182 = vshrl.u32 %v2181, 7
    %v2183 = vsub.s32 0, %v2182
    %v2184 = vrot.slane %v2179, %v2183
    %v2187 = vsel %vm205, %v2169, 0
    %v2190 = vsel %vm205, %v2170, 0
    %v2193 = vsel %vm205, %v2171, 0
    %v2196 = vsel %vm205, %v2172, 0
    %v2199 = vsel %vm205, %v2173, 0
    %v2202 = vsel %vm205, %v2174, 0
    %2204 = vmatprep.subr.mxu0 0.0
    %2205 = vmatpush1.msra.mxu0 %v2175
    %2206 = vmatprep.subr.mxu0 0.0
    %2207 = vmatpush1.msra.mxu0 %v2176
    %2208 = vmatprep.subr.mxu0 0.0
    %2209 = vmatpush1.msra.mxu0 %v2177
    %2210 = vmatprep.subr.mxu0 0.0
    %2211 = vmatpush1.msra.mxu0 %v2178
    %2212 = vmatprep.subr.mxu0 0.0
    %2213 = vmatpush1.msra.mxu0 0.0
    %2214 = vmatprep.subr.mxu0 0.0
    %2215 = vmatpush1.msra.mxu0 0.0
    %2216 = vmatprep.subr.mxu0 0.0
    %2217 = vmatpush1.msra.mxu0 0.0
    %2218 = vmatprep.subr.mxu0 0.0
    %2219 = vmatpush1.msra.mxu0 0.0
    %2220 = vmatprep.subr.mxu0 0.0
    %2221 = vmatpush1.msra.mxu0 0.0
    %2222 = vmatprep.subr.mxu0 0.0
    %2223 = vmatpush1.msra.mxu0 0.0
    %2224 = vmatprep.subr.mxu0 0.0
    %2225 = vmatpush1.msra.mxu0 0.0
    %2226 = vmatprep.subr.mxu0 0.0
    %2227 = vmatpush1.msra.mxu0 0.0
    %2228 = vmatprep.subr.mxu0 0.0
    %2229 = vmatpush1.msra.mxu0 0.0
    %2230 = vmatprep.subr.mxu0 0.0
    %2231 = vmatpush1.msra.mxu0 0.0
    %2232 = vmatprep.subr.mxu0 0.0
    %2233 = vmatpush1.msra.mxu0 0.0
    %2234 = vmatprep.subr.mxu0 0.0
    %2235 = vmatpush1.msra.mxu0 0.0
    %2236 = vmatprep.subr.mxu0 0.0
    %2237 = vmatpush1.msra.mxu0 0.0
    %2238 = vmatprep.subr.mxu0 0.0
    %2239 = vmatpush1.msra.mxu0 0.0
    %2240 = vmatprep.subr.mxu0 0.0
    %2241 = vmatpush1.msra.mxu0 0.0
    %2242 = vmatprep.subr.mxu0 0.0
    %2243 = vmatpush1.msra.mxu0 0.0
    %2244 = vmatprep.subr.mxu0 0.0
    %2245 = vmatpush1.msra.mxu0 0.0
    %2246 = vmatprep.subr.mxu0 0.0
    %2247 = vmatpush1.msra.mxu0 0.0
    %2248 = vmatprep.subr.mxu0 0.0
    %2249 = vmatpush1.msra.mxu0 0.0
    %2250 = vmatprep.subr.mxu0 0.0
    %2251 = vmatpush1.msra.mxu0 0.0
    %2252 = vmatprep.subr.mxu0 0.0
    %2253 = vmatpush1.msra.mxu0 0.0
    %2254 = vmatprep.subr.mxu0 0.0
    %2255 = vmatpush1.msra.mxu0 0.0
    %2256 = vmatprep.subr.mxu0 0.0
    %2257 = vmatpush1.msra.mxu0 0.0
    %2258 = vmatprep.subr.mxu0 0.0
    %2259 = vmatpush1.msra.mxu0 0.0
    %2260 = vmatprep.subr.mxu0 0.0
    %2261 = vmatpush1.msra.mxu0 0.0
    %2262 = vmatprep.subr.mxu0 0.0
    %2263 = vmatpush1.msra.mxu0 0.0
    %2264 = vmatprep.subr.mxu0 0.0
    %2265 = vmatpush1.msra.mxu0 0.0
    %2266 = vmatprep.subr.mxu0 0.0
    %2267 = vmatpush1.msra.mxu0 0.0
    %2268 = vmatprep.mubr.f32.mxu0 0.0
    %2269 = vmatmul.mubr.f32.gmra.mrb[0].mxu0 %v2187
    %v2270 = vpop.f32.mrb[0].mxu0
    %v2271 = vadd.f32 %v2184, %v2270
    %v2272 = vpop.f32.mrb[0].mxu0
    %2273 = vmatprep.mubr.f32.mxu0 0.0
    %2274 = vmatmul.mubr.f32.gmra.mrb[0].mxu0 %v2190
    %v2275 = vpop.f32.mrb[0].mxu0
    %v2276 = vadd.f32 %v2184, %v2275
    %v2277 = vpop.f32.mrb[0].mxu0
    %2278 = vmatprep.mubr.f32.mxu0 0.0
    %2279 = vmatmul.mubr.f32.gmra.mrb[0].mxu0 %v2193
    %v2280 = vpop.f32.mrb[0].mxu0
    %v2281 = vadd.f32 %v2184, %v2280
    %v2282 = vpop.f32.mrb[0].mxu0
    %2283 = vmatprep.mubr.f32.mxu0 0.0
    %2284 = vmatmul.mubr.f32.gmra.mrb[0].mxu0 %v2196
    %v2285 = vpop.f32.mrb[0].mxu0
    %v2286 = vadd.f32 %v2184, %v2285
    %v2287 = vpop.f32.mrb[0].mxu0
    %2288 = vmatprep.mubr.f32.mxu0 0.0
    %2289 = vmatmul.mubr.f32.gmra.mrb[0].mxu0 %v2199
    %v2290 = vpop.f32.mrb[0].mxu0
    %v2291 = vadd.f32 %v2184, %v2290
    %v2292 = vpop.f32.mrb[0].mxu0
    %2293 = vmatprep.mubr.f32.mxu0 0.0
    %2294 = vmatmul.mubr.f32.gmra.mrb[0].mxu0 %v2202
    %v2295 = vpop.f32.mrb[0].mxu0
    %v2296 = vadd.f32 %v2184, %v2295
    %v2297 = vpop.f32.mrb[0].mxu0
    %2298 = vdwg.mxu0
    %v2299 = vmul.f32 %v2271, 0.5
    %v2300 = vmul.f32 %v2276, 0.5
    %v2301 = vmul.f32 %v2281, 0.5
    %v2302 = vmul.f32 %v2286, 0.5
    %v2303 = vmul.f32 %v2291, 0.5
    %v2304 = vmul.f32 %v2296, 0.5
    %v2305 = vmul.f32 %v2271, 0.044715
    %v2306 = vmul.f32 %v2276, 0.044715
    %v2307 = vmul.f32 %v2281, 0.044715
    %v2308 = vmul.f32 %v2286, 0.044715
    %v2309 = vmul.f32 %v2291, 0.044715
    %v2310 = vmul.f32 %v2296, 0.044715
    %v2311 = vmul.f32 %v2305, %v2271
    %v2312 = vmul.f32 %v2306, %v2276
    %v2313 = vmul.f32 %v2307, %v2281
    %v2314 = vmul.f32 %v2308, %v2286
    %v2315 = vmul.f32 %v2309, %v2291
    %v2316 = vmul.f32 %v2310, %v2296
    %v2317 = vmul.f32 %v2311, %v2271
    %v2318 = vmul.f32 %v2312, %v2276
    %v2319 = vmul.f32 %v2313, %v2281
    %v2320 = vmul.f32 %v2314, %v2286
    %v2321 = vmul.f32 %v2315, %v2291
    %v2322 = vmul.f32 %v2316, %v2296
    %v2323 = vadd.f32 %v2271, %v2317
    %v2324 = vadd.f32 %v2276, %v2318
    %v2325 = vadd.f32 %v2281, %v2319
    %v2326 = vadd.f32 %v2286, %v2320
    %v2327 = vadd.f32 %v2291, %v2321
    %v2328 = vadd.f32 %v2296, %v2322
    %v2329 = vmul.f32 %v2323, 0.7978846
    %v2330 = vmul.f32 %v2324, 0.7978846
    %v2331 = vmul.f32 %v2325, 0.7978846
    %v2332 = vmul.f32 %v2326, 0.7978846
    %v2333 = vmul.f32 %v2327, 0.7978846
    %v2334 = vmul.f32 %v2328, 0.7978846
    %v2335 = vtanh.pop %v2329
    %v2336 = vtanh.pop %v2330
    %v2337 = vtanh.pop %v2331
    %v2338 = vtanh.pop %v2332
    %v2339 = vtanh.pop %v2333
    %v2340 = vtanh.pop %v2334
    %v2341 = vadd.f32 %v2335, 1.0
    %v2342 = vadd.f32 %v2336, 1.0
    %v2343 = vadd.f32 %v2337, 1.0
    %v2344 = vadd.f32 %v2338, 1.0
    %v2345 = vadd.f32 %v2339, 1.0
    %v2346 = vadd.f32 %v2340, 1.0
    %v2347 = vmul.f32 %v2299, %v2341
    %v2348 = vmul.f32 %v2300, %v2342
    %v2349 = vmul.f32 %v2301, %v2343
    %v2350 = vmul.f32 %v2302, %v2344
    %v2351 = vmul.f32 %v2303, %v2345
    %v2352 = vmul.f32 %v2304, %v2346
    %v2353 = vld [vmem:[%s16] sm:$0xff]
    %v2354 = vld [vmem:[%s16 + $0x8] sm:$0xff]
    %v2355 = vld [vmem:[%s16 + $0x10] sm:$0xff]
    %v2356 = vld [vmem:[%s16 + $0x18] sm:$0xff]
    %v2357 = vld [vmem:[%s16 + $0x20] sm:$0xff]
    %v2358 = vld [vmem:[%s16 + $0x28] sm:$0xff]
    %v2359 = vld [vmem:[%s16 + $0x30] sm:$0xff]
    %v2360 = vld [vmem:[%s16 + $0x38] sm:$0xff]
    %v2361 = vld [vmem:[%s16 + $0x40] sm:$0xff]
    %v2362 = vld [vmem:[%s16 + $0x48] sm:$0xff]
    %v2363 = vld [vmem:[%s16 + $0x50] sm:$0xff]
    %v2364 = vld [vmem:[%s16 + $0x58] sm:$0xff]
    %v2365 = vld [vmem:[%s16 + $0x60] sm:$0xff]
    %v2366 = vld [vmem:[%s16 + $0x68] sm:$0xff]
    %v2367 = vld [vmem:[%s16 + $0x70] sm:$0xff]
    %v2368 = vld [vmem:[%s16 + $0x78] sm:$0xff]
    %2369 = vmatprep.subr.mxu0 0.0
    %2370 = vmatpush1.msra.mxu0 %v2353
    %2371 = vmatprep.subr.mxu0 0.0
    %2372 = vmatpush1.msra.mxu0 %v2354
    %2373 = vmatprep.subr.mxu0 0.0
    %2374 = vmatpush1.msra.mxu0 %v2355
    %2375 = vmatprep.subr.mxu0 0.0
    %2376 = vmatpush1.msra.mxu0 %v2356
    %2377 = vmatprep.subr.mxu0 0.0
    %2378 = vmatpush1.msra.mxu0 %v2357
    %2379 = vmatprep.subr.mxu0 0.0
    %2380 = vmatpush1.msra.mxu0 %v2358
    %2381 = vmatprep.subr.mxu0 0.0
    %2382 = vmatpush1.msra.mxu0 %v2359
    %2383 = vmatprep.subr.mxu0 0.0
    %2384 = vmatpush1.msra.mxu0 %v2360
    %2385 = vmatprep.subr.mxu0 0.0
    %2386 = vmatpush1.msra.mxu0 %v2361
    %2387 = vmatprep.subr.mxu0 0.0
    %2388 = vmatpush1.msra.mxu0 %v2362
    %2389 = vmatprep.subr.mxu0 0.0
    %2390 = vmatpush1.msra.mxu0 %v2363
    %2391 = vmatprep.subr.mxu0 0.0
    %2392 = vmatpush1.msra.mxu0 %v2364
    %2393 = vmatprep.subr.mxu0 0.0
    %2394 = vmatpush1.msra.mxu0 %v2365
    %2395 = vmatprep.subr.mxu0 0.0
    %2396 = vmatpush1.msra.mxu0 %v2366
    %2397 = vmatprep.subr.mxu0 0.0
    %2398 = vmatpush1.msra.mxu0 %v2367
    %2399 = vmatprep.subr.mxu0 0.0
    %2400 = vmatpush1.msra.mxu0 %v2368
    %2401 = vmatprep.subr.mxu0 0.0
    %2402 = vmatpush1.msra.mxu0 0.0
    %2403 = vmatprep.subr.mxu0 0.0
    %2404 = vmatpush1.msra.mxu0 0.0
    %2405 = vmatprep.subr.mxu0 0.0
    %2406 = vmatpush1.msra.mxu0 0.0
    %2407 = vmatprep.subr.mxu0 0.0
    %2408 = vmatpush1.msra.mxu0 0.0
    %2409 = vmatprep.subr.mxu0 0.0
    %2410 = vmatpush1.msra.mxu0 0.0
    %2411 = vmatprep.subr.mxu0 0.0
    %2412 = vmatpush1.msra.mxu0 0.0
    %2413 = vmatprep.subr.mxu0 0.0
    %2414 = vmatpush1.msra.mxu0 0.0
    %2415 = vmatprep.subr.mxu0 0.0
    %2416 = vmatpush1.msra.mxu0 0.0
    %2417 = vmatprep.subr.mxu0 0.0
    %2418 = vmatpush1.msra.mxu0 0.0
    %2419 = vmatprep.subr.mxu0 0.0
    %2420 = vmatpush1.msra.mxu0 0.0
    %2421 = vmatprep.subr.mxu0 0.0
    %2422 = vmatpush1.msra.mxu0 0.0
    %2423 = vmatprep.subr.mxu0 0.0
    %2424 = vmatpush1.msra.mxu0 0.0
    %2425 = vmatprep.subr.mxu0 0.0
    %2426 = vmatpush1.msra.mxu0 0.0
    %2427 = vmatprep.subr.mxu0 0.0
    %2428 = vmatpush1.msra.mxu0 0.0
    %2429 = vmatprep.subr.mxu0 0.0
    %2430 = vmatpush1.msra.mxu0 0.0
    %2431 = vmatprep.subr.mxu0 0.0
    %2432 = vmatpush1.msra.mxu0 0.0
    %2433 = vmatprep.mubr.f32.mxu0 0.0
    %2434 = vmatmul.mubr.f32.gmra.mrb[0].mxu0 %v2347
    %v2435 = vpop.f32.mrb[0].mxu0
    %v2436 = vadd.f32 0.0, %v2435
    %v2437 = vpop.f32.mrb[0].mxu0
    %2438 = vmatprep.mubr.f32.mxu0 0.0
    %2439 = vmatmul.mubr.f32.gmra.mrb[0].mxu0 %v2348
    %v2440 = vpop.f32.mrb[0].mxu0
    %v2441 = vadd.f32 0.0, %v2440
    %v2442 = vpop.f32.mrb[0].mxu0
    %2443 = vmatprep.mubr.f32.mxu0 0.0
    %2444 = vmatmul.mubr.f32.gmra.mrb[0].mxu0 %v2349
    %v2445 = vpop.f32.mrb[0].mxu0
    %v2446 = vadd.f32 0.0, %v2445
    %v2447 = vpop.f32.mrb[0].mxu0
    %2448 = vmatprep.mubr.f32.mxu0 0.0
    %2449 = vmatmul.mubr.f32.gmra.mrb[0].mxu0 %v2350
    %v2450 = vpop.f32.mrb[0].mxu0
    %v2451 = vadd.f32 0.0, %v2450
    %v2452 = vpop.f32.mrb[0].mxu0
    %2453 = vmatprep.mubr.f32.mxu0 0.0
    %2454 = vmatmul.mubr.f32.gmra.mrb[0].mxu0 %v2351
    %v2455 = vpop.f32.mrb[0].mxu0
    %v2456 = vadd.f32 0.0, %v2455
    %v2457 = vpop.f32.mrb[0].mxu0
    %2458 = vmatprep.mubr.f32.mxu0 0.0
    %2459 = vmatmul.mubr.f32.gmra.mrb[0].mxu0 %v2352
    %v2460 = vpop.f32.mrb[0].mxu0
    %v2461 = vadd.f32 0.0, %v2460
    %v2462 = vpop.f32.mrb[0].mxu0
    %2463 = vdwg.mxu0
    %v2464 = vadd.f32 %v2065, %v2436
    %v2465 = vadd.f32 %v2066, %v2441
    %v2466 = vadd.f32 %v2067, %v2446
    %v2467 = vadd.f32 %v2068, %v2451
    %v2468 = vadd.f32 %v2069, %v2456
    %v2469 = vadd.f32 %v2070, %v2461
    %v2470 = vld [vmem:[%s17] sm:$0x1]
    %v2472 = vlaneseq
    %v2473 = vshrl.u32 %v2472, 7
    %v2474 = vsub.s32 0, %v2473
    %v2475 = vrot.slane %v2470, %v2474
    %v2477 = vadd.f32 %v2464, %v2475
    %v2478 = vadd.f32 %v2465, %v2475
    %v2479 = vadd.f32 %v2466, %v2475
    %v2480 = vadd.f32 %v2467, %v2475
    %v2481 = vadd.f32 %v2468, %v2475
    %v2482 = vadd.f32 %v2469, %v2475
    %s2483 = scalar_lea.vmem %s6, 1
    %v2484 = vld [vmem:[%s2483] sm:$0x1]
    %s2485 = scalar_lea.vmem %s7, 1
    %v2486 = vld [vmem:[%s2485] sm:$0x1]
    %v2487 = vsel %vm205, %v2477, 0.0
    %2488 = vadd.xlane.f32.xlu0 %v2487
    %v2489 = vpop.xlane.xlu0 %2488
    %v2490 = vsel %vm205, %v2478, 0.0
    %2491 = vadd.xlane.f32.xlu0 %v2490
    %v2492 = vpop.xlane.xlu0 %2491
    %v2493 = vsel %vm205, %v2479, 0.0
    %2494 = vadd.xlane.f32.xlu0 %v2493
    %v2495 = vpop.xlane.xlu0 %2494
    %v2496 = vsel %vm205, %v2480, 0.0
    %2497 = vadd.xlane.f32.xlu0 %v2496
    %v2498 = vpop.xlane.xlu0 %2497
    %v2499 = vsel %vm205, %v2481, 0.0
    %2500 = vadd.xlane.f32.xlu0 %v2499
    %v2501 = vpop.xlane.xlu0 %2500
    %v2502 = vsel %vm205, %v2482, 0.0
    %2503 = vadd.xlane.f32.xlu0 %v2502
    %v2504 = vpop.xlane.xlu0 %2503
    %v2505 = vmul.f32 %v2489, %v253
    %v2506 = vmul.f32 %v2492, %v253
    %v2507 = vmul.f32 %v2495, %v253
    %v2508 = vmul.f32 %v2498, %v253
    %v2509 = vmul.f32 %v2501, %v253
    %v2510 = vmul.f32 %v2504, %v253
    %v2511 = vsub.f32 %v2477, %v2505
    %v2512 = vsub.f32 %v2478, %v2506
    %v2513 = vsub.f32 %v2479, %v2507
    %v2514 = vsub.f32 %v2480, %v2508
    %v2515 = vsub.f32 %v2481, %v2509
    %v2516 = vsub.f32 %v2482, %v2510
    %v2517 = vmul.f32 %v2511, %v2511
    %v2518 = vmul.f32 %v2512, %v2512
    %v2519 = vmul.f32 %v2513, %v2513
    %v2520 = vmul.f32 %v2514, %v2514
    %v2521 = vmul.f32 %v2515, %v2515
    %v2522 = vmul.f32 %v2516, %v2516
    %v2523 = vsel %vm205, %v2517, 0.0
    %2524 = vadd.xlane.f32.xlu0 %v2523
    %v2525 = vpop.xlane.xlu0 %2524
    %v2526 = vsel %vm205, %v2518, 0.0
    %2527 = vadd.xlane.f32.xlu0 %v2526
    %v2528 = vpop.xlane.xlu0 %2527
    %v2529 = vsel %vm205, %v2519, 0.0
    %2530 = vadd.xlane.f32.xlu0 %v2529
    %v2531 = vpop.xlane.xlu0 %2530
    %v2532 = vsel %vm205, %v2520, 0.0
    %2533 = vadd.xlane.f32.xlu0 %v2532
    %v2534 = vpop.xlane.xlu0 %2533
    %v2535 = vsel %vm205, %v2521, 0.0
    %2536 = vadd.xlane.f32.xlu0 %v2535
    %v2537 = vpop.xlane.xlu0 %2536
    %v2538 = vsel %vm205, %v2522, 0.0
    %2539 = vadd.xlane.f32.xlu0 %v2538
    %v2540 = vpop.xlane.xlu0 %2539
    %v2541 = vmul.f32 %v2525, %v253
    %v2542 = vmul.f32 %v2528, %v253
    %v2543 = vmul.f32 %v2531, %v253
    %v2544 = vmul.f32 %v2534, %v253
    %v2545 = vmul.f32 %v2537, %v253
    %v2546 = vmul.f32 %v2540, %v253
    %v2547 = vadd.f32 %v2541, 1e-12
    %v2548 = vadd.f32 %v2542, 1e-12
    %v2549 = vadd.f32 %v2543, 1e-12
    %v2550 = vadd.f32 %v2544, 1e-12
    %v2551 = vadd.f32 %v2545, 1e-12
    %v2552 = vadd.f32 %v2546, 1e-12
    %v2553 = vrsqrt.pop %v2547
    %v2554 = vrsqrt.pop %v2548
    %v2555 = vrsqrt.pop %v2549
    %v2556 = vrsqrt.pop %v2550
    %v2557 = vrsqrt.pop %v2551
    %v2558 = vrsqrt.pop %v2552
    %v2559 = vmul.f32 %v2511, %v2553
    %v2560 = vmul.f32 %v2512, %v2554
    %v2561 = vmul.f32 %v2513, %v2555
    %v2562 = vmul.f32 %v2514, %v2556
    %v2563 = vmul.f32 %v2515, %v2557
    %v2564 = vmul.f32 %v2516, %v2558
    %v2566 = vlaneseq
    %v2567 = vshrl.u32 %v2566, 7
    %v2568 = vsub.s32 0, %v2567
    %v2569 = vrot.slane %v2484, %v2568
    %v2571 = vmul.f32 %v2559, %v2569
    %v2572 = vmul.f32 %v2560, %v2569
    %v2573 = vmul.f32 %v2561, %v2569
    %v2574 = vmul.f32 %v2562, %v2569
    %v2575 = vmul.f32 %v2563, %v2569
    %v2576 = vmul.f32 %v2564, %v2569
    %v2578 = vlaneseq
    %v2579 = vshrl.u32 %v2578, 7
    %v2580 = vsub.s32 0, %v2579
    %v2581 = vrot.slane %v2486, %v2580
    %v2583 = vadd.f32 %v2571, %v2581
    %v2584 = vadd.f32 %v2572, %v2581
    %v2585 = vadd.f32 %v2573, %v2581
    %v2586 = vadd.f32 %v2574, %v2581
    %v2587 = vadd.f32 %v2575, %v2581
    %v2588 = vadd.f32 %v2576, %v2581
    %s2589 = scalar_lea.vmem %s8, 32
    %v2590 = vld [vmem:[%s2589] sm:$0xff]
    %v2591 = vld [vmem:[%s2589 + $0x8] sm:$0xff]
    %v2592 = vld [vmem:[%s2589 + $0x10] sm:$0xff]
    %v2593 = vld [vmem:[%s2589 + $0x18] sm:$0xff]
    %s2594 = scalar_lea.vmem %s9, 1
    %v2595 = vld [vmem:[%s2594] sm:$0x1]
    %v2597 = vlaneseq
    %v2598 = vshrl.u32 %v2597, 7
    %v2599 = vsub.s32 0, %v2598
    %v2600 = vrot.slane %v2595, %v2599
    %v2603 = vsel %vm205, %v2583, 0
    %v2606 = vsel %vm205, %v2584, 0
    %v2609 = vsel %vm205, %v2585, 0
    %v2612 = vsel %vm205, %v2586, 0
    %v2615 = vsel %vm205, %v2587, 0
    %v2618 = vsel %vm205, %v2588, 0
    %2620 = vmatprep.subr.mxu0 0.0
    %2621 = vmatpush1.msra.mxu0 %v2590
    %2622 = vmatprep.subr.mxu0 0.0
    %2623 = vmatpush1.msra.mxu0 %v2591
    %2624 = vmatprep.subr.mxu0 0.0
    %2625 = vmatpush1.msra.mxu0 %v2592
    %2626 = vmatprep.subr.mxu0 0.0
    %2627 = vmatpush1.msra.mxu0 %v2593
    %2628 = vmatprep.subr.mxu0 0.0
    %2629 = vmatpush1.msra.mxu0 0.0
    %2630 = vmatprep.subr.mxu0 0.0
    %2631 = vmatpush1.msra.mxu0 0.0
    %2632 = vmatprep.subr.mxu0 0.0
    %2633 = vmatpush1.msra.mxu0 0.0
    %2634 = vmatprep.subr.mxu0 0.0
    %2635 = vmatpush1.msra.mxu0 0.0
    %2636 = vmatprep.subr.mxu0 0.0
    %2637 = vmatpush1.msra.mxu0 0.0
    %2638 = vmatprep.subr.mxu0 0.0
    %2639 = vmatpush1.msra.mxu0 0.0
    %2640 = vmatprep.subr.mxu0 0.0
    %2641 = vmatpush1.msra.mxu0 0.0
    %2642 = vmatprep.subr.mxu0 0.0
    %2643 = vmatpush1.msra.mxu0 0.0
    %2644 = vmatprep.subr.mxu0 0.0
    %2645 = vmatpush1.msra.mxu0 0.0
    %2646 = vmatprep.subr.mxu0 0.0
    %2647 = vmatpush1.msra.mxu0 0.0
    %2648 = vmatprep.subr.mxu0 0.0
    %2649 = vmatpush1.msra.mxu0 0.0
    %2650 = vmatprep.subr.mxu0 0.0
    %2651 = vmatpush1.msra.mxu0 0.0
    %2652 = vmatprep.subr.mxu0 0.0
    %2653 = vmatpush1.msra.mxu0 0.0
    %2654 = vmatprep.subr.mxu0 0.0
    %2655 = vmatpush1.msra.mxu0 0.0
    %2656 = vmatprep.subr.mxu0 0.0
    %2657 = vmatpush1.msra.mxu0 0.0
    %2658 = vmatprep.subr.mxu0 0.0
    %2659 = vmatpush1.msra.mxu0 0.0
    %2660 = vmatprep.subr.mxu0 0.0
    %2661 = vmatpush1.msra.mxu0 0.0
    %2662 = vmatprep.subr.mxu0 0.0
    %2663 = vmatpush1.msra.mxu0 0.0
    %2664 = vmatprep.subr.mxu0 0.0
    %2665 = vmatpush1.msra.mxu0 0.0
    %2666 = vmatprep.subr.mxu0 0.0
    %2667 = vmatpush1.msra.mxu0 0.0
    %2668 = vmatprep.subr.mxu0 0.0
    %2669 = vmatpush1.msra.mxu0 0.0
    %2670 = vmatprep.subr.mxu0 0.0
    %2671 = vmatpush1.msra.mxu0 0.0
    %2672 = vmatprep.subr.mxu0 0.0
    %2673 = vmatpush1.msra.mxu0 0.0
    %2674 = vmatprep.subr.mxu0 0.0
    %2675 = vmatpush1.msra.mxu0 0.0
    %2676 = vmatprep.subr.mxu0 0.0
    %2677 = vmatpush1.msra.mxu0 0.0
    %2678 = vmatprep.subr.mxu0 0.0
    %2679 = vmatpush1.msra.mxu0 0.0
    %2680 = vmatprep.subr.mxu0 0.0
    %2681 = vmatpush1.msra.mxu0 0.0
    %2682 = vmatprep.subr.mxu0 0.0
    %2683 = vmatpush1.msra.mxu0 0.0
    %2684 = vmatprep.mubr.f32.mxu0 0.0
    %2685 = vmatmul.mubr.f32.gmra.mrb[0].mxu0 %v2603
    %v2686 = vpop.f32.mrb[0].mxu0
    %v2687 = vadd.f32 %v2600, %v2686
    %v2688 = vpop.f32.mrb[0].mxu0
    %2689 = vmatprep.mubr.f32.mxu0 0.0
    %2690 = vmatmul.mubr.f32.gmra.mrb[0].mxu0 %v2606
    %v2691 = vpop.f32.mrb[0].mxu0
    %v2692 = vadd.f32 %v2600, %v2691
    %v2693 = vpop.f32.mrb[0].mxu0
    %2694 = vmatprep.mubr.f32.mxu0 0.0
    %2695 = vmatmul.mubr.f32.gmra.mrb[0].mxu0 %v2609
    %v2696 = vpop.f32.mrb[0].mxu0
    %v2697 = vadd.f32 %v2600, %v2696
    %v2698 = vpop.f32.mrb[0].mxu0
    %2699 = vmatprep.mubr.f32.mxu0 0.0
    %2700 = vmatmul.mubr.f32.gmra.mrb[0].mxu0 %v2612
    %v2701 = vpop.f32.mrb[0].mxu0
    %v2702 = vadd.f32 %v2600, %v2701
    %v2703 = vpop.f32.mrb[0].mxu0
    %2704 = vmatprep.mubr.f32.mxu0 0.0
    %2705 = vmatmul.mubr.f32.gmra.mrb[0].mxu0 %v2615
    %v2706 = vpop.f32.mrb[0].mxu0
    %v2707 = vadd.f32 %v2600, %v2706
    %v2708 = vpop.f32.mrb[0].mxu0
    %2709 = vmatprep.mubr.f32.mxu0 0.0
    %2710 = vmatmul.mubr.f32.gmra.mrb[0].mxu0 %v2618
    %v2711 = vpop.f32.mrb[0].mxu0
    %v2712 = vadd.f32 %v2600, %v2711
    %v2713 = vpop.f32.mrb[0].mxu0
    %2714 = vdwg.mxu0
    %v2715 = vmul.f32 %v2687, 0.35355338
    %v2716 = vmul.f32 %v2692, 0.35355338
    %v2717 = vmul.f32 %v2697, 0.35355338
    %v2718 = vmul.f32 %v2702, 0.35355338
    %v2719 = vmul.f32 %v2707, 0.35355338
    %v2720 = vmul.f32 %v2712, 0.35355338
    %2727 = vrot.lane.b32.xlu0 %v2687, 96
    %v2728 = vpop.permute.xlu0 %2727
    %2729 = vrot.lane.b32.xlu0 %v2692, 96
    %v2730 = vpop.permute.xlu0 %2729
    %2731 = vrot.lane.b32.xlu0 %v2697, 96
    %v2732 = vpop.permute.xlu0 %2731
    %2733 = vrot.lane.b32.xlu0 %v2702, 96
    %v2734 = vpop.permute.xlu0 %2733
    %2735 = vrot.lane.b32.xlu0 %v2707, 96
    %v2736 = vpop.permute.xlu0 %2735
    %2737 = vrot.lane.b32.xlu0 %v2712, 96
    %v2738 = vpop.permute.xlu0 %2737
    %v2740 = vsel %vm486, %v2715, 0
    %v2743 = vsel %vm486, %v2716, 0
    %v2746 = vsel %vm486, %v2717, 0
    %v2749 = vsel %vm486, %v2718, 0
    %v2752 = vsel %vm486, %v2719, 0
    %v2755 = vsel %vm486, %v2720, 0
    %v2757 = vsel %vm486, %v2728, 0
    %v2759 = vsel %vm486, %v2730, 0
    %v2761 = vsel %vm486, %v2732, 0
    %v2763 = vsel %vm486, %v2734, 0
    %v2765 = vsel %vm486, %v2736, 0
    %v2767 = vsel %vm486, %v2738, 0
    %2769 = vmatprep.subr.mxu0 0.0
    %2770 = vmatpush1.xpose.msra.mxu0 %v2757
    %2771 = vmatprep.subr.mxu0 0.0
    %2772 = vmatpush1.xpose.msra.mxu0 %v2759
    %2773 = vmatprep.subr.mxu0 0.0
    %2774 = vmatpush1.xpose.msra.mxu0 %v2761
    %2775 = vmatprep.subr.mxu0 0.0
    %2776 = vmatpush1.xpose.msra.mxu0 %v2763
    %2777 = vmatprep.subr.mxu0 0.0
    %2778 = vmatpush1.xpose.msra.mxu0 %v2765
    %2779 = vmatprep.subr.mxu0 0.0
    %2780 = vmatpush1.xpose.msra.mxu0 %v2767
    %2781 = vmatprep.subr.mxu0 0.0
    %2782 = vmatpush1.xpose.msra.mxu0 0.0
    %2783 = vmatprep.subr.mxu0 0.0
    %2784 = vmatpush1.xpose.msra.mxu0 0.0
    %2785 = vmatprep.subr.mxu0 0.0
    %2786 = vmatpush1.xpose.msra.mxu0 0.0
    %2787 = vmatprep.subr.mxu0 0.0
    %2788 = vmatpush1.xpose.msra.mxu0 0.0
    %2789 = vmatprep.subr.mxu0 0.0
    %2790 = vmatpush1.xpose.msra.mxu0 0.0
    %2791 = vmatprep.subr.mxu0 0.0
    %2792 = vmatpush1.xpose.msra.mxu0 0.0
    %2793 = vmatprep.subr.mxu0 0.0
    %2794 = vmatpush1.xpose.msra.mxu0 0.0
    %2795 = vmatprep.subr.mxu0 0.0
    %2796 = vmatpush1.xpose.msra.mxu0 0.0
    %2797 = vmatprep.subr.mxu0 0.0
    %2798 = vmatpush1.xpose.msra.mxu0 0.0
    %2799 = vmatprep.subr.mxu0 0.0
    %2800 = vmatpush1.xpose.msra.mxu0 0.0
    %2801 = vmatprep.subr.mxu0 0.0
    %2802 = vmatpush1.xpose.msra.mxu0 0.0
    %2803 = vmatprep.subr.mxu0 0.0
    %2804 = vmatpush1.xpose.msra.mxu0 0.0
    %2805 = vmatprep.subr.mxu0 0.0
    %2806 = vmatpush1.xpose.msra.mxu0 0.0
    %2807 = vmatprep.subr.mxu0 0.0
    %2808 = vmatpush1.xpose.msra.mxu0 0.0
    %2809 = vmatprep.subr.mxu0 0.0
    %2810 = vmatpush1.xpose.msra.mxu0 0.0
    %2811 = vmatprep.subr.mxu0 0.0
    %2812 = vmatpush1.xpose.msra.mxu0 0.0
    %2813 = vmatprep.subr.mxu0 0.0
    %2814 = vmatpush1.xpose.msra.mxu0 0.0
    %2815 = vmatprep.subr.mxu0 0.0
    %2816 = vmatpush1.xpose.msra.mxu0 0.0
    %2817 = vmatprep.subr.mxu0 0.0
    %2818 = vmatpush1.xpose.msra.mxu0 0.0
    %2819 = vmatprep.subr.mxu0 0.0
    %2820 = vmatpush1.xpose.msra.mxu0 0.0
    %2821 = vmatprep.subr.mxu0 0.0
    %2822 = vmatpush1.xpose.msra.mxu0 0.0
    %2823 = vmatprep.subr.mxu0 0.0
    %2824 = vmatpush1.xpose.msra.mxu0 0.0
    %2825 = vmatprep.subr.mxu0 0.0
    %2826 = vmatpush1.xpose.msra.mxu0 0.0
    %2827 = vmatprep.subr.mxu0 0.0
    %2828 = vmatpush1.xpose.msra.mxu0 0.0
    %2829 = vmatprep.subr.mxu0 0.0
    %2830 = vmatpush1.xpose.msra.mxu0 0.0
    %2831 = vmatprep.subr.mxu0 0.0
    %2832 = vmatpush1.xpose.msra.mxu0 0.0
    %2833 = vmatprep.mubr.f32.mxu0 0.0
    %2834 = vmatmul.mubr.f32.gmra.mrb[0].mxu0 %v2740
    %v2835 = vpop.f32.mrb[0].mxu0
    %v2836 = vadd.f32 %v227, %v2835
    %v2837 = vpop.f32.mrb[0].mxu0
    %2838 = vmatprep.mubr.f32.mxu0 0.0
    %2839 = vmatmul.mubr.f32.gmra.mrb[0].mxu0 %v2743
    %v2840 = vpop.f32.mrb[0].mxu0
    %v2841 = vadd.f32 %v228, %v2840
    %v2842 = vpop.f32.mrb[0].mxu0
    %2843 = vmatprep.mubr.f32.mxu0 0.0
    %2844 = vmatmul.mubr.f32.gmra.mrb[0].mxu0 %v2746
    %v2845 = vpop.f32.mrb[0].mxu0
    %v2846 = vadd.f32 %v229, %v2845
    %v2847 = vpop.f32.mrb[0].mxu0
    %2848 = vmatprep.mubr.f32.mxu0 0.0
    %2849 = vmatmul.mubr.f32.gmra.mrb[0].mxu0 %v2749
    %v2850 = vpop.f32.mrb[0].mxu0
    %v2851 = vadd.f32 %v230, %v2850
    %v2852 = vpop.f32.mrb[0].mxu0
    %2853 = vmatprep.mubr.f32.mxu0 0.0
    %2854 = vmatmul.mubr.f32.gmra.mrb[0].mxu0 %v2752
    %v2855 = vpop.f32.mrb[0].mxu0
    %v2856 = vadd.f32 %v231, %v2855
    %v2857 = vpop.f32.mrb[0].mxu0
    %2858 = vmatprep.mubr.f32.mxu0 0.0
    %2859 = vmatmul.mubr.f32.gmra.mrb[0].mxu0 %v2755
    %v2860 = vpop.f32.mrb[0].mxu0
    %v2861 = vadd.f32 %v232, %v2860
    %v2862 = vpop.f32.mrb[0].mxu0
    %2863 = vdwg.mxu0
    %v2864 = vsel %vm612, %v2836, -inf
    %2865 = vmax.xlane.f32.xlu0 %v2864
    %v2866 = vpop.xlane.xlu0 %2865
    %v2867 = vsel %vm612, %v2841, -inf
    %2868 = vmax.xlane.f32.xlu0 %v2867
    %v2869 = vpop.xlane.xlu0 %2868
    %v2870 = vsel %vm612, %v2846, -inf
    %2871 = vmax.xlane.f32.xlu0 %v2870
    %v2872 = vpop.xlane.xlu0 %2871
    %v2873 = vsel %vm612, %v2851, -inf
    %2874 = vmax.xlane.f32.xlu0 %v2873
    %v2875 = vpop.xlane.xlu0 %2874
    %v2876 = vsel %vm612, %v2856, -inf
    %2877 = vmax.xlane.f32.xlu0 %v2876
    %v2878 = vpop.xlane.xlu0 %2877
    %v2879 = vsel %vm612, %v2861, -inf
    %2880 = vmax.xlane.f32.xlu0 %v2879
    %v2881 = vpop.xlane.xlu0 %2880
    %v2882 = vsub.f32 %v2836, %v2866
    %v2883 = vsub.f32 %v2841, %v2869
    %v2884 = vsub.f32 %v2846, %v2872
    %v2885 = vsub.f32 %v2851, %v2875
    %v2886 = vsub.f32 %v2856, %v2878
    %v2887 = vsub.f32 %v2861, %v2881
    %v2888 = vmul.f32 %v2882, 1.442695
    %v2889 = vpow.pop %v2888
    %v2890 = vmul.f32 %v2883, 1.442695
    %v2891 = vpow.pop %v2890
    %v2892 = vmul.f32 %v2884, 1.442695
    %v2893 = vpow.pop %v2892
    %v2894 = vmul.f32 %v2885, 1.442695
    %v2895 = vpow.pop %v2894
    %v2896 = vmul.f32 %v2886, 1.442695
    %v2897 = vpow.pop %v2896
    %v2898 = vmul.f32 %v2887, 1.442695
    %v2899 = vpow.pop %v2898
    %v2900 = vsel %vm612, %v2889, 0.0
    %2901 = vadd.xlane.f32.xlu0 %v2900
    %v2902 = vpop.xlane.xlu0 %2901
    %v2903 = vsel %vm612, %v2891, 0.0
    %2904 = vadd.xlane.f32.xlu0 %v2903
    %v2905 = vpop.xlane.xlu0 %2904
    %v2906 = vsel %vm612, %v2893, 0.0
    %2907 = vadd.xlane.f32.xlu0 %v2906
    %v2908 = vpop.xlane.xlu0 %2907
    %v2909 = vsel %vm612, %v2895, 0.0
    %2910 = vadd.xlane.f32.xlu0 %v2909
    %v2911 = vpop.xlane.xlu0 %2910
    %v2912 = vsel %vm612, %v2897, 0.0
    %2913 = vadd.xlane.f32.xlu0 %v2912
    %v2914 = vpop.xlane.xlu0 %2913
    %v2915 = vsel %vm612, %v2899, 0.0
    %2916 = vadd.xlane.f32.xlu0 %v2915
    %v2917 = vpop.xlane.xlu0 %2916
    %v2918 = vrcp.pop %v2902
    %v2919 = vrcp.pop %v2905
    %v2920 = vrcp.pop %v2908
    %v2921 = vrcp.pop %v2911
    %v2922 = vrcp.pop %v2914
    %v2923 = vrcp.pop %v2917
    %v2924 = vmul.f32 %v2889, %v2918
    %v2925 = vmul.f32 %v2891, %v2919
    %v2926 = vmul.f32 %v2893, %v2920
    %v2927 = vmul.f32 %v2895, %v2921
    %v2928 = vmul.f32 %v2897, %v2922
    %v2929 = vmul.f32 %v2899, %v2923
    %2930 = vrot.lane.b32.xlu0 %v2687, 64
    %v2931 = vpop.permute.xlu0 %2930
    %2932 = vrot.lane.b32.xlu0 %v2692, 64
    %v2933 = vpop.permute.xlu0 %2932
    %2934 = vrot.lane.b32.xlu0 %v2697, 64
    %v2935 = vpop.permute.xlu0 %2934
    %2936 = vrot.lane.b32.xlu0 %v2702, 64
    %v2937 = vpop.permute.xlu0 %2936
    %2938 = vrot.lane.b32.xlu0 %v2707, 64
    %v2939 = vpop.permute.xlu0 %2938
    %2940 = vrot.lane.b32.xlu0 %v2712, 64
    %v2941 = vpop.permute.xlu0 %2940
    %v2949 = vsel %vm612, %v2924, 0
    %v2952 = vsel %vm612, %v2925, 0
    %v2955 = vsel %vm612, %v2926, 0
    %v2958 = vsel %vm612, %v2927, 0
    %v2961 = vsel %vm612, %v2928, 0
    %v2964 = vsel %vm612, %v2929, 0
    %2966 = vmatprep.subr.mxu0 0.0
    %2967 = vmatpush1.msra.mxu0 %v2931
    %2968 = vmatprep.subr.mxu0 0.0
    %2969 = vmatpush1.msra.mxu0 %v2933
    %2970 = vmatprep.subr.mxu0 0.0
    %2971 = vmatpush1.msra.mxu0 %v2935
    %2972 = vmatprep.subr.mxu0 0.0
    %2973 = vmatpush1.msra.mxu0 %v2937
    %2974 = vmatprep.subr.mxu0 0.0
    %2975 = vmatpush1.msra.mxu0 %v2939
    %2976 = vmatprep.subr.mxu0 0.0
    %2977 = vmatpush1.msra.mxu0 %v2941
    %2978 = vmatprep.subr.mxu0 0.0
    %2979 = vmatpush1.msra.mxu0 0.0
    %2980 = vmatprep.subr.mxu0 0.0
    %2981 = vmatpush1.msra.mxu0 0.0
    %2982 = vmatprep.subr.mxu0 0.0
    %2983 = vmatpush1.msra.mxu0 0.0
    %2984 = vmatprep.subr.mxu0 0.0
    %2985 = vmatpush1.msra.mxu0 0.0
    %2986 = vmatprep.subr.mxu0 0.0
    %2987 = vmatpush1.msra.mxu0 0.0
    %2988 = vmatprep.subr.mxu0 0.0
    %2989 = vmatpush1.msra.mxu0 0.0
    %2990 = vmatprep.subr.mxu0 0.0
    %2991 = vmatpush1.msra.mxu0 0.0
    %2992 = vmatprep.subr.mxu0 0.0
    %2993 = vmatpush1.msra.mxu0 0.0
    %2994 = vmatprep.subr.mxu0 0.0
    %2995 = vmatpush1.msra.mxu0 0.0
    %2996 = vmatprep.subr.mxu0 0.0
    %2997 = vmatpush1.msra.mxu0 0.0
    %2998 = vmatprep.subr.mxu0 0.0
    %2999 = vmatpush1.msra.mxu0 0.0
    %3000 = vmatprep.subr.mxu0 0.0
    %3001 = vmatpush1.msra.mxu0 0.0
    %3002 = vmatprep.subr.mxu0 0.0
    %3003 = vmatpush1.msra.mxu0 0.0
    %3004 = vmatprep.subr.mxu0 0.0
    %3005 = vmatpush1.msra.mxu0 0.0
    %3006 = vmatprep.subr.mxu0 0.0
    %3007 = vmatpush1.msra.mxu0 0.0
    %3008 = vmatprep.subr.mxu0 0.0
    %3009 = vmatpush1.msra.mxu0 0.0
    %3010 = vmatprep.subr.mxu0 0.0
    %3011 = vmatpush1.msra.mxu0 0.0
    %3012 = vmatprep.subr.mxu0 0.0
    %3013 = vmatpush1.msra.mxu0 0.0
    %3014 = vmatprep.subr.mxu0 0.0
    %3015 = vmatpush1.msra.mxu0 0.0
    %3016 = vmatprep.subr.mxu0 0.0
    %3017 = vmatpush1.msra.mxu0 0.0
    %3018 = vmatprep.subr.mxu0 0.0
    %3019 = vmatpush1.msra.mxu0 0.0
    %3020 = vmatprep.subr.mxu0 0.0
    %3021 = vmatpush1.msra.mxu0 0.0
    %3022 = vmatprep.subr.mxu0 0.0
    %3023 = vmatpush1.msra.mxu0 0.0
    %3024 = vmatprep.subr.mxu0 0.0
    %3025 = vmatpush1.msra.mxu0 0.0
    %3026 = vmatprep.subr.mxu0 0.0
    %3027 = vmatpush1.msra.mxu0 0.0
    %3028 = vmatprep.subr.mxu0 0.0
    %3029 = vmatpush1.msra.mxu0 0.0
    %3030 = vmatprep.mubr.f32.mxu0 0.0
    %3031 = vmatmul.mubr.f32.gmra.mrb[0].mxu0 %v2949
    %v3032 = vpop.f32.mrb[0].mxu0
    %v3033 = vadd.f32 0.0, %v3032
    %v3034 = vpop.f32.mrb[0].mxu0
    %3035 = vmatprep.mubr.f32.mxu0 0.0
    %3036 = vmatmul.mubr.f32.gmra.mrb[0].mxu0 %v2952
    %v3037 = vpop.f32.mrb[0].mxu0
    %v3038 = vadd.f32 0.0, %v3037
    %v3039 = vpop.f32.mrb[0].mxu0
    %3040 = vmatprep.mubr.f32.mxu0 0.0
    %3041 = vmatmul.mubr.f32.gmra.mrb[0].mxu0 %v2955
    %v3042 = vpop.f32.mrb[0].mxu0
    %v3043 = vadd.f32 0.0, %v3042
    %v3044 = vpop.f32.mrb[0].mxu0
    %3045 = vmatprep.mubr.f32.mxu0 0.0
    %3046 = vmatmul.mubr.f32.gmra.mrb[0].mxu0 %v2958
    %v3047 = vpop.f32.mrb[0].mxu0
    %v3048 = vadd.f32 0.0, %v3047
    %v3049 = vpop.f32.mrb[0].mxu0
    %3050 = vmatprep.mubr.f32.mxu0 0.0
    %3051 = vmatmul.mubr.f32.gmra.mrb[0].mxu0 %v2961
    %v3052 = vpop.f32.mrb[0].mxu0
    %v3053 = vadd.f32 0.0, %v3052
    %v3054 = vpop.f32.mrb[0].mxu0
    %3055 = vmatprep.mubr.f32.mxu0 0.0
    %3056 = vmatmul.mubr.f32.gmra.mrb[0].mxu0 %v2964
    %v3057 = vpop.f32.mrb[0].mxu0
    %v3058 = vadd.f32 0.0, %v3057
    %v3059 = vpop.f32.mrb[0].mxu0
    %3060 = vdwg.mxu0
    %3061 = vst.msk [vmem:[#allocation2] sm:$0xff] %vm486, %v3033
    %3062 = vst.msk [vmem:[#allocation2 + $0x8] sm:$0xff] %vm486, %v3038
    %3063 = vst.msk [vmem:[#allocation2 + $0x10] sm:$0xff] %vm486, %v3043
    %3064 = vst.msk [vmem:[#allocation2 + $0x18] sm:$0xff] %vm486, %v3048
    %3065 = vst.msk [vmem:[#allocation2 + $0x20] sm:$0xff] %vm486, %v3053
    %3066 = vst.msk [vmem:[#allocation2 + $0x28] sm:$0xff] %vm486, %v3058
    %3067 = vrot.lane.b32.xlu0 %v2715, 120
    %v3068 = vpop.permute.xlu0 %3067
    %3069 = vrot.lane.b32.xlu0 %v2716, 120
    %v3070 = vpop.permute.xlu0 %3069
    %3071 = vrot.lane.b32.xlu0 %v2717, 120
    %v3072 = vpop.permute.xlu0 %3071
    %3073 = vrot.lane.b32.xlu0 %v2718, 120
    %v3074 = vpop.permute.xlu0 %3073
    %3075 = vrot.lane.b32.xlu0 %v2719, 120
    %v3076 = vpop.permute.xlu0 %3075
    %3077 = vrot.lane.b32.xlu0 %v2720, 120
    %v3078 = vpop.permute.xlu0 %3077
    %3079 = vrot.lane.b32.xlu0 %v2687, 88
    %v3080 = vpop.permute.xlu0 %3079
    %3081 = vrot.lane.b32.xlu0 %v2692, 88
    %v3082 = vpop.permute.xlu0 %3081
    %3083 = vrot.lane.b32.xlu0 %v2697, 88
    %v3084 = vpop.permute.xlu0 %3083
    %3085 = vrot.lane.b32.xlu0 %v2702, 88
    %v3086 = vpop.permute.xlu0 %3085
    %3087 = vrot.lane.b32.xlu0 %v2707, 88
    %v3088 = vpop.permute.xlu0 %3087
    %3089 = vrot.lane.b32.xlu0 %v2712, 88
    %v3090 = vpop.permute.xlu0 %3089
    %v3091 = vsel %vm486, %v3068, 0
    %v3093 = vsel %vm486, %v3070, 0
    %v3095 = vsel %vm486, %v3072, 0
    %v3097 = vsel %vm486, %v3074, 0
    %v3099 = vsel %vm486, %v3076, 0
    %v3101 = vsel %vm486, %v3078, 0
    %v3103 = vsel %vm486, %v3080, 0
    %v3105 = vsel %vm486, %v3082, 0
    %v3107 = vsel %vm486, %v3084, 0
    %v3109 = vsel %vm486, %v3086, 0
    %v3111 = vsel %vm486, %v3088, 0
    %v3113 = vsel %vm486, %v3090, 0
    %3115 = vmatprep.subr.mxu0 0.0
    %3116 = vmatpush1.xpose.msra.mxu0 %v3103
    %3117 = vmatprep.subr.mxu0 0.0
    %3118 = vmatpush1.xpose.msra.mxu0 %v3105
    %3119 = vmatprep.subr.mxu0 0.0
    %3120 = vmatpush1.xpose.msra.mxu0 %v3107
    %3121 = vmatprep.subr.mxu0 0.0
    %3122 = vmatpush1.xpose.msra.mxu0 %v3109
    %3123 = vmatprep.subr.mxu0 0.0
    %3124 = vmatpush1.xpose.msra.mxu0 %v3111
    %3125 = vmatprep.subr.mxu0 0.0
    %3126 = vmatpush1.xpose.msra.mxu0 %v3113
    %3127 = vmatprep.subr.mxu0 0.0
    %3128 = vmatpush1.xpose.msra.mxu0 0.0
    %3129 = vmatprep.subr.mxu0 0.0
    %3130 = vmatpush1.xpose.msra.mxu0 0.0
    %3131 = vmatprep.subr.mxu0 0.0
    %3132 = vmatpush1.xpose.msra.mxu0 0.0
    %3133 = vmatprep.subr.mxu0 0.0
    %3134 = vmatpush1.xpose.msra.mxu0 0.0
    %3135 = vmatprep.subr.mxu0 0.0
    %3136 = vmatpush1.xpose.msra.mxu0 0.0
    %3137 = vmatprep.subr.mxu0 0.0
    %3138 = vmatpush1.xpose.msra.mxu0 0.0
    %3139 = vmatprep.subr.mxu0 0.0
    %3140 = vmatpush1.xpose.msra.mxu0 0.0
    %3141 = vmatprep.subr.mxu0 0.0
    %3142 = vmatpush1.xpose.msra.mxu0 0.0
    %3143 = vmatprep.subr.mxu0 0.0
    %3144 = vmatpush1.xpose.msra.mxu0 0.0
    %3145 = vmatprep.subr.mxu0 0.0
    %3146 = vmatpush1.xpose.msra.mxu0 0.0
    %3147 = vmatprep.subr.mxu0 0.0
    %3148 = vmatpush1.xpose.msra.mxu0 0.0
    %3149 = vmatprep.subr.mxu0 0.0
    %3150 = vmatpush1.xpose.msra.mxu0 0.0
    %3151 = vmatprep.subr.mxu0 0.0
    %3152 = vmatpush1.xpose.msra.mxu0 0.0
    %3153 = vmatprep.subr.mxu0 0.0
    %3154 = vmatpush1.xpose.msra.mxu0 0.0
    %3155 = vmatprep.subr.mxu0 0.0
    %3156 = vmatpush1.xpose.msra.mxu0 0.0
    %3157 = vmatprep.subr.mxu0 0.0
    %3158 = vmatpush1.xpose.msra.mxu0 0.0
    %3159 = vmatprep.subr.mxu0 0.0
    %3160 = vmatpush1.xpose.msra.mxu0 0.0
    %3161 = vmatprep.subr.mxu0 0.0
    %3162 = vmatpush1.xpose.msra.mxu0 0.0
    %3163 = vmatprep.subr.mxu0 0.0
    %3164 = vmatpush1.xpose.msra.mxu0 0.0
    %3165 = vmatprep.subr.mxu0 0.0
    %3166 = vmatpush1.xpose.msra.mxu0 0.0
    %3167 = vmatprep.subr.mxu0 0.0
    %3168 = vmatpush1.xpose.msra.mxu0 0.0
    %3169 = vmatprep.subr.mxu0 0.0
    %3170 = vmatpush1.xpose.msra.mxu0 0.0
    %3171 = vmatprep.subr.mxu0 0.0
    %3172 = vmatpush1.xpose.msra.mxu0 0.0
    %3173 = vmatprep.subr.mxu0 0.0
    %3174 = vmatpush1.xpose.msra.mxu0 0.0
    %3175 = vmatprep.subr.mxu0 0.0
    %3176 = vmatpush1.xpose.msra.mxu0 0.0
    %3177 = vmatprep.subr.mxu0 0.0
    %3178 = vmatpush1.xpose.msra.mxu0 0.0
    %3179 = vmatprep.mubr.f32.mxu0 0.0
    %3180 = vmatmul.mubr.f32.gmra.mrb[0].mxu0 %v3091
    %v3181 = vpop.f32.mrb[0].mxu0
    %v3182 = vadd.f32 %v227, %v3181
    %v3183 = vpop.f32.mrb[0].mxu0
    %3184 = vmatprep.mubr.f32.mxu0 0.0
    %3185 = vmatmul.mubr.f32.gmra.mrb[0].mxu0 %v3093
    %v3186 = vpop.f32.mrb[0].mxu0
    %v3187 = vadd.f32 %v228, %v3186
    %v3188 = vpop.f32.mrb[0].mxu0
    %3189 = vmatprep.mubr.f32.mxu0 0.0
    %3190 = vmatmul.mubr.f32.gmra.mrb[0].mxu0 %v3095
    %v3191 = vpop.f32.mrb[0].mxu0
    %v3192 = vadd.f32 %v229, %v3191
    %v3193 = vpop.f32.mrb[0].mxu0
    %3194 = vmatprep.mubr.f32.mxu0 0.0
    %3195 = vmatmul.mubr.f32.gmra.mrb[0].mxu0 %v3097
    %v3196 = vpop.f32.mrb[0].mxu0
    %v3197 = vadd.f32 %v230, %v3196
    %v3198 = vpop.f32.mrb[0].mxu0
    %3199 = vmatprep.mubr.f32.mxu0 0.0
    %3200 = vmatmul.mubr.f32.gmra.mrb[0].mxu0 %v3099
    %v3201 = vpop.f32.mrb[0].mxu0
    %v3202 = vadd.f32 %v231, %v3201
    %v3203 = vpop.f32.mrb[0].mxu0
    %3204 = vmatprep.mubr.f32.mxu0 0.0
    %3205 = vmatmul.mubr.f32.gmra.mrb[0].mxu0 %v3101
    %v3206 = vpop.f32.mrb[0].mxu0
    %v3207 = vadd.f32 %v232, %v3206
    %v3208 = vpop.f32.mrb[0].mxu0
    %3209 = vdwg.mxu0
    %v3210 = vsel %vm612, %v3182, -inf
    %3211 = vmax.xlane.f32.xlu0 %v3210
    %v3212 = vpop.xlane.xlu0 %3211
    %v3213 = vsel %vm612, %v3187, -inf
    %3214 = vmax.xlane.f32.xlu0 %v3213
    %v3215 = vpop.xlane.xlu0 %3214
    %v3216 = vsel %vm612, %v3192, -inf
    %3217 = vmax.xlane.f32.xlu0 %v3216
    %v3218 = vpop.xlane.xlu0 %3217
    %v3219 = vsel %vm612, %v3197, -inf
    %3220 = vmax.xlane.f32.xlu0 %v3219
    %v3221 = vpop.xlane.xlu0 %3220
    %v3222 = vsel %vm612, %v3202, -inf
    %3223 = vmax.xlane.f32.xlu0 %v3222
    %v3224 = vpop.xlane.xlu0 %3223
    %v3225 = vsel %vm612, %v3207, -inf
    %3226 = vmax.xlane.f32.xlu0 %v3225
    %v3227 = vpop.xlane.xlu0 %3226
    %v3228 = vsub.f32 %v3182, %v3212
    %v3229 = vsub.f32 %v3187, %v3215
    %v3230 = vsub.f32 %v3192, %v3218
    %v3231 = vsub.f32 %v3197, %v3221
    %v3232 = vsub.f32 %v3202, %v3224
    %v3233 = vsub.f32 %v3207, %v3227
    %v3234 = vmul.f32 %v3228, 1.442695
    %v3235 = vpow.pop %v3234
    %v3236 = vmul.f32 %v3229, 1.442695
    %v3237 = vpow.pop %v3236
    %v3238 = vmul.f32 %v3230, 1.442695
    %v3239 = vpow.pop %v3238
    %v3240 = vmul.f32 %v3231, 1.442695
    %v3241 = vpow.pop %v3240
    %v3242 = vmul.f32 %v3232, 1.442695
    %v3243 = vpow.pop %v3242
    %v3244 = vmul.f32 %v3233, 1.442695
    %v3245 = vpow.pop %v3244
    %v3246 = vsel %vm612, %v3235, 0.0
    %3247 = vadd.xlane.f32.xlu0 %v3246
    %v3248 = vpop.xlane.xlu0 %3247
    %v3249 = vsel %vm612, %v3237, 0.0
    %3250 = vadd.xlane.f32.xlu0 %v3249
    %v3251 = vpop.xlane.xlu0 %3250
    %v3252 = vsel %vm612, %v3239, 0.0
    %3253 = vadd.xlane.f32.xlu0 %v3252
    %v3254 = vpop.xlane.xlu0 %3253
    %v3255 = vsel %vm612, %v3241, 0.0
    %3256 = vadd.xlane.f32.xlu0 %v3255
    %v3257 = vpop.xlane.xlu0 %3256
    %v3258 = vsel %vm612, %v3243, 0.0
    %3259 = vadd.xlane.f32.xlu0 %v3258
    %v3260 = vpop.xlane.xlu0 %3259
    %v3261 = vsel %vm612, %v3245, 0.0
    %3262 = vadd.xlane.f32.xlu0 %v3261
    %v3263 = vpop.xlane.xlu0 %3262
    %v3264 = vrcp.pop %v3248
    %v3265 = vrcp.pop %v3251
    %v3266 = vrcp.pop %v3254
    %v3267 = vrcp.pop %v3257
    %v3268 = vrcp.pop %v3260
    %v3269 = vrcp.pop %v3263
    %v3270 = vmul.f32 %v3235, %v3264
    %v3271 = vmul.f32 %v3237, %v3265
    %v3272 = vmul.f32 %v3239, %v3266
    %v3273 = vmul.f32 %v3241, %v3267
    %v3274 = vmul.f32 %v3243, %v3268
    %v3275 = vmul.f32 %v3245, %v3269
    %3276 = vrot.lane.b32.xlu0 %v2687, 56
    %v3277 = vpop.permute.xlu0 %3276
    %3278 = vrot.lane.b32.xlu0 %v2692, 56
    %v3279 = vpop.permute.xlu0 %3278
    %3280 = vrot.lane.b32.xlu0 %v2697, 56
    %v3281 = vpop.permute.xlu0 %3280
    %3282 = vrot.lane.b32.xlu0 %v2702, 56
    %v3283 = vpop.permute.xlu0 %3282
    %3284 = vrot.lane.b32.xlu0 %v2707, 56
    %v3285 = vpop.permute.xlu0 %3284
    %3286 = vrot.lane.b32.xlu0 %v2712, 56
    %v3287 = vpop.permute.xlu0 %3286
    %v3295 = vsel %vm612, %v3270, 0
    %v3298 = vsel %vm612, %v3271, 0
    %v3301 = vsel %vm612, %v3272, 0
    %v3304 = vsel %vm612, %v3273, 0
    %v3307 = vsel %vm612, %v3274, 0
    %v3310 = vsel %vm612, %v3275, 0
    %3312 = vmatprep.subr.mxu0 0.0
    %3313 = vmatpush1.msra.mxu0 %v3277
    %3314 = vmatprep.subr.mxu0 0.0
    %3315 = vmatpush1.msra.mxu0 %v3279
    %3316 = vmatprep.subr.mxu0 0.0
    %3317 = vmatpush1.msra.mxu0 %v3281
    %3318 = vmatprep.subr.mxu0 0.0
    %3319 = vmatpush1.msra.mxu0 %v3283
    %3320 = vmatprep.subr.mxu0 0.0
    %3321 = vmatpush1.msra.mxu0 %v3285
    %3322 = vmatprep.subr.mxu0 0.0
    %3323 = vmatpush1.msra.mxu0 %v3287
    %3324 = vmatprep.subr.mxu0 0.0
    %3325 = vmatpush1.msra.mxu0 0.0
    %3326 = vmatprep.subr.mxu0 0.0
    %3327 = vmatpush1.msra.mxu0 0.0
    %3328 = vmatprep.subr.mxu0 0.0
    %3329 = vmatpush1.msra.mxu0 0.0
    %3330 = vmatprep.subr.mxu0 0.0
    %3331 = vmatpush1.msra.mxu0 0.0
    %3332 = vmatprep.subr.mxu0 0.0
    %3333 = vmatpush1.msra.mxu0 0.0
    %3334 = vmatprep.subr.mxu0 0.0
    %3335 = vmatpush1.msra.mxu0 0.0
    %3336 = vmatprep.subr.mxu0 0.0
    %3337 = vmatpush1.msra.mxu0 0.0
    %3338 = vmatprep.subr.mxu0 0.0
    %3339 = vmatpush1.msra.mxu0 0.0
    %3340 = vmatprep.subr.mxu0 0.0
    %3341 = vmatpush1.msra.mxu0 0.0
    %3342 = vmatprep.subr.mxu0 0.0
    %3343 = vmatpush1.msra.mxu0 0.0
    %3344 = vmatprep.subr.mxu0 0.0
    %3345 = vmatpush1.msra.mxu0 0.0
    %3346 = vmatprep.subr.mxu0 0.0
    %3347 = vmatpush1.msra.mxu0 0.0
    %3348 = vmatprep.subr.mxu0 0.0
    %3349 = vmatpush1.msra.mxu0 0.0
    %3350 = vmatprep.subr.mxu0 0.0
    %3351 = vmatpush1.msra.mxu0 0.0
    %3352 = vmatprep.subr.mxu0 0.0
    %3353 = vmatpush1.msra.mxu0 0.0
    %3354 = vmatprep.subr.mxu0 0.0
    %3355 = vmatpush1.msra.mxu0 0.0
    %3356 = vmatprep.subr.mxu0 0.0
    %3357 = vmatpush1.msra.mxu0 0.0
    %3358 = vmatprep.subr.mxu0 0.0
    %3359 = vmatpush1.msra.mxu0 0.0
    %3360 = vmatprep.subr.mxu0 0.0
    %3361 = vmatpush1.msra.mxu0 0.0
    %3362 = vmatprep.subr.mxu0 0.0
    %3363 = vmatpush1.msra.mxu0 0.0
    %3364 = vmatprep.subr.mxu0 0.0
    %3365 = vmatpush1.msra.mxu0 0.0
    %3366 = vmatprep.subr.mxu0 0.0
    %3367 = vmatpush1.msra.mxu0 0.0
    %3368 = vmatprep.subr.mxu0 0.0
    %3369 = vmatpush1.msra.mxu0 0.0
    %3370 = vmatprep.subr.mxu0 0.0
    %3371 = vmatpush1.msra.mxu0 0.0
    %3372 = vmatprep.subr.mxu0 0.0
    %3373 = vmatpush1.msra.mxu0 0.0
    %3374 = vmatprep.subr.mxu0 0.0
    %3375 = vmatpush1.msra.mxu0 0.0
    %3376 = vmatprep.mubr.f32.mxu0 0.0
    %3377 = vmatmul.mubr.f32.gmra.mrb[0].mxu0 %v3295
    %v3378 = vpop.f32.mrb[0].mxu0
    %v3379 = vadd.f32 0.0, %v3378
    %v3380 = vpop.f32.mrb[0].mxu0
    %3381 = vmatprep.mubr.f32.mxu0 0.0
    %3382 = vmatmul.mubr.f32.gmra.mrb[0].mxu0 %v3298
    %v3383 = vpop.f32.mrb[0].mxu0
    %v3384 = vadd.f32 0.0, %v3383
    %v3385 = vpop.f32.mrb[0].mxu0
    %3386 = vmatprep.mubr.f32.mxu0 0.0
    %3387 = vmatmul.mubr.f32.gmra.mrb[0].mxu0 %v3301
    %v3388 = vpop.f32.mrb[0].mxu0
    %v3389 = vadd.f32 0.0, %v3388
    %v3390 = vpop.f32.mrb[0].mxu0
    %3391 = vmatprep.mubr.f32.mxu0 0.0
    %3392 = vmatmul.mubr.f32.gmra.mrb[0].mxu0 %v3304
    %v3393 = vpop.f32.mrb[0].mxu0
    %v3394 = vadd.f32 0.0, %v3393
    %v3395 = vpop.f32.mrb[0].mxu0
    %3396 = vmatprep.mubr.f32.mxu0 0.0
    %3397 = vmatmul.mubr.f32.gmra.mrb[0].mxu0 %v3307
    %v3398 = vpop.f32.mrb[0].mxu0
    %v3399 = vadd.f32 0.0, %v3398
    %v3400 = vpop.f32.mrb[0].mxu0
    %3401 = vmatprep.mubr.f32.mxu0 0.0
    %3402 = vmatmul.mubr.f32.gmra.mrb[0].mxu0 %v3310
    %v3403 = vpop.f32.mrb[0].mxu0
    %v3404 = vadd.f32 0.0, %v3403
    %v3405 = vpop.f32.mrb[0].mxu0
    %3406 = vdwg.mxu0
    %3413 = vrot.lane.b32.xlu0 %v3379, 8
    %v3414 = vpop.permute.xlu0 %3413
    %3415 = vrot.lane.b32.xlu0 %v3384, 8
    %v3416 = vpop.permute.xlu0 %3415
    %3417 = vrot.lane.b32.xlu0 %v3389, 8
    %v3418 = vpop.permute.xlu0 %3417
    %3419 = vrot.lane.b32.xlu0 %v3394, 8
    %v3420 = vpop.permute.xlu0 %3419
    %3421 = vrot.lane.b32.xlu0 %v3399, 8
    %v3422 = vpop.permute.xlu0 %3421
    %3423 = vrot.lane.b32.xlu0 %v3404, 8
    %v3424 = vpop.permute.xlu0 %3423
    %3431 = vst.msk [vmem:[#allocation2] sm:$0xff] %vm1180, %v3414
    %3432 = vst.msk [vmem:[#allocation2 + $0x8] sm:$0xff] %vm1180, %v3416
    %3433 = vst.msk [vmem:[#allocation2 + $0x10] sm:$0xff] %vm1180, %v3418
    %3434 = vst.msk [vmem:[#allocation2 + $0x18] sm:$0xff] %vm1180, %v3420
    %3435 = vst.msk [vmem:[#allocation2 + $0x20] sm:$0xff] %vm1180, %v3422
    %3436 = vst.msk [vmem:[#allocation2 + $0x28] sm:$0xff] %vm1180, %v3424
    %3437 = vrot.lane.b32.xlu0 %v2715, 112
    %v3438 = vpop.permute.xlu0 %3437
    %3439 = vrot.lane.b32.xlu0 %v2716, 112
    %v3440 = vpop.permute.xlu0 %3439
    %3441 = vrot.lane.b32.xlu0 %v2717, 112
    %v3442 = vpop.permute.xlu0 %3441
    %3443 = vrot.lane.b32.xlu0 %v2718, 112
    %v3444 = vpop.permute.xlu0 %3443
    %3445 = vrot.lane.b32.xlu0 %v2719, 112
    %v3446 = vpop.permute.xlu0 %3445
    %3447 = vrot.lane.b32.xlu0 %v2720, 112
    %v3448 = vpop.permute.xlu0 %3447
    %3449 = vrot.lane.b32.xlu0 %v2687, 80
    %v3450 = vpop.permute.xlu0 %3449
    %3451 = vrot.lane.b32.xlu0 %v2692, 80
    %v3452 = vpop.permute.xlu0 %3451
    %3453 = vrot.lane.b32.xlu0 %v2697, 80
    %v3454 = vpop.permute.xlu0 %3453
    %3455 = vrot.lane.b32.xlu0 %v2702, 80
    %v3456 = vpop.permute.xlu0 %3455
    %3457 = vrot.lane.b32.xlu0 %v2707, 80
    %v3458 = vpop.permute.xlu0 %3457
    %3459 = vrot.lane.b32.xlu0 %v2712, 80
    %v3460 = vpop.permute.xlu0 %3459
    %v3461 = vsel %vm486, %v3438, 0
    %v3463 = vsel %vm486, %v3440, 0
    %v3465 = vsel %vm486, %v3442, 0
    %v3467 = vsel %vm486, %v3444, 0
    %v3469 = vsel %vm486, %v3446, 0
    %v3471 = vsel %vm486, %v3448, 0
    %v3473 = vsel %vm486, %v3450, 0
    %v3475 = vsel %vm486, %v3452, 0
    %v3477 = vsel %vm486, %v3454, 0
    %v3479 = vsel %vm486, %v3456, 0
    %v3481 = vsel %vm486, %v3458, 0
    %v3483 = vsel %vm486, %v3460, 0
    %3485 = vmatprep.subr.mxu0 0.0
    %3486 = vmatpush1.xpose.msra.mxu0 %v3473
    %3487 = vmatprep.subr.mxu0 0.0
    %3488 = vmatpush1.xpose.msra.mxu0 %v3475
    %3489 = vmatprep.subr.mxu0 0.0
    %3490 = vmatpush1.xpose.msra.mxu0 %v3477
    %3491 = vmatprep.subr.mxu0 0.0
    %3492 = vmatpush1.xpose.msra.mxu0 %v3479
    %3493 = vmatprep.subr.mxu0 0.0
    %3494 = vmatpush1.xpose.msra.mxu0 %v3481
    %3495 = vmatprep.subr.mxu0 0.0
    %3496 = vmatpush1.xpose.msra.mxu0 %v3483
    %3497 = vmatprep.subr.mxu0 0.0
    %3498 = vmatpush1.xpose.msra.mxu0 0.0
    %3499 = vmatprep.subr.mxu0 0.0
    %3500 = vmatpush1.xpose.msra.mxu0 0.0
    %3501 = vmatprep.subr.mxu0 0.0
    %3502 = vmatpush1.xpose.msra.mxu0 0.0
    %3503 = vmatprep.subr.mxu0 0.0
    %3504 = vmatpush1.xpose.msra.mxu0 0.0
    %3505 = vmatprep.subr.mxu0 0.0
    %3506 = vmatpush1.xpose.msra.mxu0 0.0
    %3507 = vmatprep.subr.mxu0 0.0
    %3508 = vmatpush1.xpose.msra.mxu0 0.0
    %3509 = vmatprep.subr.mxu0 0.0
    %3510 = vmatpush1.xpose.msra.mxu0 0.0
    %3511 = vmatprep.subr.mxu0 0.0
    %3512 = vmatpush1.xpose.msra.mxu0 0.0
    %3513 = vmatprep.subr.mxu0 0.0
    %3514 = vmatpush1.xpose.msra.mxu0 0.0
    %3515 = vmatprep.subr.mxu0 0.0
    %3516 = vmatpush1.xpose.msra.mxu0 0.0
    %3517 = vmatprep.subr.mxu0 0.0
    %3518 = vmatpush1.xpose.msra.mxu0 0.0
    %3519 = vmatprep.subr.mxu0 0.0
    %3520 = vmatpush1.xpose.msra.mxu0 0.0
    %3521 = vmatprep.subr.mxu0 0.0
    %3522 = vmatpush1.xpose.msra.mxu0 0.0
    %3523 = vmatprep.subr.mxu0 0.0
    %3524 = vmatpush1.xpose.msra.mxu0 0.0
    %3525 = vmatprep.subr.mxu0 0.0
    %3526 = vmatpush1.xpose.msra.mxu0 0.0
    %3527 = vmatprep.subr.mxu0 0.0
    %3528 = vmatpush1.xpose.msra.mxu0 0.0
    %3529 = vmatprep.subr.mxu0 0.0
    %3530 = vmatpush1.xpose.msra.mxu0 0.0
    %3531 = vmatprep.subr.mxu0 0.0
    %3532 = vmatpush1.xpose.msra.mxu0 0.0
    %3533 = vmatprep.subr.mxu0 0.0
    %3534 = vmatpush1.xpose.msra.mxu0 0.0
    %3535 = vmatprep.subr.mxu0 0.0
    %3536 = vmatpush1.xpose.msra.mxu0 0.0
    %3537 = vmatprep.subr.mxu0 0.0
    %3538 = vmatpush1.xpose.msra.mxu0 0.0
    %3539 = vmatprep.subr.mxu0 0.0
    %3540 = vmatpush1.xpose.msra.mxu0 0.0
    %3541 = vmatprep.subr.mxu0 0.0
    %3542 = vmatpush1.xpose.msra.mxu0 0.0
    %3543 = vmatprep.subr.mxu0 0.0
    %3544 = vmatpush1.xpose.msra.mxu0 0.0
    %3545 = vmatprep.subr.mxu0 0.0
    %3546 = vmatpush1.xpose.msra.mxu0 0.0
    %3547 = vmatprep.subr.mxu0 0.0
    %3548 = vmatpush1.xpose.msra.mxu0 0.0
    %3549 = vmatprep.mubr.f32.mxu0 0.0
    %3550 = vmatmul.mubr.f32.gmra.mrb[0].mxu0 %v3461
    %v3551 = vpop.f32.mrb[0].mxu0
    %v3552 = vadd.f32 %v227, %v3551
    %v3553 = vpop.f32.mrb[0].mxu0
    %3554 = vmatprep.mubr.f32.mxu0 0.0
    %3555 = vmatmul.mubr.f32.gmra.mrb[0].mxu0 %v3463
    %v3556 = vpop.f32.mrb[0].mxu0
    %v3557 = vadd.f32 %v228, %v3556
    %v3558 = vpop.f32.mrb[0].mxu0
    %3559 = vmatprep.mubr.f32.mxu0 0.0
    %3560 = vmatmul.mubr.f32.gmra.mrb[0].mxu0 %v3465
    %v3561 = vpop.f32.mrb[0].mxu0
    %v3562 = vadd.f32 %v229, %v3561
    %v3563 = vpop.f32.mrb[0].mxu0
    %3564 = vmatprep.mubr.f32.mxu0 0.0
    %3565 = vmatmul.mubr.f32.gmra.mrb[0].mxu0 %v3467
    %v3566 = vpop.f32.mrb[0].mxu0
    %v3567 = vadd.f32 %v230, %v3566
    %v3568 = vpop.f32.mrb[0].mxu0
    %3569 = vmatprep.mubr.f32.mxu0 0.0
    %3570 = vmatmul.mubr.f32.gmra.mrb[0].mxu0 %v3469
    %v3571 = vpop.f32.mrb[0].mxu0
    %v3572 = vadd.f32 %v231, %v3571
    %v3573 = vpop.f32.mrb[0].mxu0
    %3574 = vmatprep.mubr.f32.mxu0 0.0
    %3575 = vmatmul.mubr.f32.gmra.mrb[0].mxu0 %v3471
    %v3576 = vpop.f32.mrb[0].mxu0
    %v3577 = vadd.f32 %v232, %v3576
    %v3578 = vpop.f32.mrb[0].mxu0
    %3579 = vdwg.mxu0
    %v3580 = vsel %vm612, %v3552, -inf
    %3581 = vmax.xlane.f32.xlu0 %v3580
    %v3582 = vpop.xlane.xlu0 %3581
    %v3583 = vsel %vm612, %v3557, -inf
    %3584 = vmax.xlane.f32.xlu0 %v3583
    %v3585 = vpop.xlane.xlu0 %3584
    %v3586 = vsel %vm612, %v3562, -inf
    %3587 = vmax.xlane.f32.xlu0 %v3586
    %v3588 = vpop.xlane.xlu0 %3587
    %v3589 = vsel %vm612, %v3567, -inf
    %3590 = vmax.xlane.f32.xlu0 %v3589
    %v3591 = vpop.xlane.xlu0 %3590
    %v3592 = vsel %vm612, %v3572, -inf
    %3593 = vmax.xlane.f32.xlu0 %v3592
    %v3594 = vpop.xlane.xlu0 %3593
    %v3595 = vsel %vm612, %v3577, -inf
    %3596 = vmax.xlane.f32.xlu0 %v3595
    %v3597 = vpop.xlane.xlu0 %3596
    %v3598 = vsub.f32 %v3552, %v3582
    %v3599 = vsub.f32 %v3557, %v3585
    %v3600 = vsub.f32 %v3562, %v3588
    %v3601 = vsub.f32 %v3567, %v3591
    %v3602 = vsub.f32 %v3572, %v3594
    %v3603 = vsub.f32 %v3577, %v3597
    %v3604 = vmul.f32 %v3598, 1.442695
    %v3605 = vpow.pop %v3604
    %v3606 = vmul.f32 %v3599, 1.442695
    %v3607 = vpow.pop %v3606
    %v3608 = vmul.f32 %v3600, 1.442695
    %v3609 = vpow.pop %v3608
    %v3610 = vmul.f32 %v3601, 1.442695
    %v3611 = vpow.pop %v3610
    %v3612 = vmul.f32 %v3602, 1.442695
    %v3613 = vpow.pop %v3612
    %v3614 = vmul.f32 %v3603, 1.442695
    %v3615 = vpow.pop %v3614
    %v3616 = vsel %vm612, %v3605, 0.0
    %3617 = vadd.xlane.f32.xlu0 %v3616
    %v3618 = vpop.xlane.xlu0 %3617
    %v3619 = vsel %vm612, %v3607, 0.0
    %3620 = vadd.xlane.f32.xlu0 %v3619
    %v3621 = vpop.xlane.xlu0 %3620
    %v3622 = vsel %vm612, %v3609, 0.0
    %3623 = vadd.xlane.f32.xlu0 %v3622
    %v3624 = vpop.xlane.xlu0 %3623
    %v3625 = vsel %vm612, %v3611, 0.0
    %3626 = vadd.xlane.f32.xlu0 %v3625
    %v3627 = vpop.xlane.xlu0 %3626
    %v3628 = vsel %vm612, %v3613, 0.0
    %3629 = vadd.xlane.f32.xlu0 %v3628
    %v3630 = vpop.xlane.xlu0 %3629
    %v3631 = vsel %vm612, %v3615, 0.0
    %3632 = vadd.xlane.f32.xlu0 %v3631
    %v3633 = vpop.xlane.xlu0 %3632
    %v3634 = vrcp.pop %v3618
    %v3635 = vrcp.pop %v3621
    %v3636 = vrcp.pop %v3624
    %v3637 = vrcp.pop %v3627
    %v3638 = vrcp.pop %v3630
    %v3639 = vrcp.pop %v3633
    %v3640 = vmul.f32 %v3605, %v3634
    %v3641 = vmul.f32 %v3607, %v3635
    %v3642 = vmul.f32 %v3609, %v3636
    %v3643 = vmul.f32 %v3611, %v3637
    %v3644 = vmul.f32 %v3613, %v3638
    %v3645 = vmul.f32 %v3615, %v3639
    %3646 = vrot.lane.b32.xlu0 %v2687, 48
    %v3647 = vpop.permute.xlu0 %3646
    %3648 = vrot.lane.b32.xlu0 %v2692, 48
    %v3649 = vpop.permute.xlu0 %3648
    %3650 = vrot.lane.b32.xlu0 %v2697, 48
    %v3651 = vpop.permute.xlu0 %3650
    %3652 = vrot.lane.b32.xlu0 %v2702, 48
    %v3653 = vpop.permute.xlu0 %3652
    %3654 = vrot.lane.b32.xlu0 %v2707, 48
    %v3655 = vpop.permute.xlu0 %3654
    %3656 = vrot.lane.b32.xlu0 %v2712, 48
    %v3657 = vpop.permute.xlu0 %3656
    %v3665 = vsel %vm612, %v3640, 0
    %v3668 = vsel %vm612, %v3641, 0
    %v3671 = vsel %vm612, %v3642, 0
    %v3674 = vsel %vm612, %v3643, 0
    %v3677 = vsel %vm612, %v3644, 0
    %v3680 = vsel %vm612, %v3645, 0
    %3682 = vmatprep.subr.mxu0 0.0
    %3683 = vmatpush1.msra.mxu0 %v3647
    %3684 = vmatprep.subr.mxu0 0.0
    %3685 = vmatpush1.msra.mxu0 %v3649
    %3686 = vmatprep.subr.mxu0 0.0
    %3687 = vmatpush1.msra.mxu0 %v3651
    %3688 = vmatprep.subr.mxu0 0.0
    %3689 = vmatpush1.msra.mxu0 %v3653
    %3690 = vmatprep.subr.mxu0 0.0
    %3691 = vmatpush1.msra.mxu0 %v3655
    %3692 = vmatprep.subr.mxu0 0.0
    %3693 = vmatpush1.msra.mxu0 %v3657
    %3694 = vmatprep.subr.mxu0 0.0
    %3695 = vmatpush1.msra.mxu0 0.0
    %3696 = vmatprep.subr.mxu0 0.0
    %3697 = vmatpush1.msra.mxu0 0.0
    %3698 = vmatprep.subr.mxu0 0.0
    %3699 = vmatpush1.msra.mxu0 0.0
    %3700 = vmatprep.subr.mxu0 0.0
    %3701 = vmatpush1.msra.mxu0 0.0
    %3702 = vmatprep.subr.mxu0 0.0
    %3703 = vmatpush1.msra.mxu0 0.0
    %3704 = vmatprep.subr.mxu0 0.0
    %3705 = vmatpush1.msra.mxu0 0.0
    %3706 = vmatprep.subr.mxu0 0.0
    %3707 = vmatpush1.msra.mxu0 0.0
    %3708 = vmatprep.subr.mxu0 0.0
    %3709 = vmatpush1.msra.mxu0 0.0
    %3710 = vmatprep.subr.mxu0 0.0
    %3711 = vmatpush1.msra.mxu0 0.0
    %3712 = vmatprep.subr.mxu0 0.0
    %3713 = vmatpush1.msra.mxu0 0.0
    %3714 = vmatprep.subr.mxu0 0.0
    %3715 = vmatpush1.msra.mxu0 0.0
    %3716 = vmatprep.subr.mxu0 0.0
    %3717 = vmatpush1.msra.mxu0 0.0
    %3718 = vmatprep.subr.mxu0 0.0
    %3719 = vmatpush1.msra.mxu0 0.0
    %3720 = vmatprep.subr.mxu0 0.0
    %3721 = vmatpush1.msra.mxu0 0.0
    %3722 = vmatprep.subr.mxu0 0.0
    %3723 = vmatpush1.msra.mxu0 0.0
    %3724 = vmatprep.subr.mxu0 0.0
    %3725 = vmatpush1.msra.mxu0 0.0
    %3726 = vmatprep.subr.mxu0 0.0
    %3727 = vmatpush1.msra.mxu0 0.0
    %3728 = vmatprep.subr.mxu0 0.0
    %3729 = vmatpush1.msra.mxu0 0.0
    %3730 = vmatprep.subr.mxu0 0.0
    %3731 = vmatpush1.msra.mxu0 0.0
    %3732 = vmatprep.subr.mxu0 0.0
    %3733 = vmatpush1.msra.mxu0 0.0
    %3734 = vmatprep.subr.mxu0 0.0
    %3735 = vmatpush1.msra.mxu0 0.0
    %3736 = vmatprep.subr.mxu0 0.0
    %3737 = vmatpush1.msra.mxu0 0.0
    %3738 = vmatprep.subr.mxu0 0.0
    %3739 = vmatpush1.msra.mxu0 0.0
    %3740 = vmatprep.subr.mxu0 0.0
    %3741 = vmatpush1.msra.mxu0 0.0
    %3742 = vmatprep.subr.mxu0 0.0
    %3743 = vmatpush1.msra.mxu0 0.0
    %3744 = vmatprep.subr.mxu0 0.0
    %3745 = vmatpush1.msra.mxu0 0.0
    %3746 = vmatprep.mubr.f32.mxu0 0.0
    %3747 = vmatmul.mubr.f32.gmra.mrb[0].mxu0 %v3665
    %v3748 = vpop.f32.mrb[0].mxu0
    %v3749 = vadd.f32 0.0, %v3748
    %v3750 = vpop.f32.mrb[0].mxu0
    %3751 = vmatprep.mubr.f32.mxu0 0.0
    %3752 = vmatmul.mubr.f32.gmra.mrb[0].mxu0 %v3668
    %v3753 = vpop.f32.mrb[0].mxu0
    %v3754 = vadd.f32 0.0, %v3753
    %v3755 = vpop.f32.mrb[0].mxu0
    %3756 = vmatprep.mubr.f32.mxu0 0.0
    %3757 = vmatmul.mubr.f32.gmra.mrb[0].mxu0 %v3671
    %v3758 = vpop.f32.mrb[0].mxu0
    %v3759 = vadd.f32 0.0, %v3758
    %v3760 = vpop.f32.mrb[0].mxu0
    %3761 = vmatprep.mubr.f32.mxu0 0.0
    %3762 = vmatmul.mubr.f32.gmra.mrb[0].mxu0 %v3674
    %v3763 = vpop.f32.mrb[0].mxu0
    %v3764 = vadd.f32 0.0, %v3763
    %v3765 = vpop.f32.mrb[0].mxu0
    %3766 = vmatprep.mubr.f32.mxu0 0.0
    %3767 = vmatmul.mubr.f32.gmra.mrb[0].mxu0 %v3677
    %v3768 = vpop.f32.mrb[0].mxu0
    %v3769 = vadd.f32 0.0, %v3768
    %v3770 = vpop.f32.mrb[0].mxu0
    %3771 = vmatprep.mubr.f32.mxu0 0.0
    %3772 = vmatmul.mubr.f32.gmra.mrb[0].mxu0 %v3680
    %v3773 = vpop.f32.mrb[0].mxu0
    %v3774 = vadd.f32 0.0, %v3773
    %v3775 = vpop.f32.mrb[0].mxu0
    %3776 = vdwg.mxu0
    %3783 = vrot.lane.b32.xlu0 %v3749, 16
    %v3784 = vpop.permute.xlu0 %3783
    %3785 = vrot.lane.b32.xlu0 %v3754, 16
    %v3786 = vpop.permute.xlu0 %3785
    %3787 = vrot.lane.b32.xlu0 %v3759, 16
    %v3788 = vpop.permute.xlu0 %3787
    %3789 = vrot.lane.b32.xlu0 %v3764, 16
    %v3790 = vpop.permute.xlu0 %3789
    %3791 = vrot.lane.b32.xlu0 %v3769, 16
    %v3792 = vpop.permute.xlu0 %3791
    %3793 = vrot.lane.b32.xlu0 %v3774, 16
    %v3794 = vpop.permute.xlu0 %3793
    %3801 = vst.msk [vmem:[#allocation2] sm:$0xff] %vm1551, %v3784
    %3802 = vst.msk [vmem:[#allocation2 + $0x8] sm:$0xff] %vm1551, %v3786
    %3803 = vst.msk [vmem:[#allocation2 + $0x10] sm:$0xff] %vm1551, %v3788
    %3804 = vst.msk [vmem:[#allocation2 + $0x18] sm:$0xff] %vm1551, %v3790
    %3805 = vst.msk [vmem:[#allocation2 + $0x20] sm:$0xff] %vm1551, %v3792
    %3806 = vst.msk [vmem:[#allocation2 + $0x28] sm:$0xff] %vm1551, %v3794
    %3807 = vrot.lane.b32.xlu0 %v2715, 104
    %v3808 = vpop.permute.xlu0 %3807
    %3809 = vrot.lane.b32.xlu0 %v2716, 104
    %v3810 = vpop.permute.xlu0 %3809
    %3811 = vrot.lane.b32.xlu0 %v2717, 104
    %v3812 = vpop.permute.xlu0 %3811
    %3813 = vrot.lane.b32.xlu0 %v2718, 104
    %v3814 = vpop.permute.xlu0 %3813
    %3815 = vrot.lane.b32.xlu0 %v2719, 104
    %v3816 = vpop.permute.xlu0 %3815
    %3817 = vrot.lane.b32.xlu0 %v2720, 104
    %v3818 = vpop.permute.xlu0 %3817
    %3819 = vrot.lane.b32.xlu0 %v2687, 72
    %v3820 = vpop.permute.xlu0 %3819
    %3821 = vrot.lane.b32.xlu0 %v2692, 72
    %v3822 = vpop.permute.xlu0 %3821
    %3823 = vrot.lane.b32.xlu0 %v2697, 72
    %v3824 = vpop.permute.xlu0 %3823
    %3825 = vrot.lane.b32.xlu0 %v2702, 72
    %v3826 = vpop.permute.xlu0 %3825
    %3827 = vrot.lane.b32.xlu0 %v2707, 72
    %v3828 = vpop.permute.xlu0 %3827
    %3829 = vrot.lane.b32.xlu0 %v2712, 72
    %v3830 = vpop.permute.xlu0 %3829
    %v3831 = vsel %vm486, %v3808, 0
    %v3833 = vsel %vm486, %v3810, 0
    %v3835 = vsel %vm486, %v3812, 0
    %v3837 = vsel %vm486, %v3814, 0
    %v3839 = vsel %vm486, %v3816, 0
    %v3841 = vsel %vm486, %v3818, 0
    %v3843 = vsel %vm486, %v3820, 0
    %v3845 = vsel %vm486, %v3822, 0
    %v3847 = vsel %vm486, %v3824, 0
    %v3849 = vsel %vm486, %v3826, 0
    %v3851 = vsel %vm486, %v3828, 0
    %v3853 = vsel %vm486, %v3830, 0
    %3855 = vmatprep.subr.mxu0 0.0
    %3856 = vmatpush1.xpose.msra.mxu0 %v3843
    %3857 = vmatprep.subr.mxu0 0.0
    %3858 = vmatpush1.xpose.msra.mxu0 %v3845
    %3859 = vmatprep.subr.mxu0 0.0
    %3860 = vmatpush1.xpose.msra.mxu0 %v3847
    %3861 = vmatprep.subr.mxu0 0.0
    %3862 = vmatpush1.xpose.msra.mxu0 %v3849
    %3863 = vmatprep.subr.mxu0 0.0
    %3864 = vmatpush1.xpose.msra.mxu0 %v3851
    %3865 = vmatprep.subr.mxu0 0.0
    %3866 = vmatpush1.xpose.msra.mxu0 %v3853
    %3867 = vmatprep.subr.mxu0 0.0
    %3868 = vmatpush1.xpose.msra.mxu0 0.0
    %3869 = vmatprep.subr.mxu0 0.0
    %3870 = vmatpush1.xpose.msra.mxu0 0.0
    %3871 = vmatprep.subr.mxu0 0.0
    %3872 = vmatpush1.xpose.msra.mxu0 0.0
    %3873 = vmatprep.subr.mxu0 0.0
    %3874 = vmatpush1.xpose.msra.mxu0 0.0
    %3875 = vmatprep.subr.mxu0 0.0
    %3876 = vmatpush1.xpose.msra.mxu0 0.0
    %3877 = vmatprep.subr.mxu0 0.0
    %3878 = vmatpush1.xpose.msra.mxu0 0.0
    %3879 = vmatprep.subr.mxu0 0.0
    %3880 = vmatpush1.xpose.msra.mxu0 0.0
    %3881 = vmatprep.subr.mxu0 0.0
    %3882 = vmatpush1.xpose.msra.mxu0 0.0
    %3883 = vmatprep.subr.mxu0 0.0
    %3884 = vmatpush1.xpose.msra.mxu0 0.0
    %3885 = vmatprep.subr.mxu0 0.0
    %3886 = vmatpush1.xpose.msra.mxu0 0.0
    %3887 = vmatprep.subr.mxu0 0.0
    %3888 = vmatpush1.xpose.msra.mxu0 0.0
    %3889 = vmatprep.subr.mxu0 0.0
    %3890 = vmatpush1.xpose.msra.mxu0 0.0
    %3891 = vmatprep.subr.mxu0 0.0
    %3892 = vmatpush1.xpose.msra.mxu0 0.0
    %3893 = vmatprep.subr.mxu0 0.0
    %3894 = vmatpush1.xpose.msra.mxu0 0.0
    %3895 = vmatprep.subr.mxu0 0.0
    %3896 = vmatpush1.xpose.msra.mxu0 0.0
    %3897 = vmatprep.subr.mxu0 0.0
    %3898 = vmatpush1.xpose.msra.mxu0 0.0
    %3899 = vmatprep.subr.mxu0 0.0
    %3900 = vmatpush1.xpose.msra.mxu0 0.0
    %3901 = vmatprep.subr.mxu0 0.0
    %3902 = vmatpush1.xpose.msra.mxu0 0.0
    %3903 = vmatprep.subr.mxu0 0.0
    %3904 = vmatpush1.xpose.msra.mxu0 0.0
    %3905 = vmatprep.subr.mxu0 0.0
    %3906 = vmatpush1.xpose.msra.mxu0 0.0
    %3907 = vmatprep.subr.mxu0 0.0
    %3908 = vmatpush1.xpose.msra.mxu0 0.0
    %3909 = vmatprep.subr.mxu0 0.0
    %3910 = vmatpush1.xpose.msra.mxu0 0.0
    %3911 = vmatprep.subr.mxu0 0.0
    %3912 = vmatpush1.xpose.msra.mxu0 0.0
    %3913 = vmatprep.subr.mxu0 0.0
    %3914 = vmatpush1.xpose.msra.mxu0 0.0
    %3915 = vmatprep.subr.mxu0 0.0
    %3916 = vmatpush1.xpose.msra.mxu0 0.0
    %3917 = vmatprep.subr.mxu0 0.0
    %3918 = vmatpush1.xpose.msra.mxu0 0.0
    %3919 = vmatprep.mubr.f32.mxu0 0.0
    %3920 = vmatmul.mubr.f32.gmra.mrb[0].mxu0 %v3831
    %v3921 = vpop.f32.mrb[0].mxu0
    %v3922 = vadd.f32 %v227, %v3921
    %v3923 = vpop.f32.mrb[0].mxu0
    %3924 = vmatprep.mubr.f32.mxu0 0.0
    %3925 = vmatmul.mubr.f32.gmra.mrb[0].mxu0 %v3833
    %v3926 = vpop.f32.mrb[0].mxu0
    %v3927 = vadd.f32 %v228, %v3926
    %v3928 = vpop.f32.mrb[0].mxu0
    %3929 = vmatprep.mubr.f32.mxu0 0.0
    %3930 = vmatmul.mubr.f32.gmra.mrb[0].mxu0 %v3835
    %v3931 = vpop.f32.mrb[0].mxu0
    %v3932 = vadd.f32 %v229, %v3931
    %v3933 = vpop.f32.mrb[0].mxu0
    %3934 = vmatprep.mubr.f32.mxu0 0.0
    %3935 = vmatmul.mubr.f32.gmra.mrb[0].mxu0 %v3837
    %v3936 = vpop.f32.mrb[0].mxu0
    %v3937 = vadd.f32 %v230, %v3936
    %v3938 = vpop.f32.mrb[0].mxu0
    %3939 = vmatprep.mubr.f32.mxu0 0.0
    %3940 = vmatmul.mubr.f32.gmra.mrb[0].mxu0 %v3839
    %v3941 = vpop.f32.mrb[0].mxu0
    %v3942 = vadd.f32 %v231, %v3941
    %v3943 = vpop.f32.mrb[0].mxu0
    %3944 = vmatprep.mubr.f32.mxu0 0.0
    %3945 = vmatmul.mubr.f32.gmra.mrb[0].mxu0 %v3841
    %v3946 = vpop.f32.mrb[0].mxu0
    %v3947 = vadd.f32 %v232, %v3946
    %v3948 = vpop.f32.mrb[0].mxu0
    %3949 = vdwg.mxu0
    %v3950 = vsel %vm612, %v3922, -inf
    %3951 = vmax.xlane.f32.xlu0 %v3950
    %v3952 = vpop.xlane.xlu0 %3951
    %v3953 = vsel %vm612, %v3927, -inf
    %3954 = vmax.xlane.f32.xlu0 %v3953
    %v3955 = vpop.xlane.xlu0 %3954
    %v3956 = vsel %vm612, %v3932, -inf
    %3957 = vmax.xlane.f32.xlu0 %v3956
    %v3958 = vpop.xlane.xlu0 %3957
    %v3959 = vsel %vm612, %v3937, -inf
    %3960 = vmax.xlane.f32.xlu0 %v3959
    %v3961 = vpop.xlane.xlu0 %3960
    %v3962 = vsel %vm612, %v3942, -inf
    %3963 = vmax.xlane.f32.xlu0 %v3962
    %v3964 = vpop.xlane.xlu0 %3963
    %v3965 = vsel %vm612, %v3947, -inf
    %3966 = vmax.xlane.f32.xlu0 %v3965
    %v3967 = vpop.xlane.xlu0 %3966
    %v3968 = vsub.f32 %v3922, %v3952
    %v3969 = vsub.f32 %v3927, %v3955
    %v3970 = vsub.f32 %v3932, %v3958
    %v3971 = vsub.f32 %v3937, %v3961
    %v3972 = vsub.f32 %v3942, %v3964
    %v3973 = vsub.f32 %v3947, %v3967
    %v3974 = vmul.f32 %v3968, 1.442695
    %v3975 = vpow.pop %v3974
    %v3976 = vmul.f32 %v3969, 1.442695
    %v3977 = vpow.pop %v3976
    %v3978 = vmul.f32 %v3970, 1.442695
    %v3979 = vpow.pop %v3978
    %v3980 = vmul.f32 %v3971, 1.442695
    %v3981 = vpow.pop %v3980
    %v3982 = vmul.f32 %v3972, 1.442695
    %v3983 = vpow.pop %v3982
    %v3984 = vmul.f32 %v3973, 1.442695
    %v3985 = vpow.pop %v3984
    %v3986 = vsel %vm612, %v3975, 0.0
    %3987 = vadd.xlane.f32.xlu0 %v3986
    %v3988 = vpop.xlane.xlu0 %3987
    %v3989 = vsel %vm612, %v3977, 0.0
    %3990 = vadd.xlane.f32.xlu0 %v3989
    %v3991 = vpop.xlane.xlu0 %3990
    %v3992 = vsel %vm612, %v3979, 0.0
    %3993 = vadd.xlane.f32.xlu0 %v3992
    %v3994 = vpop.xlane.xlu0 %3993
    %v3995 = vsel %vm612, %v3981, 0.0
    %3996 = vadd.xlane.f32.xlu0 %v3995
    %v3997 = vpop.xlane.xlu0 %3996
    %v3998 = vsel %vm612, %v3983, 0.0
    %3999 = vadd.xlane.f32.xlu0 %v3998
    %v4000 = vpop.xlane.xlu0 %3999
    %v4001 = vsel %vm612, %v3985, 0.0
    %4002 = vadd.xlane.f32.xlu0 %v4001
    %v4003 = vpop.xlane.xlu0 %4002
    %v4004 = vrcp.pop %v3988
    %v4005 = vrcp.pop %v3991
    %v4006 = vrcp.pop %v3994
    %v4007 = vrcp.pop %v3997
    %v4008 = vrcp.pop %v4000
    %v4009 = vrcp.pop %v4003
    %v4010 = vmul.f32 %v3975, %v4004
    %v4011 = vmul.f32 %v3977, %v4005
    %v4012 = vmul.f32 %v3979, %v4006
    %v4013 = vmul.f32 %v3981, %v4007
    %v4014 = vmul.f32 %v3983, %v4008
    %v4015 = vmul.f32 %v3985, %v4009
    %4016 = vrot.lane.b32.xlu0 %v2687, 40
    %v4017 = vpop.permute.xlu0 %4016
    %4018 = vrot.lane.b32.xlu0 %v2692, 40
    %v4019 = vpop.permute.xlu0 %4018
    %4020 = vrot.lane.b32.xlu0 %v2697, 40
    %v4021 = vpop.permute.xlu0 %4020
    %4022 = vrot.lane.b32.xlu0 %v2702, 40
    %v4023 = vpop.permute.xlu0 %4022
    %4024 = vrot.lane.b32.xlu0 %v2707, 40
    %v4025 = vpop.permute.xlu0 %4024
    %4026 = vrot.lane.b32.xlu0 %v2712, 40
    %v4027 = vpop.permute.xlu0 %4026
    %v4035 = vsel %vm612, %v4010, 0
    %v4038 = vsel %vm612, %v4011, 0
    %v4041 = vsel %vm612, %v4012, 0
    %v4044 = vsel %vm612, %v4013, 0
    %v4047 = vsel %vm612, %v4014, 0
    %v4050 = vsel %vm612, %v4015, 0
    %4052 = vmatprep.subr.mxu0 0.0
    %4053 = vmatpush1.msra.mxu0 %v4017
    %4054 = vmatprep.subr.mxu0 0.0
    %4055 = vmatpush1.msra.mxu0 %v4019
    %4056 = vmatprep.subr.mxu0 0.0
    %4057 = vmatpush1.msra.mxu0 %v4021
    %4058 = vmatprep.subr.mxu0 0.0
    %4059 = vmatpush1.msra.mxu0 %v4023
    %4060 = vmatprep.subr.mxu0 0.0
    %4061 = vmatpush1.msra.mxu0 %v4025
    %4062 = vmatprep.subr.mxu0 0.0
    %4063 = vmatpush1.msra.mxu0 %v4027
    %4064 = vmatprep.subr.mxu0 0.0
    %4065 = vmatpush1.msra.mxu0 0.0
    %4066 = vmatprep.subr.mxu0 0.0
    %4067 = vmatpush1.msra.mxu0 0.0
    %4068 = vmatprep.subr.mxu0 0.0
    %4069 = vmatpush1.msra.mxu0 0.0
    %4070 = vmatprep.subr.mxu0 0.0
    %4071 = vmatpush1.msra.mxu0 0.0
    %4072 = vmatprep.subr.mxu0 0.0
    %4073 = vmatpush1.msra.mxu0 0.0
    %4074 = vmatprep.subr.mxu0 0.0
    %4075 = vmatpush1.msra.mxu0 0.0
    %4076 = vmatprep.subr.mxu0 0.0
    %4077 = vmatpush1.msra.mxu0 0.0
    %4078 = vmatprep.subr.mxu0 0.0
    %4079 = vmatpush1.msra.mxu0 0.0
    %4080 = vmatprep.subr.mxu0 0.0
    %4081 = vmatpush1.msra.mxu0 0.0
    %4082 = vmatprep.subr.mxu0 0.0
    %4083 = vmatpush1.msra.mxu0 0.0
    %4084 = vmatprep.subr.mxu0 0.0
    %4085 = vmatpush1.msra.mxu0 0.0
    %4086 = vmatprep.subr.mxu0 0.0
    %4087 = vmatpush1.msra.mxu0 0.0
    %4088 = vmatprep.subr.mxu0 0.0
    %4089 = vmatpush1.msra.mxu0 0.0
    %4090 = vmatprep.subr.mxu0 0.0
    %4091 = vmatpush1.msra.mxu0 0.0
    %4092 = vmatprep.subr.mxu0 0.0
    %4093 = vmatpush1.msra.mxu0 0.0
    %4094 = vmatprep.subr.mxu0 0.0
    %4095 = vmatpush1.msra.mxu0 0.0
    %4096 = vmatprep.subr.mxu0 0.0
    %4097 = vmatpush1.msra.mxu0 0.0
    %4098 = vmatprep.subr.mxu0 0.0
    %4099 = vmatpush1.msra.mxu0 0.0
    %4100 = vmatprep.subr.mxu0 0.0
    %4101 = vmatpush1.msra.mxu0 0.0
    %4102 = vmatprep.subr.mxu0 0.0
    %4103 = vmatpush1.msra.mxu0 0.0
    %4104 = vmatprep.subr.mxu0 0.0
    %4105 = vmatpush1.msra.mxu0 0.0
    %4106 = vmatprep.subr.mxu0 0.0
    %4107 = vmatpush1.msra.mxu0 0.0
    %4108 = vmatprep.subr.mxu0 0.0
    %4109 = vmatpush1.msra.mxu0 0.0
    %4110 = vmatprep.subr.mxu0 0.0
    %4111 = vmatpush1.msra.mxu0 0.0
    %4112 = vmatprep.subr.mxu0 0.0
    %4113 = vmatpush1.msra.mxu0 0.0
    %4114 = vmatprep.subr.mxu0 0.0
    %4115 = vmatpush1.msra.mxu0 0.0
    %4116 = vmatprep.mubr.f32.mxu0 0.0
    %4117 = vmatmul.mubr.f32.gmra.mrb[0].mxu0 %v4035
    %v4118 = vpop.f32.mrb[0].mxu0
    %v4119 = vadd.f32 0.0, %v4118
    %v4120 = vpop.f32.mrb[0].mxu0
    %4121 = vmatprep.mubr.f32.mxu0 0.0
    %4122 = vmatmul.mubr.f32.gmra.mrb[0].mxu0 %v4038
    %v4123 = vpop.f32.mrb[0].mxu0
    %v4124 = vadd.f32 0.0, %v4123
    %v4125 = vpop.f32.mrb[0].mxu0
    %4126 = vmatprep.mubr.f32.mxu0 0.0
    %4127 = vmatmul.mubr.f32.gmra.mrb[0].mxu0 %v4041
    %v4128 = vpop.f32.mrb[0].mxu0
    %v4129 = vadd.f32 0.0, %v4128
    %v4130 = vpop.f32.mrb[0].mxu0
    %4131 = vmatprep.mubr.f32.mxu0 0.0
    %4132 = vmatmul.mubr.f32.gmra.mrb[0].mxu0 %v4044
    %v4133 = vpop.f32.mrb[0].mxu0
    %v4134 = vadd.f32 0.0, %v4133
    %v4135 = vpop.f32.mrb[0].mxu0
    %4136 = vmatprep.mubr.f32.mxu0 0.0
    %4137 = vmatmul.mubr.f32.gmra.mrb[0].mxu0 %v4047
    %v4138 = vpop.f32.mrb[0].mxu0
    %v4139 = vadd.f32 0.0, %v4138
    %v4140 = vpop.f32.mrb[0].mxu0
    %4141 = vmatprep.mubr.f32.mxu0 0.0
    %4142 = vmatmul.mubr.f32.gmra.mrb[0].mxu0 %v4050
    %v4143 = vpop.f32.mrb[0].mxu0
    %v4144 = vadd.f32 0.0, %v4143
    %v4145 = vpop.f32.mrb[0].mxu0
    %4146 = vdwg.mxu0
    %4153 = vrot.lane.b32.xlu0 %v4119, 24
    %v4154 = vpop.permute.xlu0 %4153
    %4155 = vrot.lane.b32.xlu0 %v4124, 24
    %v4156 = vpop.permute.xlu0 %4155
    %4157 = vrot.lane.b32.xlu0 %v4129, 24
    %v4158 = vpop.permute.xlu0 %4157
    %4159 = vrot.lane.b32.xlu0 %v4134, 24
    %v4160 = vpop.permute.xlu0 %4159
    %4161 = vrot.lane.b32.xlu0 %v4139, 24
    %v4162 = vpop.permute.xlu0 %4161
    %4163 = vrot.lane.b32.xlu0 %v4144, 24
    %v4164 = vpop.permute.xlu0 %4163
    %4171 = vst.msk [vmem:[#allocation2] sm:$0xff] %vm1922, %v4154
    %4172 = vst.msk [vmem:[#allocation2 + $0x8] sm:$0xff] %vm1922, %v4156
    %4173 = vst.msk [vmem:[#allocation2 + $0x10] sm:$0xff] %vm1922, %v4158
    %4174 = vst.msk [vmem:[#allocation2 + $0x18] sm:$0xff] %vm1922, %v4160
    %4175 = vst.msk [vmem:[#allocation2 + $0x20] sm:$0xff] %vm1922, %v4162
    %4176 = vst.msk [vmem:[#allocation2 + $0x28] sm:$0xff] %vm1922, %v4164
    %v4177 = vld [vmem:[#allocation2] sm:$0xff]
    %v4178 = vld [vmem:[#allocation2 + $0x8] sm:$0xff]
    %v4179 = vld [vmem:[#allocation2 + $0x10] sm:$0xff]
    %v4180 = vld [vmem:[#allocation2 + $0x18] sm:$0xff]
    %v4181 = vld [vmem:[#allocation2 + $0x20] sm:$0xff]
    %v4182 = vld [vmem:[#allocation2 + $0x28] sm:$0xff]
    %s4183 = scalar_lea.vmem %s10, 32
    %v4184 = vld [vmem:[%s4183] sm:$0xff]
    %v4185 = vld [vmem:[%s4183 + $0x8] sm:$0xff]
    %v4186 = vld [vmem:[%s4183 + $0x10] sm:$0xff]
    %v4187 = vld [vmem:[%s4183 + $0x18] sm:$0xff]
    %v4189 = vsel %vm205, %v4177, 0
    %v4192 = vsel %vm205, %v4178, 0
    %v4195 = vsel %vm205, %v4179, 0
    %v4198 = vsel %vm205, %v4180, 0
    %v4201 = vsel %vm205, %v4181, 0
    %v4204 = vsel %vm205, %v4182, 0
    %4206 = vmatprep.subr.mxu0 0.0
    %4207 = vmatpush1.msra.mxu0 %v4184
    %4208 = vmatprep.subr.mxu0 0.0
    %4209 = vmatpush1.msra.mxu0 %v4185
    %4210 = vmatprep.subr.mxu0 0.0
    %4211 = vmatpush1.msra.mxu0 %v4186
    %4212 = vmatprep.subr.mxu0 0.0
    %4213 = vmatpush1.msra.mxu0 %v4187
    %4214 = vmatprep.subr.mxu0 0.0
    %4215 = vmatpush1.msra.mxu0 0.0
    %4216 = vmatprep.subr.mxu0 0.0
    %4217 = vmatpush1.msra.mxu0 0.0
    %4218 = vmatprep.subr.mxu0 0.0
    %4219 = vmatpush1.msra.mxu0 0.0
    %4220 = vmatprep.subr.mxu0 0.0
    %4221 = vmatpush1.msra.mxu0 0.0
    %4222 = vmatprep.subr.mxu0 0.0
    %4223 = vmatpush1.msra.mxu0 0.0
    %4224 = vmatprep.subr.mxu0 0.0
    %4225 = vmatpush1.msra.mxu0 0.0
    %4226 = vmatprep.subr.mxu0 0.0
    %4227 = vmatpush1.msra.mxu0 0.0
    %4228 = vmatprep.subr.mxu0 0.0
    %4229 = vmatpush1.msra.mxu0 0.0
    %4230 = vmatprep.subr.mxu0 0.0
    %4231 = vmatpush1.msra.mxu0 0.0
    %4232 = vmatprep.subr.mxu0 0.0
    %4233 = vmatpush1.msra.mxu0 0.0
    %4234 = vmatprep.subr.mxu0 0.0
    %4235 = vmatpush1.msra.mxu0 0.0
    %4236 = vmatprep.subr.mxu0 0.0
    %4237 = vmatpush1.msra.mxu0 0.0
    %4238 = vmatprep.subr.mxu0 0.0
    %4239 = vmatpush1.msra.mxu0 0.0
    %4240 = vmatprep.subr.mxu0 0.0
    %4241 = vmatpush1.msra.mxu0 0.0
    %4242 = vmatprep.subr.mxu0 0.0
    %4243 = vmatpush1.msra.mxu0 0.0
    %4244 = vmatprep.subr.mxu0 0.0
    %4245 = vmatpush1.msra.mxu0 0.0
    %4246 = vmatprep.subr.mxu0 0.0
    %4247 = vmatpush1.msra.mxu0 0.0
    %4248 = vmatprep.subr.mxu0 0.0
    %4249 = vmatpush1.msra.mxu0 0.0
    %4250 = vmatprep.subr.mxu0 0.0
    %4251 = vmatpush1.msra.mxu0 0.0
    %4252 = vmatprep.subr.mxu0 0.0
    %4253 = vmatpush1.msra.mxu0 0.0
    %4254 = vmatprep.subr.mxu0 0.0
    %4255 = vmatpush1.msra.mxu0 0.0
    %4256 = vmatprep.subr.mxu0 0.0
    %4257 = vmatpush1.msra.mxu0 0.0
    %4258 = vmatprep.subr.mxu0 0.0
    %4259 = vmatpush1.msra.mxu0 0.0
    %4260 = vmatprep.subr.mxu0 0.0
    %4261 = vmatpush1.msra.mxu0 0.0
    %4262 = vmatprep.subr.mxu0 0.0
    %4263 = vmatpush1.msra.mxu0 0.0
    %4264 = vmatprep.subr.mxu0 0.0
    %4265 = vmatpush1.msra.mxu0 0.0
    %4266 = vmatprep.subr.mxu0 0.0
    %4267 = vmatpush1.msra.mxu0 0.0
    %4268 = vmatprep.subr.mxu0 0.0
    %4269 = vmatpush1.msra.mxu0 0.0
    %4270 = vmatprep.mubr.f32.mxu0 0.0
    %4271 = vmatmul.mubr.f32.gmra.mrb[0].mxu0 %v4189
    %v4272 = vpop.f32.mrb[0].mxu0
    %v4273 = vadd.f32 0.0, %v4272
    %v4274 = vpop.f32.mrb[0].mxu0
    %4275 = vmatprep.mubr.f32.mxu0 0.0
    %4276 = vmatmul.mubr.f32.gmra.mrb[0].mxu0 %v4192
    %v4277 = vpop.f32.mrb[0].mxu0
    %v4278 = vadd.f32 0.0, %v4277
    %v4279 = vpop.f32.mrb[0].mxu0
    %4280 = vmatprep.mubr.f32.mxu0 0.0
    %4281 = vmatmul.mubr.f32.gmra.mrb[0].mxu0 %v4195
    %v4282 = vpop.f32.mrb[0].mxu0
    %v4283 = vadd.f32 0.0, %v4282
    %v4284 = vpop.f32.mrb[0].mxu0
    %4285 = vmatprep.mubr.f32.mxu0 0.0
    %4286 = vmatmul.mubr.f32.gmra.mrb[0].mxu0 %v4198
    %v4287 = vpop.f32.mrb[0].mxu0
    %v4288 = vadd.f32 0.0, %v4287
    %v4289 = vpop.f32.mrb[0].mxu0
    %4290 = vmatprep.mubr.f32.mxu0 0.0
    %4291 = vmatmul.mubr.f32.gmra.mrb[0].mxu0 %v4201
    %v4292 = vpop.f32.mrb[0].mxu0
    %v4293 = vadd.f32 0.0, %v4292
    %v4294 = vpop.f32.mrb[0].mxu0
    %4295 = vmatprep.mubr.f32.mxu0 0.0
    %4296 = vmatmul.mubr.f32.gmra.mrb[0].mxu0 %v4204
    %v4297 = vpop.f32.mrb[0].mxu0
    %v4298 = vadd.f32 0.0, %v4297
    %v4299 = vpop.f32.mrb[0].mxu0
    %4300 = vdwg.mxu0
    %v4301 = vadd.f32 %v2477, %v4273
    %v4302 = vadd.f32 %v2478, %v4278
    %v4303 = vadd.f32 %v2479, %v4283
    %v4304 = vadd.f32 %v2480, %v4288
    %v4305 = vadd.f32 %v2481, %v4293
    %v4306 = vadd.f32 %v2482, %v4298
    %s4307 = scalar_lea.vmem %s11, 1
    %v4308 = vld [vmem:[%s4307] sm:$0x1]
    %v4310 = vlaneseq
    %v4311 = vshrl.u32 %v4310, 7
    %v4312 = vsub.s32 0, %v4311
    %v4313 = vrot.slane %v4308, %v4312
    %v4315 = vadd.f32 %v4301, %v4313
    %v4316 = vadd.f32 %v4302, %v4313
    %v4317 = vadd.f32 %v4303, %v4313
    %v4318 = vadd.f32 %v4304, %v4313
    %v4319 = vadd.f32 %v4305, %v4313
    %v4320 = vadd.f32 %v4306, %v4313
    %s4321 = scalar_lea.vmem %s12, 1
    %v4322 = vld [vmem:[%s4321] sm:$0x1]
    %s4323 = scalar_lea.vmem %s13, 1
    %v4324 = vld [vmem:[%s4323] sm:$0x1]
    %v4325 = vsel %vm205, %v4315, 0.0
    %4326 = vadd.xlane.f32.xlu0 %v4325
    %v4327 = vpop.xlane.xlu0 %4326
    %v4328 = vsel %vm205, %v4316, 0.0
    %4329 = vadd.xlane.f32.xlu0 %v4328
    %v4330 = vpop.xlane.xlu0 %4329
    %v4331 = vsel %vm205, %v4317, 0.0
    %4332 = vadd.xlane.f32.xlu0 %v4331
    %v4333 = vpop.xlane.xlu0 %4332
    %v4334 = vsel %vm205, %v4318, 0.0
    %4335 = vadd.xlane.f32.xlu0 %v4334
    %v4336 = vpop.xlane.xlu0 %4335
    %v4337 = vsel %vm205, %v4319, 0.0
    %4338 = vadd.xlane.f32.xlu0 %v4337
    %v4339 = vpop.xlane.xlu0 %4338
    %v4340 = vsel %vm205, %v4320, 0.0
    %4341 = vadd.xlane.f32.xlu0 %v4340
    %v4342 = vpop.xlane.xlu0 %4341
    %v4343 = vmul.f32 %v4327, %v253
    %v4344 = vmul.f32 %v4330, %v253
    %v4345 = vmul.f32 %v4333, %v253
    %v4346 = vmul.f32 %v4336, %v253
    %v4347 = vmul.f32 %v4339, %v253
    %v4348 = vmul.f32 %v4342, %v253
    %v4349 = vsub.f32 %v4315, %v4343
    %v4350 = vsub.f32 %v4316, %v4344
    %v4351 = vsub.f32 %v4317, %v4345
    %v4352 = vsub.f32 %v4318, %v4346
    %v4353 = vsub.f32 %v4319, %v4347
    %v4354 = vsub.f32 %v4320, %v4348
    %v4355 = vmul.f32 %v4349, %v4349
    %v4356 = vmul.f32 %v4350, %v4350
    %v4357 = vmul.f32 %v4351, %v4351
    %v4358 = vmul.f32 %v4352, %v4352
    %v4359 = vmul.f32 %v4353, %v4353
    %v4360 = vmul.f32 %v4354, %v4354
    %v4361 = vsel %vm205, %v4355, 0.0
    %4362 = vadd.xlane.f32.xlu0 %v4361
    %v4363 = vpop.xlane.xlu0 %4362
    %v4364 = vsel %vm205, %v4356, 0.0
    %4365 = vadd.xlane.f32.xlu0 %v4364
    %v4366 = vpop.xlane.xlu0 %4365
    %v4367 = vsel %vm205, %v4357, 0.0
    %4368 = vadd.xlane.f32.xlu0 %v4367
    %v4369 = vpop.xlane.xlu0 %4368
    %v4370 = vsel %vm205, %v4358, 0.0
    %4371 = vadd.xlane.f32.xlu0 %v4370
    %v4372 = vpop.xlane.xlu0 %4371
    %v4373 = vsel %vm205, %v4359, 0.0
    %4374 = vadd.xlane.f32.xlu0 %v4373
    %v4375 = vpop.xlane.xlu0 %4374
    %v4376 = vsel %vm205, %v4360, 0.0
    %4377 = vadd.xlane.f32.xlu0 %v4376
    %v4378 = vpop.xlane.xlu0 %4377
    %v4379 = vmul.f32 %v4363, %v253
    %v4380 = vmul.f32 %v4366, %v253
    %v4381 = vmul.f32 %v4369, %v253
    %v4382 = vmul.f32 %v4372, %v253
    %v4383 = vmul.f32 %v4375, %v253
    %v4384 = vmul.f32 %v4378, %v253
    %v4385 = vadd.f32 %v4379, 1e-12
    %v4386 = vadd.f32 %v4380, 1e-12
    %v4387 = vadd.f32 %v4381, 1e-12
    %v4388 = vadd.f32 %v4382, 1e-12
    %v4389 = vadd.f32 %v4383, 1e-12
    %v4390 = vadd.f32 %v4384, 1e-12
    %v4391 = vrsqrt.pop %v4385
    %v4392 = vrsqrt.pop %v4386
    %v4393 = vrsqrt.pop %v4387
    %v4394 = vrsqrt.pop %v4388
    %v4395 = vrsqrt.pop %v4389
    %v4396 = vrsqrt.pop %v4390
    %v4397 = vmul.f32 %v4349, %v4391
    %v4398 = vmul.f32 %v4350, %v4392
    %v4399 = vmul.f32 %v4351, %v4393
    %v4400 = vmul.f32 %v4352, %v4394
    %v4401 = vmul.f32 %v4353, %v4395
    %v4402 = vmul.f32 %v4354, %v4396
    %v4404 = vlaneseq
    %v4405 = vshrl.u32 %v4404, 7
    %v4406 = vsub.s32 0, %v4405
    %v4407 = vrot.slane %v4322, %v4406
    %v4409 = vmul.f32 %v4397, %v4407
    %v4410 = vmul.f32 %v4398, %v4407
    %v4411 = vmul.f32 %v4399, %v4407
    %v4412 = vmul.f32 %v4400, %v4407
    %v4413 = vmul.f32 %v4401, %v4407
    %v4414 = vmul.f32 %v4402, %v4407
    %v4416 = vlaneseq
    %v4417 = vshrl.u32 %v4416, 7
    %v4418 = vsub.s32 0, %v4417
    %v4419 = vrot.slane %v4324, %v4418
    %v4421 = vadd.f32 %v4409, %v4419
    %v4422 = vadd.f32 %v4410, %v4419
    %v4423 = vadd.f32 %v4411, %v4419
    %v4424 = vadd.f32 %v4412, %v4419
    %v4425 = vadd.f32 %v4413, %v4419
    %v4426 = vadd.f32 %v4414, %v4419
    %s4427 = scalar_lea.vmem %s14, 32
    %v4428 = vld [vmem:[%s4427] sm:$0xff]
    %v4429 = vld [vmem:[%s4427 + $0x8] sm:$0xff]
    %v4430 = vld [vmem:[%s4427 + $0x10] sm:$0xff]
    %v4431 = vld [vmem:[%s4427 + $0x18] sm:$0xff]
    %s4432 = scalar_lea.vmem %s15, 1
    %v4433 = vld [vmem:[%s4432] sm:$0x1]
    %v4435 = vlaneseq
    %v4436 = vshrl.u32 %v4435, 7
    %v4437 = vsub.s32 0, %v4436
    %v4438 = vrot.slane %v4433, %v4437
    %v4441 = vsel %vm205, %v4421, 0
    %v4444 = vsel %vm205, %v4422, 0
    %v4447 = vsel %vm205, %v4423, 0
    %v4450 = vsel %vm205, %v4424, 0
    %v4453 = vsel %vm205, %v4425, 0
    %v4456 = vsel %vm205, %v4426, 0
    %4458 = vmatprep.subr.mxu0 0.0
    %4459 = vmatpush1.msra.mxu0 %v4428
    %4460 = vmatprep.subr.mxu0 0.0
    %4461 = vmatpush1.msra.mxu0 %v4429
    %4462 = vmatprep.subr.mxu0 0.0
    %4463 = vmatpush1.msra.mxu0 %v4430
    %4464 = vmatprep.subr.mxu0 0.0
    %4465 = vmatpush1.msra.mxu0 %v4431
    %4466 = vmatprep.subr.mxu0 0.0
    %4467 = vmatpush1.msra.mxu0 0.0
    %4468 = vmatprep.subr.mxu0 0.0
    %4469 = vmatpush1.msra.mxu0 0.0
    %4470 = vmatprep.subr.mxu0 0.0
    %4471 = vmatpush1.msra.mxu0 0.0
    %4472 = vmatprep.subr.mxu0 0.0
    %4473 = vmatpush1.msra.mxu0 0.0
    %4474 = vmatprep.subr.mxu0 0.0
    %4475 = vmatpush1.msra.mxu0 0.0
    %4476 = vmatprep.subr.mxu0 0.0
    %4477 = vmatpush1.msra.mxu0 0.0
    %4478 = vmatprep.subr.mxu0 0.0
    %4479 = vmatpush1.msra.mxu0 0.0
    %4480 = vmatprep.subr.mxu0 0.0
    %4481 = vmatpush1.msra.mxu0 0.0
    %4482 = vmatprep.subr.mxu0 0.0
    %4483 = vmatpush1.msra.mxu0 0.0
    %4484 = vmatprep.subr.mxu0 0.0
    %4485 = vmatpush1.msra.mxu0 0.0
    %4486 = vmatprep.subr.mxu0 0.0
    %4487 = vmatpush1.msra.mxu0 0.0
    %4488 = vmatprep.subr.mxu0 0.0
    %4489 = vmatpush1.msra.mxu0 0.0
    %4490 = vmatprep.subr.mxu0 0.0
    %4491 = vmatpush1.msra.mxu0 0.0
    %4492 = vmatprep.subr.mxu0 0.0
    %4493 = vmatpush1.msra.mxu0 0.0
    %4494 = vmatprep.subr.mxu0 0.0
    %4495 = vmatpush1.msra.mxu0 0.0
    %4496 = vmatprep.subr.mxu0 0.0
    %4497 = vmatpush1.msra.mxu0 0.0
    %4498 = vmatprep.subr.mxu0 0.0
    %4499 = vmatpush1.msra.mxu0 0.0
    %4500 = vmatprep.subr.mxu0 0.0
    %4501 = vmatpush1.msra.mxu0 0.0
    %4502 = vmatprep.subr.mxu0 0.0
    %4503 = vmatpush1.msra.mxu0 0.0
    %4504 = vmatprep.subr.mxu0 0.0
    %4505 = vmatpush1.msra.mxu0 0.0
    %4506 = vmatprep.subr.mxu0 0.0
    %4507 = vmatpush1.msra.mxu0 0.0
    %4508 = vmatprep.subr.mxu0 0.0
    %4509 = vmatpush1.msra.mxu0 0.0
    %4510 = vmatprep.subr.mxu0 0.0
    %4511 = vmatpush1.msra.mxu0 0.0
    %4512 = vmatprep.subr.mxu0 0.0
    %4513 = vmatpush1.msra.mxu0 0.0
    %4514 = vmatprep.subr.mxu0 0.0
    %4515 = vmatpush1.msra.mxu0 0.0
    %4516 = vmatprep.subr.mxu0 0.0
    %4517 = vmatpush1.msra.mxu0 0.0
    %4518 = vmatprep.subr.mxu0 0.0
    %4519 = vmatpush1.msra.mxu0 0.0
    %4520 = vmatprep.subr.mxu0 0.0
    %4521 = vmatpush1.msra.mxu0 0.0
    %4522 = vmatprep.mubr.f32.mxu0 0.0
    %4523 = vmatmul.mubr.f32.gmra.mrb[0].mxu0 %v4441
    %v4524 = vpop.f32.mrb[0].mxu0
    %v4525 = vadd.f32 %v4438, %v4524
    %v4526 = vpop.f32.mrb[0].mxu0
    %4527 = vmatprep.mubr.f32.mxu0 0.0
    %4528 = vmatmul.mubr.f32.gmra.mrb[0].mxu0 %v4444
    %v4529 = vpop.f32.mrb[0].mxu0
    %v4530 = vadd.f32 %v4438, %v4529
    %v4531 = vpop.f32.mrb[0].mxu0
    %4532 = vmatprep.mubr.f32.mxu0 0.0
    %4533 = vmatmul.mubr.f32.gmra.mrb[0].mxu0 %v4447
    %v4534 = vpop.f32.mrb[0].mxu0
    %v4535 = vadd.f32 %v4438, %v4534
    %v4536 = vpop.f32.mrb[0].mxu0
    %4537 = vmatprep.mubr.f32.mxu0 0.0
    %4538 = vmatmul.mubr.f32.gmra.mrb[0].mxu0 %v4450
    %v4539 = vpop.f32.mrb[0].mxu0
    %v4540 = vadd.f32 %v4438, %v4539
    %v4541 = vpop.f32.mrb[0].mxu0
    %4542 = vmatprep.mubr.f32.mxu0 0.0
    %4543 = vmatmul.mubr.f32.gmra.mrb[0].mxu0 %v4453
    %v4544 = vpop.f32.mrb[0].mxu0
    %v4545 = vadd.f32 %v4438, %v4544
    %v4546 = vpop.f32.mrb[0].mxu0
    %4547 = vmatprep.mubr.f32.mxu0 0.0
    %4548 = vmatmul.mubr.f32.gmra.mrb[0].mxu0 %v4456
    %v4549 = vpop.f32.mrb[0].mxu0
    %v4550 = vadd.f32 %v4438, %v4549
    %v4551 = vpop.f32.mrb[0].mxu0
    %4552 = vdwg.mxu0
    %v4553 = vmul.f32 %v4525, 0.5
    %v4554 = vmul.f32 %v4530, 0.5
    %v4555 = vmul.f32 %v4535, 0.5
    %v4556 = vmul.f32 %v4540, 0.5
    %v4557 = vmul.f32 %v4545, 0.5
    %v4558 = vmul.f32 %v4550, 0.5
    %v4559 = vmul.f32 %v4525, 0.044715
    %v4560 = vmul.f32 %v4530, 0.044715
    %v4561 = vmul.f32 %v4535, 0.044715
    %v4562 = vmul.f32 %v4540, 0.044715
    %v4563 = vmul.f32 %v4545, 0.044715
    %v4564 = vmul.f32 %v4550, 0.044715
    %v4565 = vmul.f32 %v4559, %v4525
    %v4566 = vmul.f32 %v4560, %v4530
    %v4567 = vmul.f32 %v4561, %v4535
    %v4568 = vmul.f32 %v4562, %v4540
    %v4569 = vmul.f32 %v4563, %v4545
    %v4570 = vmul.f32 %v4564, %v4550
    %v4571 = vmul.f32 %v4565, %v4525
    %v4572 = vmul.f32 %v4566, %v4530
    %v4573 = vmul.f32 %v4567, %v4535
    %v4574 = vmul.f32 %v4568, %v4540
    %v4575 = vmul.f32 %v4569, %v4545
    %v4576 = vmul.f32 %v4570, %v4550
    %v4577 = vadd.f32 %v4525, %v4571
    %v4578 = vadd.f32 %v4530, %v4572
    %v4579 = vadd.f32 %v4535, %v4573
    %v4580 = vadd.f32 %v4540, %v4574
    %v4581 = vadd.f32 %v4545, %v4575
    %v4582 = vadd.f32 %v4550, %v4576
    %v4583 = vmul.f32 %v4577, 0.7978846
    %v4584 = vmul.f32 %v4578, 0.7978846
    %v4585 = vmul.f32 %v4579, 0.7978846
    %v4586 = vmul.f32 %v4580, 0.7978846
    %v4587 = vmul.f32 %v4581, 0.7978846
    %v4588 = vmul.f32 %v4582, 0.7978846
    %v4589 = vtanh.pop %v4583
    %v4590 = vtanh.pop %v4584
    %v4591 = vtanh.pop %v4585
    %v4592 = vtanh.pop %v4586
    %v4593 = vtanh.pop %v4587
    %v4594 = vtanh.pop %v4588
    %v4595 = vadd.f32 %v4589, 1.0
    %v4596 = vadd.f32 %v4590, 1.0
    %v4597 = vadd.f32 %v4591, 1.0
    %v4598 = vadd.f32 %v4592, 1.0
    %v4599 = vadd.f32 %v4593, 1.0
    %v4600 = vadd.f32 %v4594, 1.0
    %v4601 = vmul.f32 %v4553, %v4595
    %v4602 = vmul.f32 %v4554, %v4596
    %v4603 = vmul.f32 %v4555, %v4597
    %v4604 = vmul.f32 %v4556, %v4598
    %v4605 = vmul.f32 %v4557, %v4599
    %v4606 = vmul.f32 %v4558, %v4600
    %s4607 = scalar_lea.vmem %s16, 128
    %v4608 = vld [vmem:[%s4607] sm:$0xff]
    %v4609 = vld [vmem:[%s4607 + $0x8] sm:$0xff]
    %v4610 = vld [vmem:[%s4607 + $0x10] sm:$0xff]
    %v4611 = vld [vmem:[%s4607 + $0x18] sm:$0xff]
    %v4612 = vld [vmem:[%s4607 + $0x20] sm:$0xff]
    %v4613 = vld [vmem:[%s4607 + $0x28] sm:$0xff]
    %v4614 = vld [vmem:[%s4607 + $0x30] sm:$0xff]
    %v4615 = vld [vmem:[%s4607 + $0x38] sm:$0xff]
    %v4616 = vld [vmem:[%s4607 + $0x40] sm:$0xff]
    %v4617 = vld [vmem:[%s4607 + $0x48] sm:$0xff]
    %v4618 = vld [vmem:[%s4607 + $0x50] sm:$0xff]
    %v4619 = vld [vmem:[%s4607 + $0x58] sm:$0xff]
    %v4620 = vld [vmem:[%s4607 + $0x60] sm:$0xff]
    %v4621 = vld [vmem:[%s4607 + $0x68] sm:$0xff]
    %v4622 = vld [vmem:[%s4607 + $0x70] sm:$0xff]
    %v4623 = vld [vmem:[%s4607 + $0x78] sm:$0xff]
    %4624 = vmatprep.subr.mxu0 0.0
    %4625 = vmatpush1.msra.mxu0 %v4608
    %4626 = vmatprep.subr.mxu0 0.0
    %4627 = vmatpush1.msra.mxu0 %v4609
    %4628 = vmatprep.subr.mxu0 0.0
    %4629 = vmatpush1.msra.mxu0 %v4610
    %4630 = vmatprep.subr.mxu0 0.0
    %4631 = vmatpush1.msra.mxu0 %v4611
    %4632 = vmatprep.subr.mxu0 0.0
    %4633 = vmatpush1.msra.mxu0 %v4612
    %4634 = vmatprep.subr.mxu0 0.0
    %4635 = vmatpush1.msra.mxu0 %v4613
    %4636 = vmatprep.subr.mxu0 0.0
    %4637 = vmatpush1.msra.mxu0 %v4614
    %4638 = vmatprep.subr.mxu0 0.0
    %4639 = vmatpush1.msra.mxu0 %v4615
    %4640 = vmatprep.subr.mxu0 0.0
    %4641 = vmatpush1.msra.mxu0 %v4616
    %4642 = vmatprep.subr.mxu0 0.0
    %4643 = vmatpush1.msra.mxu0 %v4617
    %4644 = vmatprep.subr.mxu0 0.0
    %4645 = vmatpush1.msra.mxu0 %v4618
    %4646 = vmatprep.subr.mxu0 0.0
    %4647 = vmatpush1.msra.mxu0 %v4619
    %4648 = vmatprep.subr.mxu0 0.0
    %4649 = vmatpush1.msra.mxu0 %v4620
    %4650 = vmatprep.subr.mxu0 0.0
    %4651 = vmatpush1.msra.mxu0 %v4621
    %4652 = vmatprep.subr.mxu0 0.0
    %4653 = vmatpush1.msra.mxu0 %v4622
    %4654 = vmatprep.subr.mxu0 0.0
    %4655 = vmatpush1.msra.mxu0 %v4623
    %4656 = vmatprep.subr.mxu0 0.0
    %4657 = vmatpush1.msra.mxu0 0.0
    %4658 = vmatprep.subr.mxu0 0.0
    %4659 = vmatpush1.msra.mxu0 0.0
    %4660 = vmatprep.subr.mxu0 0.0
    %4661 = vmatpush1.msra.mxu0 0.0
    %4662 = vmatprep.subr.mxu0 0.0
    %4663 = vmatpush1.msra.mxu0 0.0
    %4664 = vmatprep.subr.mxu0 0.0
    %4665 = vmatpush1.msra.mxu0 0.0
    %4666 = vmatprep.subr.mxu0 0.0
    %4667 = vmatpush1.msra.mxu0 0.0
    %4668 = vmatprep.subr.mxu0 0.0
    %4669 = vmatpush1.msra.mxu0 0.0
    %4670 = vmatprep.subr.mxu0 0.0
    %4671 = vmatpush1.msra.mxu0 0.0
    %4672 = vmatprep.subr.mxu0 0.0
    %4673 = vmatpush1.msra.mxu0 0.0
    %4674 = vmatprep.subr.mxu0 0.0
    %4675 = vmatpush1.msra.mxu0 0.0
    %4676 = vmatprep.subr.mxu0 0.0
    %4677 = vmatpush1.msra.mxu0 0.0
    %4678 = vmatprep.subr.mxu0 0.0
    %4679 = vmatpush1.msra.mxu0 0.0
    %4680 = vmatprep.subr.mxu0 0.0
    %4681 = vmatpush1.msra.mxu0 0.0
    %4682 = vmatprep.subr.mxu0 0.0
    %4683 = vmatpush1.msra.mxu0 0.0
    %4684 = vmatprep.subr.mxu0 0.0
    %4685 = vmatpush1.msra.mxu0 0.0
    %4686 = vmatprep.subr.mxu0 0.0
    %4687 = vmatpush1.msra.mxu0 0.0
    %4688 = vmatprep.mubr.f32.mxu0 0.0
    %4689 = vmatmul.mubr.f32.gmra.mrb[0].mxu0 %v4601
    %v4690 = vpop.f32.mrb[0].mxu0
    %v4691 = vadd.f32 0.0, %v4690
    %v4692 = vpop.f32.mrb[0].mxu0
    %4693 = vmatprep.mubr.f32.mxu0 0.0
    %4694 = vmatmul.mubr.f32.gmra.mrb[0].mxu0 %v4602
    %v4695 = vpop.f32.mrb[0].mxu0
    %v4696 = vadd.f32 0.0, %v4695
    %v4697 = vpop.f32.mrb[0].mxu0
    %4698 = vmatprep.mubr.f32.mxu0 0.0
    %4699 = vmatmul.mubr.f32.gmra.mrb[0].mxu0 %v4603
    %v4700 = vpop.f32.mrb[0].mxu0
    %v4701 = vadd.f32 0.0, %v4700
    %v4702 = vpop.f32.mrb[0].mxu0
    %4703 = vmatprep.mubr.f32.mxu0 0.0
    %4704 = vmatmul.mubr.f32.gmra.mrb[0].mxu0 %v4604
    %v4705 = vpop.f32.mrb[0].mxu0
    %v4706 = vadd.f32 0.0, %v4705
    %v4707 = vpop.f32.mrb[0].mxu0
    %4708 = vmatprep.mubr.f32.mxu0 0.0
    %4709 = vmatmul.mubr.f32.gmra.mrb[0].mxu0 %v4605
    %v4710 = vpop.f32.mrb[0].mxu0
    %v4711 = vadd.f32 0.0, %v4710
    %v4712 = vpop.f32.mrb[0].mxu0
    %4713 = vmatprep.mubr.f32.mxu0 0.0
    %4714 = vmatmul.mubr.f32.gmra.mrb[0].mxu0 %v4606
    %v4715 = vpop.f32.mrb[0].mxu0
    %v4716 = vadd.f32 0.0, %v4715
    %v4717 = vpop.f32.mrb[0].mxu0
    %4718 = vdwg.mxu0
    %v4719 = vadd.f32 %v4315, %v4691
    %v4720 = vadd.f32 %v4316, %v4696
    %v4721 = vadd.f32 %v4317, %v4701
    %v4722 = vadd.f32 %v4318, %v4706
    %v4723 = vadd.f32 %v4319, %v4711
    %v4724 = vadd.f32 %v4320, %v4716
    %s4725 = scalar_lea.vmem %s17, 1
    %v4726 = vld [vmem:[%s4725] sm:$0x1]
    %v4728 = vlaneseq
    %v4729 = vshrl.u32 %v4728, 7
    %v4730 = vsub.s32 0, %v4729
    %v4731 = vrot.slane %v4726, %v4730
    %v4733 = vadd.f32 %v4719, %v4731
    %v4734 = vadd.f32 %v4720, %v4731
    %v4735 = vadd.f32 %v4721, %v4731
    %v4736 = vadd.f32 %v4722, %v4731
    %v4737 = vadd.f32 %v4723, %v4731
    %v4738 = vadd.f32 %v4724, %v4731
    %s4739 = scalar_lea.vmem %s6, 2
    %v4740 = vld [vmem:[%s4739] sm:$0x1]
    %s4741 = scalar_lea.vmem %s7, 2
    %v4742 = vld [vmem:[%s4741] sm:$0x1]
    %v4743 = vsel %vm205, %v4733, 0.0
    %4744 = vadd.xlane.f32.xlu0 %v4743
    %v4745 = vpop.xlane.xlu0 %4744
    %v4746 = vsel %vm205, %v4734, 0.0
    %4747 = vadd.xlane.f32.xlu0 %v4746
    %v4748 = vpop.xlane.xlu0 %4747
    %v4749 = vsel %vm205, %v4735, 0.0
    %4750 = vadd.xlane.f32.xlu0 %v4749
    %v4751 = vpop.xlane.xlu0 %4750
    %v4752 = vsel %vm205, %v4736, 0.0
    %4753 = vadd.xlane.f32.xlu0 %v4752
    %v4754 = vpop.xlane.xlu0 %4753
    %v4755 = vsel %vm205, %v4737, 0.0
    %4756 = vadd.xlane.f32.xlu0 %v4755
    %v4757 = vpop.xlane.xlu0 %4756
    %v4758 = vsel %vm205, %v4738, 0.0
    %4759 = vadd.xlane.f32.xlu0 %v4758
    %v4760 = vpop.xlane.xlu0 %4759
    %v4761 = vmul.f32 %v4745, %v253
    %v4762 = vmul.f32 %v4748, %v253
    %v4763 = vmul.f32 %v4751, %v253
    %v4764 = vmul.f32 %v4754, %v253
    %v4765 = vmul.f32 %v4757, %v253
    %v4766 = vmul.f32 %v4760, %v253
    %v4767 = vsub.f32 %v4733, %v4761
    %v4768 = vsub.f32 %v4734, %v4762
    %v4769 = vsub.f32 %v4735, %v4763
    %v4770 = vsub.f32 %v4736, %v4764
    %v4771 = vsub.f32 %v4737, %v4765
    %v4772 = vsub.f32 %v4738, %v4766
    %v4773 = vmul.f32 %v4767, %v4767
    %v4774 = vmul.f32 %v4768, %v4768
    %v4775 = vmul.f32 %v4769, %v4769
    %v4776 = vmul.f32 %v4770, %v4770
    %v4777 = vmul.f32 %v4771, %v4771
    %v4778 = vmul.f32 %v4772, %v4772
    %v4779 = vsel %vm205, %v4773, 0.0
    %4780 = vadd.xlane.f32.xlu0 %v4779
    %v4781 = vpop.xlane.xlu0 %4780
    %v4782 = vsel %vm205, %v4774, 0.0
    %4783 = vadd.xlane.f32.xlu0 %v4782
    %v4784 = vpop.xlane.xlu0 %4783
    %v4785 = vsel %vm205, %v4775, 0.0
    %4786 = vadd.xlane.f32.xlu0 %v4785
    %v4787 = vpop.xlane.xlu0 %4786
    %v4788 = vsel %vm205, %v4776, 0.0
    %4789 = vadd.xlane.f32.xlu0 %v4788
    %v4790 = vpop.xlane.xlu0 %4789
    %v4791 = vsel %vm205, %v4777, 0.0
    %4792 = vadd.xlane.f32.xlu0 %v4791
    %v4793 = vpop.xlane.xlu0 %4792
    %v4794 = vsel %vm205, %v4778, 0.0
    %4795 = vadd.xlane.f32.xlu0 %v4794
    %v4796 = vpop.xlane.xlu0 %4795
    %v4797 = vmul.f32 %v4781, %v253
    %v4798 = vmul.f32 %v4784, %v253
    %v4799 = vmul.f32 %v4787, %v253
    %v4800 = vmul.f32 %v4790, %v253
    %v4801 = vmul.f32 %v4793, %v253
    %v4802 = vmul.f32 %v4796, %v253
    %v4803 = vadd.f32 %v4797, 1e-12
    %v4804 = vadd.f32 %v4798, 1e-12
    %v4805 = vadd.f32 %v4799, 1e-12
    %v4806 = vadd.f32 %v4800, 1e-12
    %v4807 = vadd.f32 %v4801, 1e-12
    %v4808 = vadd.f32 %v4802, 1e-12
    %v4809 = vrsqrt.pop %v4803
    %v4810 = vrsqrt.pop %v4804
    %v4811 = vrsqrt.pop %v4805
    %v4812 = vrsqrt.pop %v4806
    %v4813 = vrsqrt.pop %v4807
    %v4814 = vrsqrt.pop %v4808
    %v4815 = vmul.f32 %v4767, %v4809
    %v4816 = vmul.f32 %v4768, %v4810
    %v4817 = vmul.f32 %v4769, %v4811
    %v4818 = vmul.f32 %v4770, %v4812
    %v4819 = vmul.f32 %v4771, %v4813
    %v4820 = vmul.f32 %v4772, %v4814
    %v4822 = vlaneseq
    %v4823 = vshrl.u32 %v4822, 7
    %v4824 = vsub.s32 0, %v4823
    %v4825 = vrot.slane %v4740, %v4824
    %v4827 = vmul.f32 %v4815, %v4825
    %v4828 = vmul.f32 %v4816, %v4825
    %v4829 = vmul.f32 %v4817, %v4825
    %v4830 = vmul.f32 %v4818, %v4825
    %v4831 = vmul.f32 %v4819, %v4825
    %v4832 = vmul.f32 %v4820, %v4825
    %v4834 = vlaneseq
    %v4835 = vshrl.u32 %v4834, 7
    %v4836 = vsub.s32 0, %v4835
    %v4837 = vrot.slane %v4742, %v4836
    %v4839 = vadd.f32 %v4827, %v4837
    %v4840 = vadd.f32 %v4828, %v4837
    %v4841 = vadd.f32 %v4829, %v4837
    %v4842 = vadd.f32 %v4830, %v4837
    %v4843 = vadd.f32 %v4831, %v4837
    %v4844 = vadd.f32 %v4832, %v4837
    %s4845 = scalar_lea.vmem %s8, 64
    %v4846 = vld [vmem:[%s4845] sm:$0xff]
    %v4847 = vld [vmem:[%s4845 + $0x8] sm:$0xff]
    %v4848 = vld [vmem:[%s4845 + $0x10] sm:$0xff]
    %v4849 = vld [vmem:[%s4845 + $0x18] sm:$0xff]
    %s4850 = scalar_lea.vmem %s9, 2
    %v4851 = vld [vmem:[%s4850] sm:$0x1]
    %v4853 = vlaneseq
    %v4854 = vshrl.u32 %v4853, 7
    %v4855 = vsub.s32 0, %v4854
    %v4856 = vrot.slane %v4851, %v4855
    %v4859 = vsel %vm205, %v4839, 0
    %v4862 = vsel %vm205, %v4840, 0
    %v4865 = vsel %vm205, %v4841, 0
    %v4868 = vsel %vm205, %v4842, 0
    %v4871 = vsel %vm205, %v4843, 0
    %v4874 = vsel %vm205, %v4844, 0
    %4876 = vmatprep.subr.mxu0 0.0
    %4877 = vmatpush1.msra.mxu0 %v4846
    %4878 = vmatprep.subr.mxu0 0.0
    %4879 = vmatpush1.msra.mxu0 %v4847
    %4880 = vmatprep.subr.mxu0 0.0
    %4881 = vmatpush1.msra.mxu0 %v4848
    %4882 = vmatprep.subr.mxu0 0.0
    %4883 = vmatpush1.msra.mxu0 %v4849
    %4884 = vmatprep.subr.mxu0 0.0
    %4885 = vmatpush1.msra.mxu0 0.0
    %4886 = vmatprep.subr.mxu0 0.0
    %4887 = vmatpush1.msra.mxu0 0.0
    %4888 = vmatprep.subr.mxu0 0.0
    %4889 = vmatpush1.msra.mxu0 0.0
    %4890 = vmatprep.subr.mxu0 0.0
    %4891 = vmatpush1.msra.mxu0 0.0
    %4892 = vmatprep.subr.mxu0 0.0
    %4893 = vmatpush1.msra.mxu0 0.0
    %4894 = vmatprep.subr.mxu0 0.0
    %4895 = vmatpush1.msra.mxu0 0.0
    %4896 = vmatprep.subr.mxu0 0.0
    %4897 = vmatpush1.msra.mxu0 0.0
    %4898 = vmatprep.subr.mxu0 0.0
    %4899 = vmatpush1.msra.mxu0 0.0
    %4900 = vmatprep.subr.mxu0 0.0
    %4901 = vmatpush1.msra.mxu0 0.0
    %4902 = vmatprep.subr.mxu0 0.0
    %4903 = vmatpush1.msra.mxu0 0.0
    %4904 = vmatprep.subr.mxu0 0.0
    %4905 = vmatpush1.msra.mxu0 0.0
    %4906 = vmatprep.subr.mxu0 0.0
    %4907 = vmatpush1.msra.mxu0 0.0
    %4908 = vmatprep.subr.mxu0 0.0
    %4909 = vmatpush1.msra.mxu0 0.0
    %4910 = vmatprep.subr.mxu0 0.0
    %4911 = vmatpush1.msra.mxu0 0.0
    %4912 = vmatprep.subr.mxu0 0.0
    %4913 = vmatpush1.msra.mxu0 0.0
    %4914 = vmatprep.subr.mxu0 0.0
    %4915 = vmatpush1.msra.mxu0 0.0
    %4916 = vmatprep.subr.mxu0 0.0
    %4917 = vmatpush1.msra.mxu0 0.0
    %4918 = vmatprep.subr.mxu0 0.0
    %4919 = vmatpush1.msra.mxu0 0.0
    %4920 = vmatprep.subr.mxu0 0.0
    %4921 = vmatpush1.msra.mxu0 0.0
    %4922 = vmatprep.subr.mxu0 0.0
    %4923 = vmatpush1.msra.mxu0 0.0
    %4924 = vmatprep.subr.mxu0 0.0
    %4925 = vmatpush1.msra.mxu0 0.0
    %4926 = vmatprep.subr.mxu0 0.0
    %4927 = vmatpush1.msra.mxu0 0.0
    %4928 = vmatprep.subr.mxu0 0.0
    %4929 = vmatpush1.msra.mxu0 0.0
    %4930 = vmatprep.subr.mxu0 0.0
    %4931 = vmatpush1.msra.mxu0 0.0
    %4932 = vmatprep.subr.mxu0 0.0
    %4933 = vmatpush1.msra.mxu0 0.0
    %4934 = vmatprep.subr.mxu0 0.0
    %4935 = vmatpush1.msra.mxu0 0.0
    %4936 = vmatprep.subr.mxu0 0.0
    %4937 = vmatpush1.msra.mxu0 0.0
    %4938 = vmatprep.subr.mxu0 0.0
    %4939 = vmatpush1.msra.mxu0 0.0
    %4940 = vmatprep.mubr.f32.mxu0 0.0
    %4941 = vmatmul.mubr.f32.gmra.mrb[0].mxu0 %v4859
    %v4942 = vpop.f32.mrb[0].mxu0
    %v4943 = vadd.f32 %v4856, %v4942
    %v4944 = vpop.f32.mrb[0].mxu0
    %4945 = vmatprep.mubr.f32.mxu0 0.0
    %4946 = vmatmul.mubr.f32.gmra.mrb[0].mxu0 %v4862
    %v4947 = vpop.f32.mrb[0].mxu0
    %v4948 = vadd.f32 %v4856, %v4947
    %v4949 = vpop.f32.mrb[0].mxu0
    %4950 = vmatprep.mubr.f32.mxu0 0.0
    %4951 = vmatmul.mubr.f32.gmra.mrb[0].mxu0 %v4865
    %v4952 = vpop.f32.mrb[0].mxu0
    %v4953 = vadd.f32 %v4856, %v4952
    %v4954 = vpop.f32.mrb[0].mxu0
    %4955 = vmatprep.mubr.f32.mxu0 0.0
    %4956 = vmatmul.mubr.f32.gmra.mrb[0].mxu0 %v4868
    %v4957 = vpop.f32.mrb[0].mxu0
    %v4958 = vadd.f32 %v4856, %v4957
    %v4959 = vpop.f32.mrb[0].mxu0
    %4960 = vmatprep.mubr.f32.mxu0 0.0
    %4961 = vmatmul.mubr.f32.gmra.mrb[0].mxu0 %v4871
    %v4962 = vpop.f32.mrb[0].mxu0
    %v4963 = vadd.f32 %v4856, %v4962
    %v4964 = vpop.f32.mrb[0].mxu0
    %4965 = vmatprep.mubr.f32.mxu0 0.0
    %4966 = vmatmul.mubr.f32.gmra.mrb[0].mxu0 %v4874
    %v4967 = vpop.f32.mrb[0].mxu0
    %v4968 = vadd.f32 %v4856, %v4967
    %v4969 = vpop.f32.mrb[0].mxu0
    %4970 = vdwg.mxu0
    %v4971 = vmul.f32 %v4943, 0.35355338
    %v4972 = vmul.f32 %v4948, 0.35355338
    %v4973 = vmul.f32 %v4953, 0.35355338
    %v4974 = vmul.f32 %v4958, 0.35355338
    %v4975 = vmul.f32 %v4963, 0.35355338
    %v4976 = vmul.f32 %v4968, 0.35355338
    %4983 = vrot.lane.b32.xlu0 %v4943, 96
    %v4984 = vpop.permute.xlu0 %4983
    %4985 = vrot.lane.b32.xlu0 %v4948, 96
    %v4986 = vpop.permute.xlu0 %4985
    %4987 = vrot.lane.b32.xlu0 %v4953, 96
    %v4988 = vpop.permute.xlu0 %4987
    %4989 = vrot.lane.b32.xlu0 %v4958, 96
    %v4990 = vpop.permute.xlu0 %4989
    %4991 = vrot.lane.b32.xlu0 %v4963, 96
    %v4992 = vpop.permute.xlu0 %4991
    %4993 = vrot.lane.b32.xlu0 %v4968, 96
    %v4994 = vpop.permute.xlu0 %4993
    %v4996 = vsel %vm486, %v4971, 0
    %v4999 = vsel %vm486, %v4972, 0
    %v5002 = vsel %vm486, %v4973, 0
    %v5005 = vsel %vm486, %v4974, 0
    %v5008 = vsel %vm486, %v4975, 0
    %v5011 = vsel %vm486, %v4976, 0
    %v5013 = vsel %vm486, %v4984, 0
    %v5015 = vsel %vm486, %v4986, 0
    %v5017 = vsel %vm486, %v4988, 0
    %v5019 = vsel %vm486, %v4990, 0
    %v5021 = vsel %vm486, %v4992, 0
    %v5023 = vsel %vm486, %v4994, 0
    %5025 = vmatprep.subr.mxu0 0.0
    %5026 = vmatpush1.xpose.msra.mxu0 %v5013
    %5027 = vmatprep.subr.mxu0 0.0
    %5028 = vmatpush1.xpose.msra.mxu0 %v5015
    %5029 = vmatprep.subr.mxu0 0.0
    %5030 = vmatpush1.xpose.msra.mxu0 %v5017
    %5031 = vmatprep.subr.mxu0 0.0
    %5032 = vmatpush1.xpose.msra.mxu0 %v5019
    %5033 = vmatprep.subr.mxu0 0.0
    %5034 = vmatpush1.xpose.msra.mxu0 %v5021
    %5035 = vmatprep.subr.mxu0 0.0
    %5036 = vmatpush1.xpose.msra.mxu0 %v5023
    %5037 = vmatprep.subr.mxu0 0.0
    %5038 = vmatpush1.xpose.msra.mxu0 0.0
    %5039 = vmatprep.subr.mxu0 0.0
    %5040 = vmatpush1.xpose.msra.mxu0 0.0
    %5041 = vmatprep.subr.mxu0 0.0
    %5042 = vmatpush1.xpose.msra.mxu0 0.0
    %5043 = vmatprep.subr.mxu0 0.0
    %5044 = vmatpush1.xpose.msra.mxu0 0.0
    %5045 = vmatprep.subr.mxu0 0.0
    %5046 = vmatpush1.xpose.msra.mxu0 0.0
    %5047 = vmatprep.subr.mxu0 0.0
    %5048 = vmatpush1.xpose.msra.mxu0 0.0
    %5049 = vmatprep.subr.mxu0 0.0
    %5050 = vmatpush1.xpose.msra.mxu0 0.0
    %5051 = vmatprep.subr.mxu0 0.0
    %5052 = vmatpush1.xpose.msra.mxu0 0.0
    %5053 = vmatprep.subr.mxu0 0.0
    %5054 = vmatpush1.xpose.msra.mxu0 0.0
    %5055 = vmatprep.subr.mxu0 0.0
    %5056 = vmatpush1.xpose.msra.mxu0 0.0
    %5057 = vmatprep.subr.mxu0 0.0
    %5058 = vmatpush1.xpose.msra.mxu0 0.0
    %5059 = vmatprep.subr.mxu0 0.0
    %5060 = vmatpush1.xpose.msra.mxu0 0.0
    %5061 = vmatprep.subr.mxu0 0.0
    %5062 = vmatpush1.xpose.msra.mxu0 0.0
    %5063 = vmatprep.subr.mxu0 0.0
    %5064 = vmatpush1.xpose.msra.mxu0 0.0
    %5065 = vmatprep.subr.mxu0 0.0
    %5066 = vmatpush1.xpose.msra.mxu0 0.0
    %5067 = vmatprep.subr.mxu0 0.0
    %5068 = vmatpush1.xpose.msra.mxu0 0.0
    %5069 = vmatprep.subr.mxu0 0.0
    %5070 = vmatpush1.xpose.msra.mxu0 0.0
    %5071 = vmatprep.subr.mxu0 0.0
    %5072 = vmatpush1.xpose.msra.mxu0 0.0
    %5073 = vmatprep.subr.mxu0 0.0
    %5074 = vmatpush1.xpose.msra.mxu0 0.0
    %5075 = vmatprep.subr.mxu0 0.0
    %5076 = vmatpush1.xpose.msra.mxu0 0.0
    %5077 = vmatprep.subr.mxu0 0.0
    %5078 = vmatpush1.xpose.msra.mxu0 0.0
    %5079 = vmatprep.subr.mxu0 0.0
    %5080 = vmatpush1.xpose.msra.mxu0 0.0
    %5081 = vmatprep.subr.mxu0 0.0
    %5082 = vmatpush1.xpose.msra.mxu0 0.0
    %5083 = vmatprep.subr.mxu0 0.0
    %5084 = vmatpush1.xpose.msra.mxu0 0.0
    %5085 = vmatprep.subr.mxu0 0.0
    %5086 = vmatpush1.xpose.msra.mxu0 0.0
    %5087 = vmatprep.subr.mxu0 0.0
    %5088 = vmatpush1.xpose.msra.mxu0 0.0
    %5089 = vmatprep.mubr.f32.mxu0 0.0
    %5090 = vmatmul.mubr.f32.gmra.mrb[0].mxu0 %v4996
    %v5091 = vpop.f32.mrb[0].mxu0
    %v5092 = vadd.f32 %v227, %v5091
    %v5093 = vpop.f32.mrb[0].mxu0
    %5094 = vmatprep.mubr.f32.mxu0 0.0
    %5095 = vmatmul.mubr.f32.gmra.mrb[0].mxu0 %v4999
    %v5096 = vpop.f32.mrb[0].mxu0
    %v5097 = vadd.f32 %v228, %v5096
    %v5098 = vpop.f32.mrb[0].mxu0
    %5099 = vmatprep.mubr.f32.mxu0 0.0
    %5100 = vmatmul.mubr.f32.gmra.mrb[0].mxu0 %v5002
    %v5101 = vpop.f32.mrb[0].mxu0
    %v5102 = vadd.f32 %v229, %v5101
    %v5103 = vpop.f32.mrb[0].mxu0
    %5104 = vmatprep.mubr.f32.mxu0 0.0
    %5105 = vmatmul.mubr.f32.gmra.mrb[0].mxu0 %v5005
    %v5106 = vpop.f32.mrb[0].mxu0
    %v5107 = vadd.f32 %v230, %v5106
    %v5108 = vpop.f32.mrb[0].mxu0
    %5109 = vmatprep.mubr.f32.mxu0 0.0
    %5110 = vmatmul.mubr.f32.gmra.mrb[0].mxu0 %v5008
    %v5111 = vpop.f32.mrb[0].mxu0
    %v5112 = vadd.f32 %v231, %v5111
    %v5113 = vpop.f32.mrb[0].mxu0
    %5114 = vmatprep.mubr.f32.mxu0 0.0
    %5115 = vmatmul.mubr.f32.gmra.mrb[0].mxu0 %v5011
    %v5116 = vpop.f32.mrb[0].mxu0
    %v5117 = vadd.f32 %v232, %v5116
    %v5118 = vpop.f32.mrb[0].mxu0
    %5119 = vdwg.mxu0
    %v5120 = vsel %vm612, %v5092, -inf
    %5121 = vmax.xlane.f32.xlu0 %v5120
    %v5122 = vpop.xlane.xlu0 %5121
    %v5123 = vsel %vm612, %v5097, -inf
    %5124 = vmax.xlane.f32.xlu0 %v5123
    %v5125 = vpop.xlane.xlu0 %5124
    %v5126 = vsel %vm612, %v5102, -inf
    %5127 = vmax.xlane.f32.xlu0 %v5126
    %v5128 = vpop.xlane.xlu0 %5127
    %v5129 = vsel %vm612, %v5107, -inf
    %5130 = vmax.xlane.f32.xlu0 %v5129
    %v5131 = vpop.xlane.xlu0 %5130
    %v5132 = vsel %vm612, %v5112, -inf
    %5133 = vmax.xlane.f32.xlu0 %v5132
    %v5134 = vpop.xlane.xlu0 %5133
    %v5135 = vsel %vm612, %v5117, -inf
    %5136 = vmax.xlane.f32.xlu0 %v5135
    %v5137 = vpop.xlane.xlu0 %5136
    %v5138 = vsub.f32 %v5092, %v5122
    %v5139 = vsub.f32 %v5097, %v5125
    %v5140 = vsub.f32 %v5102, %v5128
    %v5141 = vsub.f32 %v5107, %v5131
    %v5142 = vsub.f32 %v5112, %v5134
    %v5143 = vsub.f32 %v5117, %v5137
    %v5144 = vmul.f32 %v5138, 1.442695
    %v5145 = vpow.pop %v5144
    %v5146 = vmul.f32 %v5139, 1.442695
    %v5147 = vpow.pop %v5146
    %v5148 = vmul.f32 %v5140, 1.442695
    %v5149 = vpow.pop %v5148
    %v5150 = vmul.f32 %v5141, 1.442695
    %v5151 = vpow.pop %v5150
    %v5152 = vmul.f32 %v5142, 1.442695
    %v5153 = vpow.pop %v5152
    %v5154 = vmul.f32 %v5143, 1.442695
    %v5155 = vpow.pop %v5154
    %v5156 = vsel %vm612, %v5145, 0.0
    %5157 = vadd.xlane.f32.xlu0 %v5156
    %v5158 = vpop.xlane.xlu0 %5157
    %v5159 = vsel %vm612, %v5147, 0.0
    %5160 = vadd.xlane.f32.xlu0 %v5159
    %v5161 = vpop.xlane.xlu0 %5160
    %v5162 = vsel %vm612, %v5149, 0.0
    %5163 = vadd.xlane.f32.xlu0 %v5162
    %v5164 = vpop.xlane.xlu0 %5163
    %v5165 = vsel %vm612, %v5151, 0.0
    %5166 = vadd.xlane.f32.xlu0 %v5165
    %v5167 = vpop.xlane.xlu0 %5166
    %v5168 = vsel %vm612, %v5153, 0.0
    %5169 = vadd.xlane.f32.xlu0 %v5168
    %v5170 = vpop.xlane.xlu0 %5169
    %v5171 = vsel %vm612, %v5155, 0.0
    %5172 = vadd.xlane.f32.xlu0 %v5171
    %v5173 = vpop.xlane.xlu0 %5172
    %v5174 = vrcp.pop %v5158
    %v5175 = vrcp.pop %v5161
    %v5176 = vrcp.pop %v5164
    %v5177 = vrcp.pop %v5167
    %v5178 = vrcp.pop %v5170
    %v5179 = vrcp.pop %v5173
    %v5180 = vmul.f32 %v5145, %v5174
    %v5181 = vmul.f32 %v5147, %v5175
    %v5182 = vmul.f32 %v5149, %v5176
    %v5183 = vmul.f32 %v5151, %v5177
    %v5184 = vmul.f32 %v5153, %v5178
    %v5185 = vmul.f32 %v5155, %v5179
    %5186 = vrot.lane.b32.xlu0 %v4943, 64
    %v5187 = vpop.permute.xlu0 %5186
    %5188 = vrot.lane.b32.xlu0 %v4948, 64
    %v5189 = vpop.permute.xlu0 %5188
    %5190 = vrot.lane.b32.xlu0 %v4953, 64
    %v5191 = vpop.permute.xlu0 %5190
    %5192 = vrot.lane.b32.xlu0 %v4958, 64
    %v5193 = vpop.permute.xlu0 %5192
    %5194 = vrot.lane.b32.xlu0 %v4963, 64
    %v5195 = vpop.permute.xlu0 %5194
    %5196 = vrot.lane.b32.xlu0 %v4968, 64
    %v5197 = vpop.permute.xlu0 %5196
    %v5205 = vsel %vm612, %v5180, 0
    %v5208 = vsel %vm612, %v5181, 0
    %v5211 = vsel %vm612, %v5182, 0
    %v5214 = vsel %vm612, %v5183, 0
    %v5217 = vsel %vm612, %v5184, 0
    %v5220 = vsel %vm612, %v5185, 0
    %5222 = vmatprep.subr.mxu0 0.0
    %5223 = vmatpush1.msra.mxu0 %v5187
    %5224 = vmatprep.subr.mxu0 0.0
    %5225 = vmatpush1.msra.mxu0 %v5189
    %5226 = vmatprep.subr.mxu0 0.0
    %5227 = vmatpush1.msra.mxu0 %v5191
    %5228 = vmatprep.subr.mxu0 0.0
    %5229 = vmatpush1.msra.mxu0 %v5193
    %5230 = vmatprep.subr.mxu0 0.0
    %5231 = vmatpush1.msra.mxu0 %v5195
    %5232 = vmatprep.subr.mxu0 0.0
    %5233 = vmatpush1.msra.mxu0 %v5197
    %5234 = vmatprep.subr.mxu0 0.0
    %5235 = vmatpush1.msra.mxu0 0.0
    %5236 = vmatprep.subr.mxu0 0.0
    %5237 = vmatpush1.msra.mxu0 0.0
    %5238 = vmatprep.subr.mxu0 0.0
    %5239 = vmatpush1.msra.mxu0 0.0
    %5240 = vmatprep.subr.mxu0 0.0
    %5241 = vmatpush1.msra.mxu0 0.0
    %5242 = vmatprep.subr.mxu0 0.0
    %5243 = vmatpush1.msra.mxu0 0.0
    %5244 = vmatprep.subr.mxu0 0.0
    %5245 = vmatpush1.msra.mxu0 0.0
    %5246 = vmatprep.subr.mxu0 0.0
    %5247 = vmatpush1.msra.mxu0 0.0
    %5248 = vmatprep.subr.mxu0 0.0
    %5249 = vmatpush1.msra.mxu0 0.0
    %5250 = vmatprep.subr.mxu0 0.0
    %5251 = vmatpush1.msra.mxu0 0.0
    %5252 = vmatprep.subr.mxu0 0.0
    %5253 = vmatpush1.msra.mxu0 0.0
    %5254 = vmatprep.subr.mxu0 0.0
    %5255 = vmatpush1.msra.mxu0 0.0
    %5256 = vmatprep.subr.mxu0 0.0
    %5257 = vmatpush1.msra.mxu0 0.0
    %5258 = vmatprep.subr.mxu0 0.0
    %5259 = vmatpush1.msra.mxu0 0.0
    %5260 = vmatprep.subr.mxu0 0.0
    %5261 = vmatpush1.msra.mxu0 0.0
    %5262 = vmatprep.subr.mxu0 0.0
    %5263 = vmatpush1.msra.mxu0 0.0
    %5264 = vmatprep.subr.mxu0 0.0
    %5265 = vmatpush1.msra.mxu0 0.0
    %5266 = vmatprep.subr.mxu0 0.0
    %5267 = vmatpush1.msra.mxu0 0.0
    %5268 = vmatprep.subr.mxu0 0.0
    %5269 = vmatpush1.msra.mxu0 0.0
    %5270 = vmatprep.subr.mxu0 0.0
    %5271 = vmatpush1.msra.mxu0 0.0
    %5272 = vmatprep.subr.mxu0 0.0
    %5273 = vmatpush1.msra.mxu0 0.0
    %5274 = vmatprep.subr.mxu0 0.0
    %5275 = vmatpush1.msra.mxu0 0.0
    %5276 = vmatprep.subr.mxu0 0.0
    %5277 = vmatpush1.msra.mxu0 0.0
    %5278 = vmatprep.subr.mxu0 0.0
    %5279 = vmatpush1.msra.mxu0 0.0
    %5280 = vmatprep.subr.mxu0 0.0
    %5281 = vmatpush1.msra.mxu0 0.0
    %5282 = vmatprep.subr.mxu0 0.0
    %5283 = vmatpush1.msra.mxu0 0.0
    %5284 = vmatprep.subr.mxu0 0.0
    %5285 = vmatpush1.msra.mxu0 0.0
    %5286 = vmatprep.mubr.f32.mxu0 0.0
    %5287 = vmatmul.mubr.f32.gmra.mrb[0].mxu0 %v5205
    %v5288 = vpop.f32.mrb[0].mxu0
    %v5289 = vadd.f32 0.0, %v5288
    %v5290 = vpop.f32.mrb[0].mxu0
    %5291 = vmatprep.mubr.f32.mxu0 0.0
    %5292 = vmatmul.mubr.f32.gmra.mrb[0].mxu0 %v5208
    %v5293 = vpop.f32.mrb[0].mxu0
    %v5294 = vadd.f32 0.0, %v5293
    %v5295 = vpop.f32.mrb[0].mxu0
    %5296 = vmatprep.mubr.f32.mxu0 0.0
    %5297 = vmatmul.mubr.f32.gmra.mrb[0].mxu0 %v5211
    %v5298 = vpop.f32.mrb[0].mxu0
    %v5299 = vadd.f32 0.0, %v5298
    %v5300 = vpop.f32.mrb[0].mxu0
    %5301 = vmatprep.mubr.f32.mxu0 0.0
    %5302 = vmatmul.mubr.f32.gmra.mrb[0].mxu0 %v5214
    %v5303 = vpop.f32.mrb[0].mxu0
    %v5304 = vadd.f32 0.0, %v5303
    %v5305 = vpop.f32.mrb[0].mxu0
    %5306 = vmatprep.mubr.f32.mxu0 0.0
    %5307 = vmatmul.mubr.f32.gmra.mrb[0].mxu0 %v5217
    %v5308 = vpop.f32.mrb[0].mxu0
    %v5309 = vadd.f32 0.0, %v5308
    %v5310 = vpop.f32.mrb[0].mxu0
    %5311 = vmatprep.mubr.f32.mxu0 0.0
    %5312 = vmatmul.mubr.f32.gmra.mrb[0].mxu0 %v5220
    %v5313 = vpop.f32.mrb[0].mxu0
    %v5314 = vadd.f32 0.0, %v5313
    %v5315 = vpop.f32.mrb[0].mxu0
    %5316 = vdwg.mxu0
    %5317 = vst.msk [vmem:[#allocation2] sm:$0xff] %vm486, %v5289
    %5318 = vst.msk [vmem:[#allocation2 + $0x8] sm:$0xff] %vm486, %v5294
    %5319 = vst.msk [vmem:[#allocation2 + $0x10] sm:$0xff] %vm486, %v5299
    %5320 = vst.msk [vmem:[#allocation2 + $0x18] sm:$0xff] %vm486, %v5304
    %5321 = vst.msk [vmem:[#allocation2 + $0x20] sm:$0xff] %vm486, %v5309
    %5322 = vst.msk [vmem:[#allocation2 + $0x28] sm:$0xff] %vm486, %v5314
    %5323 = vrot.lane.b32.xlu0 %v4971, 120
    %v5324 = vpop.permute.xlu0 %5323
    %5325 = vrot.lane.b32.xlu0 %v4972, 120
    %v5326 = vpop.permute.xlu0 %5325
    %5327 = vrot.lane.b32.xlu0 %v4973, 120
    %v5328 = vpop.permute.xlu0 %5327
    %5329 = vrot.lane.b32.xlu0 %v4974, 120
    %v5330 = vpop.permute.xlu0 %5329
    %5331 = vrot.lane.b32.xlu0 %v4975, 120
    %v5332 = vpop.permute.xlu0 %5331
    %5333 = vrot.lane.b32.xlu0 %v4976, 120
    %v5334 = vpop.permute.xlu0 %5333
    %5335 = vrot.lane.b32.xlu0 %v4943, 88
    %v5336 = vpop.permute.xlu0 %5335
    %5337 = vrot.lane.b32.xlu0 %v4948, 88
    %v5338 = vpop.permute.xlu0 %5337
    %5339 = vrot.lane.b32.xlu0 %v4953, 88
    %v5340 = vpop.permute.xlu0 %5339
    %5341 = vrot.lane.b32.xlu0 %v4958, 88
    %v5342 = vpop.permute.xlu0 %5341
    %5343 = vrot.lane.b32.xlu0 %v4963, 88
    %v5344 = vpop.permute.xlu0 %5343
    %5345 = vrot.lane.b32.xlu0 %v4968, 88
    %v5346 = vpop.permute.xlu0 %5345
    %v5347 = vsel %vm486, %v5324, 0
    %v5349 = vsel %vm486, %v5326, 0
    %v5351 = vsel %vm486, %v5328, 0
    %v5353 = vsel %vm486, %v5330, 0
    %v5355 = vsel %vm486, %v5332, 0
    %v5357 = vsel %vm486, %v5334, 0
    %v5359 = vsel %vm486, %v5336, 0
    %v5361 = vsel %vm486, %v5338, 0
    %v5363 = vsel %vm486, %v5340, 0
    %v5365 = vsel %vm486, %v5342, 0
    %v5367 = vsel %vm486, %v5344, 0
    %v5369 = vsel %vm486, %v5346, 0
    %5371 = vmatprep.subr.mxu0 0.0
    %5372 = vmatpush1.xpose.msra.mxu0 %v5359
    %5373 = vmatprep.subr.mxu0 0.0
    %5374 = vmatpush1.xpose.msra.mxu0 %v5361
    %5375 = vmatprep.subr.mxu0 0.0
    %5376 = vmatpush1.xpose.msra.mxu0 %v5363
    %5377 = vmatprep.subr.mxu0 0.0
    %5378 = vmatpush1.xpose.msra.mxu0 %v5365
    %5379 = vmatprep.subr.mxu0 0.0
    %5380 = vmatpush1.xpose.msra.mxu0 %v5367
    %5381 = vmatprep.subr.mxu0 0.0
    %5382 = vmatpush1.xpose.msra.mxu0 %v5369
    %5383 = vmatprep.subr.mxu0 0.0
    %5384 = vmatpush1.xpose.msra.mxu0 0.0
    %5385 = vmatprep.subr.mxu0 0.0
    %5386 = vmatpush1.xpose.msra.mxu0 0.0
    %5387 = vmatprep.subr.mxu0 0.0
    %5388 = vmatpush1.xpose.msra.mxu0 0.0
    %5389 = vmatprep.subr.mxu0 0.0
    %5390 = vmatpush1.xpose.msra.mxu0 0.0
    %5391 = vmatprep.subr.mxu0 0.0
    %5392 = vmatpush1.xpose.msra.mxu0 0.0
    %5393 = vmatprep.subr.mxu0 0.0
    %5394 = vmatpush1.xpose.msra.mxu0 0.0
    %5395 = vmatprep.subr.mxu0 0.0
    %5396 = vmatpush1.xpose.msra.mxu0 0.0
    %5397 = vmatprep.subr.mxu0 0.0
    %5398 = vmatpush1.xpose.msra.mxu0 0.0
    %5399 = vmatprep.subr.mxu0 0.0
    %5400 = vmatpush1.xpose.msra.mxu0 0.0
    %5401 = vmatprep.subr.mxu0 0.0
    %5402 = vmatpush1.xpose.msra.mxu0 0.0
    %5403 = vmatprep.subr.mxu0 0.0
    %5404 = vmatpush1.xpose.msra.mxu0 0.0
    %5405 = vmatprep.subr.mxu0 0.0
    %5406 = vmatpush1.xpose.msra.mxu0 0.0
    %5407 = vmatprep.subr.mxu0 0.0
    %5408 = vmatpush1.xpose.msra.mxu0 0.0
    %5409 = vmatprep.subr.mxu0 0.0
    %5410 = vmatpush1.xpose.msra.mxu0 0.0
    %5411 = vmatprep.subr.mxu0 0.0
    %5412 = vmatpush1.xpose.msra.mxu0 0.0
    %5413 = vmatprep.subr.mxu0 0.0
    %5414 = vmatpush1.xpose.msra.mxu0 0.0
    %5415 = vmatprep.subr.mxu0 0.0
    %5416 = vmatpush1.xpose.msra.mxu0 0.0
    %5417 = vmatprep.subr.mxu0 0.0
    %5418 = vmatpush1.xpose.msra.mxu0 0.0
    %5419 = vmatprep.subr.mxu0 0.0
    %5420 = vmatpush1.xpose.msra.mxu0 0.0
    %5421 = vmatprep.subr.mxu0 0.0
    %5422 = vmatpush1.xpose.msra.mxu0 0.0
    %5423 = vmatprep.subr.mxu0 0.0
    %5424 = vmatpush1.xpose.msra.mxu0 0.0
    %5425 = vmatprep.subr.mxu0 0.0
    %5426 = vmatpush1.xpose.msra.mxu0 0.0
    %5427 = vmatprep.subr.mxu0 0.0
    %5428 = vmatpush1.xpose.msra.mxu0 0.0
    %5429 = vmatprep.subr.mxu0 0.0
    %5430 = vmatpush1.xpose.msra.mxu0 0.0
    %5431 = vmatprep.subr.mxu0 0.0
    %5432 = vmatpush1.xpose.msra.mxu0 0.0
    %5433 = vmatprep.subr.mxu0 0.0
    %5434 = vmatpush1.xpose.msra.mxu0 0.0
    %5435 = vmatprep.mubr.f32.mxu0 0.0
    %5436 = vmatmul.mubr.f32.gmra.mrb[0].mxu0 %v5347
    %v5437 = vpop.f32.mrb[0].mxu0
    %v5438 = vadd.f32 %v227, %v5437
    %v5439 = vpop.f32.mrb[0].mxu0
    %5440 = vmatprep.mubr.f32.mxu0 0.0
    %5441 = vmatmul.mubr.f32.gmra.mrb[0].mxu0 %v5349
    %v5442 = vpop.f32.mrb[0].mxu0
    %v5443 = vadd.f32 %v228, %v5442
    %v5444 = vpop.f32.mrb[0].mxu0
    %5445 = vmatprep.mubr.f32.mxu0 0.0
    %5446 = vmatmul.mubr.f32.gmra.mrb[0].mxu0 %v5351
    %v5447 = vpop.f32.mrb[0].mxu0
    %v5448 = vadd.f32 %v229, %v5447
    %v5449 = vpop.f32.mrb[0].mxu0
    %5450 = vmatprep.mubr.f32.mxu0 0.0
    %5451 = vmatmul.mubr.f32.gmra.mrb[0].mxu0 %v5353
    %v5452 = vpop.f32.mrb[0].mxu0
    %v5453 = vadd.f32 %v230, %v5452
    %v5454 = vpop.f32.mrb[0].mxu0
    %5455 = vmatprep.mubr.f32.mxu0 0.0
    %5456 = vmatmul.mubr.f32.gmra.mrb[0].mxu0 %v5355
    %v5457 = vpop.f32.mrb[0].mxu0
    %v5458 = vadd.f32 %v231, %v5457
    %v5459 = vpop.f32.mrb[0].mxu0
    %5460 = vmatprep.mubr.f32.mxu0 0.0
    %5461 = vmatmul.mubr.f32.gmra.mrb[0].mxu0 %v5357
    %v5462 = vpop.f32.mrb[0].mxu0
    %v5463 = vadd.f32 %v232, %v5462
    %v5464 = vpop.f32.mrb[0].mxu0
    %5465 = vdwg.mxu0
    %v5466 = vsel %vm612, %v5438, -inf
    %5467 = vmax.xlane.f32.xlu0 %v5466
    %v5468 = vpop.xlane.xlu0 %5467
    %v5469 = vsel %vm612, %v5443, -inf
    %5470 = vmax.xlane.f32.xlu0 %v5469
    %v5471 = vpop.xlane.xlu0 %5470
    %v5472 = vsel %vm612, %v5448, -inf
    %5473 = vmax.xlane.f32.xlu0 %v5472
    %v5474 = vpop.xlane.xlu0 %5473
    %v5475 = vsel %vm612, %v5453, -inf
    %5476 = vmax.xlane.f32.xlu0 %v5475
    %v5477 = vpop.xlane.xlu0 %5476
    %v5478 = vsel %vm612, %v5458, -inf
    %5479 = vmax.xlane.f32.xlu0 %v5478
    %v5480 = vpop.xlane.xlu0 %5479
    %v5481 = vsel %vm612, %v5463, -inf
    %5482 = vmax.xlane.f32.xlu0 %v5481
    %v5483 = vpop.xlane.xlu0 %5482
    %v5484 = vsub.f32 %v5438, %v5468
    %v5485 = vsub.f32 %v5443, %v5471
    %v5486 = vsub.f32 %v5448, %v5474
    %v5487 = vsub.f32 %v5453, %v5477
    %v5488 = vsub.f32 %v5458, %v5480
    %v5489 = vsub.f32 %v5463, %v5483
    %v5490 = vmul.f32 %v5484, 1.442695
    %v5491 = vpow.pop %v5490
    %v5492 = vmul.f32 %v5485, 1.442695
    %v5493 = vpow.pop %v5492
    %v5494 = vmul.f32 %v5486, 1.442695
    %v5495 = vpow.pop %v5494
    %v5496 = vmul.f32 %v5487, 1.442695
    %v5497 = vpow.pop %v5496
    %v5498 = vmul.f32 %v5488, 1.442695
    %v5499 = vpow.pop %v5498
    %v5500 = vmul.f32 %v5489, 1.442695
    %v5501 = vpow.pop %v5500
    %v5502 = vsel %vm612, %v5491, 0.0
    %5503 = vadd.xlane.f32.xlu0 %v5502
    %v5504 = vpop.xlane.xlu0 %5503
    %v5505 = vsel %vm612, %v5493, 0.0
    %5506 = vadd.xlane.f32.xlu0 %v5505
    %v5507 = vpop.xlane.xlu0 %5506
    %v5508 = vsel %vm612, %v5495, 0.0
    %5509 = vadd.xlane.f32.xlu0 %v5508
    %v5510 = vpop.xlane.xlu0 %5509
    %v5511 = vsel %vm612, %v5497, 0.0
    %5512 = vadd.xlane.f32.xlu0 %v5511
    %v5513 = vpop.xlane.xlu0 %5512
    %v5514 = vsel %vm612, %v5499, 0.0
    %5515 = vadd.xlane.f32.xlu0 %v5514
    %v5516 = vpop.xlane.xlu0 %5515
    %v5517 = vsel %vm612, %v5501, 0.0
    %5518 = vadd.xlane.f32.xlu0 %v5517
    %v5519 = vpop.xlane.xlu0 %5518
    %v5520 = vrcp.pop %v5504
    %v5521 = vrcp.pop %v5507
    %v5522 = vrcp.pop %v5510
    %v5523 = vrcp.pop %v5513
    %v5524 = vrcp.pop %v5516
    %v5525 = vrcp.pop %v5519
    %v5526 = vmul.f32 %v5491, %v5520
    %v5527 = vmul.f32 %v5493, %v5521
    %v5528 = vmul.f32 %v5495, %v5522
    %v5529 = vmul.f32 %v5497, %v5523
    %v5530 = vmul.f32 %v5499, %v5524
    %v5531 = vmul.f32 %v5501, %v5525
    %5532 = vrot.lane.b32.xlu0 %v4943, 56
    %v5533 = vpop.permute.xlu0 %5532
    %5534 = vrot.lane.b32.xlu0 %v4948, 56
    %v5535 = vpop.permute.xlu0 %5534
    %5536 = vrot.lane.b32.xlu0 %v4953, 56
    %v5537 = vpop.permute.xlu0 %5536
    %5538 = vrot.lane.b32.xlu0 %v4958, 56
    %v5539 = vpop.permute.xlu0 %5538
    %5540 = vrot.lane.b32.xlu0 %v4963, 56
    %v5541 = vpop.permute.xlu0 %5540
    %5542 = vrot.lane.b32.xlu0 %v4968, 56
    %v5543 = vpop.permute.xlu0 %5542
    %v5551 = vsel %vm612, %v5526, 0
    %v5554 = vsel %vm612, %v5527, 0
    %v5557 = vsel %vm612, %v5528, 0
    %v5560 = vsel %vm612, %v5529, 0
    %v5563 = vsel %vm612, %v5530, 0
    %v5566 = vsel %vm612, %v5531, 0
    %5568 = vmatprep.subr.mxu0 0.0
    %5569 = vmatpush1.msra.mxu0 %v5533
    %5570 = vmatprep.subr.mxu0 0.0
    %5571 = vmatpush1.msra.mxu0 %v5535
    %5572 = vmatprep.subr.mxu0 0.0
    %5573 = vmatpush1.msra.mxu0 %v5537
    %5574 = vmatprep.subr.mxu0 0.0
    %5575 = vmatpush1.msra.mxu0 %v5539
    %5576 = vmatprep.subr.mxu0 0.0
    %5577 = vmatpush1.msra.mxu0 %v5541
    %5578 = vmatprep.subr.mxu0 0.0
    %5579 = vmatpush1.msra.mxu0 %v5543
    %5580 = vmatprep.subr.mxu0 0.0
    %5581 = vmatpush1.msra.mxu0 0.0
    %5582 = vmatprep.subr.mxu0 0.0
    %5583 = vmatpush1.msra.mxu0 0.0
    %5584 = vmatprep.subr.mxu0 0.0
    %5585 = vmatpush1.msra.mxu0 0.0
    %5586 = vmatprep.subr.mxu0 0.0
    %5587 = vmatpush1.msra.mxu0 0.0
    %5588 = vmatprep.subr.mxu0 0.0
    %5589 = vmatpush1.msra.mxu0 0.0
    %5590 = vmatprep.subr.mxu0 0.0
    %5591 = vmatpush1.msra.mxu0 0.0
    %5592 = vmatprep.subr.mxu0 0.0
    %5593 = vmatpush1.msra.mxu0 0.0
    %5594 = vmatprep.subr.mxu0 0.0
    %5595 = vmatpush1.msra.mxu0 0.0
    %5596 = vmatprep.subr.mxu0 0.0
    %5597 = vmatpush1.msra.mxu0 0.0
    %5598 = vmatprep.subr.mxu0 0.0
    %5599 = vmatpush1.msra.mxu0 0.0
    %5600 = vmatprep.subr.mxu0 0.0
    %5601 = vmatpush1.msra.mxu0 0.0
    %5602 = vmatprep.subr.mxu0 0.0
    %5603 = vmatpush1.msra.mxu0 0.0
    %5604 = vmatprep.subr.mxu0 0.0
    %5605 = vmatpush1.msra.mxu0 0.0
    %5606 = vmatprep.subr.mxu0 0.0
    %5607 = vmatpush1.msra.mxu0 0.0
    %5608 = vmatprep.subr.mxu0 0.0
    %5609 = vmatpush1.msra.mxu0 0.0
    %5610 = vmatprep.subr.mxu0 0.0
    %5611 = vmatpush1.msra.mxu0 0.0
    %5612 = vmatprep.subr.mxu0 0.0
    %5613 = vmatpush1.msra.mxu0 0.0
    %5614 = vmatprep.subr.mxu0 0.0
    %5615 = vmatpush1.msra.mxu0 0.0
    %5616 = vmatprep.subr.mxu0 0.0
    %5617 = vmatpush1.msra.mxu0 0.0
    %5618 = vmatprep.subr.mxu0 0.0
    %5619 = vmatpush1.msra.mxu0 0.0
    %5620 = vmatprep.subr.mxu0 0.0
    %5621 = vmatpush1.msra.mxu0 0.0
    %5622 = vmatprep.subr.mxu0 0.0
    %5623 = vmatpush1.msra.mxu0 0.0
    %5624 = vmatprep.subr.mxu0 0.0
    %5625 = vmatpush1.msra.mxu0 0.0
    %5626 = vmatprep.subr.mxu0 0.0
    %5627 = vmatpush1.msra.mxu0 0.0
    %5628 = vmatprep.subr.mxu0 0.0
    %5629 = vmatpush1.msra.mxu0 0.0
    %5630 = vmatprep.subr.mxu0 0.0
    %5631 = vmatpush1.msra.mxu0 0.0
    %5632 = vmatprep.mubr.f32.mxu0 0.0
    %5633 = vmatmul.mubr.f32.gmra.mrb[0].mxu0 %v5551
    %v5634 = vpop.f32.mrb[0].mxu0
    %v5635 = vadd.f32 0.0, %v5634
    %v5636 = vpop.f32.mrb[0].mxu0
    %5637 = vmatprep.mubr.f32.mxu0 0.0
    %5638 = vmatmul.mubr.f32.gmra.mrb[0].mxu0 %v5554
    %v5639 = vpop.f32.mrb[0].mxu0
    %v5640 = vadd.f32 0.0, %v5639
    %v5641 = vpop.f32.mrb[0].mxu0
    %5642 = vmatprep.mubr.f32.mxu0 0.0
    %5643 = vmatmul.mubr.f32.gmra.mrb[0].mxu0 %v5557
    %v5644 = vpop.f32.mrb[0].mxu0
    %v5645 = vadd.f32 0.0, %v5644
    %v5646 = vpop.f32.mrb[0].mxu0
    %5647 = vmatprep.mubr.f32.mxu0 0.0
    %5648 = vmatmul.mubr.f32.gmra.mrb[0].mxu0 %v5560
    %v5649 = vpop.f32.mrb[0].mxu0
    %v5650 = vadd.f32 0.0, %v5649
    %v5651 = vpop.f32.mrb[0].mxu0
    %5652 = vmatprep.mubr.f32.mxu0 0.0
    %5653 = vmatmul.mubr.f32.gmra.mrb[0].mxu0 %v5563
    %v5654 = vpop.f32.mrb[0].mxu0
    %v5655 = vadd.f32 0.0, %v5654
    %v5656 = vpop.f32.mrb[0].mxu0
    %5657 = vmatprep.mubr.f32.mxu0 0.0
    %5658 = vmatmul.mubr.f32.gmra.mrb[0].mxu0 %v5566
    %v5659 = vpop.f32.mrb[0].mxu0
    %v5660 = vadd.f32 0.0, %v5659
    %v5661 = vpop.f32.mrb[0].mxu0
    %5662 = vdwg.mxu0
    %5669 = vrot.lane.b32.xlu0 %v5635, 8
    %v5670 = vpop.permute.xlu0 %5669
    %5671 = vrot.lane.b32.xlu0 %v5640, 8
    %v5672 = vpop.permute.xlu0 %5671
    %5673 = vrot.lane.b32.xlu0 %v5645, 8
    %v5674 = vpop.permute.xlu0 %5673
    %5675 = vrot.lane.b32.xlu0 %v5650, 8
    %v5676 = vpop.permute.xlu0 %5675
    %5677 = vrot.lane.b32.xlu0 %v5655, 8
    %v5678 = vpop.permute.xlu0 %5677
    %5679 = vrot.lane.b32.xlu0 %v5660, 8
    %v5680 = vpop.permute.xlu0 %5679
    %5687 = vst.msk [vmem:[#allocation2] sm:$0xff] %vm1180, %v5670
    %5688 = vst.msk [vmem:[#allocation2 + $0x8] sm:$0xff] %vm1180, %v5672
    %5689 = vst.msk [vmem:[#allocation2 + $0x10] sm:$0xff] %vm1180, %v5674
    %5690 = vst.msk [vmem:[#allocation2 + $0x18] sm:$0xff] %vm1180, %v5676
    %5691 = vst.msk [vmem:[#allocation2 + $0x20] sm:$0xff] %vm1180, %v5678
    %5692 = vst.msk [vmem:[#allocation2 + $0x28] sm:$0xff] %vm1180, %v5680
    %5693 = vrot.lane.b32.xlu0 %v4971, 112
    %v5694 = vpop.permute.xlu0 %5693
    %5695 = vrot.lane.b32.xlu0 %v4972, 112
    %v5696 = vpop.permute.xlu0 %5695
    %5697 = vrot.lane.b32.xlu0 %v4973, 112
    %v5698 = vpop.permute.xlu0 %5697
    %5699 = vrot.lane.b32.xlu0 %v4974, 112
    %v5700 = vpop.permute.xlu0 %5699
    %5701 = vrot.lane.b32.xlu0 %v4975, 112
    %v5702 = vpop.permute.xlu0 %5701
    %5703 = vrot.lane.b32.xlu0 %v4976, 112
    %v5704 = vpop.permute.xlu0 %5703
    %5705 = vrot.lane.b32.xlu0 %v4943, 80
    %v5706 = vpop.permute.xlu0 %5705
    %5707 = vrot.lane.b32.xlu0 %v4948, 80
    %v5708 = vpop.permute.xlu0 %5707
    %5709 = vrot.lane.b32.xlu0 %v4953, 80
    %v5710 = vpop.permute.xlu0 %5709
    %5711 = vrot.lane.b32.xlu0 %v4958, 80
    %v5712 = vpop.permute.xlu0 %5711
    %5713 = vrot.lane.b32.xlu0 %v4963, 80
    %v5714 = vpop.permute.xlu0 %5713
    %5715 = vrot.lane.b32.xlu0 %v4968, 80
    %v5716 = vpop.permute.xlu0 %5715
    %v5717 = vsel %vm486, %v5694, 0
    %v5719 = vsel %vm486, %v5696, 0
    %v5721 = vsel %vm486, %v5698, 0
    %v5723 = vsel %vm486, %v5700, 0
    %v5725 = vsel %vm486, %v5702, 0
    %v5727 = vsel %vm486, %v5704, 0
    %v5729 = vsel %vm486, %v5706, 0
    %v5731 = vsel %vm486, %v5708, 0
    %v5733 = vsel %vm486, %v5710, 0
    %v5735 = vsel %vm486, %v5712, 0
    %v5737 = vsel %vm486, %v5714, 0
    %v5739 = vsel %vm486, %v5716, 0
    %5741 = vmatprep.subr.mxu0 0.0
    %5742 = vmatpush1.xpose.msra.mxu0 %v5729
    %5743 = vmatprep.subr.mxu0 0.0
    %5744 = vmatpush1.xpose.msra.mxu0 %v5731
    %5745 = vmatprep.subr.mxu0 0.0
    %5746 = vmatpush1.xpose.msra.mxu0 %v5733
    %5747 = vmatprep.subr.mxu0 0.0
    %5748 = vmatpush1.xpose.msra.mxu0 %v5735
    %5749 = vmatprep.subr.mxu0 0.0
    %5750 = vmatpush1.xpose.msra.mxu0 %v5737
    %5751 = vmatprep.subr.mxu0 0.0
    %5752 = vmatpush1.xpose.msra.mxu0 %v5739
    %5753 = vmatprep.subr.mxu0 0.0
    %5754 = vmatpush1.xpose.msra.mxu0 0.0
    %5755 = vmatprep.subr.mxu0 0.0
    %5756 = vmatpush1.xpose.msra.mxu0 0.0
    %5757 = vmatprep.subr.mxu0 0.0
    %5758 = vmatpush1.xpose.msra.mxu0 0.0
    %5759 = vmatprep.subr.mxu0 0.0
    %5760 = vmatpush1.xpose.msra.mxu0 0.0
    %5761 = vmatprep.subr.mxu0 0.0
    %5762 = vmatpush1.xpose.msra.mxu0 0.0
    %5763 = vmatprep.subr.mxu0 0.0
    %5764 = vmatpush1.xpose.msra.mxu0 0.0
    %5765 = vmatprep.subr.mxu0 0.0
    %5766 = vmatpush1.xpose.msra.mxu0 0.0
    %5767 = vmatprep.subr.mxu0 0.0
    %5768 = vmatpush1.xpose.msra.mxu0 0.0
    %5769 = vmatprep.subr.mxu0 0.0
    %5770 = vmatpush1.xpose.msra.mxu0 0.0
    %5771 = vmatprep.subr.mxu0 0.0
    %5772 = vmatpush1.xpose.msra.mxu0 0.0
    %5773 = vmatprep.subr.mxu0 0.0
    %5774 = vmatpush1.xpose.msra.mxu0 0.0
    %5775 = vmatprep.subr.mxu0 0.0
    %5776 = vmatpush1.xpose.msra.mxu0 0.0
    %5777 = vmatprep.subr.mxu0 0.0
    %5778 = vmatpush1.xpose.msra.mxu0 0.0
    %5779 = vmatprep.subr.mxu0 0.0
    %5780 = vmatpush1.xpose.msra.mxu0 0.0
    %5781 = vmatprep.subr.mxu0 0.0
    %5782 = vmatpush1.xpose.msra.mxu0 0.0
    %5783 = vmatprep.subr.mxu0 0.0
    %5784 = vmatpush1.xpose.msra.mxu0 0.0
    %5785 = vmatprep.subr.mxu0 0.0
    %5786 = vmatpush1.xpose.msra.mxu0 0.0
    %5787 = vmatprep.subr.mxu0 0.0
    %5788 = vmatpush1.xpose.msra.mxu0 0.0
    %5789 = vmatprep.subr.mxu0 0.0
    %5790 = vmatpush1.xpose.msra.mxu0 0.0
    %5791 = vmatprep.subr.mxu0 0.0
    %5792 = vmatpush1.xpose.msra.mxu0 0.0
    %5793 = vmatprep.subr.mxu0 0.0
    %5794 = vmatpush1.xpose.msra.mxu0 0.0
    %5795 = vmatprep.subr.mxu0 0.0
    %5796 = vmatpush1.xpose.msra.mxu0 0.0
    %5797 = vmatprep.subr.mxu0 0.0
    %5798 = vmatpush1.xpose.msra.mxu0 0.0
    %5799 = vmatprep.subr.mxu0 0.0
    %5800 = vmatpush1.xpose.msra.mxu0 0.0
    %5801 = vmatprep.subr.mxu0 0.0
    %5802 = vmatpush1.xpose.msra.mxu0 0.0
    %5803 = vmatprep.subr.mxu0 0.0
    %5804 = vmatpush1.xpose.msra.mxu0 0.0
    %5805 = vmatprep.mubr.f32.mxu0 0.0
    %5806 = vmatmul.mubr.f32.gmra.mrb[0].mxu0 %v5717
    %v5807 = vpop.f32.mrb[0].mxu0
    %v5808 = vadd.f32 %v227, %v5807
    %v5809 = vpop.f32.mrb[0].mxu0
    %5810 = vmatprep.mubr.f32.mxu0 0.0
    %5811 = vmatmul.mubr.f32.gmra.mrb[0].mxu0 %v5719
    %v5812 = vpop.f32.mrb[0].mxu0
    %v5813 = vadd.f32 %v228, %v5812
    %v5814 = vpop.f32.mrb[0].mxu0
    %5815 = vmatprep.mubr.f32.mxu0 0.0
    %5816 = vmatmul.mubr.f32.gmra.mrb[0].mxu0 %v5721
    %v5817 = vpop.f32.mrb[0].mxu0
    %v5818 = vadd.f32 %v229, %v5817
    %v5819 = vpop.f32.mrb[0].mxu0
    %5820 = vmatprep.mubr.f32.mxu0 0.0
    %5821 = vmatmul.mubr.f32.gmra.mrb[0].mxu0 %v5723
    %v5822 = vpop.f32.mrb[0].mxu0
    %v5823 = vadd.f32 %v230, %v5822
    %v5824 = vpop.f32.mrb[0].mxu0
    %5825 = vmatprep.mubr.f32.mxu0 0.0
    %5826 = vmatmul.mubr.f32.gmra.mrb[0].mxu0 %v5725
    %v5827 = vpop.f32.mrb[0].mxu0
    %v5828 = vadd.f32 %v231, %v5827
    %v5829 = vpop.f32.mrb[0].mxu0
    %5830 = vmatprep.mubr.f32.mxu0 0.0
    %5831 = vmatmul.mubr.f32.gmra.mrb[0].mxu0 %v5727
    %v5832 = vpop.f32.mrb[0].mxu0
    %v5833 = vadd.f32 %v232, %v5832
    %v5834 = vpop.f32.mrb[0].mxu0
    %5835 = vdwg.mxu0
    %v5836 = vsel %vm612, %v5808, -inf
    %5837 = vmax.xlane.f32.xlu0 %v5836
    %v5838 = vpop.xlane.xlu0 %5837
    %v5839 = vsel %vm612, %v5813, -inf
    %5840 = vmax.xlane.f32.xlu0 %v5839
    %v5841 = vpop.xlane.xlu0 %5840
    %v5842 = vsel %vm612, %v5818, -inf
    %5843 = vmax.xlane.f32.xlu0 %v5842
    %v5844 = vpop.xlane.xlu0 %5843
    %v5845 = vsel %vm612, %v5823, -inf
    %5846 = vmax.xlane.f32.xlu0 %v5845
    %v5847 = vpop.xlane.xlu0 %5846
    %v5848 = vsel %vm612, %v5828, -inf
    %5849 = vmax.xlane.f32.xlu0 %v5848
    %v5850 = vpop.xlane.xlu0 %5849
    %v5851 = vsel %vm612, %v5833, -inf
    %5852 = vmax.xlane.f32.xlu0 %v5851
    %v5853 = vpop.xlane.xlu0 %5852
    %v5854 = vsub.f32 %v5808, %v5838
    %v5855 = vsub.f32 %v5813, %v5841
    %v5856 = vsub.f32 %v5818, %v5844
    %v5857 = vsub.f32 %v5823, %v5847
    %v5858 = vsub.f32 %v5828, %v5850
    %v5859 = vsub.f32 %v5833, %v5853
    %v5860 = vmul.f32 %v5854, 1.442695
    %v5861 = vpow.pop %v5860
    %v5862 = vmul.f32 %v5855, 1.442695
    %v5863 = vpow.pop %v5862
    %v5864 = vmul.f32 %v5856, 1.442695
    %v5865 = vpow.pop %v5864
    %v5866 = vmul.f32 %v5857, 1.442695
    %v5867 = vpow.pop %v5866
    %v5868 = vmul.f32 %v5858, 1.442695
    %v5869 = vpow.pop %v5868
    %v5870 = vmul.f32 %v5859, 1.442695
    %v5871 = vpow.pop %v5870
    %v5872 = vsel %vm612, %v5861, 0.0
    %5873 = vadd.xlane.f32.xlu0 %v5872
    %v5874 = vpop.xlane.xlu0 %5873
    %v5875 = vsel %vm612, %v5863, 0.0
    %5876 = vadd.xlane.f32.xlu0 %v5875
    %v5877 = vpop.xlane.xlu0 %5876
    %v5878 = vsel %vm612, %v5865, 0.0
    %5879 = vadd.xlane.f32.xlu0 %v5878
    %v5880 = vpop.xlane.xlu0 %5879
    %v5881 = vsel %vm612, %v5867, 0.0
    %5882 = vadd.xlane.f32.xlu0 %v5881
    %v5883 = vpop.xlane.xlu0 %5882
    %v5884 = vsel %vm612, %v5869, 0.0
    %5885 = vadd.xlane.f32.xlu0 %v5884
    %v5886 = vpop.xlane.xlu0 %5885
    %v5887 = vsel %vm612, %v5871, 0.0
    %5888 = vadd.xlane.f32.xlu0 %v5887
    %v5889 = vpop.xlane.xlu0 %5888
    %v5890 = vrcp.pop %v5874
    %v5891 = vrcp.pop %v5877
    %v5892 = vrcp.pop %v5880
    %v5893 = vrcp.pop %v5883
    %v5894 = vrcp.pop %v5886
    %v5895 = vrcp.pop %v5889
    %v5896 = vmul.f32 %v5861, %v5890
    %v5897 = vmul.f32 %v5863, %v5891
    %v5898 = vmul.f32 %v5865, %v5892
    %v5899 = vmul.f32 %v5867, %v5893
    %v5900 = vmul.f32 %v5869, %v5894
    %v5901 = vmul.f32 %v5871, %v5895
    %5902 = vrot.lane.b32.xlu0 %v4943, 48
    %v5903 = vpop.permute.xlu0 %5902
    %5904 = vrot.lane.b32.xlu0 %v4948, 48
    %v5905 = vpop.permute.xlu0 %5904
    %5906 = vrot.lane.b32.xlu0 %v4953, 48
    %v5907 = vpop.permute.xlu0 %5906
    %5908 = vrot.lane.b32.xlu0 %v4958, 48
    %v5909 = vpop.permute.xlu0 %5908
    %5910 = vrot.lane.b32.xlu0 %v4963, 48
    %v5911 = vpop.permute.xlu0 %5910
    %5912 = vrot.lane.b32.xlu0 %v4968, 48
    %v5913 = vpop.permute.xlu0 %5912
    %v5921 = vsel %vm612, %v5896, 0
    %v5924 = vsel %vm612, %v5897, 0
    %v5927 = vsel %vm612, %v5898, 0
    %v5930 = vsel %vm612, %v5899, 0
    %v5933 = vsel %vm612, %v5900, 0
    %v5936 = vsel %vm612, %v5901, 0
    %5938 = vmatprep.subr.mxu0 0.0
    %5939 = vmatpush1.msra.mxu0 %v5903
    %5940 = vmatprep.subr.mxu0 0.0
    %5941 = vmatpush1.msra.mxu0 %v5905
    %5942 = vmatprep.subr.mxu0 0.0
    %5943 = vmatpush1.msra.mxu0 %v5907
    %5944 = vmatprep.subr.mxu0 0.0
    %5945 = vmatpush1.msra.mxu0 %v5909
    %5946 = vmatprep.subr.mxu0 0.0
    %5947 = vmatpush1.msra.mxu0 %v5911
    %5948 = vmatprep.subr.mxu0 0.0
    %5949 = vmatpush1.msra.mxu0 %v5913
    %5950 = vmatprep.subr.mxu0 0.0
    %5951 = vmatpush1.msra.mxu0 0.0
    %5952 = vmatprep.subr.mxu0 0.0
    %5953 = vmatpush1.msra.mxu0 0.0
    %5954 = vmatprep.subr.mxu0 0.0
    %5955 = vmatpush1.msra.mxu0 0.0
    %5956 = vmatprep.subr.mxu0 0.0
    %5957 = vmatpush1.msra.mxu0 0.0
    %5958 = vmatprep.subr.mxu0 0.0
    %5959 = vmatpush1.msra.mxu0 0.0
    %5960 = vmatprep.subr.mxu0 0.0
    %5961 = vmatpush1.msra.mxu0 0.0
    %5962 = vmatprep.subr.mxu0 0.0
    %5963 = vmatpush1.msra.mxu0 0.0
    %5964 = vmatprep.subr.mxu0 0.0
    %5965 = vmatpush1.msra.mxu0 0.0
    %5966 = vmatprep.subr.mxu0 0.0
    %5967 = vmatpush1.msra.mxu0 0.0
    %5968 = vmatprep.subr.mxu0 0.0
    %5969 = vmatpush1.msra.mxu0 0.0
    %5970 = vmatprep.subr.mxu0 0.0
    %5971 = vmatpush1.msra.mxu0 0.0
    %5972 = vmatprep.subr.mxu0 0.0
    %5973 = vmatpush1.msra.mxu0 0.0
    %5974 = vmatprep.subr.mxu0 0.0
    %5975 = vmatpush1.msra.mxu0 0.0
    %5976 = vmatprep.subr.mxu0 0.0
    %5977 = vmatpush1.msra.mxu0 0.0
    %5978 = vmatprep.subr.mxu0 0.0
    %5979 = vmatpush1.msra.mxu0 0.0
    %5980 = vmatprep.subr.mxu0 0.0
    %5981 = vmatpush1.msra.mxu0 0.0
    %5982 = vmatprep.subr.mxu0 0.0
    %5983 = vmatpush1.msra.mxu0 0.0
    %5984 = vmatprep.subr.mxu0 0.0
    %5985 = vmatpush1.msra.mxu0 0.0
    %5986 = vmatprep.subr.mxu0 0.0
    %5987 = vmatpush1.msra.mxu0 0.0
    %5988 = vmatprep.subr.mxu0 0.0
    %5989 = vmatpush1.msra.mxu0 0.0
    %5990 = vmatprep.subr.mxu0 0.0
    %5991 = vmatpush1.msra.mxu0 0.0
    %5992 = vmatprep.subr.mxu0 0.0
    %5993 = vmatpush1.msra.mxu0 0.0
    %5994 = vmatprep.subr.mxu0 0.0
    %5995 = vmatpush1.msra.mxu0 0.0
    %5996 = vmatprep.subr.mxu0 0.0
    %5997 = vmatpush1.msra.mxu0 0.0
    %5998 = vmatprep.subr.mxu0 0.0
    %5999 = vmatpush1.msra.mxu0 0.0
    %6000 = vmatprep.subr.mxu0 0.0
    %6001 = vmatpush1.msra.mxu0 0.0
    %6002 = vmatprep.mubr.f32.mxu0 0.0
    %6003 = vmatmul.mubr.f32.gmra.mrb[0].mxu0 %v5921
    %v6004 = vpop.f32.mrb[0].mxu0
    %v6005 = vadd.f32 0.0, %v6004
    %v6006 = vpop.f32.mrb[0].mxu0
    %6007 = vmatprep.mubr.f32.mxu0 0.0
    %6008 = vmatmul.mubr.f32.gmra.mrb[0].mxu0 %v5924
    %v6009 = vpop.f32.mrb[0].mxu0
    %v6010 = vadd.f32 0.0, %v6009
    %v6011 = vpop.f32.mrb[0].mxu0
    %6012 = vmatprep.mubr.f32.mxu0 0.0
    %6013 = vmatmul.mubr.f32.gmra.mrb[0].mxu0 %v5927
    %v6014 = vpop.f32.mrb[0].mxu0
    %v6015 = vadd.f32 0.0, %v6014
    %v6016 = vpop.f32.mrb[0].mxu0
    %6017 = vmatprep.mubr.f32.mxu0 0.0
    %6018 = vmatmul.mubr.f32.gmra.mrb[0].mxu0 %v5930
    %v6019 = vpop.f32.mrb[0].mxu0
    %v6020 = vadd.f32 0.0, %v6019
    %v6021 = vpop.f32.mrb[0].mxu0
    %6022 = vmatprep.mubr.f32.mxu0 0.0
    %6023 = vmatmul.mubr.f32.gmra.mrb[0].mxu0 %v5933
    %v6024 = vpop.f32.mrb[0].mxu0
    %v6025 = vadd.f32 0.0, %v6024
    %v6026 = vpop.f32.mrb[0].mxu0
    %6027 = vmatprep.mubr.f32.mxu0 0.0
    %6028 = vmatmul.mubr.f32.gmra.mrb[0].mxu0 %v5936
    %v6029 = vpop.f32.mrb[0].mxu0
    %v6030 = vadd.f32 0.0, %v6029
    %v6031 = vpop.f32.mrb[0].mxu0
    %6032 = vdwg.mxu0
    %6039 = vrot.lane.b32.xlu0 %v6005, 16
    %v6040 = vpop.permute.xlu0 %6039
    %6041 = vrot.lane.b32.xlu0 %v6010, 16
    %v6042 = vpop.permute.xlu0 %6041
    %6043 = vrot.lane.b32.xlu0 %v6015, 16
    %v6044 = vpop.permute.xlu0 %6043
    %6045 = vrot.lane.b32.xlu0 %v6020, 16
    %v6046 = vpop.permute.xlu0 %6045
    %6047 = vrot.lane.b32.xlu0 %v6025, 16
    %v6048 = vpop.permute.xlu0 %6047
    %6049 = vrot.lane.b32.xlu0 %v6030, 16
    %v6050 = vpop.permute.xlu0 %6049
    %6057 = vst.msk [vmem:[#allocation2] sm:$0xff] %vm1551, %v6040
    %6058 = vst.msk [vmem:[#allocation2 + $0x8] sm:$0xff] %vm1551, %v6042
    %6059 = vst.msk [vmem:[#allocation2 + $0x10] sm:$0xff] %vm1551, %v6044
    %6060 = vst.msk [vmem:[#allocation2 + $0x18] sm:$0xff] %vm1551, %v6046
    %6061 = vst.msk [vmem:[#allocation2 + $0x20] sm:$0xff] %vm1551, %v6048
    %6062 = vst.msk [vmem:[#allocation2 + $0x28] sm:$0xff] %vm1551, %v6050
    %6063 = vrot.lane.b32.xlu0 %v4971, 104
    %v6064 = vpop.permute.xlu0 %6063
    %6065 = vrot.lane.b32.xlu0 %v4972, 104
    %v6066 = vpop.permute.xlu0 %6065
    %6067 = vrot.lane.b32.xlu0 %v4973, 104
    %v6068 = vpop.permute.xlu0 %6067
    %6069 = vrot.lane.b32.xlu0 %v4974, 104
    %v6070 = vpop.permute.xlu0 %6069
    %6071 = vrot.lane.b32.xlu0 %v4975, 104
    %v6072 = vpop.permute.xlu0 %6071
    %6073 = vrot.lane.b32.xlu0 %v4976, 104
    %v6074 = vpop.permute.xlu0 %6073
    %6075 = vrot.lane.b32.xlu0 %v4943, 72
    %v6076 = vpop.permute.xlu0 %6075
    %6077 = vrot.lane.b32.xlu0 %v4948, 72
    %v6078 = vpop.permute.xlu0 %6077
    %6079 = vrot.lane.b32.xlu0 %v4953, 72
    %v6080 = vpop.permute.xlu0 %6079
    %6081 = vrot.lane.b32.xlu0 %v4958, 72
    %v6082 = vpop.permute.xlu0 %6081
    %6083 = vrot.lane.b32.xlu0 %v4963, 72
    %v6084 = vpop.permute.xlu0 %6083
    %6085 = vrot.lane.b32.xlu0 %v4968, 72
    %v6086 = vpop.permute.xlu0 %6085
    %v6087 = vsel %vm486, %v6064, 0
    %v6089 = vsel %vm486, %v6066, 0
    %v6091 = vsel %vm486, %v6068, 0
    %v6093 = vsel %vm486, %v6070, 0
    %v6095 = vsel %vm486, %v6072, 0
    %v6097 = vsel %vm486, %v6074, 0
    %v6099 = vsel %vm486, %v6076, 0
    %v6101 = vsel %vm486, %v6078, 0
    %v6103 = vsel %vm486, %v6080, 0
    %v6105 = vsel %vm486, %v6082, 0
    %v6107 = vsel %vm486, %v6084, 0
    %v6109 = vsel %vm486, %v6086, 0
    %6111 = vmatprep.subr.mxu0 0.0
    %6112 = vmatpush1.xpose.msra.mxu0 %v6099
    %6113 = vmatprep.subr.mxu0 0.0
    %6114 = vmatpush1.xpose.msra.mxu0 %v6101
    %6115 = vmatprep.subr.mxu0 0.0
    %6116 = vmatpush1.xpose.msra.mxu0 %v6103
    %6117 = vmatprep.subr.mxu0 0.0
    %6118 = vmatpush1.xpose.msra.mxu0 %v6105
    %6119 = vmatprep.subr.mxu0 0.0
    %6120 = vmatpush1.xpose.msra.mxu0 %v6107
    %6121 = vmatprep.subr.mxu0 0.0
    %6122 = vmatpush1.xpose.msra.mxu0 %v6109
    %6123 = vmatprep.subr.mxu0 0.0
    %6124 = vmatpush1.xpose.msra.mxu0 0.0
    %6125 = vmatprep.subr.mxu0 0.0
    %6126 = vmatpush1.xpose.msra.mxu0 0.0
    %6127 = vmatprep.subr.mxu0 0.0
    %6128 = vmatpush1.xpose.msra.mxu0 0.0
    %6129 = vmatprep.subr.mxu0 0.0
    %6130 = vmatpush1.xpose.msra.mxu0 0.0
    %6131 = vmatprep.subr.mxu0 0.0
    %6132 = vmatpush1.xpose.msra.mxu0 0.0
    %6133 = vmatprep.subr.mxu0 0.0
    %6134 = vmatpush1.xpose.msra.mxu0 0.0
    %6135 = vmatprep.subr.mxu0 0.0
    %6136 = vmatpush1.xpose.msra.mxu0 0.0
    %6137 = vmatprep.subr.mxu0 0.0
    %6138 = vmatpush1.xpose.msra.mxu0 0.0
    %6139 = vmatprep.subr.mxu0 0.0
    %6140 = vmatpush1.xpose.msra.mxu0 0.0
    %6141 = vmatprep.subr.mxu0 0.0
    %6142 = vmatpush1.xpose.msra.mxu0 0.0
    %6143 = vmatprep.subr.mxu0 0.0
    %6144 = vmatpush1.xpose.msra.mxu0 0.0
    %6145 = vmatprep.subr.mxu0 0.0
    %6146 = vmatpush1.xpose.msra.mxu0 0.0
    %6147 = vmatprep.subr.mxu0 0.0
    %6148 = vmatpush1.xpose.msra.mxu0 0.0
    %6149 = vmatprep.subr.mxu0 0.0
    %6150 = vmatpush1.xpose.msra.mxu0 0.0
    %6151 = vmatprep.subr.mxu0 0.0
    %6152 = vmatpush1.xpose.msra.mxu0 0.0
    %6153 = vmatprep.subr.mxu0 0.0
    %6154 = vmatpush1.xpose.msra.mxu0 0.0
    %6155 = vmatprep.subr.mxu0 0.0
    %6156 = vmatpush1.xpose.msra.mxu0 0.0
    %6157 = vmatprep.subr.mxu0 0.0
    %6158 = vmatpush1.xpose.msra.mxu0 0.0
    %6159 = vmatprep.subr.mxu0 0.0
    %6160 = vmatpush1.xpose.msra.mxu0 0.0
    %6161 = vmatprep.subr.mxu0 0.0
    %6162 = vmatpush1.xpose.msra.mxu0 0.0
    %6163 = vmatprep.subr.mxu0 0.0
    %6164 = vmatpush1.xpose.msra.mxu0 0.0
    %6165 = vmatprep.subr.mxu0 0.0
    %6166 = vmatpush1.xpose.msra.mxu0 0.0
    %6167 = vmatprep.subr.mxu0 0.0
    %6168 = vmatpush1.xpose.msra.mxu0 0.0
    %6169 = vmatprep.subr.mxu0 0.0
    %6170 = vmatpush1.xpose.msra.mxu0 0.0
    %6171 = vmatprep.subr.mxu0 0.0
    %6172 = vmatpush1.xpose.msra.mxu0 0.0
    %6173 = vmatprep.subr.mxu0 0.0
    %6174 = vmatpush1.xpose.msra.mxu0 0.0
    %6175 = vmatprep.mubr.f32.mxu0 0.0
    %6176 = vmatmul.mubr.f32.gmra.mrb[0].mxu0 %v6087
    %v6177 = vpop.f32.mrb[0].mxu0
    %v6178 = vadd.f32 %v227, %v6177
    %v6179 = vpop.f32.mrb[0].mxu0
    %6180 = vmatprep.mubr.f32.mxu0 0.0
    %6181 = vmatmul.mubr.f32.gmra.mrb[0].mxu0 %v6089
    %v6182 = vpop.f32.mrb[0].mxu0
    %v6183 = vadd.f32 %v228, %v6182
    %v6184 = vpop.f32.mrb[0].mxu0
    %6185 = vmatprep.mubr.f32.mxu0 0.0
    %6186 = vmatmul.mubr.f32.gmra.mrb[0].mxu0 %v6091
    %v6187 = vpop.f32.mrb[0].mxu0
    %v6188 = vadd.f32 %v229, %v6187
    %v6189 = vpop.f32.mrb[0].mxu0
    %6190 = vmatprep.mubr.f32.mxu0 0.0
    %6191 = vmatmul.mubr.f32.gmra.mrb[0].mxu0 %v6093
    %v6192 = vpop.f32.mrb[0].mxu0
    %v6193 = vadd.f32 %v230, %v6192
    %v6194 = vpop.f32.mrb[0].mxu0
    %6195 = vmatprep.mubr.f32.mxu0 0.0
    %6196 = vmatmul.mubr.f32.gmra.mrb[0].mxu0 %v6095
    %v6197 = vpop.f32.mrb[0].mxu0
    %v6198 = vadd.f32 %v231, %v6197
    %v6199 = vpop.f32.mrb[0].mxu0
    %6200 = vmatprep.mubr.f32.mxu0 0.0
    %6201 = vmatmul.mubr.f32.gmra.mrb[0].mxu0 %v6097
    %v6202 = vpop.f32.mrb[0].mxu0
    %v6203 = vadd.f32 %v232, %v6202
    %v6204 = vpop.f32.mrb[0].mxu0
    %6205 = vdwg.mxu0
    %v6206 = vsel %vm612, %v6178, -inf
    %6207 = vmax.xlane.f32.xlu0 %v6206
    %v6208 = vpop.xlane.xlu0 %6207
    %v6209 = vsel %vm612, %v6183, -inf
    %6210 = vmax.xlane.f32.xlu0 %v6209
    %v6211 = vpop.xlane.xlu0 %6210
    %v6212 = vsel %vm612, %v6188, -inf
    %6213 = vmax.xlane.f32.xlu0 %v6212
    %v6214 = vpop.xlane.xlu0 %6213
    %v6215 = vsel %vm612, %v6193, -inf
    %6216 = vmax.xlane.f32.xlu0 %v6215
    %v6217 = vpop.xlane.xlu0 %6216
    %v6218 = vsel %vm612, %v6198, -inf
    %6219 = vmax.xlane.f32.xlu0 %v6218
    %v6220 = vpop.xlane.xlu0 %6219
    %v6221 = vsel %vm612, %v6203, -inf
    %6222 = vmax.xlane.f32.xlu0 %v6221
    %v6223 = vpop.xlane.xlu0 %6222
    %v6224 = vsub.f32 %v6178, %v6208
    %v6225 = vsub.f32 %v6183, %v6211
    %v6226 = vsub.f32 %v6188, %v6214
    %v6227 = vsub.f32 %v6193, %v6217
    %v6228 = vsub.f32 %v6198, %v6220
    %v6229 = vsub.f32 %v6203, %v6223
    %v6230 = vmul.f32 %v6224, 1.442695
    %v6231 = vpow.pop %v6230
    %v6232 = vmul.f32 %v6225, 1.442695
    %v6233 = vpow.pop %v6232
    %v6234 = vmul.f32 %v6226, 1.442695
    %v6235 = vpow.pop %v6234
    %v6236 = vmul.f32 %v6227, 1.442695
    %v6237 = vpow.pop %v6236
    %v6238 = vmul.f32 %v6228, 1.442695
    %v6239 = vpow.pop %v6238
    %v6240 = vmul.f32 %v6229, 1.442695
    %v6241 = vpow.pop %v6240
    %v6242 = vsel %vm612, %v6231, 0.0
    %6243 = vadd.xlane.f32.xlu0 %v6242
    %v6244 = vpop.xlane.xlu0 %6243
    %v6245 = vsel %vm612, %v6233, 0.0
    %6246 = vadd.xlane.f32.xlu0 %v6245
    %v6247 = vpop.xlane.xlu0 %6246
    %v6248 = vsel %vm612, %v6235, 0.0
    %6249 = vadd.xlane.f32.xlu0 %v6248
    %v6250 = vpop.xlane.xlu0 %6249
    %v6251 = vsel %vm612, %v6237, 0.0
    %6252 = vadd.xlane.f32.xlu0 %v6251
    %v6253 = vpop.xlane.xlu0 %6252
    %v6254 = vsel %vm612, %v6239, 0.0
    %6255 = vadd.xlane.f32.xlu0 %v6254
    %v6256 = vpop.xlane.xlu0 %6255
    %v6257 = vsel %vm612, %v6241, 0.0
    %6258 = vadd.xlane.f32.xlu0 %v6257
    %v6259 = vpop.xlane.xlu0 %6258
    %v6260 = vrcp.pop %v6244
    %v6261 = vrcp.pop %v6247
    %v6262 = vrcp.pop %v6250
    %v6263 = vrcp.pop %v6253
    %v6264 = vrcp.pop %v6256
    %v6265 = vrcp.pop %v6259
    %v6266 = vmul.f32 %v6231, %v6260
    %v6267 = vmul.f32 %v6233, %v6261
    %v6268 = vmul.f32 %v6235, %v6262
    %v6269 = vmul.f32 %v6237, %v6263
    %v6270 = vmul.f32 %v6239, %v6264
    %v6271 = vmul.f32 %v6241, %v6265
    %6272 = vrot.lane.b32.xlu0 %v4943, 40
    %v6273 = vpop.permute.xlu0 %6272
    %6274 = vrot.lane.b32.xlu0 %v4948, 40
    %v6275 = vpop.permute.xlu0 %6274
    %6276 = vrot.lane.b32.xlu0 %v4953, 40
    %v6277 = vpop.permute.xlu0 %6276
    %6278 = vrot.lane.b32.xlu0 %v4958, 40
    %v6279 = vpop.permute.xlu0 %6278
    %6280 = vrot.lane.b32.xlu0 %v4963, 40
    %v6281 = vpop.permute.xlu0 %6280
    %6282 = vrot.lane.b32.xlu0 %v4968, 40
    %v6283 = vpop.permute.xlu0 %6282
    %v6291 = vsel %vm612, %v6266, 0
    %v6294 = vsel %vm612, %v6267, 0
    %v6297 = vsel %vm612, %v6268, 0
    %v6300 = vsel %vm612, %v6269, 0
    %v6303 = vsel %vm612, %v6270, 0
    %v6306 = vsel %vm612, %v6271, 0
    %6308 = vmatprep.subr.mxu0 0.0
    %6309 = vmatpush1.msra.mxu0 %v6273
    %6310 = vmatprep.subr.mxu0 0.0
    %6311 = vmatpush1.msra.mxu0 %v6275
    %6312 = vmatprep.subr.mxu0 0.0
    %6313 = vmatpush1.msra.mxu0 %v6277
    %6314 = vmatprep.subr.mxu0 0.0
    %6315 = vmatpush1.msra.mxu0 %v6279
    %6316 = vmatprep.subr.mxu0 0.0
    %6317 = vmatpush1.msra.mxu0 %v6281
    %6318 = vmatprep.subr.mxu0 0.0
    %6319 = vmatpush1.msra.mxu0 %v6283
    %6320 = vmatprep.subr.mxu0 0.0
    %6321 = vmatpush1.msra.mxu0 0.0
    %6322 = vmatprep.subr.mxu0 0.0
    %6323 = vmatpush1.msra.mxu0 0.0
    %6324 = vmatprep.subr.mxu0 0.0
    %6325 = vmatpush1.msra.mxu0 0.0
    %6326 = vmatprep.subr.mxu0 0.0
    %6327 = vmatpush1.msra.mxu0 0.0
    %6328 = vmatprep.subr.mxu0 0.0
    %6329 = vmatpush1.msra.mxu0 0.0
    %6330 = vmatprep.subr.mxu0 0.0
    %6331 = vmatpush1.msra.mxu0 0.0
    %6332 = vmatprep.subr.mxu0 0.0
    %6333 = vmatpush1.msra.mxu0 0.0
    %6334 = vmatprep.subr.mxu0 0.0
    %6335 = vmatpush1.msra.mxu0 0.0
    %6336 = vmatprep.subr.mxu0 0.0
    %6337 = vmatpush1.msra.mxu0 0.0
    %6338 = vmatprep.subr.mxu0 0.0
    %6339 = vmatpush1.msra.mxu0 0.0
    %6340 = vmatprep.subr.mxu0 0.0
    %6341 = vmatpush1.msra.mxu0 0.0
    %6342 = vmatprep.subr.mxu0 0.0
    %6343 = vmatpush1.msra.mxu0 0.0
    %6344 = vmatprep.subr.mxu0 0.0
    %6345 = vmatpush1.msra.mxu0 0.0
    %6346 = vmatprep.subr.mxu0 0.0
    %6347 = vmatpush1.msra.mxu0 0.0
    %6348 = vmatprep.subr.mxu0 0.0
    %6349 = vmatpush1.msra.mxu0 0.0
    %6350 = vmatprep.subr.mxu0 0.0
    %6351 = vmatpush1.msra.mxu0 0.0
    %6352 = vmatprep.subr.mxu0 0.0
    %6353 = vmatpush1.msra.mxu0 0.0
    %6354 = vmatprep.subr.mxu0 0.0
    %6355 = vmatpush1.msra.mxu0 0.0
    %6356 = vmatprep.subr.mxu0 0.0
    %6357 = vmatpush1.msra.mxu0 0.0
    %6358 = vmatprep.subr.mxu0 0.0
    %6359 = vmatpush1.msra.mxu0 0.0
    %6360 = vmatprep.subr.mxu0 0.0
    %6361 = vmatpush1.msra.mxu0 0.0
    %6362 = vmatprep.subr.mxu0 0.0
    %6363 = vmatpush1.msra.mxu0 0.0
    %6364 = vmatprep.subr.mxu0 0.0
    %6365 = vmatpush1.msra.mxu0 0.0
    %6366 = vmatprep.subr.mxu0 0.0
    %6367 = vmatpush1.msra.mxu0 0.0
    %6368 = vmatprep.subr.mxu0 0.0
    %6369 = vmatpush1.msra.mxu0 0.0
    %6370 = vmatprep.subr.mxu0 0.0
    %6371 = vmatpush1.msra.mxu0 0.0
    %6372 = vmatprep.mubr.f32.mxu0 0.0
    %6373 = vmatmul.mubr.f32.gmra.mrb[0].mxu0 %v6291
    %v6374 = vpop.f32.mrb[0].mxu0
    %v6375 = vadd.f32 0.0, %v6374
    %v6376 = vpop.f32.mrb[0].mxu0
    %6377 = vmatprep.mubr.f32.mxu0 0.0
    %6378 = vmatmul.mubr.f32.gmra.mrb[0].mxu0 %v6294
    %v6379 = vpop.f32.mrb[0].mxu0
    %v6380 = vadd.f32 0.0, %v6379
    %v6381 = vpop.f32.mrb[0].mxu0
    %6382 = vmatprep.mubr.f32.mxu0 0.0
    %6383 = vmatmul.mubr.f32.gmra.mrb[0].mxu0 %v6297
    %v6384 = vpop.f32.mrb[0].mxu0
    %v6385 = vadd.f32 0.0, %v6384
    %v6386 = vpop.f32.mrb[0].mxu0
    %6387 = vmatprep.mubr.f32.mxu0 0.0
    %6388 = vmatmul.mubr.f32.gmra.mrb[0].mxu0 %v6300
    %v6389 = vpop.f32.mrb[0].mxu0
    %v6390 = vadd.f32 0.0, %v6389
    %v6391 = vpop.f32.mrb[0].mxu0
    %6392 = vmatprep.mubr.f32.mxu0 0.0
    %6393 = vmatmul.mubr.f32.gmra.mrb[0].mxu0 %v6303
    %v6394 = vpop.f32.mrb[0].mxu0
    %v6395 = vadd.f32 0.0, %v6394
    %v6396 = vpop.f32.mrb[0].mxu0
    %6397 = vmatprep.mubr.f32.mxu0 0.0
    %6398 = vmatmul.mubr.f32.gmra.mrb[0].mxu0 %v6306
    %v6399 = vpop.f32.mrb[0].mxu0
    %v6400 = vadd.f32 0.0, %v6399
    %v6401 = vpop.f32.mrb[0].mxu0
    %6402 = vdwg.mxu0
    %6409 = vrot.lane.b32.xlu0 %v6375, 24
    %v6410 = vpop.permute.xlu0 %6409
    %6411 = vrot.lane.b32.xlu0 %v6380, 24
    %v6412 = vpop.permute.xlu0 %6411
    %6413 = vrot.lane.b32.xlu0 %v6385, 24
    %v6414 = vpop.permute.xlu0 %6413
    %6415 = vrot.lane.b32.xlu0 %v6390, 24
    %v6416 = vpop.permute.xlu0 %6415
    %6417 = vrot.lane.b32.xlu0 %v6395, 24
    %v6418 = vpop.permute.xlu0 %6417
    %6419 = vrot.lane.b32.xlu0 %v6400, 24
    %v6420 = vpop.permute.xlu0 %6419
    %6427 = vst.msk [vmem:[#allocation2] sm:$0xff] %vm1922, %v6410
    %6428 = vst.msk [vmem:[#allocation2 + $0x8] sm:$0xff] %vm1922, %v6412
    %6429 = vst.msk [vmem:[#allocation2 + $0x10] sm:$0xff] %vm1922, %v6414
    %6430 = vst.msk [vmem:[#allocation2 + $0x18] sm:$0xff] %vm1922, %v6416
    %6431 = vst.msk [vmem:[#allocation2 + $0x20] sm:$0xff] %vm1922, %v6418
    %6432 = vst.msk [vmem:[#allocation2 + $0x28] sm:$0xff] %vm1922, %v6420
    %v6433 = vld [vmem:[#allocation2] sm:$0xff]
    %v6434 = vld [vmem:[#allocation2 + $0x8] sm:$0xff]
    %v6435 = vld [vmem:[#allocation2 + $0x10] sm:$0xff]
    %v6436 = vld [vmem:[#allocation2 + $0x18] sm:$0xff]
    %v6437 = vld [vmem:[#allocation2 + $0x20] sm:$0xff]
    %v6438 = vld [vmem:[#allocation2 + $0x28] sm:$0xff]
    %s6439 = scalar_lea.vmem %s10, 64
    %v6440 = vld [vmem:[%s6439] sm:$0xff]
    %v6441 = vld [vmem:[%s6439 + $0x8] sm:$0xff]
    %v6442 = vld [vmem:[%s6439 + $0x10] sm:$0xff]
    %v6443 = vld [vmem:[%s6439 + $0x18] sm:$0xff]
    %v6445 = vsel %vm205, %v6433, 0
    %v6448 = vsel %vm205, %v6434, 0
    %v6451 = vsel %vm205, %v6435, 0
    %v6454 = vsel %vm205, %v6436, 0
    %v6457 = vsel %vm205, %v6437, 0
    %v6460 = vsel %vm205, %v6438, 0
    %6462 = vmatprep.subr.mxu0 0.0
    %6463 = vmatpush1.msra.mxu0 %v6440
    %6464 = vmatprep.subr.mxu0 0.0
    %6465 = vmatpush1.msra.mxu0 %v6441
    %6466 = vmatprep.subr.mxu0 0.0
    %6467 = vmatpush1.msra.mxu0 %v6442
    %6468 = vmatprep.subr.mxu0 0.0
    %6469 = vmatpush1.msra.mxu0 %v6443
    %6470 = vmatprep.subr.mxu0 0.0
    %6471 = vmatpush1.msra.mxu0 0.0
    %6472 = vmatprep.subr.mxu0 0.0
    %6473 = vmatpush1.msra.mxu0 0.0
    %6474 = vmatprep.subr.mxu0 0.0
    %6475 = vmatpush1.msra.mxu0 0.0
    %6476 = vmatprep.subr.mxu0 0.0
    %6477 = vmatpush1.msra.mxu0 0.0
    %6478 = vmatprep.subr.mxu0 0.0
    %6479 = vmatpush1.msra.mxu0 0.0
    %6480 = vmatprep.subr.mxu0 0.0
    %6481 = vmatpush1.msra.mxu0 0.0
    %6482 = vmatprep.subr.mxu0 0.0
    %6483 = vmatpush1.msra.mxu0 0.0
    %6484 = vmatprep.subr.mxu0 0.0
    %6485 = vmatpush1.msra.mxu0 0.0
    %6486 = vmatprep.subr.mxu0 0.0
    %6487 = vmatpush1.msra.mxu0 0.0
    %6488 = vmatprep.subr.mxu0 0.0
    %6489 = vmatpush1.msra.mxu0 0.0
    %6490 = vmatprep.subr.mxu0 0.0
    %6491 = vmatpush1.msra.mxu0 0.0
    %6492 = vmatprep.subr.mxu0 0.0
    %6493 = vmatpush1.msra.mxu0 0.0
    %6494 = vmatprep.subr.mxu0 0.0
    %6495 = vmatpush1.msra.mxu0 0.0
    %6496 = vmatprep.subr.mxu0 0.0
    %6497 = vmatpush1.msra.mxu0 0.0
    %6498 = vmatprep.subr.mxu0 0.0
    %6499 = vmatpush1.msra.mxu0 0.0
    %6500 = vmatprep.subr.mxu0 0.0
    %6501 = vmatpush1.msra.mxu0 0.0
    %6502 = vmatprep.subr.mxu0 0.0
    %6503 = vmatpush1.msra.mxu0 0.0
    %6504 = vmatprep.subr.mxu0 0.0
    %6505 = vmatpush1.msra.mxu0 0.0
    %6506 = vmatprep.subr.mxu0 0.0
    %6507 = vmatpush1.msra.mxu0 0.0
    %6508 = vmatprep.subr.mxu0 0.0
    %6509 = vmatpush1.msra.mxu0 0.0
    %6510 = vmatprep.subr.mxu0 0.0
    %6511 = vmatpush1.msra.mxu0 0.0
    %6512 = vmatprep.subr.mxu0 0.0
    %6513 = vmatpush1.msra.mxu0 0.0
    %6514 = vmatprep.subr.mxu0 0.0
    %6515 = vmatpush1.msra.mxu0 0.0
    %6516 = vmatprep.subr.mxu0 0.0
    %6517 = vmatpush1.msra.mxu0 0.0
    %6518 = vmatprep.subr.mxu0 0.0
    %6519 = vmatpush1.msra.mxu0 0.0
    %6520 = vmatprep.subr.mxu0 0.0
    %6521 = vmatpush1.msra.mxu0 0.0
    %6522 = vmatprep.subr.mxu0 0.0
    %6523 = vmatpush1.msra.mxu0 0.0
    %6524 = vmatprep.subr.mxu0 0.0
    %6525 = vmatpush1.msra.mxu0 0.0
    %6526 = vmatprep.mubr.f32.mxu0 0.0
    %6527 = vmatmul.mubr.f32.gmra.mrb[0].mxu0 %v6445
    %v6528 = vpop.f32.mrb[0].mxu0
    %v6529 = vadd.f32 0.0, %v6528
    %v6530 = vpop.f32.mrb[0].mxu0
    %6531 = vmatprep.mubr.f32.mxu0 0.0
    %6532 = vmatmul.mubr.f32.gmra.mrb[0].mxu0 %v6448
    %v6533 = vpop.f32.mrb[0].mxu0
    %v6534 = vadd.f32 0.0, %v6533
    %v6535 = vpop.f32.mrb[0].mxu0
    %6536 = vmatprep.mubr.f32.mxu0 0.0
    %6537 = vmatmul.mubr.f32.gmra.mrb[0].mxu0 %v6451
    %v6538 = vpop.f32.mrb[0].mxu0
    %v6539 = vadd.f32 0.0, %v6538
    %v6540 = vpop.f32.mrb[0].mxu0
    %6541 = vmatprep.mubr.f32.mxu0 0.0
    %6542 = vmatmul.mubr.f32.gmra.mrb[0].mxu0 %v6454
    %v6543 = vpop.f32.mrb[0].mxu0
    %v6544 = vadd.f32 0.0, %v6543
    %v6545 = vpop.f32.mrb[0].mxu0
    %6546 = vmatprep.mubr.f32.mxu0 0.0
    %6547 = vmatmul.mubr.f32.gmra.mrb[0].mxu0 %v6457
    %v6548 = vpop.f32.mrb[0].mxu0
    %v6549 = vadd.f32 0.0, %v6548
    %v6550 = vpop.f32.mrb[0].mxu0
    %6551 = vmatprep.mubr.f32.mxu0 0.0
    %6552 = vmatmul.mubr.f32.gmra.mrb[0].mxu0 %v6460
    %v6553 = vpop.f32.mrb[0].mxu0
    %v6554 = vadd.f32 0.0, %v6553
    %v6555 = vpop.f32.mrb[0].mxu0
    %6556 = vdwg.mxu0
    %v6557 = vadd.f32 %v4733, %v6529
    %v6558 = vadd.f32 %v4734, %v6534
    %v6559 = vadd.f32 %v4735, %v6539
    %v6560 = vadd.f32 %v4736, %v6544
    %v6561 = vadd.f32 %v4737, %v6549
    %v6562 = vadd.f32 %v4738, %v6554
    %s6563 = scalar_lea.vmem %s11, 2
    %v6564 = vld [vmem:[%s6563] sm:$0x1]
    %v6566 = vlaneseq
    %v6567 = vshrl.u32 %v6566, 7
    %v6568 = vsub.s32 0, %v6567
    %v6569 = vrot.slane %v6564, %v6568
    %v6571 = vadd.f32 %v6557, %v6569
    %v6572 = vadd.f32 %v6558, %v6569
    %v6573 = vadd.f32 %v6559, %v6569
    %v6574 = vadd.f32 %v6560, %v6569
    %v6575 = vadd.f32 %v6561, %v6569
    %v6576 = vadd.f32 %v6562, %v6569
    %s6577 = scalar_lea.vmem %s12, 2
    %v6578 = vld [vmem:[%s6577] sm:$0x1]
    %s6579 = scalar_lea.vmem %s13, 2
    %v6580 = vld [vmem:[%s6579] sm:$0x1]
    %v6581 = vsel %vm205, %v6571, 0.0
    %6582 = vadd.xlane.f32.xlu0 %v6581
    %v6583 = vpop.xlane.xlu0 %6582
    %v6584 = vsel %vm205, %v6572, 0.0
    %6585 = vadd.xlane.f32.xlu0 %v6584
    %v6586 = vpop.xlane.xlu0 %6585
    %v6587 = vsel %vm205, %v6573, 0.0
    %6588 = vadd.xlane.f32.xlu0 %v6587
    %v6589 = vpop.xlane.xlu0 %6588
    %v6590 = vsel %vm205, %v6574, 0.0
    %6591 = vadd.xlane.f32.xlu0 %v6590
    %v6592 = vpop.xlane.xlu0 %6591
    %v6593 = vsel %vm205, %v6575, 0.0
    %6594 = vadd.xlane.f32.xlu0 %v6593
    %v6595 = vpop.xlane.xlu0 %6594
    %v6596 = vsel %vm205, %v6576, 0.0
    %6597 = vadd.xlane.f32.xlu0 %v6596
    %v6598 = vpop.xlane.xlu0 %6597
    %v6599 = vmul.f32 %v6583, %v253
    %v6600 = vmul.f32 %v6586, %v253
    %v6601 = vmul.f32 %v6589, %v253
    %v6602 = vmul.f32 %v6592, %v253
    %v6603 = vmul.f32 %v6595, %v253
    %v6604 = vmul.f32 %v6598, %v253
    %v6605 = vsub.f32 %v6571, %v6599
    %v6606 = vsub.f32 %v6572, %v6600
    %v6607 = vsub.f32 %v6573, %v6601
    %v6608 = vsub.f32 %v6574, %v6602
    %v6609 = vsub.f32 %v6575, %v6603
    %v6610 = vsub.f32 %v6576, %v6604
    %v6611 = vmul.f32 %v6605, %v6605
    %v6612 = vmul.f32 %v6606, %v6606
    %v6613 = vmul.f32 %v6607, %v6607
    %v6614 = vmul.f32 %v6608, %v6608
    %v6615 = vmul.f32 %v6609, %v6609
    %v6616 = vmul.f32 %v6610, %v6610
    %v6617 = vsel %vm205, %v6611, 0.0
    %6618 = vadd.xlane.f32.xlu0 %v6617
    %v6619 = vpop.xlane.xlu0 %6618
    %v6620 = vsel %vm205, %v6612, 0.0
    %6621 = vadd.xlane.f32.xlu0 %v6620
    %v6622 = vpop.xlane.xlu0 %6621
    %v6623 = vsel %vm205, %v6613, 0.0
    %6624 = vadd.xlane.f32.xlu0 %v6623
    %v6625 = vpop.xlane.xlu0 %6624
    %v6626 = vsel %vm205, %v6614, 0.0
    %6627 = vadd.xlane.f32.xlu0 %v6626
    %v6628 = vpop.xlane.xlu0 %6627
    %v6629 = vsel %vm205, %v6615, 0.0
    %6630 = vadd.xlane.f32.xlu0 %v6629
    %v6631 = vpop.xlane.xlu0 %6630
    %v6632 = vsel %vm205, %v6616, 0.0
    %6633 = vadd.xlane.f32.xlu0 %v6632
    %v6634 = vpop.xlane.xlu0 %6633
    %v6635 = vmul.f32 %v6619, %v253
    %v6636 = vmul.f32 %v6622, %v253
    %v6637 = vmul.f32 %v6625, %v253
    %v6638 = vmul.f32 %v6628, %v253
    %v6639 = vmul.f32 %v6631, %v253
    %v6640 = vmul.f32 %v6634, %v253
    %v6641 = vadd.f32 %v6635, 1e-12
    %v6642 = vadd.f32 %v6636, 1e-12
    %v6643 = vadd.f32 %v6637, 1e-12
    %v6644 = vadd.f32 %v6638, 1e-12
    %v6645 = vadd.f32 %v6639, 1e-12
    %v6646 = vadd.f32 %v6640, 1e-12
    %v6647 = vrsqrt.pop %v6641
    %v6648 = vrsqrt.pop %v6642
    %v6649 = vrsqrt.pop %v6643
    %v6650 = vrsqrt.pop %v6644
    %v6651 = vrsqrt.pop %v6645
    %v6652 = vrsqrt.pop %v6646
    %v6653 = vmul.f32 %v6605, %v6647
    %v6654 = vmul.f32 %v6606, %v6648
    %v6655 = vmul.f32 %v6607, %v6649
    %v6656 = vmul.f32 %v6608, %v6650
    %v6657 = vmul.f32 %v6609, %v6651
    %v6658 = vmul.f32 %v6610, %v6652
    %v6660 = vlaneseq
    %v6661 = vshrl.u32 %v6660, 7
    %v6662 = vsub.s32 0, %v6661
    %v6663 = vrot.slane %v6578, %v6662
    %v6665 = vmul.f32 %v6653, %v6663
    %v6666 = vmul.f32 %v6654, %v6663
    %v6667 = vmul.f32 %v6655, %v6663
    %v6668 = vmul.f32 %v6656, %v6663
    %v6669 = vmul.f32 %v6657, %v6663
    %v6670 = vmul.f32 %v6658, %v6663
    %v6672 = vlaneseq
    %v6673 = vshrl.u32 %v6672, 7
    %v6674 = vsub.s32 0, %v6673
    %v6675 = vrot.slane %v6580, %v6674
    %v6677 = vadd.f32 %v6665, %v6675
    %v6678 = vadd.f32 %v6666, %v6675
    %v6679 = vadd.f32 %v6667, %v6675
    %v6680 = vadd.f32 %v6668, %v6675
    %v6681 = vadd.f32 %v6669, %v6675
    %v6682 = vadd.f32 %v6670, %v6675
    %s6683 = scalar_lea.vmem %s14, 64
    %v6684 = vld [vmem:[%s6683] sm:$0xff]
    %v6685 = vld [vmem:[%s6683 + $0x8] sm:$0xff]
    %v6686 = vld [vmem:[%s6683 + $0x10] sm:$0xff]
    %v6687 = vld [vmem:[%s6683 + $0x18] sm:$0xff]
    %s6688 = scalar_lea.vmem %s15, 2
    %v6689 = vld [vmem:[%s6688] sm:$0x1]
    %v6691 = vlaneseq
    %v6692 = vshrl.u32 %v6691, 7
    %v6693 = vsub.s32 0, %v6692
    %v6694 = vrot.slane %v6689, %v6693
    %v6697 = vsel %vm205, %v6677, 0
    %v6700 = vsel %vm205, %v6678, 0
    %v6703 = vsel %vm205, %v6679, 0
    %v6706 = vsel %vm205, %v6680, 0
    %v6709 = vsel %vm205, %v6681, 0
    %v6712 = vsel %vm205, %v6682, 0
    %6714 = vmatprep.subr.mxu0 0.0
    %6715 = vmatpush1.msra.mxu0 %v6684
    %6716 = vmatprep.subr.mxu0 0.0
    %6717 = vmatpush1.msra.mxu0 %v6685
    %6718 = vmatprep.subr.mxu0 0.0
    %6719 = vmatpush1.msra.mxu0 %v6686
    %6720 = vmatprep.subr.mxu0 0.0
    %6721 = vmatpush1.msra.mxu0 %v6687
    %6722 = vmatprep.subr.mxu0 0.0
    %6723 = vmatpush1.msra.mxu0 0.0
    %6724 = vmatprep.subr.mxu0 0.0
    %6725 = vmatpush1.msra.mxu0 0.0
    %6726 = vmatprep.subr.mxu0 0.0
    %6727 = vmatpush1.msra.mxu0 0.0
    %6728 = vmatprep.subr.mxu0 0.0
    %6729 = vmatpush1.msra.mxu0 0.0
    %6730 = vmatprep.subr.mxu0 0.0
    %6731 = vmatpush1.msra.mxu0 0.0
    %6732 = vmatprep.subr.mxu0 0.0
    %6733 = vmatpush1.msra.mxu0 0.0
    %6734 = vmatprep.subr.mxu0 0.0
    %6735 = vmatpush1.msra.mxu0 0.0
    %6736 = vmatprep.subr.mxu0 0.0
    %6737 = vmatpush1.msra.mxu0 0.0
    %6738 = vmatprep.subr.mxu0 0.0
    %6739 = vmatpush1.msra.mxu0 0.0
    %6740 = vmatprep.subr.mxu0 0.0
    %6741 = vmatpush1.msra.mxu0 0.0
    %6742 = vmatprep.subr.mxu0 0.0
    %6743 = vmatpush1.msra.mxu0 0.0
    %6744 = vmatprep.subr.mxu0 0.0
    %6745 = vmatpush1.msra.mxu0 0.0
    %6746 = vmatprep.subr.mxu0 0.0
    %6747 = vmatpush1.msra.mxu0 0.0
    %6748 = vmatprep.subr.mxu0 0.0
    %6749 = vmatpush1.msra.mxu0 0.0
    %6750 = vmatprep.subr.mxu0 0.0
    %6751 = vmatpush1.msra.mxu0 0.0
    %6752 = vmatprep.subr.mxu0 0.0
    %6753 = vmatpush1.msra.mxu0 0.0
    %6754 = vmatprep.subr.mxu0 0.0
    %6755 = vmatpush1.msra.mxu0 0.0
    %6756 = vmatprep.subr.mxu0 0.0
    %6757 = vmatpush1.msra.mxu0 0.0
    %6758 = vmatprep.subr.mxu0 0.0
    %6759 = vmatpush1.msra.mxu0 0.0
    %6760 = vmatprep.subr.mxu0 0.0
    %6761 = vmatpush1.msra.mxu0 0.0
    %6762 = vmatprep.subr.mxu0 0.0
    %6763 = vmatpush1.msra.mxu0 0.0
    %6764 = vmatprep.subr.mxu0 0.0
    %6765 = vmatpush1.msra.mxu0 0.0
    %6766 = vmatprep.subr.mxu0 0.0
    %6767 = vmatpush1.msra.mxu0 0.0
    %6768 = vmatprep.subr.mxu0 0.0
    %6769 = vmatpush1.msra.mxu0 0.0
    %6770 = vmatprep.subr.mxu0 0.0
    %6771 = vmatpush1.msra.mxu0 0.0
    %6772 = vmatprep.subr.mxu0 0.0
    %6773 = vmatpush1.msra.mxu0 0.0
    %6774 = vmatprep.subr.mxu0 0.0
    %6775 = vmatpush1.msra.mxu0 0.0
    %6776 = vmatprep.subr.mxu0 0.0
    %6777 = vmatpush1.msra.mxu0 0.0
    %6778 = vmatprep.mubr.f32.mxu0 0.0
    %6779 = vmatmul.mubr.f32.gmra.mrb[0].mxu0 %v6697
    %v6780 = vpop.f32.mrb[0].mxu0
    %v6781 = vadd.f32 %v6694, %v6780
    %v6782 = vpop.f32.mrb[0].mxu0
    %6783 = vmatprep.mubr.f32.mxu0 0.0
    %6784 = vmatmul.mubr.f32.gmra.mrb[0].mxu0 %v6700
    %v6785 = vpop.f32.mrb[0].mxu0
    %v6786 = vadd.f32 %v6694, %v6785
    %v6787 = vpop.f32.mrb[0].mxu0
    %6788 = vmatprep.mubr.f32.mxu0 0.0
    %6789 = vmatmul.mubr.f32.gmra.mrb[0].mxu0 %v6703
    %v6790 = vpop.f32.mrb[0].mxu0
    %v6791 = vadd.f32 %v6694, %v6790
    %v6792 = vpop.f32.mrb[0].mxu0
    %6793 = vmatprep.mubr.f32.mxu0 0.0
    %6794 = vmatmul.mubr.f32.gmra.mrb[0].mxu0 %v6706
    %v6795 = vpop.f32.mrb[0].mxu0
    %v6796 = vadd.f32 %v6694, %v6795
    %v6797 = vpop.f32.mrb[0].mxu0
    %6798 = vmatprep.mubr.f32.mxu0 0.0
    %6799 = vmatmul.mubr.f32.gmra.mrb[0].mxu0 %v6709
    %v6800 = vpop.f32.mrb[0].mxu0
    %v6801 = vadd.f32 %v6694, %v6800
    %v6802 = vpop.f32.mrb[0].mxu0
    %6803 = vmatprep.mubr.f32.mxu0 0.0
    %6804 = vmatmul.mubr.f32.gmra.mrb[0].mxu0 %v6712
    %v6805 = vpop.f32.mrb[0].mxu0
    %v6806 = vadd.f32 %v6694, %v6805
    %v6807 = vpop.f32.mrb[0].mxu0
    %6808 = vdwg.mxu0
    %v6809 = vmul.f32 %v6781, 0.5
    %v6810 = vmul.f32 %v6786, 0.5
    %v6811 = vmul.f32 %v6791, 0.5
    %v6812 = vmul.f32 %v6796, 0.5
    %v6813 = vmul.f32 %v6801, 0.5
    %v6814 = vmul.f32 %v6806, 0.5
    %v6815 = vmul.f32 %v6781, 0.044715
    %v6816 = vmul.f32 %v6786, 0.044715
    %v6817 = vmul.f32 %v6791, 0.044715
    %v6818 = vmul.f32 %v6796, 0.044715
    %v6819 = vmul.f32 %v6801, 0.044715
    %v6820 = vmul.f32 %v6806, 0.044715
    %v6821 = vmul.f32 %v6815, %v6781
    %v6822 = vmul.f32 %v6816, %v6786
    %v6823 = vmul.f32 %v6817, %v6791
    %v6824 = vmul.f32 %v6818, %v6796
    %v6825 = vmul.f32 %v6819, %v6801
    %v6826 = vmul.f32 %v6820, %v6806
    %v6827 = vmul.f32 %v6821, %v6781
    %v6828 = vmul.f32 %v6822, %v6786
    %v6829 = vmul.f32 %v6823, %v6791
    %v6830 = vmul.f32 %v6824, %v6796
    %v6831 = vmul.f32 %v6825, %v6801
    %v6832 = vmul.f32 %v6826, %v6806
    %v6833 = vadd.f32 %v6781, %v6827
    %v6834 = vadd.f32 %v6786, %v6828
    %v6835 = vadd.f32 %v6791, %v6829
    %v6836 = vadd.f32 %v6796, %v6830
    %v6837 = vadd.f32 %v6801, %v6831
    %v6838 = vadd.f32 %v6806, %v6832
    %v6839 = vmul.f32 %v6833, 0.7978846
    %v6840 = vmul.f32 %v6834, 0.7978846
    %v6841 = vmul.f32 %v6835, 0.7978846
    %v6842 = vmul.f32 %v6836, 0.7978846
    %v6843 = vmul.f32 %v6837, 0.7978846
    %v6844 = vmul.f32 %v6838, 0.7978846
    %v6845 = vtanh.pop %v6839
    %v6846 = vtanh.pop %v6840
    %v6847 = vtanh.pop %v6841
    %v6848 = vtanh.pop %v6842
    %v6849 = vtanh.pop %v6843
    %v6850 = vtanh.pop %v6844
    %v6851 = vadd.f32 %v6845, 1.0
    %v6852 = vadd.f32 %v6846, 1.0
    %v6853 = vadd.f32 %v6847, 1.0
    %v6854 = vadd.f32 %v6848, 1.0
    %v6855 = vadd.f32 %v6849, 1.0
    %v6856 = vadd.f32 %v6850, 1.0
    %v6857 = vmul.f32 %v6809, %v6851
    %v6858 = vmul.f32 %v6810, %v6852
    %v6859 = vmul.f32 %v6811, %v6853
    %v6860 = vmul.f32 %v6812, %v6854
    %v6861 = vmul.f32 %v6813, %v6855
    %v6862 = vmul.f32 %v6814, %v6856
    %s6863 = scalar_lea.vmem %s16, 256
    %v6864 = vld [vmem:[%s6863] sm:$0xff]
    %v6865 = vld [vmem:[%s6863 + $0x8] sm:$0xff]
    %v6866 = vld [vmem:[%s6863 + $0x10] sm:$0xff]
    %v6867 = vld [vmem:[%s6863 + $0x18] sm:$0xff]
    %v6868 = vld [vmem:[%s6863 + $0x20] sm:$0xff]
    %v6869 = vld [vmem:[%s6863 + $0x28] sm:$0xff]
    %v6870 = vld [vmem:[%s6863 + $0x30] sm:$0xff]
    %v6871 = vld [vmem:[%s6863 + $0x38] sm:$0xff]
    %v6872 = vld [vmem:[%s6863 + $0x40] sm:$0xff]
    %v6873 = vld [vmem:[%s6863 + $0x48] sm:$0xff]
    %v6874 = vld [vmem:[%s6863 + $0x50] sm:$0xff]
    %v6875 = vld [vmem:[%s6863 + $0x58] sm:$0xff]
    %v6876 = vld [vmem:[%s6863 + $0x60] sm:$0xff]
    %v6877 = vld [vmem:[%s6863 + $0x68] sm:$0xff]
    %v6878 = vld [vmem:[%s6863 + $0x70] sm:$0xff]
    %v6879 = vld [vmem:[%s6863 + $0x78] sm:$0xff]
    %6880 = vmatprep.subr.mxu0 0.0
    %6881 = vmatpush1.msra.mxu0 %v6864
    %6882 = vmatprep.subr.mxu0 0.0
    %6883 = vmatpush1.msra.mxu0 %v6865
    %6884 = vmatprep.subr.mxu0 0.0
    %6885 = vmatpush1.msra.mxu0 %v6866
    %6886 = vmatprep.subr.mxu0 0.0
    %6887 = vmatpush1.msra.mxu0 %v6867
    %6888 = vmatprep.subr.mxu0 0.0
    %6889 = vmatpush1.msra.mxu0 %v6868
    %6890 = vmatprep.subr.mxu0 0.0
    %6891 = vmatpush1.msra.mxu0 %v6869
    %6892 = vmatprep.subr.mxu0 0.0
    %6893 = vmatpush1.msra.mxu0 %v6870
    %6894 = vmatprep.subr.mxu0 0.0
    %6895 = vmatpush1.msra.mxu0 %v6871
    %6896 = vmatprep.subr.mxu0 0.0
    %6897 = vmatpush1.msra.mxu0 %v6872
    %6898 = vmatprep.subr.mxu0 0.0
    %6899 = vmatpush1.msra.mxu0 %v6873
    %6900 = vmatprep.subr.mxu0 0.0
    %6901 = vmatpush1.msra.mxu0 %v6874
    %6902 = vmatprep.subr.mxu0 0.0
    %6903 = vmatpush1.msra.mxu0 %v6875
    %6904 = vmatprep.subr.mxu0 0.0
    %6905 = vmatpush1.msra.mxu0 %v6876
    %6906 = vmatprep.subr.mxu0 0.0
    %6907 = vmatpush1.msra.mxu0 %v6877
    %6908 = vmatprep.subr.mxu0 0.0
    %6909 = vmatpush1.msra.mxu0 %v6878
    %6910 = vmatprep.subr.mxu0 0.0
    %6911 = vmatpush1.msra.mxu0 %v6879
    %6912 = vmatprep.subr.mxu0 0.0
    %6913 = vmatpush1.msra.mxu0 0.0
    %6914 = vmatprep.subr.mxu0 0.0
    %6915 = vmatpush1.msra.mxu0 0.0
    %6916 = vmatprep.subr.mxu0 0.0
    %6917 = vmatpush1.msra.mxu0 0.0
    %6918 = vmatprep.subr.mxu0 0.0
    %6919 = vmatpush1.msra.mxu0 0.0
    %6920 = vmatprep.subr.mxu0 0.0
    %6921 = vmatpush1.msra.mxu0 0.0
    %6922 = vmatprep.subr.mxu0 0.0
    %6923 = vmatpush1.msra.mxu0 0.0
    %6924 = vmatprep.subr.mxu0 0.0
    %6925 = vmatpush1.msra.mxu0 0.0
    %6926 = vmatprep.subr.mxu0 0.0
    %6927 = vmatpush1.msra.mxu0 0.0
    %6928 = vmatprep.subr.mxu0 0.0
    %6929 = vmatpush1.msra.mxu0 0.0
    %6930 = vmatprep.subr.mxu0 0.0
    %6931 = vmatpush1.msra.mxu0 0.0
    %6932 = vmatprep.subr.mxu0 0.0
    %6933 = vmatpush1.msra.mxu0 0.0
    %6934 = vmatprep.subr.mxu0 0.0
    %6935 = vmatpush1.msra.mxu0 0.0
    %6936 = vmatprep.subr.mxu0 0.0
    %6937 = vmatpush1.msra.mxu0 0.0
    %6938 = vmatprep.subr.mxu0 0.0
    %6939 = vmatpush1.msra.mxu0 0.0
    %6940 = vmatprep.subr.mxu0 0.0
    %6941 = vmatpush1.msra.mxu0 0.0
    %6942 = vmatprep.subr.mxu0 0.0
    %6943 = vmatpush1.msra.mxu0 0.0
    %6944 = vmatprep.mubr.f32.mxu0 0.0
    %6945 = vmatmul.mubr.f32.gmra.mrb[0].mxu0 %v6857
    %v6946 = vpop.f32.mrb[0].mxu0
    %v6947 = vadd.f32 0.0, %v6946
    %v6948 = vpop.f32.mrb[0].mxu0
    %6949 = vmatprep.mubr.f32.mxu0 0.0
    %6950 = vmatmul.mubr.f32.gmra.mrb[0].mxu0 %v6858
    %v6951 = vpop.f32.mrb[0].mxu0
    %v6952 = vadd.f32 0.0, %v6951
    %v6953 = vpop.f32.mrb[0].mxu0
    %6954 = vmatprep.mubr.f32.mxu0 0.0
    %6955 = vmatmul.mubr.f32.gmra.mrb[0].mxu0 %v6859
    %v6956 = vpop.f32.mrb[0].mxu0
    %v6957 = vpop.f32.mrb[0].mxu0
    %6958 = vmatprep.mubr.f32.mxu0 0.0
    %6959 = vmatmul.mubr.f32.gmra.mrb[0].mxu0 %v6860
    %v6960 = vpop.f32.mrb[0].mxu0
    %v6961 = vadd.f32 0.0, %v6960
    %v6962 = vpop.f32.mrb[0].mxu0
    %6963 = vmatprep.mubr.f32.mxu0 0.0
    %6964 = vmatmul.mubr.f32.gmra.mrb[0].mxu0 %v6861
    %v6965 = vpop.f32.mrb[0].mxu0
    %v6966 = vadd.f32 0.0, %v6965
    %v6967 = vpop.f32.mrb[0].mxu0
    %6968 = vmatprep.mubr.f32.mxu0 0.0
    %6969 = vmatmul.mubr.f32.gmra.mrb[0].mxu0 %v6862
    %v6970 = vpop.f32.mrb[0].mxu0
    %v6971 = vpop.f32.mrb[0].mxu0
    %6972 = vdwg.mxu0
    %v6973 = vadd.f32 %v6571, %v6947
    %v6974 = vadd.f32 %v6572, %v6952
    %v6975 = vadd.f32 %v6574, %v6961
    %v6976 = vadd.f32 %v6575, %v6966
    %s6977 = scalar_lea.vmem %s17, 2
    %v6978 = vld [vmem:[%s6977] sm:$0x1]
    %v6980 = vlaneseq
    %v6981 = vshrl.u32 %v6980, 7
    %v6982 = vsub.s32 0, %v6981
    %v6983 = vrot.slane %v6978, %v6982
    %v6985 = vadd.f32 %v6973, %v6983
    %v6986 = vadd.f32 %v6974, %v6983
    %v6987 = vadd.f32 %v6975, %v6983
    %v6988 = vadd.f32 %v6976, %v6983
    %6989 = vst.msk [vmem:[#allocation3] sm:$0xff] %vm205, %v6985
    %6990 = vst.msk [vmem:[#allocation3 + $0x8] sm:$0xff] %vm205, %v6986
    %6991 = vst.msk [vmem:[#allocation3 + $0x10] sm:$0xff] %vm205, %v6987
    %6992 = vst.msk [vmem:[#allocation3 + $0x18] sm:$0xff] %vm205, %v6988
    // Predicated region
    $region74: #{mae_forward.1} parent=1 // pred_check
      _
    $region75: #{mae_forward.1} parent=1 // pred_check_branch
      %6994 = sbr.rel (0) target = $region77
    $region76: #{mae_forward.1} parent=1 // pred_region
      %s6996 = ssub.s32 512, 512
      %6997 = vsyncadd [#allocation4], %s6996
      %s6998 = sshll.u32 [#allocation3], 4
      %s6999 = int_to_ptr.vmem [resolvable:$true] %s6998
      %7004 = dma.vmem_to_hbm [thread:$0]  %s6999, 512, %s18, [#allocation4], 128, 128, 8
    $region77: #{mae_forward.1} parent=1 // pred_fallthru
      _
    // Predicated region
    $region78: #{mae_forward.1} parent=1 // pred_check
      _
    $region79: #{mae_forward.1} parent=1 // pred_check_branch
      %7006 = sbr.rel (0) target = $region81
    $region80: #{mae_forward.1} parent=1 // pred_region
      %7007 = dma.done [#allocation4], 512
    $region81: #{mae_forward.1} parent=1 // pred_fallthru
      _
    %7008 = vsyncpa [#allocation4], 1

</llo_original>
